<compile_context>
chip_gen: v5e
topology: v5e:2x2
jax: 0.10.0
libtpu: 0.0.40
codegen_flags: <defaults>
</compile_context>

<pallas_src>
import itertools

import jax
import jax.numpy as jnp
from jax.experimental import pallas as pl
from jax.experimental.pallas import tpu as pltpu


# ----------------------------------------------------------------------------
# Glue math (plain JAX)
# ----------------------------------------------------------------------------
def fourier_position_encoding(x, sigma_scale, m_num_freqs):
    # x: (M, 3) relative coords in [0, 1]; returns (M, 3 * 2 * m_num_freqs)
    # TODO(synk): exact pitn.nn.inr.fourier_position_encoding formula is not in
    # the provided source; a standard geometric-frequency sin/cos encoding
    # (freq_j = sigma ** (j/m)) with matching output width is used instead.
    j = jnp.arange(m_num_freqs, dtype=x.dtype) / m_num_freqs
    freqs = jnp.asarray(sigma_scale, x.dtype) ** j                 # (m,)
    ang = 2.0 * jnp.pi * x[..., None] * freqs                      # (M, 3, m)
    enc = jnp.concatenate([jnp.sin(ang), jnp.cos(ang)], axis=-1)   # (M, 3, 2m)
    return enc.reshape(x.shape[0], -1)


def _round_up(x, mult):
    return ((x + mult - 1) // mult) * mult


def _pick_tile(mp, tm_max=1024):
    """Largest row tile (multiple of 128, <= tm_max) dividing mp, preferring a
    grid of >= 2 steps so both v7x TensorCores get work."""
    k = mp // 128
    jmax = max(1, tm_max // 128)
    best = 1
    for j in range(1, min(jmax, k) + 1):
        if k % j == 0 and (k // j >= 2 or k == j):
            best = j
    return best * 128


# ----------------------------------------------------------------------------
# Pallas kernel: corner-batched MLP + trilinear weighted accumulation.
# One grid step = one row tile, all 8 corners handled in batched matmuls.
# ----------------------------------------------------------------------------
def _make_decoder_kernel(n_linears, n_corners):
    corner_offsets = list(itertools.product((0.0, 1.0), (0.0, 1.0), (0.0, 1.0)))

    def kernel(*refs):
        (x_ref, sb_ref, cb_ref, qsub_ref, cph_ref, sph_ref,
         w1a_ref, w1e_ref, b1_ref) = refs[:9]
        wb = refs[9:9 + 2 * (n_linears - 1)]
        o_ref = refs[9 + 2 * (n_linears - 1)]

        f32 = jnp.float32
        bf16 = jnp.bfloat16
        tm = qsub_ref.shape[0]

        # ---- corner-batched raw features: (8, tm, F) -> (8*tm, F) ---------
        x = x_ref[...]                                       # bf16
        xf = x.reshape(n_corners * tm, x.shape[-1])

        # ---- per-corner Fourier features via the angle-sum identity -------
        # enc_c = sin(A + P_c) = sin(A)*cos(P_c) + cos(A)*sin(P_c); VPU only.
        sb = sb_ref[...].astype(f32)                         # (tm, E)
        cb = cb_ref[...].astype(f32)                         # (tm, E)
        cph = cph_ref[...]                                   # (8, E) f32
        sph = sph_ref[...]                                   # (8, E) f32
        enc = sb[None, :, :] * cph[:, None, :] + cb[None, :, :] * sph[:, None, :]
        encf = enc.reshape(n_corners * tm, enc.shape[-1]).astype(bf16)

        # ---- layer 1 (weights split raw/encoding), SiLU in f32 ------------
        h = (jnp.dot(xf, w1a_ref[...], preferred_element_type=f32)
             + jnp.dot(encf, w1e_ref[...], preferred_element_type=f32)
             + b1_ref[...])
        h = h * jax.nn.sigmoid(h)

        # ---- internal layers (all but last), bf16 MXU / f32 SiLU ----------
        for li in range(n_linears - 2):
            h = (jnp.dot(h.astype(bf16), wb[2 * li][...],
                         preferred_element_type=f32) + wb[2 * li + 1][...])
            h = h * jax.nn.sigmoid(h)

        # ---- trilinear corner weights + reduction over corners (VPU) ------
        q_sub = qsub_ref[...]                                # (tm, 3) f32
        hc = h.reshape(n_corners, tm, h.shape[-1])
        hw = jnp.zeros((tm, hc.shape[-1]), f32)
        sw = jnp.zeros((tm, 1), f32)
        for ci, (oi, oj, ok) in enumerate(corner_offsets):
            w_c = (jnp.abs((1.0 - oi) - q_sub[:, 0:1])
                   * jnp.abs((1.0 - oj) - q_sub[:, 1:2])
                   * jnp.abs((1.0 - ok) - q_sub[:, 2:3]))    # (tm, 1)
            hw = hw + w_c * hc[ci]
            sw = sw + w_c

        # ---- final Linear applied once (linearity over the corner sum) ----
        y = (jnp.dot(hw.astype(bf16), wb[-2][...], preferred_element_type=f32)
             + sw * wb[-1][...])
        o_ref[...] = y.astype(o_ref.dtype)

    return kernel


def decoder_mlp_accumulate(x_stack, sin_base, cos_base, q_sub, cos_ph, sin_ph,
                           params, out_features, tm_max=1024):
    """x_stack: (8, mp, F_raw) bf16, sin/cos_base: (mp, E), q_sub: (mp, 3) f32,
    cos_ph/sin_ph: (8, E) f32 -> (mp, out_features) f32."""
    n_corners, mp, f_raw = x_stack.shape
    n_enc = cos_ph.shape[1]
    n_linears = len(params)
    assert n_linears >= 2
    assert params[0][0].shape[0] == f_raw + n_enc

    tm = _pick_tile(mp, tm_max)

    # MLP parameters: bf16 weights (MXU-native), f32 biases. Layer-1 weights
    # are split into the raw-feature part and the encoding part.
    w1, b1 = params[0]
    flat = [w1[:f_raw].astype(jnp.bfloat16),
            w1[f_raw:].astype(jnp.bfloat16),
            b1.reshape(1, -1).astype(jnp.float32)]
    for w, b in params[1:]:
        flat.append(w.astype(jnp.bfloat16))
        flat.append(b.reshape(1, -1).astype(jnp.float32))

    in_specs = [
        pl.BlockSpec((n_corners, tm, f_raw), lambda i: (0, i, 0)),
        pl.BlockSpec((tm, n_enc), lambda i: (i, 0)),
        pl.BlockSpec((tm, n_enc), lambda i: (i, 0)),
        pl.BlockSpec((tm, 3), lambda i: (i, 0)),
        pl.BlockSpec((n_corners, n_enc), lambda i: (0, 0)),
        pl.BlockSpec((n_corners, n_enc), lambda i: (0, 0)),
    ]
    in_specs += [pl.BlockSpec(p.shape, lambda i: (0, 0)) for p in flat]

    out = pl.pallas_call(
        _make_decoder_kernel(n_linears, n_corners),
        out_shape=jax.ShapeDtypeStruct((mp, out_features), jnp.float32),
        grid_spec=pltpu.PrefetchScalarGridSpec(
            num_scalar_prefetch=0,
            grid=(mp // tm,),
            in_specs=in_specs,
            out_specs=pl.BlockSpec((tm, out_features), lambda i: (i, 0)),
        ),
        compiler_params=pltpu.CompilerParams(
            dimension_semantics=("parallel",),
            vmem_limit_bytes=32 * 1024 * 1024),
    )(x_stack, sin_base, cos_base,
      q_sub.astype(jnp.float32), cos_ph.astype(jnp.float32),
      sin_ph.astype(jnp.float32), *flat)
    return out


# ----------------------------------------------------------------------------
# Shared query preprocessing (world -> context voxel coords, corner bottoms)
# ----------------------------------------------------------------------------
def _prepare_query(grid_spatial_shape, query_real_coords, query_coords_mask,
                   affine_context_vox2real):
    B = query_real_coords.shape[0]
    q_world = query_real_coords.reshape(B, -1, 3)
    N = q_world.shape[1]
    q_mask = query_coords_mask.reshape(B, -1, 1).astype(bool)

    dummy = q_world[:, N // 2][:, None, :]
    q_world = jnp.where(q_mask, q_world, dummy)

    ones = jnp.ones((B, N, 1), q_world.dtype)
    q_homog = jnp.swapaxes(jnp.concatenate([q_world, ones], axis=-1), 1, 2)  # (B,4,N)
    # TODO(synk): reference solves in float64 then rounds; TPU default is f32.
    q_ctx_vox = jnp.linalg.solve(affine_context_vox2real, q_homog)
    q_ctx_vox = jnp.round(q_ctx_vox, 6)
    q_ctx_vox = jnp.swapaxes(q_ctx_vox[:, :3, :], 1, 2)                      # (B,N,3)

    gshape = jnp.asarray(grid_spatial_shape, jnp.int32).reshape(1, 1, 3)
    clamped = jnp.clip(q_ctx_vox, 0.0, gshape.astype(q_ctx_vox.dtype))
    tol = 1e-5
    q_ctx_vox = jnp.where(
        (q_ctx_vox != clamped) & (jnp.abs(q_ctx_vox - clamped) < tol),
        clamped, q_ctx_vox)

    # TODO(synk): clamp keeps the +1 corner gather in range; the torch
    # reference does not clamp the top face (it would index out of bounds).
    q_bottom = jnp.floor(q_ctx_vox).astype(jnp.int32)
    q_bottom = jnp.clip(q_bottom, 0, gshape - 2)
    q_sub = q_ctx_vox - q_bottom.astype(q_ctx_vox.dtype)
    return q_world, q_mask, q_bottom, q_sub


# ----------------------------------------------------------------------------
# SimplifiedDecoder.forward equivalent
# ----------------------------------------------------------------------------
def simplified_decoder_forward(params, cfg, context_v, context_real_coords,
                               query_real_coords, query_coords_mask,
                               affine_context_vox2real, context_spacing,
                               query_spacing):
    del context_spacing, query_spacing  # unused by the reference forward
    B, C = context_v.shape[:2]
    q_orig_shape = query_real_coords.shape
    out_features = cfg["out_features"]
    m_freqs = cfg["m_encode_num_freqs"]
    sigma = cfg["sigma_encode_scale"]

    q_world, q_mask, q_bottom, q_sub = _prepare_query(
        context_v.shape[2:], query_real_coords, query_coords_mask,
        affine_context_vox2real)
    N = q_world.shape[1]
    M = B * N
    maskf = q_mask.astype(jnp.float32)

    # Pad the SMALL per-row arrays up to a multiple of 128 rows before the
    # 8x-replicated corner stack is built (so the big stack is written once).
    mp = _round_up(M, 128)
    pad = mp - M

    def _padrows(a):
        if pad == 0:
            return a
        widths = ((0, pad),) + ((0, 0),) * (a.ndim - 1)
        return jnp.pad(a, widths)

    q_world_f = _padrows(q_world.reshape(M, 3))
    q_sub_f = _padrows(q_sub.reshape(M, 3))
    q_bot_f = _padrows(q_bottom.reshape(M, 3))
    mask_f = _padrows(maskf.reshape(M, 1))
    bidx_f = _padrows(jnp.repeat(jnp.arange(B, dtype=jnp.int32), N))

    # TODO(synk): corner gather is still assembled in plain JAX (8x-replicated
    # HBM stack); fusing it into the kernel via scalar-prefetched indices +
    # manual DMA is the remaining structural win.
    x_corners = []
    for oi, oj, ok in itertools.product((0, 1), (0, 1), (0, 1)):
        idx = q_bot_f + jnp.asarray([oi, oj, ok], jnp.int32)                 # (mp,3)
        ctx_v_g = context_v[bidx_f, :, idx[:, 0], idx[:, 1], idx[:, 2]]      # (mp,C)
        ctx_c_g = context_real_coords[bidx_f, idx[:, 0], idx[:, 1], idx[:, 2], :]
        x_c = jnp.concatenate([ctx_v_g, ctx_c_g, q_world_f], axis=-1) * mask_f
        x_corners.append(x_c.astype(jnp.bfloat16))
    x_stack = jnp.stack(x_corners, axis=0)                                   # (8,mp,C+6)

    # Fourier encoding, factored so the per-corner part is corner-constant:
    #   ang_c[k] = 2*pi*f_k*(q_sub[d_k] - off_c[d_k] + 1)/2 + p_k
    #            = A[k] + P_c[k],  A = pi*f_k*q_sub[d_k]
    # The wrapper stores sin(A), cos(A) once per row; the kernel rebuilds each
    # corner's encoding as sin(A)cos(P_c) + cos(A)sin(P_c) (VPU only).
    n_enc = 3 * 2 * m_freqs
    freqs = jnp.asarray(sigma, jnp.float32) ** (
        jnp.arange(m_freqs, dtype=jnp.float32) / m_freqs)                    # (m,)
    f_k = jnp.tile(jnp.concatenate([freqs, freqs]), 3)                       # (n_enc,)
    p_k = jnp.tile(jnp.concatenate(
        [jnp.zeros((m_freqs,), jnp.float32),
         jnp.full((m_freqs,), jnp.pi / 2, jnp.float32)]), 3)                 # (n_enc,)
    d_k = jnp.repeat(jnp.arange(3), 2 * m_freqs)                             # (n_enc,)
    amat = jax.nn.one_hot(d_k, 3, dtype=jnp.float32).T * (jnp.pi * f_k)      # (3,n_enc)
    ang = q_sub_f @ amat                                                     # (mp,n_enc)
    sin_base = (jnp.sin(ang) * mask_f).astype(jnp.bfloat16)
    cos_base = (jnp.cos(ang) * mask_f).astype(jnp.bfloat16)

    offs = jnp.asarray(list(itertools.product((0.0, 1.0), (0.0, 1.0), (0.0, 1.0))),
                       jnp.float32)                                          # (8,3)
    phase = jnp.pi * f_k[None, :] * (1.0 - offs[:, d_k]) + p_k[None, :]      # (8,n_enc)
    cos_ph = jnp.cos(phase)
    sin_ph = jnp.sin(phase)

    y = decoder_mlp_accumulate(x_stack, sin_base, cos_base, q_sub_f,
                               cos_ph, sin_ph, params, out_features)          # (mp,out)
    y = y[:M].reshape(B, N, out_features)
    y = jnp.swapaxes(y, 1, 2)                                                 # (B,out,N)
    return y.reshape((B, out_features) + q_orig_shape[1:-1])


# ----------------------------------------------------------------------------
# Pure-JAX f32 reference (mirrors the torch module structure per corner)
# ----------------------------------------------------------------------------
def reference_forward(params, cfg, context_v, context_real_coords,
                      query_real_coords, query_coords_mask,
                      affine_context_vox2real):
    B = context_v.shape[0]
    q_orig_shape = query_real_coords.shape
    out_features = cfg["out_features"]
    q_world, q_mask, q_bottom, q_sub = _prepare_query(
        context_v.shape[2:], query_real_coords, query_coords_mask,
        affine_context_vox2real)
    N = q_world.shape[1]
    maskf = q_mask.astype(jnp.float32)
    b_idx = jnp.arange(B)[:, None]
    y_acc = jnp.zeros((B, N, out_features), jnp.float32)
    for oi, oj, ok in itertools.product((0, 1), (0, 1), (0, 1)):
        off_i = jnp.asarray([oi, oj, ok], jnp.int32)
        off_f = jnp.asarray([oi, oj, ok], jnp.float32)
        idx = q_bottom + off_i
        ctx_v_g = context_v[b_idx, :, idx[..., 0], idx[..., 1], idx[..., 2]]
        ctx_c_g = context_real_coords[b_idx, idx[..., 0], idx[..., 1], idx[..., 2], :]
        rel = (q_sub - off_f + 1.0) / 2.0
        enc = fourier_position_encoding(
            rel.reshape(B * N, 3), cfg["sigma_encode_scale"],
            cfg["m_encode_num_freqs"]).reshape(B, N, -1)
        feats = jnp.concatenate(
            [ctx_v_g * maskf,
             jnp.concatenate([ctx_c_g, q_world, enc], axis=-1) * maskf], axis=-1)
        h = feats.reshape(B * N, -1)
        for li, (w, b) in enumerate(params):
            h = h @ w + b
            if li != len(params) - 1:
                h = h * jax.nn.sigmoid(h)
        h = h.reshape(B, N, -1)
        w_tri = jnp.prod(jnp.abs((1.0 - off_f) - q_sub), axis=-1, keepdims=True)
        y_acc = y_acc + w_tri * h
    y = jnp.swapaxes(y_acc, 1, 2)
    return y.reshape((B, out_features) + q_orig_shape[1:-1])


# ----------------------------------------------------------------------------
# Deterministic parameter init (same shapes as the torch Linear stack)
# ----------------------------------------------------------------------------
def init_params(key, input_features, internal_features, out_features,
                n_internal_layers):
    dims = ([input_features] + [internal_features] * (n_internal_layers + 1)
            + [out_features])
    params = []
    for li in range(len(dims) - 1):
        key, k1, k2 = jax.random.split(key, 3)
        bound = 1.0 / float(dims[li]) ** 0.5
        wgt = jax.random.uniform(k1, (dims[li], dims[li + 1]), jnp.float32,
                                 -bound, bound)   # stored as (in, out)
        bias = jax.random.uniform(k2, (dims[li + 1],), jnp.float32, -bound, bound)
        params.append((wgt, bias))
    return params


if __name__ == "__main__":
    key = jax.random.PRNGKey(0)
    B = 2
    C = 32                    # context_v_features
    m_freqs = 4               # m_encode_num_freqs
    internal = 32             # n_internal_features
    n_internal_layers = 1
    out_features = 8
    sigma = 3.0               # sigma_encode_scale
    GX = GY = GZ = 6          # context grid
    QX = QY = QZ = 4          # query grid

    n_encode = 3 * 2 * m_freqs
    input_features = C + 2 * 3 + n_encode

    cfg = dict(m_encode_num_freqs=m_freqs, sigma_encode_scale=sigma,
               out_features=out_features)

    k1, k2, k3, k4 = jax.random.split(key, 4)
    params = init_params(k1, input_features, internal, out_features,
                         n_internal_layers)

    context_v = jax.random.normal(k2, (B, C, GX, GY, GZ), jnp.float32)

    # identity vox->world affine, so world coords == voxel coords
    affine = jnp.tile(jnp.eye(4, dtype=jnp.float32)[None], (B, 1, 1))

    ii, jj, kk = jnp.meshgrid(jnp.arange(GX), jnp.arange(GY), jnp.arange(GZ),
                              indexing="ij")
    grid_coords = jnp.stack([ii, jj, kk], axis=-1).astype(jnp.float32)
    context_real_coords = jnp.tile(grid_coords[None], (B, 1, 1, 1, 1))

    query_real_coords = jax.random.uniform(
        k3, (B, QX, QY, QZ, 3), jnp.float32, minval=0.25, maxval=GX - 1.25)
    query_coords_mask = (jax.random.uniform(k4, (B, QX, QY, QZ, 1)) > 0.1)

    context_spacing = jnp.ones((B, 3), jnp.float32)
    query_spacing = jnp.ones((B, 3), jnp.float32)

    y = simplified_decoder_forward(
        params, cfg, context_v, context_real_coords, query_real_coords,
        query_coords_mask, affine, context_spacing, query_spacing)
    y = jax.block_until_ready(y)
    assert y.shape == (B, out_features, QX, QY, QZ)
    assert bool(jnp.all(jnp.isfinite(y)))

    # Loose-tolerance check against the pure-JAX f32 reference (kernel runs
    # the feature stack / matmuls in bf16 by design).
    y_ref = jax.block_until_ready(reference_forward(
        params, cfg, context_v, context_real_coords, query_real_coords,
        query_coords_mask, affine))
    max_err = float(jnp.max(jnp.abs(y - y_ref)))
    assert max_err < 0.15, f"kernel vs reference mismatch: max abs err {max_err}"

    print("KERNEL_OK")
</pallas_src>

<mosaic_0001>
module attributes {stable_mosaic.version = 11 : i64} {
  func.func @kernel(%arg0: i32, %arg1: memref<8x128x38xbf16, #tpu.memory_space<vmem>>, %arg2: memref<128x24xbf16, #tpu.memory_space<vmem>>, %arg3: memref<128x24xbf16, #tpu.memory_space<vmem>>, %arg4: memref<128x3xf32, #tpu.memory_space<vmem>>, %arg5: memref<8x24xf32, #tpu.memory_space<vmem>>, %arg6: memref<8x24xf32, #tpu.memory_space<vmem>>, %arg7: memref<38x32xbf16, #tpu.memory_space<vmem>>, %arg8: memref<24x32xbf16, #tpu.memory_space<vmem>>, %arg9: memref<1x32xf32, #tpu.memory_space<vmem>>, %arg10: memref<32x32xbf16, #tpu.memory_space<vmem>>, %arg11: memref<1x32xf32, #tpu.memory_space<vmem>>, %arg12: memref<32x8xbf16, #tpu.memory_space<vmem>>, %arg13: memref<1x8xf32, #tpu.memory_space<vmem>>, %arg14: memref<128x8xf32, #tpu.memory_space<vmem>>) attributes {dimension_semantics = [#tpu.dimension_semantics<parallel>], iteration_bounds = array<i64: 1>, scalar_prefetch = 0 : i64, scratch_operands = 0 : i64, tpu.core_type = #tpu.core_type<tc>, window_params = [{transform_indices = @transform_0, window_bounds = array<i64: 8, 128, 38>}, {transform_indices = @transform_1, window_bounds = array<i64: 128, 24>}, {transform_indices = @transform_2, window_bounds = array<i64: 128, 24>}, {transform_indices = @transform_3, window_bounds = array<i64: 128, 3>}, {pipeline_mode = #tpu.pipeline_mode<synchronous>, transform_indices = @transform_4, window_bounds = array<i64: 8, 24>}, {pipeline_mode = #tpu.pipeline_mode<synchronous>, transform_indices = @transform_5, window_bounds = array<i64: 8, 24>}, {pipeline_mode = #tpu.pipeline_mode<synchronous>, transform_indices = @transform_6, window_bounds = array<i64: 38, 32>}, {pipeline_mode = #tpu.pipeline_mode<synchronous>, transform_indices = @transform_7, window_bounds = array<i64: 24, 32>}, {pipeline_mode = #tpu.pipeline_mode<synchronous>, transform_indices = @transform_8, window_bounds = array<i64: 1, 32>}, {pipeline_mode = #tpu.pipeline_mode<synchronous>, transform_indices = @transform_9, window_bounds = array<i64: 32, 32>}, {pipeline_mode = #tpu.pipeline_mode<synchronous>, transform_indices = @transform_10, window_bounds = array<i64: 1, 32>}, {pipeline_mode = #tpu.pipeline_mode<synchronous>, transform_indices = @transform_11, window_bounds = array<i64: 32, 8>}, {pipeline_mode = #tpu.pipeline_mode<synchronous>, transform_indices = @transform_12, window_bounds = array<i64: 1, 8>}, {transform_indices = @transform_13, window_bounds = array<i64: 128, 8>}]} {
    %c0 = arith.constant 0 : index
    %c0_0 = arith.constant 0 : index
    %c0_1 = arith.constant 0 : index
    %0 = vector.load %arg1[%c0, %c0_0, %c0_1] : memref<8x128x38xbf16, #tpu.memory_space<vmem>>, vector<8x128x38xbf16>
    %1 = vector.shape_cast %0 : vector<8x128x38xbf16> to vector<1024x38xbf16>
    %c0_2 = arith.constant 0 : index
    %c0_3 = arith.constant 0 : index
    %2 = vector.load %arg2[%c0_2, %c0_3] : memref<128x24xbf16, #tpu.memory_space<vmem>>, vector<128x24xbf16>
    %3 = arith.extf %2 : vector<128x24xbf16> to vector<128x24xf32>
    %c0_4 = arith.constant 0 : index
    %c0_5 = arith.constant 0 : index
    %4 = vector.load %arg3[%c0_4, %c0_5] : memref<128x24xbf16, #tpu.memory_space<vmem>>, vector<128x24xbf16>
    %5 = arith.extf %4 : vector<128x24xbf16> to vector<128x24xf32>
    %c0_6 = arith.constant 0 : index
    %c0_7 = arith.constant 0 : index
    %6 = vector.load %arg5[%c0_6, %c0_7] : memref<8x24xf32, #tpu.memory_space<vmem>>, vector<8x24xf32>
    %c0_8 = arith.constant 0 : index
    %c0_9 = arith.constant 0 : index
    %7 = vector.load %arg6[%c0_8, %c0_9] : memref<8x24xf32, #tpu.memory_space<vmem>>, vector<8x24xf32>
    %8 = vector.shape_cast %3 : vector<128x24xf32> to vector<1x128x24xf32>
    %9 = vector.shape_cast %6 : vector<8x24xf32> to vector<8x1x24xf32>
    %10 = vector.broadcast %8 : vector<1x128x24xf32> to vector<8x128x24xf32>
    %11 = vector.broadcast %9 : vector<8x1x24xf32> to vector<8x128x24xf32>
    %12 = arith.mulf %10, %11 : vector<8x128x24xf32>
    %13 = vector.shape_cast %5 : vector<128x24xf32> to vector<1x128x24xf32>
    %14 = vector.shape_cast %7 : vector<8x24xf32> to vector<8x1x24xf32>
    %15 = vector.broadcast %13 : vector<1x128x24xf32> to vector<8x128x24xf32>
    %16 = vector.broadcast %14 : vector<8x1x24xf32> to vector<8x128x24xf32>
    %17 = arith.mulf %15, %16 : vector<8x128x24xf32>
    %18 = arith.addf %12, %17 : vector<8x128x24xf32>
    %19 = vector.shape_cast %18 : vector<8x128x24xf32> to vector<1024x24xf32>
    %20 = arith.truncf %19 : vector<1024x24xf32> to vector<1024x24xbf16>
    %c0_10 = arith.constant 0 : index
    %c0_11 = arith.constant 0 : index
    %21 = vector.load %arg7[%c0_10, %c0_11] : memref<38x32xbf16, #tpu.memory_space<vmem>>, vector<38x32xbf16>
    %cst = arith.constant dense<0.000000e+00> : vector<1024x32xf32>
    %22 = tpu.matmul %1, %21, %cst {dimension_numbers = #tpu.dot_dimension_numbers<[1], [0], [0], [1], [0, 0, 1, 1], [], []>} : vector<1024x38xbf16>, vector<38x32xbf16>, vector<1024x32xf32> -> vector<1024x32xf32>
    %c0_12 = arith.constant 0 : index
    %c0_13 = arith.constant 0 : index
    %23 = vector.load %arg8[%c0_12, %c0_13] : memref<24x32xbf16, #tpu.memory_space<vmem>>, vector<24x32xbf16>
    %cst_14 = arith.constant dense<0.000000e+00> : vector<1024x32xf32>
    %24 = tpu.matmul %20, %23, %cst_14 {dimension_numbers = #tpu.dot_dimension_numbers<[1], [0], [0], [1], [0, 0, 1, 1], [], []>} : vector<1024x24xbf16>, vector<24x32xbf16>, vector<1024x32xf32> -> vector<1024x32xf32>
    %25 = arith.addf %22, %24 : vector<1024x32xf32>
    %c0_15 = arith.constant 0 : index
    %c0_16 = arith.constant 0 : index
    %26 = vector.load %arg9[%c0_15, %c0_16] : memref<1x32xf32, #tpu.memory_space<vmem>>, vector<1x32xf32>
    %27 = vector.broadcast %26 : vector<1x32xf32> to vector<1024x32xf32>
    %28 = arith.addf %25, %27 : vector<1024x32xf32>
    %29 = arith.negf %28 : vector<1024x32xf32>
    %30 = math.exp %29 : vector<1024x32xf32>
    %cst_17 = arith.constant 1.000000e+00 : f32
    %31 = vector.broadcast %cst_17 : f32 to vector<1024x32xf32>
    %32 = arith.addf %31, %30 : vector<1024x32xf32>
    %33 = arith.divf %31, %32 : vector<1024x32xf32>
    %34 = arith.mulf %28, %33 : vector<1024x32xf32>
    %35 = arith.truncf %34 : vector<1024x32xf32> to vector<1024x32xbf16>
    %c0_18 = arith.constant 0 : index
    %c0_19 = arith.constant 0 : index
    %36 = vector.load %arg10[%c0_18, %c0_19] : memref<32x32xbf16, #tpu.memory_space<vmem>>, vector<32x32xbf16>
    %cst_20 = arith.constant dense<0.000000e+00> : vector<1024x32xf32>
    %37 = tpu.matmul %35, %36, %cst_20 {dimension_numbers = #tpu.dot_dimension_numbers<[1], [0], [0], [1], [0, 0, 1, 1], [], []>} : vector<1024x32xbf16>, vector<32x32xbf16>, vector<1024x32xf32> -> vector<1024x32xf32>
    %c0_21 = arith.constant 0 : index
    %c0_22 = arith.constant 0 : index
    %38 = vector.load %arg11[%c0_21, %c0_22] : memref<1x32xf32, #tpu.memory_space<vmem>>, vector<1x32xf32>
    %39 = vector.broadcast %38 : vector<1x32xf32> to vector<1024x32xf32>
    %40 = arith.addf %37, %39 : vector<1024x32xf32>
    %41 = arith.negf %40 : vector<1024x32xf32>
    %42 = math.exp %41 : vector<1024x32xf32>
    %cst_23 = arith.constant 1.000000e+00 : f32
    %43 = vector.broadcast %cst_23 : f32 to vector<1024x32xf32>
    %44 = arith.addf %43, %42 : vector<1024x32xf32>
    %45 = arith.divf %43, %44 : vector<1024x32xf32>
    %46 = arith.mulf %40, %45 : vector<1024x32xf32>
    %c0_24 = arith.constant 0 : index
    %c0_25 = arith.constant 0 : index
    %47 = vector.load %arg4[%c0_24, %c0_25] : memref<128x3xf32, #tpu.memory_space<vmem>>, vector<128x3xf32>
    %48 = vector.shape_cast %46 : vector<1024x32xf32> to vector<8x128x32xf32>
    %cst_26 = arith.constant 0.000000e+00 : f32
    %49 = vector.broadcast %cst_26 : f32 to vector<128x32xf32>
    %cst_27 = arith.constant 0.000000e+00 : f32
    %50 = vector.broadcast %cst_27 : f32 to vector<128x1xf32>
    %51 = vector.extract_strided_slice %47 {offsets = [0, 0], sizes = [128, 1], strides = [1, 1]} : vector<128x3xf32> to vector<128x1xf32>
    %cst_28 = arith.constant 1.000000e+00 : f32
    %52 = vector.broadcast %cst_28 : f32 to vector<128x1xf32>
    %53 = arith.subf %52, %51 : vector<128x1xf32>
    %54 = math.absf %53 : vector<128x1xf32>
    %55 = vector.extract_strided_slice %47 {offsets = [0, 1], sizes = [128, 1], strides = [1, 1]} : vector<128x3xf32> to vector<128x1xf32>
    %cst_29 = arith.constant 1.000000e+00 : f32
    %56 = vector.broadcast %cst_29 : f32 to vector<128x1xf32>
    %57 = arith.subf %56, %55 : vector<128x1xf32>
    %58 = math.absf %57 : vector<128x1xf32>
    %59 = arith.mulf %54, %58 : vector<128x1xf32>
    %60 = vector.extract_strided_slice %47 {offsets = [0, 2], sizes = [128, 1], strides = [1, 1]} : vector<128x3xf32> to vector<128x1xf32>
    %cst_30 = arith.constant 1.000000e+00 : f32
    %61 = vector.broadcast %cst_30 : f32 to vector<128x1xf32>
    %62 = arith.subf %61, %60 : vector<128x1xf32>
    %63 = math.absf %62 : vector<128x1xf32>
    %64 = arith.mulf %59, %63 : vector<128x1xf32>
    %65 = vector.extract_strided_slice %48 {offsets = [0, 0, 0], sizes = [1, 128, 32], strides = [1, 1, 1]} : vector<8x128x32xf32> to vector<1x128x32xf32>
    %66 = vector.shape_cast %65 : vector<1x128x32xf32> to vector<128x32xf32>
    %67 = vector.broadcast %64 : vector<128x1xf32> to vector<128x32xf32>
    %68 = arith.mulf %67, %66 : vector<128x32xf32>
    %69 = arith.addf %49, %68 : vector<128x32xf32>
    %70 = arith.addf %50, %64 : vector<128x1xf32>
    %71 = vector.extract_strided_slice %47 {offsets = [0, 0], sizes = [128, 1], strides = [1, 1]} : vector<128x3xf32> to vector<128x1xf32>
    %cst_31 = arith.constant 1.000000e+00 : f32
    %72 = vector.broadcast %cst_31 : f32 to vector<128x1xf32>
    %73 = arith.subf %72, %71 : vector<128x1xf32>
    %74 = math.absf %73 : vector<128x1xf32>
    %75 = vector.extract_strided_slice %47 {offsets = [0, 1], sizes = [128, 1], strides = [1, 1]} : vector<128x3xf32> to vector<128x1xf32>
    %cst_32 = arith.constant 1.000000e+00 : f32
    %76 = vector.broadcast %cst_32 : f32 to vector<128x1xf32>
    %77 = arith.subf %76, %75 : vector<128x1xf32>
    %78 = math.absf %77 : vector<128x1xf32>
    %79 = arith.mulf %74, %78 : vector<128x1xf32>
    %80 = vector.extract_strided_slice %47 {offsets = [0, 2], sizes = [128, 1], strides = [1, 1]} : vector<128x3xf32> to vector<128x1xf32>
    %cst_33 = arith.constant 0.000000e+00 : f32
    %81 = vector.broadcast %cst_33 : f32 to vector<128x1xf32>
    %82 = arith.subf %81, %80 : vector<128x1xf32>
    %83 = math.absf %82 : vector<128x1xf32>
    %84 = arith.mulf %79, %83 : vector<128x1xf32>
    %85 = vector.extract_strided_slice %48 {offsets = [1, 0, 0], sizes = [1, 128, 32], strides = [1, 1, 1]} : vector<8x128x32xf32> to vector<1x128x32xf32>
    %86 = vector.shape_cast %85 : vector<1x128x32xf32> to vector<128x32xf32>
    %87 = vector.broadcast %84 : vector<128x1xf32> to vector<128x32xf32>
    %88 = arith.mulf %87, %86 : vector<128x32xf32>
    %89 = arith.addf %69, %88 : vector<128x32xf32>
    %90 = arith.addf %70, %84 : vector<128x1xf32>
    %91 = vector.extract_strided_slice %47 {offsets = [0, 0], sizes = [128, 1], strides = [1, 1]} : vector<128x3xf32> to vector<128x1xf32>
    %cst_34 = arith.constant 1.000000e+00 : f32
    %92 = vector.broadcast %cst_34 : f32 to vector<128x1xf32>
    %93 = arith.subf %92, %91 : vector<128x1xf32>
    %94 = math.absf %93 : vector<128x1xf32>
    %95 = vector.extract_strided_slice %47 {offsets = [0, 1], sizes = [128, 1], strides = [1, 1]} : vector<128x3xf32> to vector<128x1xf32>
    %cst_35 = arith.constant 0.000000e+00 : f32
    %96 = vector.broadcast %cst_35 : f32 to vector<128x1xf32>
    %97 = arith.subf %96, %95 : vector<128x1xf32>
    %98 = math.absf %97 : vector<128x1xf32>
    %99 = arith.mulf %94, %98 : vector<128x1xf32>
    %100 = vector.extract_strided_slice %47 {offsets = [0, 2], sizes = [128, 1], strides = [1, 1]} : vector<128x3xf32> to vector<128x1xf32>
    %cst_36 = arith.constant 1.000000e+00 : f32
    %101 = vector.broadcast %cst_36 : f32 to vector<128x1xf32>
    %102 = arith.subf %101, %100 : vector<128x1xf32>
    %103 = math.absf %102 : vector<128x1xf32>
    %104 = arith.mulf %99, %103 : vector<128x1xf32>
    %105 = vector.extract_strided_slice %48 {offsets = [2, 0, 0], sizes = [1, 128, 32], strides = [1, 1, 1]} : vector<8x128x32xf32> to vector<1x128x32xf32>
    %106 = vector.shape_cast %105 : vector<1x128x32xf32> to vector<128x32xf32>
    %107 = vector.broadcast %104 : vector<128x1xf32> to vector<128x32xf32>
    %108 = arith.mulf %107, %106 : vector<128x32xf32>
    %109 = arith.addf %89, %108 : vector<128x32xf32>
    %110 = arith.addf %90, %104 : vector<128x1xf32>
    %111 = vector.extract_strided_slice %47 {offsets = [0, 0], sizes = [128, 1], strides = [1, 1]} : vector<128x3xf32> to vector<128x1xf32>
    %cst_37 = arith.constant 1.000000e+00 : f32
    %112 = vector.broadcast %cst_37 : f32 to vector<128x1xf32>
    %113 = arith.subf %112, %111 : vector<128x1xf32>
    %114 = math.absf %113 : vector<128x1xf32>
    %115 = vector.extract_strided_slice %47 {offsets = [0, 1], sizes = [128, 1], strides = [1, 1]} : vector<128x3xf32> to vector<128x1xf32>
    %cst_38 = arith.constant 0.000000e+00 : f32
    %116 = vector.broadcast %cst_38 : f32 to vector<128x1xf32>
    %117 = arith.subf %116, %115 : vector<128x1xf32>
    %118 = math.absf %117 : vector<128x1xf32>
    %119 = arith.mulf %114, %118 : vector<128x1xf32>
    %120 = vector.extract_strided_slice %47 {offsets = [0, 2], sizes = [128, 1], strides = [1, 1]} : vector<128x3xf32> to vector<128x1xf32>
    %cst_39 = arith.constant 0.000000e+00 : f32
    %121 = vector.broadcast %cst_39 : f32 to vector<128x1xf32>
    %122 = arith.subf %121, %120 : vector<128x1xf32>
    %123 = math.absf %122 : vector<128x1xf32>
    %124 = arith.mulf %119, %123 : vector<128x1xf32>
    %125 = vector.extract_strided_slice %48 {offsets = [3, 0, 0], sizes = [1, 128, 32], strides = [1, 1, 1]} : vector<8x128x32xf32> to vector<1x128x32xf32>
    %126 = vector.shape_cast %125 : vector<1x128x32xf32> to vector<128x32xf32>
    %127 = vector.broadcast %124 : vector<128x1xf32> to vector<128x32xf32>
    %128 = arith.mulf %127, %126 : vector<128x32xf32>
    %129 = arith.addf %109, %128 : vector<128x32xf32>
    %130 = arith.addf %110, %124 : vector<128x1xf32>
    %131 = vector.extract_strided_slice %47 {offsets = [0, 0], sizes = [128, 1], strides = [1, 1]} : vector<128x3xf32> to vector<128x1xf32>
    %cst_40 = arith.constant 0.000000e+00 : f32
    %132 = vector.broadcast %cst_40 : f32 to vector<128x1xf32>
    %133 = arith.subf %132, %131 : vector<128x1xf32>
    %134 = math.absf %133 : vector<128x1xf32>
    %135 = vector.extract_strided_slice %47 {offsets = [0, 1], sizes = [128, 1], strides = [1, 1]} : vector<128x3xf32> to vector<128x1xf32>
    %cst_41 = arith.constant 1.000000e+00 : f32
    %136 = vector.broadcast %cst_41 : f32 to vector<128x1xf32>
    %137 = arith.subf %136, %135 : vector<128x1xf32>
    %138 = math.absf %137 : vector<128x1xf32>
    %139 = arith.mulf %134, %138 : vector<128x1xf32>
    %140 = vector.extract_strided_slice %47 {offsets = [0, 2], sizes = [128, 1], strides = [1, 1]} : vector<128x3xf32> to vector<128x1xf32>
    %cst_42 = arith.constant 1.000000e+00 : f32
    %141 = vector.broadcast %cst_42 : f32 to vector<128x1xf32>
    %142 = arith.subf %141, %140 : vector<128x1xf32>
    %143 = math.absf %142 : vector<128x1xf32>
    %144 = arith.mulf %139, %143 : vector<128x1xf32>
    %145 = vector.extract_strided_slice %48 {offsets = [4, 0, 0], sizes = [1, 128, 32], strides = [1, 1, 1]} : vector<8x128x32xf32> to vector<1x128x32xf32>
    %146 = vector.shape_cast %145 : vector<1x128x32xf32> to vector<128x32xf32>
    %147 = vector.broadcast %144 : vector<128x1xf32> to vector<128x32xf32>
    %148 = arith.mulf %147, %146 : vector<128x32xf32>
    %149 = arith.addf %129, %148 : vector<128x32xf32>
    %150 = arith.addf %130, %144 : vector<128x1xf32>
    %151 = vector.extract_strided_slice %47 {offsets = [0, 0], sizes = [128, 1], strides = [1, 1]} : vector<128x3xf32> to vector<128x1xf32>
    %cst_43 = arith.constant 0.000000e+00 : f32
    %152 = vector.broadcast %cst_43 : f32 to vector<128x1xf32>
    %153 = arith.subf %152, %151 : vector<128x1xf32>
    %154 = math.absf %153 : vector<128x1xf32>
    %155 = vector.extract_strided_slice %47 {offsets = [0, 1], sizes = [128, 1], strides = [1, 1]} : vector<128x3xf32> to vector<128x1xf32>
    %cst_44 = arith.constant 1.000000e+00 : f32
    %156 = vector.broadcast %cst_44 : f32 to vector<128x1xf32>
    %157 = arith.subf %156, %155 : vector<128x1xf32>
    %158 = math.absf %157 : vector<128x1xf32>
    %159 = arith.mulf %154, %158 : vector<128x1xf32>
    %160 = vector.extract_strided_slice %47 {offsets = [0, 2], sizes = [128, 1], strides = [1, 1]} : vector<128x3xf32> to vector<128x1xf32>
    %cst_45 = arith.constant 0.000000e+00 : f32
    %161 = vector.broadcast %cst_45 : f32 to vector<128x1xf32>
    %162 = arith.subf %161, %160 : vector<128x1xf32>
    %163 = math.absf %162 : vector<128x1xf32>
    %164 = arith.mulf %159, %163 : vector<128x1xf32>
    %165 = vector.extract_strided_slice %48 {offsets = [5, 0, 0], sizes = [1, 128, 32], strides = [1, 1, 1]} : vector<8x128x32xf32> to vector<1x128x32xf32>
    %166 = vector.shape_cast %165 : vector<1x128x32xf32> to vector<128x32xf32>
    %167 = vector.broadcast %164 : vector<128x1xf32> to vector<128x32xf32>
    %168 = arith.mulf %167, %166 : vector<128x32xf32>
    %169 = arith.addf %149, %168 : vector<128x32xf32>
    %170 = arith.addf %150, %164 : vector<128x1xf32>
    %171 = vector.extract_strided_slice %47 {offsets = [0, 0], sizes = [128, 1], strides = [1, 1]} : vector<128x3xf32> to vector<128x1xf32>
    %cst_46 = arith.constant 0.000000e+00 : f32
    %172 = vector.broadcast %cst_46 : f32 to vector<128x1xf32>
    %173 = arith.subf %172, %171 : vector<128x1xf32>
    %174 = math.absf %173 : vector<128x1xf32>
    %175 = vector.extract_strided_slice %47 {offsets = [0, 1], sizes = [128, 1], strides = [1, 1]} : vector<128x3xf32> to vector<128x1xf32>
    %cst_47 = arith.constant 0.000000e+00 : f32
    %176 = vector.broadcast %cst_47 : f32 to vector<128x1xf32>
    %177 = arith.subf %176, %175 : vector<128x1xf32>
    %178 = math.absf %177 : vector<128x1xf32>
    %179 = arith.mulf %174, %178 : vector<128x1xf32>
    %180 = vector.extract_strided_slice %47 {offsets = [0, 2], sizes = [128, 1], strides = [1, 1]} : vector<128x3xf32> to vector<128x1xf32>
    %cst_48 = arith.constant 1.000000e+00 : f32
    %181 = vector.broadcast %cst_48 : f32 to vector<128x1xf32>
    %182 = arith.subf %181, %180 : vector<128x1xf32>
    %183 = math.absf %182 : vector<128x1xf32>
    %184 = arith.mulf %179, %183 : vector<128x1xf32>
    %185 = vector.extract_strided_slice %48 {offsets = [6, 0, 0], sizes = [1, 128, 32], strides = [1, 1, 1]} : vector<8x128x32xf32> to vector<1x128x32xf32>
    %186 = vector.shape_cast %185 : vector<1x128x32xf32> to vector<128x32xf32>
    %187 = vector.broadcast %184 : vector<128x1xf32> to vector<128x32xf32>
    %188 = arith.mulf %187, %186 : vector<128x32xf32>
    %189 = arith.addf %169, %188 : vector<128x32xf32>
    %190 = arith.addf %170, %184 : vector<128x1xf32>
    %191 = vector.extract_strided_slice %47 {offsets = [0, 0], sizes = [128, 1], strides = [1, 1]} : vector<128x3xf32> to vector<128x1xf32>
    %cst_49 = arith.constant 0.000000e+00 : f32
    %192 = vector.broadcast %cst_49 : f32 to vector<128x1xf32>
    %193 = arith.subf %192, %191 : vector<128x1xf32>
    %194 = math.absf %193 : vector<128x1xf32>
    %195 = vector.extract_strided_slice %47 {offsets = [0, 1], sizes = [128, 1], strides = [1, 1]} : vector<128x3xf32> to vector<128x1xf32>
    %cst_50 = arith.constant 0.000000e+00 : f32
    %196 = vector.broadcast %cst_50 : f32 to vector<128x1xf32>
    %197 = arith.subf %196, %195 : vector<128x1xf32>
    %198 = math.absf %197 : vector<128x1xf32>
    %199 = arith.mulf %194, %198 : vector<128x1xf32>
    %200 = vector.extract_strided_slice %47 {offsets = [0, 2], sizes = [128, 1], strides = [1, 1]} : vector<128x3xf32> to vector<128x1xf32>
    %cst_51 = arith.constant 0.000000e+00 : f32
    %201 = vector.broadcast %cst_51 : f32 to vector<128x1xf32>
    %202 = arith.subf %201, %200 : vector<128x1xf32>
    %203 = math.absf %202 : vector<128x1xf32>
    %204 = arith.mulf %199, %203 : vector<128x1xf32>
    %205 = vector.extract_strided_slice %48 {offsets = [7, 0, 0], sizes = [1, 128, 32], strides = [1, 1, 1]} : vector<8x128x32xf32> to vector<1x128x32xf32>
    %206 = vector.shape_cast %205 : vector<1x128x32xf32> to vector<128x32xf32>
    %207 = vector.broadcast %204 : vector<128x1xf32> to vector<128x32xf32>
    %208 = arith.mulf %207, %206 : vector<128x32xf32>
    %209 = arith.addf %189, %208 : vector<128x32xf32>
    %210 = arith.addf %190, %204 : vector<128x1xf32>
    %211 = arith.truncf %209 : vector<128x32xf32> to vector<128x32xbf16>
    %c0_52 = arith.constant 0 : index
    %c0_53 = arith.constant 0 : index
    %212 = vector.load %arg12[%c0_52, %c0_53] : memref<32x8xbf16, #tpu.memory_space<vmem>>, vector<32x8xbf16>
    %cst_54 = arith.constant dense<0.000000e+00> : vector<128x8xf32>
    %213 = tpu.matmul %211, %212, %cst_54 {dimension_numbers = #tpu.dot_dimension_numbers<[1], [0], [0], [1], [0, 0, 1, 1], [], []>} : vector<128x32xbf16>, vector<32x8xbf16>, vector<128x8xf32> -> vector<128x8xf32>
    %c0_55 = arith.constant 0 : index
    %c0_56 = arith.constant 0 : index
    %214 = vector.load %arg13[%c0_55, %c0_56] : memref<1x8xf32, #tpu.memory_space<vmem>>, vector<1x8xf32>
    %215 = vector.broadcast %210 : vector<128x1xf32> to vector<128x8xf32>
    %216 = vector.broadcast %214 : vector<1x8xf32> to vector<128x8xf32>
    %217 = arith.mulf %215, %216 : vector<128x8xf32>
    %218 = arith.addf %213, %217 : vector<128x8xf32>
    %c0_57 = arith.constant 0 : index
    %c0_58 = arith.constant 0 : index
    %219 = vector.load %arg14[%c0_57, %c0_58] : memref<128x8xf32, #tpu.memory_space<vmem>>, vector<128x8xf32>
    tpu.vector_store %arg14[%c0_57, %c0_58], %218 {strides = array<i32>} : memref<128x8xf32, #tpu.memory_space<vmem>>, vector<128x8xf32>,
    return
  }
  func.func @transform_0(%arg0: i32) -> (i32, i32, i32) {
    %c0_i32 = arith.constant 0 : i32
    %c0_i32_0 = arith.constant 0 : i32
    %c0_i32_1 = arith.constant 0 : i32
    return %c0_i32, %arg0, %c0_i32_0 : i32, i32, i32
  }
  func.func @transform_1(%arg0: i32) -> (i32, i32) {
    %c0_i32 = arith.constant 0 : i32
    %c0_i32_0 = arith.constant 0 : i32
    return %arg0, %c0_i32 : i32, i32
  }
  func.func @transform_2(%arg0: i32) -> (i32, i32) {
    %c0_i32 = arith.constant 0 : i32
    %c0_i32_0 = arith.constant 0 : i32
    return %arg0, %c0_i32 : i32, i32
  }
  func.func @transform_3(%arg0: i32) -> (i32, i32) {
    %c0_i32 = arith.constant 0 : i32
    %c0_i32_0 = arith.constant 0 : i32
    return %arg0, %c0_i32 : i32, i32
  }
  func.func @transform_4(%arg0: i32) -> (i32, i32) {
    %c0_i32 = arith.constant 0 : i32
    %c0_i32_0 = arith.constant 0 : i32
    %c0_i32_1 = arith.constant 0 : i32
    return %c0_i32, %c0_i32_0 : i32, i32
  }
  func.func @transform_5(%arg0: i32) -> (i32, i32) {
    %c0_i32 = arith.constant 0 : i32
    %c0_i32_0 = arith.constant 0 : i32
    %c0_i32_1 = arith.constant 0 : i32
    return %c0_i32, %c0_i32_0 : i32, i32
  }
  func.func @transform_6(%arg0: i32) -> (i32, i32) {
    %c0_i32 = arith.constant 0 : i32
    %c0_i32_0 = arith.constant 0 : i32
    %c0_i32_1 = arith.constant 0 : i32
    return %c0_i32, %c0_i32_0 : i32, i32
  }
  func.func @transform_7(%arg0: i32) -> (i32, i32) {
    %c0_i32 = arith.constant 0 : i32
    %c0_i32_0 = arith.constant 0 : i32
    %c0_i32_1 = arith.constant 0 : i32
    return %c0_i32, %c0_i32_0 : i32, i32
  }
  func.func @transform_8(%arg0: i32) -> (i32, i32) {
    %c0_i32 = arith.constant 0 : i32
    %c0_i32_0 = arith.constant 0 : i32
    %c0_i32_1 = arith.constant 0 : i32
    return %c0_i32, %c0_i32_0 : i32, i32
  }
  func.func @transform_9(%arg0: i32) -> (i32, i32) {
    %c0_i32 = arith.constant 0 : i32
    %c0_i32_0 = arith.constant 0 : i32
    %c0_i32_1 = arith.constant 0 : i32
    return %c0_i32, %c0_i32_0 : i32, i32
  }
  func.func @transform_10(%arg0: i32) -> (i32, i32) {
    %c0_i32 = arith.constant 0 : i32
    %c0_i32_0 = arith.constant 0 : i32
    %c0_i32_1 = arith.constant 0 : i32
    return %c0_i32, %c0_i32_0 : i32, i32
  }
  func.func @transform_11(%arg0: i32) -> (i32, i32) {
    %c0_i32 = arith.constant 0 : i32
    %c0_i32_0 = arith.constant 0 : i32
    %c0_i32_1 = arith.constant 0 : i32
    return %c0_i32, %c0_i32_0 : i32, i32
  }
  func.func @transform_12(%arg0: i32) -> (i32, i32) {
    %c0_i32 = arith.constant 0 : i32
    %c0_i32_0 = arith.constant 0 : i32
    %c0_i32_1 = arith.constant 0 : i32
    return %c0_i32, %c0_i32_0 : i32, i32
  }
  func.func @transform_13(%arg0: i32) -> (i32, i32) {
    %c0_i32 = arith.constant 0 : i32
    %c0_i32_0 = arith.constant 0 : i32
    return %arg0, %c0_i32 : i32, i32
  }
}

</mosaic_0001>

<llo_original>
// kernel: tpu_custom_call.1
$region0: #{tpu_custom_call.1}
  #allocation0 [shape = 'u32[]', space=smem, size = 0x4, offset = 0x4, fixed_abs, tag = 'smem constant byte address 0x4 - core index']
  #allocation1 [shape = 'u32[72,128]{1,0:T(1,128)}', space=vmem, size = 0x9000, scoped, tag = 'internal scratch']
  %s0 = inlined_call_operand.vmem [shape: bf16[8,128,38], index: 0, kind: input, shape index: {}]
  %s1 = inlined_call_operand.vmem [shape: bf16[128,24], index: 1, kind: input, shape index: {}]
  %s2 = inlined_call_operand.vmem [shape: bf16[128,24], index: 2, kind: input, shape index: {}]
  %s3 = inlined_call_operand.vmem [shape: f32[128,3], index: 3, kind: input, shape index: {}]
  %s4 = inlined_call_operand.vmem [shape: f32[8,24], index: 4, kind: input, shape index: {}]
  %s5 = inlined_call_operand.vmem [shape: f32[8,24], index: 5, kind: input, shape index: {}]
  %s6 = inlined_call_operand.vmem [shape: bf16[38,32], index: 6, kind: input, shape index: {}]
  %s7 = inlined_call_operand.vmem [shape: bf16[24,32], index: 7, kind: input, shape index: {}]
  %s8 = inlined_call_operand.vmem [shape: f32[1,32], index: 8, kind: input, shape index: {}]
  %s9 = inlined_call_operand.vmem [shape: bf16[32,32], index: 9, kind: input, shape index: {}]
  %s10 = inlined_call_operand.vmem [shape: f32[1,32], index: 10, kind: input, shape index: {}]
  %s11 = inlined_call_operand.vmem [shape: bf16[32,8], index: 11, kind: input, shape index: {}]
  %s12 = inlined_call_operand.vmem [shape: f32[1,8], index: 12, kind: input, shape index: {}]
  %s13 = inlined_call_operand.vmem [shape: f32[128,8], index: 13, kind: output, shape index: {}]
  %s14 = sld [smem:[#allocation0]]
  $region62: #{tpu_custom_call.1} parent=0
    _
  %s16 = ssub.s32 1, %s14
  %s17 = scalar_select 0, %s16, %s14
  // Predicated region
  $region2: #{tpu_custom_call.1} parent=0 // pred_check
    _
  $region3: #{tpu_custom_call.1} parent=0 // pred_check_branch
    %19 = sbr.rel (0) target = $region5
  $region4: #{tpu_custom_call.1} parent=0 // pred_region
    _
  $region5: #{tpu_custom_call.1} parent=0 // pred_fallthru
    _
  // Predicated region
  $region6: #{tpu_custom_call.1} parent=0 // pred_check
    _
  $region7: #{tpu_custom_call.1} parent=0 // pred_check_branch
    %21 = sbr.rel (0) target = $region9
  $region8: #{tpu_custom_call.1} parent=0 // pred_region
    _
  $region9: #{tpu_custom_call.1} parent=0 // pred_fallthru
    _
  // Predicated region
  $region10: #{tpu_custom_call.1} parent=0 // pred_check
    _
  $region11: #{tpu_custom_call.1} parent=0 // pred_check_branch
    %23 = sbr.rel (0) target = $region13
  $region12: #{tpu_custom_call.1} parent=0 // pred_region
    _
  $region13: #{tpu_custom_call.1} parent=0 // pred_fallthru
    _
  // Predicated region
  $region14: #{tpu_custom_call.1} parent=0 // pred_check
    _
  $region15: #{tpu_custom_call.1} parent=0 // pred_check_branch
    %25 = sbr.rel (0) target = $region17
  $region16: #{tpu_custom_call.1} parent=0 // pred_region
    _
  $region17: #{tpu_custom_call.1} parent=0 // pred_fallthru
    _
  // Predicated region
  $region18: #{tpu_custom_call.1} parent=0 // pred_check
    _
  $region19: #{tpu_custom_call.1} parent=0 // pred_check_branch
    %27 = sbr.rel (0) target = $region21
  $region20: #{tpu_custom_call.1} parent=0 // pred_region
    _
  $region21: #{tpu_custom_call.1} parent=0 // pred_fallthru
    _
  // Predicated region
  $region22: #{tpu_custom_call.1} parent=0 // pred_check
    _
  $region23: #{tpu_custom_call.1} parent=0 // pred_check_branch
    %29 = sbr.rel (0) target = $region25
  $region24: #{tpu_custom_call.1} parent=0 // pred_region
    _
  $region25: #{tpu_custom_call.1} parent=0 // pred_fallthru
    _
  // Predicated region
  $region26: #{tpu_custom_call.1} parent=0 // pred_check
    _
  $region27: #{tpu_custom_call.1} parent=0 // pred_check_branch
    %31 = sbr.rel (0) target = $region29
  $region28: #{tpu_custom_call.1} parent=0 // pred_region
    _
  $region29: #{tpu_custom_call.1} parent=0 // pred_fallthru
    _
  // Predicated region
  $region30: #{tpu_custom_call.1} parent=0 // pred_check
    _
  $region31: #{tpu_custom_call.1} parent=0 // pred_check_branch
    %33 = sbr.rel (0) target = $region33
  $region32: #{tpu_custom_call.1} parent=0 // pred_region
    _
  $region33: #{tpu_custom_call.1} parent=0 // pred_fallthru
    _
  // Predicated region
  $region34: #{tpu_custom_call.1} parent=0 // pred_check
    _
  $region35: #{tpu_custom_call.1} parent=0 // pred_check_branch
    %35 = sbr.rel (0) target = $region37
  $region36: #{tpu_custom_call.1} parent=0 // pred_region
    _
  $region37: #{tpu_custom_call.1} parent=0 // pred_fallthru
    _
  // Predicated region
  $region38: #{tpu_custom_call.1} parent=0 // pred_check
    _
  $region39: #{tpu_custom_call.1} parent=0 // pred_check_branch
    %37 = sbr.rel (0) target = $region41
  $region40: #{tpu_custom_call.1} parent=0 // pred_region
    _
  $region41: #{tpu_custom_call.1} parent=0 // pred_fallthru
    _
  // Predicated region
  $region42: #{tpu_custom_call.1} parent=0 // pred_check
    _
  $region43: #{tpu_custom_call.1} parent=0 // pred_check_branch
    %39 = sbr.rel (0) target = $region45
  $region44: #{tpu_custom_call.1} parent=0 // pred_region
    _
  $region45: #{tpu_custom_call.1} parent=0 // pred_fallthru
    _
  // Predicated region
  $region46: #{tpu_custom_call.1} parent=0 // pred_check
    _
  $region47: #{tpu_custom_call.1} parent=0 // pred_check_branch
    %41 = sbr.rel (0) target = $region49
  $region48: #{tpu_custom_call.1} parent=0 // pred_region
    _
  $region49: #{tpu_custom_call.1} parent=0 // pred_fallthru
    _
  // Predicated region
  $region50: #{tpu_custom_call.1} parent=0 // pred_check
    _
  $region51: #{tpu_custom_call.1} parent=0 // pred_check_branch
    %43 = sbr.rel (0) target = $region53
  $region52: #{tpu_custom_call.1} parent=0 // pred_region
    _
  $region53: #{tpu_custom_call.1} parent=0 // pred_fallthru
    _
  %v45 = vld [vmem:[%s0] sm:$0xf]
  %v46 = vld [vmem:[%s0 + $0x4] sm:$0xf]
  %v47 = vld [vmem:[%s0 + $0x8] sm:$0xf]
  %v48 = vld [vmem:[%s0 + $0xc] sm:$0xf]
  %v49 = vld [vmem:[%s0 + $0x10] sm:$0xf]
  %v50 = vld [vmem:[%s0 + $0x14] sm:$0xf]
  %v51 = vld [vmem:[%s0 + $0x18] sm:$0xf]
  %v52 = vld [vmem:[%s0 + $0x1c] sm:$0xf]
  %v53 = vld [vmem:[%s0 + $0x20] sm:$0xf]
  %v54 = vld [vmem:[%s0 + $0x24] sm:$0xf]
  %v55 = vld [vmem:[%s0 + $0x28] sm:$0xf]
  %v56 = vld [vmem:[%s0 + $0x2c] sm:$0xf]
  %v57 = vld [vmem:[%s0 + $0x30] sm:$0xf]
  %v58 = vld [vmem:[%s0 + $0x34] sm:$0xf]
  %v59 = vld [vmem:[%s0 + $0x38] sm:$0xf]
  %v60 = vld [vmem:[%s0 + $0x3c] sm:$0xf]
  %v61 = vld [vmem:[%s0 + $0x40] sm:$0xf]
  %v62 = vld [vmem:[%s0 + $0x44] sm:$0xf]
  %v63 = vld [vmem:[%s0 + $0x48] sm:$0xf]
  %v64 = vld [vmem:[%s0 + $0x4c] sm:$0xf]
  %v65 = vld [vmem:[%s0 + $0x50] sm:$0xf]
  %v66 = vld [vmem:[%s0 + $0x54] sm:$0xf]
  %v67 = vld [vmem:[%s0 + $0x58] sm:$0xf]
  %v68 = vld [vmem:[%s0 + $0x5c] sm:$0xf]
  %v69 = vld [vmem:[%s0 + $0x60] sm:$0xf]
  %v70 = vld [vmem:[%s0 + $0x64] sm:$0xf]
  %v71 = vld [vmem:[%s0 + $0x68] sm:$0xf]
  %v72 = vld [vmem:[%s0 + $0x6c] sm:$0xf]
  %v73 = vld [vmem:[%s0 + $0x70] sm:$0xf]
  %v74 = vld [vmem:[%s0 + $0x74] sm:$0xf]
  %v75 = vld [vmem:[%s0 + $0x78] sm:$0xf]
  %v76 = vld [vmem:[%s0 + $0x7c] sm:$0xf]
  %v77 = vld [vmem:[%s0 + $0x80] sm:$0xf]
  %v78 = vld [vmem:[%s0 + $0x84] sm:$0xf]
  %v79 = vld [vmem:[%s0 + $0x88] sm:$0xf]
  %v80 = vld [vmem:[%s0 + $0x8c] sm:$0xf]
  %v81 = vld [vmem:[%s0 + $0x90] sm:$0xf]
  %v82 = vld [vmem:[%s0 + $0x94] sm:$0xf]
  %v83 = vld [vmem:[%s0 + $0x98] sm:$0xf]
  %v84 = vld [vmem:[%s0 + $0x9c] sm:$0xf]
  %v85 = vld [vmem:[%s0 + $0xa0] sm:$0xf]
  %v86 = vld [vmem:[%s0 + $0xa4] sm:$0xf]
  %v87 = vld [vmem:[%s0 + $0xa8] sm:$0xf]
  %v88 = vld [vmem:[%s0 + $0xac] sm:$0xf]
  %v89 = vld [vmem:[%s0 + $0xb0] sm:$0xf]
  %v90 = vld [vmem:[%s0 + $0xb4] sm:$0xf]
  %v91 = vld [vmem:[%s0 + $0xb8] sm:$0xf]
  %v92 = vld [vmem:[%s0 + $0xbc] sm:$0xf]
  %v93 = vld [vmem:[%s0 + $0xc0] sm:$0xf]
  %v94 = vld [vmem:[%s0 + $0xc4] sm:$0xf]
  %v95 = vld [vmem:[%s0 + $0xc8] sm:$0xf]
  %v96 = vld [vmem:[%s0 + $0xcc] sm:$0xf]
  %v97 = vld [vmem:[%s0 + $0xd0] sm:$0xf]
  %v98 = vld [vmem:[%s0 + $0xd4] sm:$0xf]
  %v99 = vld [vmem:[%s0 + $0xd8] sm:$0xf]
  %v100 = vld [vmem:[%s0 + $0xdc] sm:$0xf]
  %v101 = vld [vmem:[%s0 + $0xe0] sm:$0xf]
  %v102 = vld [vmem:[%s0 + $0xe4] sm:$0xf]
  %v103 = vld [vmem:[%s0 + $0xe8] sm:$0xf]
  %v104 = vld [vmem:[%s0 + $0xec] sm:$0xf]
  %v105 = vld [vmem:[%s0 + $0xf0] sm:$0xf]
  %v106 = vld [vmem:[%s0 + $0xf4] sm:$0xf]
  %v107 = vld [vmem:[%s0 + $0xf8] sm:$0xf]
  %v108 = vld [vmem:[%s0 + $0xfc] sm:$0xf]
  %v109 = vld [vmem:[%s0 + $0x100] sm:$0xf]
  %v110 = vld [vmem:[%s0 + $0x104] sm:$0xf]
  %v111 = vld [vmem:[%s0 + $0x108] sm:$0xf]
  %v112 = vld [vmem:[%s0 + $0x10c] sm:$0xf]
  %v113 = vld [vmem:[%s0 + $0x110] sm:$0xf]
  %v114 = vld [vmem:[%s0 + $0x114] sm:$0xf]
  %v115 = vld [vmem:[%s0 + $0x118] sm:$0xf]
  %v116 = vld [vmem:[%s0 + $0x11c] sm:$0xf]
  %v117 = vld [vmem:[%s0 + $0x120] sm:$0xf]
  %v118 = vld [vmem:[%s0 + $0x124] sm:$0xf]
  %v119 = vld [vmem:[%s0 + $0x128] sm:$0xf]
  %v120 = vld [vmem:[%s0 + $0x12c] sm:$0xf]
  %v121 = vld [vmem:[%s0 + $0x130] sm:$0xf]
  %v122 = vld [vmem:[%s0 + $0x134] sm:$0xf]
  %v123 = vld [vmem:[%s0 + $0x138] sm:$0xf]
  %v124 = vld [vmem:[%s0 + $0x13c] sm:$0xf]
  %v125 = vld [vmem:[%s0 + $0x140] sm:$0xf]
  %v126 = vld [vmem:[%s0 + $0x144] sm:$0xf]
  %v127 = vld [vmem:[%s0 + $0x148] sm:$0xf]
  %v128 = vld [vmem:[%s0 + $0x14c] sm:$0xf]
  %v129 = vld [vmem:[%s0 + $0x150] sm:$0xf]
  %v130 = vld [vmem:[%s0 + $0x154] sm:$0xf]
  %v131 = vld [vmem:[%s0 + $0x158] sm:$0xf]
  %v132 = vld [vmem:[%s0 + $0x15c] sm:$0xf]
  %v133 = vld [vmem:[%s0 + $0x160] sm:$0xf]
  %v134 = vld [vmem:[%s0 + $0x164] sm:$0xf]
  %v135 = vld [vmem:[%s0 + $0x168] sm:$0xf]
  %v136 = vld [vmem:[%s0 + $0x16c] sm:$0xf]
  %v137 = vld [vmem:[%s0 + $0x170] sm:$0xf]
  %v138 = vld [vmem:[%s0 + $0x174] sm:$0xf]
  %v139 = vld [vmem:[%s0 + $0x178] sm:$0xf]
  %v140 = vld [vmem:[%s0 + $0x17c] sm:$0xf]
  %v141 = vld [vmem:[%s0 + $0x180] sm:$0xf]
  %v142 = vld [vmem:[%s0 + $0x184] sm:$0xf]
  %v143 = vld [vmem:[%s0 + $0x188] sm:$0xf]
  %v144 = vld [vmem:[%s0 + $0x18c] sm:$0xf]
  %v145 = vld [vmem:[%s0 + $0x190] sm:$0xf]
  %v146 = vld [vmem:[%s0 + $0x194] sm:$0xf]
  %v147 = vld [vmem:[%s0 + $0x198] sm:$0xf]
  %v148 = vld [vmem:[%s0 + $0x19c] sm:$0xf]
  %v149 = vld [vmem:[%s0 + $0x1a0] sm:$0xf]
  %v150 = vld [vmem:[%s0 + $0x1a4] sm:$0xf]
  %v151 = vld [vmem:[%s0 + $0x1a8] sm:$0xf]
  %v152 = vld [vmem:[%s0 + $0x1ac] sm:$0xf]
  %v153 = vld [vmem:[%s0 + $0x1b0] sm:$0xf]
  %v154 = vld [vmem:[%s0 + $0x1b4] sm:$0xf]
  %v155 = vld [vmem:[%s0 + $0x1b8] sm:$0xf]
  %v156 = vld [vmem:[%s0 + $0x1bc] sm:$0xf]
  %v157 = vld [vmem:[%s0 + $0x1c0] sm:$0xf]
  %v158 = vld [vmem:[%s0 + $0x1c4] sm:$0xf]
  %v159 = vld [vmem:[%s0 + $0x1c8] sm:$0xf]
  %v160 = vld [vmem:[%s0 + $0x1cc] sm:$0xf]
  %v161 = vld [vmem:[%s0 + $0x1d0] sm:$0xf]
  %v162 = vld [vmem:[%s0 + $0x1d4] sm:$0xf]
  %v163 = vld [vmem:[%s0 + $0x1d8] sm:$0xf]
  %v164 = vld [vmem:[%s0 + $0x1dc] sm:$0xf]
  %v165 = vld [vmem:[%s0 + $0x1e0] sm:$0xf]
  %v166 = vld [vmem:[%s0 + $0x1e4] sm:$0xf]
  %v167 = vld [vmem:[%s0 + $0x1e8] sm:$0xf]
  %v168 = vld [vmem:[%s0 + $0x1ec] sm:$0xf]
  %v169 = vld [vmem:[%s0 + $0x1f0] sm:$0xf]
  %v170 = vld [vmem:[%s0 + $0x1f4] sm:$0xf]
  %v171 = vld [vmem:[%s0 + $0x1f8] sm:$0xf]
  %v172 = vld [vmem:[%s0 + $0x1fc] sm:$0xf]
  %v173 = vld [vmem:[%s1] sm:$0xf]
  %v174 = vld [vmem:[%s1 + $0x4] sm:$0xf]
  %v175 = vld [vmem:[%s1 + $0x8] sm:$0xf]
  %v176 = vld [vmem:[%s1 + $0xc] sm:$0xf]
  %v177 = vld [vmem:[%s1 + $0x10] sm:$0xf]
  %v178 = vld [vmem:[%s1 + $0x14] sm:$0xf]
  %v179 = vld [vmem:[%s1 + $0x18] sm:$0xf]
  %v180 = vld [vmem:[%s1 + $0x1c] sm:$0xf]
  %v181 = vld [vmem:[%s1 + $0x20] sm:$0xf]
  %v182 = vld [vmem:[%s1 + $0x24] sm:$0xf]
  %v183 = vld [vmem:[%s1 + $0x28] sm:$0xf]
  %v184 = vld [vmem:[%s1 + $0x2c] sm:$0xf]
  %v185 = vld [vmem:[%s1 + $0x30] sm:$0xf]
  %v186 = vld [vmem:[%s1 + $0x34] sm:$0xf]
  %v187 = vld [vmem:[%s1 + $0x38] sm:$0xf]
  %v188 = vld [vmem:[%s1 + $0x3c] sm:$0xf]
  %v189 = vunpack.c.l.bf16 %v173
  %v190 = vunpack.c.l.bf16 %v174
  %v191 = vunpack.c.l.bf16 %v175
  %v192 = vunpack.c.l.bf16 %v176
  %v193 = vunpack.c.l.bf16 %v177
  %v194 = vunpack.c.l.bf16 %v178
  %v195 = vunpack.c.l.bf16 %v179
  %v196 = vunpack.c.l.bf16 %v180
  %v197 = vunpack.c.l.bf16 %v181
  %v198 = vunpack.c.l.bf16 %v182
  %v199 = vunpack.c.l.bf16 %v183
  %v200 = vunpack.c.l.bf16 %v184
  %v201 = vunpack.c.l.bf16 %v185
  %v202 = vunpack.c.l.bf16 %v186
  %v203 = vunpack.c.l.bf16 %v187
  %v204 = vunpack.c.l.bf16 %v188
  %v205 = vld [vmem:[%s2] sm:$0xf]
  %v206 = vld [vmem:[%s2 + $0x4] sm:$0xf]
  %v207 = vld [vmem:[%s2 + $0x8] sm:$0xf]
  %v208 = vld [vmem:[%s2 + $0xc] sm:$0xf]
  %v209 = vld [vmem:[%s2 + $0x10] sm:$0xf]
  %v210 = vld [vmem:[%s2 + $0x14] sm:$0xf]
  %v211 = vld [vmem:[%s2 + $0x18] sm:$0xf]
  %v212 = vld [vmem:[%s2 + $0x1c] sm:$0xf]
  %v213 = vld [vmem:[%s2 + $0x20] sm:$0xf]
  %v214 = vld [vmem:[%s2 + $0x24] sm:$0xf]
  %v215 = vld [vmem:[%s2 + $0x28] sm:$0xf]
  %v216 = vld [vmem:[%s2 + $0x2c] sm:$0xf]
  %v217 = vld [vmem:[%s2 + $0x30] sm:$0xf]
  %v218 = vld [vmem:[%s2 + $0x34] sm:$0xf]
  %v219 = vld [vmem:[%s2 + $0x38] sm:$0xf]
  %v220 = vld [vmem:[%s2 + $0x3c] sm:$0xf]
  %v221 = vunpack.c.l.bf16 %v205
  %v222 = vunpack.c.l.bf16 %v206
  %v223 = vunpack.c.l.bf16 %v207
  %v224 = vunpack.c.l.bf16 %v208
  %v225 = vunpack.c.l.bf16 %v209
  %v226 = vunpack.c.l.bf16 %v210
  %v227 = vunpack.c.l.bf16 %v211
  %v228 = vunpack.c.l.bf16 %v212
  %v229 = vunpack.c.l.bf16 %v213
  %v230 = vunpack.c.l.bf16 %v214
  %v231 = vunpack.c.l.bf16 %v215
  %v232 = vunpack.c.l.bf16 %v216
  %v233 = vunpack.c.l.bf16 %v217
  %v234 = vunpack.c.l.bf16 %v218
  %v235 = vunpack.c.l.bf16 %v219
  %v236 = vunpack.c.l.bf16 %v220
  %v237 = vld [vmem:[%s4] sm:$0xff]
  %v238 = vld [vmem:[%s5] sm:$0xff]
  %v240 = vrot.slane %v237, 1
  %v241 = vrot.slane %v237, 2
  %v242 = vrot.slane %v237, 3
  %v243 = vrot.slane %v237, 4
  %v244 = vrot.slane %v237, 5
  %v245 = vrot.slane %v237, 6
  %v246 = vrot.slane %v237, 7
  %v247 = vperm.slane %v237, 0
  %v248 = vperm.slane %v240, 0
  %v249 = vperm.slane %v241, 0
  %v250 = vperm.slane %v242, 0
  %v251 = vperm.slane %v243, 0
  %v252 = vperm.slane %v244, 0
  %v253 = vperm.slane %v245, 0
  %v254 = vperm.slane %v246, 0
  %v263 = vmul.f32 %v189, %v247
  %v264 = vmul.f32 %v190, %v247
  %v265 = vmul.f32 %v191, %v247
  %v266 = vmul.f32 %v192, %v247
  %v267 = vmul.f32 %v193, %v247
  %v268 = vmul.f32 %v194, %v247
  %v269 = vmul.f32 %v195, %v247
  %v270 = vmul.f32 %v196, %v247
  %v271 = vmul.f32 %v197, %v247
  %v272 = vmul.f32 %v198, %v247
  %v273 = vmul.f32 %v199, %v247
  %v274 = vmul.f32 %v200, %v247
  %v275 = vmul.f32 %v201, %v247
  %v276 = vmul.f32 %v202, %v247
  %v277 = vmul.f32 %v203, %v247
  %v278 = vmul.f32 %v204, %v247
  %v279 = vmul.f32 %v189, %v248
  %v280 = vmul.f32 %v190, %v248
  %v281 = vmul.f32 %v191, %v248
  %v282 = vmul.f32 %v192, %v248
  %v283 = vmul.f32 %v193, %v248
  %v284 = vmul.f32 %v194, %v248
  %v285 = vmul.f32 %v195, %v248
  %v286 = vmul.f32 %v196, %v248
  %v287 = vmul.f32 %v197, %v248
  %v288 = vmul.f32 %v198, %v248
  %v289 = vmul.f32 %v199, %v248
  %v290 = vmul.f32 %v200, %v248
  %v291 = vmul.f32 %v201, %v248
  %v292 = vmul.f32 %v202, %v248
  %v293 = vmul.f32 %v203, %v248
  %v294 = vmul.f32 %v204, %v248
  %v295 = vmul.f32 %v189, %v249
  %v296 = vmul.f32 %v190, %v249
  %v297 = vmul.f32 %v191, %v249
  %v298 = vmul.f32 %v192, %v249
  %v299 = vmul.f32 %v193, %v249
  %v300 = vmul.f32 %v194, %v249
  %v301 = vmul.f32 %v195, %v249
  %v302 = vmul.f32 %v196, %v249
  %v303 = vmul.f32 %v197, %v249
  %v304 = vmul.f32 %v198, %v249
  %v305 = vmul.f32 %v199, %v249
  %v306 = vmul.f32 %v200, %v249
  %v307 = vmul.f32 %v201, %v249
  %v308 = vmul.f32 %v202, %v249
  %v309 = vmul.f32 %v203, %v249
  %v310 = vmul.f32 %v204, %v249
  %v311 = vmul.f32 %v189, %v250
  %v312 = vmul.f32 %v190, %v250
  %v313 = vmul.f32 %v191, %v250
  %v314 = vmul.f32 %v192, %v250
  %v315 = vmul.f32 %v193, %v250
  %v316 = vmul.f32 %v194, %v250
  %v317 = vmul.f32 %v195, %v250
  %v318 = vmul.f32 %v196, %v250
  %v319 = vmul.f32 %v197, %v250
  %v320 = vmul.f32 %v198, %v250
  %v321 = vmul.f32 %v199, %v250
  %v322 = vmul.f32 %v200, %v250
  %v323 = vmul.f32 %v201, %v250
  %v324 = vmul.f32 %v202, %v250
  %v325 = vmul.f32 %v203, %v250
  %v326 = vmul.f32 %v204, %v250
  %v327 = vmul.f32 %v189, %v251
  %v328 = vmul.f32 %v190, %v251
  %v329 = vmul.f32 %v191, %v251
  %v330 = vmul.f32 %v192, %v251
  %v331 = vmul.f32 %v193, %v251
  %v332 = vmul.f32 %v194, %v251
  %v333 = vmul.f32 %v195, %v251
  %v334 = vmul.f32 %v196, %v251
  %v335 = vmul.f32 %v197, %v251
  %v336 = vmul.f32 %v198, %v251
  %v337 = vmul.f32 %v199, %v251
  %v338 = vmul.f32 %v200, %v251
  %v339 = vmul.f32 %v201, %v251
  %v340 = vmul.f32 %v202, %v251
  %v341 = vmul.f32 %v203, %v251
  %v342 = vmul.f32 %v204, %v251
  %v343 = vmul.f32 %v189, %v252
  %v344 = vmul.f32 %v190, %v252
  %v345 = vmul.f32 %v191, %v252
  %v346 = vmul.f32 %v192, %v252
  %v347 = vmul.f32 %v193, %v252
  %v348 = vmul.f32 %v194, %v252
  %v349 = vmul.f32 %v195, %v252
  %v350 = vmul.f32 %v196, %v252
  %v351 = vmul.f32 %v197, %v252
  %v352 = vmul.f32 %v198, %v252
  %v353 = vmul.f32 %v199, %v252
  %v354 = vmul.f32 %v200, %v252
  %v355 = vmul.f32 %v201, %v252
  %v356 = vmul.f32 %v202, %v252
  %v357 = vmul.f32 %v203, %v252
  %v358 = vmul.f32 %v204, %v252
  %v359 = vmul.f32 %v189, %v253
  %v360 = vmul.f32 %v190, %v253
  %v361 = vmul.f32 %v191, %v253
  %v362 = vmul.f32 %v192, %v253
  %v363 = vmul.f32 %v193, %v253
  %v364 = vmul.f32 %v194, %v253
  %v365 = vmul.f32 %v195, %v253
  %v366 = vmul.f32 %v196, %v253
  %v367 = vmul.f32 %v197, %v253
  %v368 = vmul.f32 %v198, %v253
  %v369 = vmul.f32 %v199, %v253
  %v370 = vmul.f32 %v200, %v253
  %v371 = vmul.f32 %v201, %v253
  %v372 = vmul.f32 %v202, %v253
  %v373 = vmul.f32 %v203, %v253
  %v374 = vmul.f32 %v204, %v253
  %v375 = vmul.f32 %v189, %v254
  %v376 = vmul.f32 %v190, %v254
  %v377 = vmul.f32 %v191, %v254
  %v378 = vmul.f32 %v192, %v254
  %v379 = vmul.f32 %v193, %v254
  %v380 = vmul.f32 %v194, %v254
  %v381 = vmul.f32 %v195, %v254
  %v382 = vmul.f32 %v196, %v254
  %v383 = vmul.f32 %v197, %v254
  %v384 = vmul.f32 %v198, %v254
  %v385 = vmul.f32 %v199, %v254
  %v386 = vmul.f32 %v200, %v254
  %v387 = vmul.f32 %v201, %v254
  %v388 = vmul.f32 %v202, %v254
  %v389 = vmul.f32 %v203, %v254
  %v390 = vmul.f32 %v204, %v254
  %v392 = vrot.slane %v238, 1
  %v393 = vrot.slane %v238, 2
  %v394 = vrot.slane %v238, 3
  %v395 = vrot.slane %v238, 4
  %v396 = vrot.slane %v238, 5
  %v397 = vrot.slane %v238, 6
  %v398 = vrot.slane %v238, 7
  %v399 = vperm.slane %v238, 0
  %v400 = vperm.slane %v392, 0
  %v401 = vperm.slane %v393, 0
  %v402 = vperm.slane %v394, 0
  %v403 = vperm.slane %v395, 0
  %v404 = vperm.slane %v396, 0
  %v405 = vperm.slane %v397, 0
  %v406 = vperm.slane %v398, 0
  %v415 = vmul.f32 %v221, %v399
  %v416 = vmul.f32 %v222, %v399
  %v417 = vmul.f32 %v223, %v399
  %v418 = vmul.f32 %v224, %v399
  %v419 = vmul.f32 %v225, %v399
  %v420 = vmul.f32 %v226, %v399
  %v421 = vmul.f32 %v227, %v399
  %v422 = vmul.f32 %v228, %v399
  %v423 = vmul.f32 %v229, %v399
  %v424 = vmul.f32 %v230, %v399
  %v425 = vmul.f32 %v231, %v399
  %v426 = vmul.f32 %v232, %v399
  %v427 = vmul.f32 %v233, %v399
  %v428 = vmul.f32 %v234, %v399
  %v429 = vmul.f32 %v235, %v399
  %v430 = vmul.f32 %v236, %v399
  %v431 = vmul.f32 %v221, %v400
  %v432 = vmul.f32 %v222, %v400
  %v433 = vmul.f32 %v223, %v400
  %v434 = vmul.f32 %v224, %v400
  %v435 = vmul.f32 %v225, %v400
  %v436 = vmul.f32 %v226, %v400
  %v437 = vmul.f32 %v227, %v400
  %v438 = vmul.f32 %v228, %v400
  %v439 = vmul.f32 %v229, %v400
  %v440 = vmul.f32 %v230, %v400
  %v441 = vmul.f32 %v231, %v400
  %v442 = vmul.f32 %v232, %v400
  %v443 = vmul.f32 %v233, %v400
  %v444 = vmul.f32 %v234, %v400
  %v445 = vmul.f32 %v235, %v400
  %v446 = vmul.f32 %v236, %v400
  %v447 = vmul.f32 %v221, %v401
  %v448 = vmul.f32 %v222, %v401
  %v449 = vmul.f32 %v223, %v401
  %v450 = vmul.f32 %v224, %v401
  %v451 = vmul.f32 %v225, %v401
  %v452 = vmul.f32 %v226, %v401
  %v453 = vmul.f32 %v227, %v401
  %v454 = vmul.f32 %v228, %v401
  %v455 = vmul.f32 %v229, %v401
  %v456 = vmul.f32 %v230, %v401
  %v457 = vmul.f32 %v231, %v401
  %v458 = vmul.f32 %v232, %v401
  %v459 = vmul.f32 %v233, %v401
  %v460 = vmul.f32 %v234, %v401
  %v461 = vmul.f32 %v235, %v401
  %v462 = vmul.f32 %v236, %v401
  %v463 = vmul.f32 %v221, %v402
  %v464 = vmul.f32 %v222, %v402
  %v465 = vmul.f32 %v223, %v402
  %v466 = vmul.f32 %v224, %v402
  %v467 = vmul.f32 %v225, %v402
  %v468 = vmul.f32 %v226, %v402
  %v469 = vmul.f32 %v227, %v402
  %v470 = vmul.f32 %v228, %v402
  %v471 = vmul.f32 %v229, %v402
  %v472 = vmul.f32 %v230, %v402
  %v473 = vmul.f32 %v231, %v402
  %v474 = vmul.f32 %v232, %v402
  %v475 = vmul.f32 %v233, %v402
  %v476 = vmul.f32 %v234, %v402
  %v477 = vmul.f32 %v235, %v402
  %v478 = vmul.f32 %v236, %v402
  %v479 = vmul.f32 %v221, %v403
  %v480 = vmul.f32 %v222, %v403
  %v481 = vmul.f32 %v223, %v403
  %v482 = vmul.f32 %v224, %v403
  %v483 = vmul.f32 %v225, %v403
  %v484 = vmul.f32 %v226, %v403
  %v485 = vmul.f32 %v227, %v403
  %v486 = vmul.f32 %v228, %v403
  %v487 = vmul.f32 %v229, %v403
  %v488 = vmul.f32 %v230, %v403
  %v489 = vmul.f32 %v231, %v403
  %v490 = vmul.f32 %v232, %v403
  %v491 = vmul.f32 %v233, %v403
  %v492 = vmul.f32 %v234, %v403
  %v493 = vmul.f32 %v235, %v403
  %v494 = vmul.f32 %v236, %v403
  %v495 = vmul.f32 %v221, %v404
  %v496 = vmul.f32 %v222, %v404
  %v497 = vmul.f32 %v223, %v404
  %v498 = vmul.f32 %v224, %v404
  %v499 = vmul.f32 %v225, %v404
  %v500 = vmul.f32 %v226, %v404
  %v501 = vmul.f32 %v227, %v404
  %v502 = vmul.f32 %v228, %v404
  %v503 = vmul.f32 %v229, %v404
  %v504 = vmul.f32 %v230, %v404
  %v505 = vmul.f32 %v231, %v404
  %v506 = vmul.f32 %v232, %v404
  %v507 = vmul.f32 %v233, %v404
  %v508 = vmul.f32 %v234, %v404
  %v509 = vmul.f32 %v235, %v404
  %v510 = vmul.f32 %v236, %v404
  %v511 = vmul.f32 %v221, %v405
  %v512 = vmul.f32 %v222, %v405
  %v513 = vmul.f32 %v223, %v405
  %v514 = vmul.f32 %v224, %v405
  %v515 = vmul.f32 %v225, %v405
  %v516 = vmul.f32 %v226, %v405
  %v517 = vmul.f32 %v227, %v405
  %v518 = vmul.f32 %v228, %v405
  %v519 = vmul.f32 %v229, %v405
  %v520 = vmul.f32 %v230, %v405
  %v521 = vmul.f32 %v231, %v405
  %v522 = vmul.f32 %v232, %v405
  %v523 = vmul.f32 %v233, %v405
  %v524 = vmul.f32 %v234, %v405
  %v525 = vmul.f32 %v235, %v405
  %v526 = vmul.f32 %v236, %v405
  %v527 = vmul.f32 %v221, %v406
  %v528 = vmul.f32 %v222, %v406
  %v529 = vmul.f32 %v223, %v406
  %v530 = vmul.f32 %v224, %v406
  %v531 = vmul.f32 %v225, %v406
  %v532 = vmul.f32 %v226, %v406
  %v533 = vmul.f32 %v227, %v406
  %v534 = vmul.f32 %v228, %v406
  %v535 = vmul.f32 %v229, %v406
  %v536 = vmul.f32 %v230, %v406
  %v537 = vmul.f32 %v231, %v406
  %v538 = vmul.f32 %v232, %v406
  %v539 = vmul.f32 %v233, %v406
  %v540 = vmul.f32 %v234, %v406
  %v541 = vmul.f32 %v235, %v406
  %v542 = vmul.f32 %v236, %v406
  %v543 = vadd.f32 %v263, %v415
  %v544 = vadd.f32 %v264, %v416
  %v545 = vadd.f32 %v265, %v417
  %v546 = vadd.f32 %v266, %v418
  %v547 = vadd.f32 %v267, %v419
  %v548 = vadd.f32 %v268, %v420
  %v549 = vadd.f32 %v269, %v421
  %v550 = vadd.f32 %v270, %v422
  %v551 = vadd.f32 %v271, %v423
  %v552 = vadd.f32 %v272, %v424
  %v553 = vadd.f32 %v273, %v425
  %v554 = vadd.f32 %v274, %v426
  %v555 = vadd.f32 %v275, %v427
  %v556 = vadd.f32 %v276, %v428
  %v557 = vadd.f32 %v277, %v429
  %v558 = vadd.f32 %v278, %v430
  %v559 = vadd.f32 %v279, %v431
  %v560 = vadd.f32 %v280, %v432
  %v561 = vadd.f32 %v281, %v433
  %v562 = vadd.f32 %v282, %v434
  %v563 = vadd.f32 %v283, %v435
  %v564 = vadd.f32 %v284, %v436
  %v565 = vadd.f32 %v285, %v437
  %v566 = vadd.f32 %v286, %v438
  %v567 = vadd.f32 %v287, %v439
  %v568 = vadd.f32 %v288, %v440
  %v569 = vadd.f32 %v289, %v441
  %v570 = vadd.f32 %v290, %v442
  %v571 = vadd.f32 %v291, %v443
  %v572 = vadd.f32 %v292, %v444
  %v573 = vadd.f32 %v293, %v445
  %v574 = vadd.f32 %v294, %v446
  %v575 = vadd.f32 %v295, %v447
  %v576 = vadd.f32 %v296, %v448
  %v577 = vadd.f32 %v297, %v449
  %v578 = vadd.f32 %v298, %v450
  %v579 = vadd.f32 %v299, %v451
  %v580 = vadd.f32 %v300, %v452
  %v581 = vadd.f32 %v301, %v453
  %v582 = vadd.f32 %v302, %v454
  %v583 = vadd.f32 %v303, %v455
  %v584 = vadd.f32 %v304, %v456
  %v585 = vadd.f32 %v305, %v457
  %v586 = vadd.f32 %v306, %v458
  %v587 = vadd.f32 %v307, %v459
  %v588 = vadd.f32 %v308, %v460
  %v589 = vadd.f32 %v309, %v461
  %v590 = vadd.f32 %v310, %v462
  %v591 = vadd.f32 %v311, %v463
  %v592 = vadd.f32 %v312, %v464
  %v593 = vadd.f32 %v313, %v465
  %v594 = vadd.f32 %v314, %v466
  %v595 = vadd.f32 %v315, %v467
  %v596 = vadd.f32 %v316, %v468
  %v597 = vadd.f32 %v317, %v469
  %v598 = vadd.f32 %v318, %v470
  %v599 = vadd.f32 %v319, %v471
  %v600 = vadd.f32 %v320, %v472
  %v601 = vadd.f32 %v321, %v473
  %v602 = vadd.f32 %v322, %v474
  %v603 = vadd.f32 %v323, %v475
  %v604 = vadd.f32 %v324, %v476
  %v605 = vadd.f32 %v325, %v477
  %v606 = vadd.f32 %v326, %v478
  %v607 = vadd.f32 %v327, %v479
  %v608 = vadd.f32 %v328, %v480
  %v609 = vadd.f32 %v329, %v481
  %v610 = vadd.f32 %v330, %v482
  %v611 = vadd.f32 %v331, %v483
  %v612 = vadd.f32 %v332, %v484
  %v613 = vadd.f32 %v333, %v485
  %v614 = vadd.f32 %v334, %v486
  %v615 = vadd.f32 %v335, %v487
  %v616 = vadd.f32 %v336, %v488
  %v617 = vadd.f32 %v337, %v489
  %v618 = vadd.f32 %v338, %v490
  %v619 = vadd.f32 %v339, %v491
  %v620 = vadd.f32 %v340, %v492
  %v621 = vadd.f32 %v341, %v493
  %v622 = vadd.f32 %v342, %v494
  %v623 = vadd.f32 %v343, %v495
  %v624 = vadd.f32 %v344, %v496
  %v625 = vadd.f32 %v345, %v497
  %v626 = vadd.f32 %v346, %v498
  %v627 = vadd.f32 %v347, %v499
  %v628 = vadd.f32 %v348, %v500
  %v629 = vadd.f32 %v349, %v501
  %v630 = vadd.f32 %v350, %v502
  %v631 = vadd.f32 %v351, %v503
  %v632 = vadd.f32 %v352, %v504
  %v633 = vadd.f32 %v353, %v505
  %v634 = vadd.f32 %v354, %v506
  %v635 = vadd.f32 %v355, %v507
  %v636 = vadd.f32 %v356, %v508
  %v637 = vadd.f32 %v357, %v509
  %v638 = vadd.f32 %v358, %v510
  %v639 = vadd.f32 %v359, %v511
  %v640 = vadd.f32 %v360, %v512
  %v641 = vadd.f32 %v361, %v513
  %v642 = vadd.f32 %v362, %v514
  %v643 = vadd.f32 %v363, %v515
  %v644 = vadd.f32 %v364, %v516
  %v645 = vadd.f32 %v365, %v517
  %v646 = vadd.f32 %v366, %v518
  %v647 = vadd.f32 %v367, %v519
  %v648 = vadd.f32 %v368, %v520
  %v649 = vadd.f32 %v369, %v521
  %v650 = vadd.f32 %v370, %v522
  %v651 = vadd.f32 %v371, %v523
  %v652 = vadd.f32 %v372, %v524
  %v653 = vadd.f32 %v373, %v525
  %v654 = vadd.f32 %v374, %v526
  %v655 = vadd.f32 %v375, %v527
  %v656 = vadd.f32 %v376, %v528
  %v657 = vadd.f32 %v377, %v529
  %v658 = vadd.f32 %v378, %v530
  %v659 = vadd.f32 %v379, %v531
  %v660 = vadd.f32 %v380, %v532
  %v661 = vadd.f32 %v381, %v533
  %v662 = vadd.f32 %v382, %v534
  %v663 = vadd.f32 %v383, %v535
  %v664 = vadd.f32 %v384, %v536
  %v665 = vadd.f32 %v385, %v537
  %v666 = vadd.f32 %v386, %v538
  %v667 = vadd.f32 %v387, %v539
  %v668 = vadd.f32 %v388, %v540
  %v669 = vadd.f32 %v389, %v541
  %v670 = vadd.f32 %v390, %v542
  %v671 = vpack.c.bf16 %v544, %v543
  %v672 = vpack.c.bf16 %v546, %v545
  %v673 = vpack.c.bf16 %v548, %v547
  %v674 = vpack.c.bf16 %v550, %v549
  %v675 = vpack.c.bf16 %v552, %v551
  %v676 = vpack.c.bf16 %v554, %v553
  %v677 = vpack.c.bf16 %v556, %v555
  %v678 = vpack.c.bf16 %v558, %v557
  %v679 = vpack.c.bf16 %v560, %v559
  %v680 = vpack.c.bf16 %v562, %v561
  %v681 = vpack.c.bf16 %v564, %v563
  %v682 = vpack.c.bf16 %v566, %v565
  %v683 = vpack.c.bf16 %v568, %v567
  %v684 = vpack.c.bf16 %v570, %v569
  %v685 = vpack.c.bf16 %v572, %v571
  %v686 = vpack.c.bf16 %v574, %v573
  %v687 = vpack.c.bf16 %v576, %v575
  %v688 = vpack.c.bf16 %v578, %v577
  %v689 = vpack.c.bf16 %v580, %v579
  %v690 = vpack.c.bf16 %v582, %v581
  %v691 = vpack.c.bf16 %v584, %v583
  %v692 = vpack.c.bf16 %v586, %v585
  %v693 = vpack.c.bf16 %v588, %v587
  %v694 = vpack.c.bf16 %v590, %v589
  %v695 = vpack.c.bf16 %v592, %v591
  %v696 = vpack.c.bf16 %v594, %v593
  %v697 = vpack.c.bf16 %v596, %v595
  %v698 = vpack.c.bf16 %v598, %v597
  %v699 = vpack.c.bf16 %v600, %v599
  %v700 = vpack.c.bf16 %v602, %v601
  %v701 = vpack.c.bf16 %v604, %v603
  %v702 = vpack.c.bf16 %v606, %v605
  %v703 = vpack.c.bf16 %v608, %v607
  %v704 = vpack.c.bf16 %v610, %v609
  %v705 = vpack.c.bf16 %v612, %v611
  %v706 = vpack.c.bf16 %v614, %v613
  %v707 = vpack.c.bf16 %v616, %v615
  %v708 = vpack.c.bf16 %v618, %v617
  %v709 = vpack.c.bf16 %v620, %v619
  %v710 = vpack.c.bf16 %v622, %v621
  %v711 = vpack.c.bf16 %v624, %v623
  %v712 = vpack.c.bf16 %v626, %v625
  %v713 = vpack.c.bf16 %v628, %v627
  %v714 = vpack.c.bf16 %v630, %v629
  %v715 = vpack.c.bf16 %v632, %v631
  %v716 = vpack.c.bf16 %v634, %v633
  %v717 = vpack.c.bf16 %v636, %v635
  %v718 = vpack.c.bf16 %v638, %v637
  %v719 = vpack.c.bf16 %v640, %v639
  %v720 = vpack.c.bf16 %v642, %v641
  %v721 = vpack.c.bf16 %v644, %v643
  %v722 = vpack.c.bf16 %v646, %v645
  %v723 = vpack.c.bf16 %v648, %v647
  %v724 = vpack.c.bf16 %v650, %v649
  %v725 = vpack.c.bf16 %v652, %v651
  %v726 = vpack.c.bf16 %v654, %v653
  %v727 = vpack.c.bf16 %v656, %v655
  %v728 = vpack.c.bf16 %v658, %v657
  %v729 = vpack.c.bf16 %v660, %v659
  %v730 = vpack.c.bf16 %v662, %v661
  %v731 = vpack.c.bf16 %v664, %v663
  %v732 = vpack.c.bf16 %v666, %v665
  %v733 = vpack.c.bf16 %v668, %v667
  %v734 = vpack.c.bf16 %v670, %v669
  %v735 = vld [vmem:[%s6] sm:$0xf]
  %v736 = vld [vmem:[%s6 + $0x4] sm:$0xf]
  %v737 = vld [vmem:[%s6 + $0x8] sm:$0xf]
  %v738 = vld [vmem:[%s6 + $0xc] sm:$0xf]
  %v739 = vld [vmem:[%s6 + $0x10] sm:$0x7]
  %v740 = vld [vmem:[%s7] sm:$0xf]
  %v741 = vld [vmem:[%s7 + $0x4] sm:$0xf]
  %v742 = vld [vmem:[%s7 + $0x8] sm:$0xf]
  %v746 = vunpack.c.l.b16 %v740
  %v747 = vunpack.c.l.b16 %v741
  %v748 = vunpack.c.l.b16 %v742
  %v749 = vpack.c.b16 %v747, %v746
  %v750 = vpack.c.b16 %v748, %v748
  %vm752 = vcmask 195584
  %v754 = vsel %vm752, %v671, 0
  %v757 = vsel %vm752, %v672, 0
  %v760 = vsel %vm752, %v673, 0
  %v763 = vsel %vm752, %v674, 0
  %v766 = vsel %vm752, %v675, 0
  %v769 = vsel %vm752, %v676, 0
  %v772 = vsel %vm752, %v677, 0
  %v775 = vsel %vm752, %v678, 0
  %v778 = vsel %vm752, %v679, 0
  %v781 = vsel %vm752, %v680, 0
  %v784 = vsel %vm752, %v681, 0
  %v787 = vsel %vm752, %v682, 0
  %v790 = vsel %vm752, %v683, 0
  %v793 = vsel %vm752, %v684, 0
  %v796 = vsel %vm752, %v685, 0
  %v799 = vsel %vm752, %v686, 0
  %v802 = vsel %vm752, %v687, 0
  %v805 = vsel %vm752, %v688, 0
  %v808 = vsel %vm752, %v689, 0
  %v811 = vsel %vm752, %v690, 0
  %v814 = vsel %vm752, %v691, 0
  %v817 = vsel %vm752, %v692, 0
  %v820 = vsel %vm752, %v693, 0
  %v823 = vsel %vm752, %v694, 0
  %v826 = vsel %vm752, %v695, 0
  %v829 = vsel %vm752, %v696, 0
  %v832 = vsel %vm752, %v697, 0
  %v835 = vsel %vm752, %v698, 0
  %v838 = vsel %vm752, %v699, 0
  %v841 = vsel %vm752, %v700, 0
  %v844 = vsel %vm752, %v701, 0
  %v847 = vsel %vm752, %v702, 0
  %v850 = vsel %vm752, %v703, 0
  %v853 = vsel %vm752, %v704, 0
  %v856 = vsel %vm752, %v705, 0
  %v859 = vsel %vm752, %v706, 0
  %v862 = vsel %vm752, %v707, 0
  %v865 = vsel %vm752, %v708, 0
  %v868 = vsel %vm752, %v709, 0
  %v871 = vsel %vm752, %v710, 0
  %v874 = vsel %vm752, %v711, 0
  %v877 = vsel %vm752, %v712, 0
  %v880 = vsel %vm752, %v713, 0
  %v883 = vsel %vm752, %v714, 0
  %v886 = vsel %vm752, %v715, 0
  %v889 = vsel %vm752, %v716, 0
  %v892 = vsel %vm752, %v717, 0
  %v895 = vsel %vm752, %v718, 0
  %v898 = vsel %vm752, %v719, 0
  %v901 = vsel %vm752, %v720, 0
  %v904 = vsel %vm752, %v721, 0
  %v907 = vsel %vm752, %v722, 0
  %v910 = vsel %vm752, %v723, 0
  %v913 = vsel %vm752, %v724, 0
  %v916 = vsel %vm752, %v725, 0
  %v919 = vsel %vm752, %v726, 0
  %v922 = vsel %vm752, %v727, 0
  %v925 = vsel %vm752, %v728, 0
  %v928 = vsel %vm752, %v729, 0
  %v931 = vsel %vm752, %v730, 0
  %v934 = vsel %vm752, %v731, 0
  %v937 = vsel %vm752, %v732, 0
  %v940 = vsel %vm752, %v733, 0
  %v943 = vsel %vm752, %v734, 0
  %vm945 = vcmask 1043456
  %v947 = vsel %vm945, %v750, 0
  %949 = vmatpush.bf16.msra.mxu0 0
  %950 = vmatpush.bf16.msra.mxu0 0
  %951 = vmatpush.bf16.msra.mxu0 0
  %952 = vmatpush.bf16.msra.mxu0 0
  %953 = vmatpush.bf16.msra.mxu0 0
  %954 = vmatpush.bf16.msra.mxu0 0
  %955 = vmatpush.bf16.msra.mxu0 %v947
  %956 = vmatpush.bf16.msra.mxu0 %v749
  %957 = vmatmul.bf16.gmra.mxu0 %v754
  %v958 = vpop.f32.mrf.mxu0
  %v959 = vadd.f32 0.0, %v958
  %v960 = vpop.f32.mrf.mxu0
  %v961 = vadd.f32 0.0, %v960
  %962 = vmatmul.bf16.gmra.mxu0 %v757
  %v963 = vpop.f32.mrf.mxu0
  %v964 = vadd.f32 0.0, %v963
  %v965 = vpop.f32.mrf.mxu0
  %v966 = vadd.f32 0.0, %v965
  %967 = vmatmul.bf16.gmra.mxu0 %v760
  %v968 = vpop.f32.mrf.mxu0
  %v969 = vadd.f32 0.0, %v968
  %v970 = vpop.f32.mrf.mxu0
  %v971 = vadd.f32 0.0, %v970
  %972 = vmatmul.bf16.gmra.mxu0 %v763
  %v973 = vpop.f32.mrf.mxu0
  %v974 = vadd.f32 0.0, %v973
  %v975 = vpop.f32.mrf.mxu0
  %v976 = vadd.f32 0.0, %v975
  %977 = vmatmul.bf16.gmra.mxu0 %v766
  %v978 = vpop.f32.mrf.mxu0
  %v979 = vadd.f32 0.0, %v978
  %v980 = vpop.f32.mrf.mxu0
  %v981 = vadd.f32 0.0, %v980
  %982 = vmatmul.bf16.gmra.mxu0 %v769
  %v983 = vpop.f32.mrf.mxu0
  %v984 = vadd.f32 0.0, %v983
  %v985 = vpop.f32.mrf.mxu0
  %v986 = vadd.f32 0.0, %v985
  %987 = vmatmul.bf16.gmra.mxu0 %v772
  %v988 = vpop.f32.mrf.mxu0
  %v989 = vadd.f32 0.0, %v988
  %v990 = vpop.f32.mrf.mxu0
  %v991 = vadd.f32 0.0, %v990
  %992 = vmatmul.bf16.gmra.mxu0 %v775
  %v993 = vpop.f32.mrf.mxu0
  %v994 = vadd.f32 0.0, %v993
  %v995 = vpop.f32.mrf.mxu0
  %v996 = vadd.f32 0.0, %v995
  %997 = vmatmul.bf16.gmra.mxu0 %v778
  %v998 = vpop.f32.mrf.mxu0
  %v999 = vadd.f32 0.0, %v998
  %v1000 = vpop.f32.mrf.mxu0
  %v1001 = vadd.f32 0.0, %v1000
  %1002 = vmatmul.bf16.gmra.mxu0 %v781
  %v1003 = vpop.f32.mrf.mxu0
  %v1004 = vadd.f32 0.0, %v1003
  %v1005 = vpop.f32.mrf.mxu0
  %v1006 = vadd.f32 0.0, %v1005
  %1007 = vmatmul.bf16.gmra.mxu0 %v784
  %v1008 = vpop.f32.mrf.mxu0
  %v1009 = vadd.f32 0.0, %v1008
  %v1010 = vpop.f32.mrf.mxu0
  %v1011 = vadd.f32 0.0, %v1010
  %1012 = vmatmul.bf16.gmra.mxu0 %v787
  %v1013 = vpop.f32.mrf.mxu0
  %v1014 = vadd.f32 0.0, %v1013
  %v1015 = vpop.f32.mrf.mxu0
  %v1016 = vadd.f32 0.0, %v1015
  %1017 = vmatmul.bf16.gmra.mxu0 %v790
  %v1018 = vpop.f32.mrf.mxu0
  %v1019 = vadd.f32 0.0, %v1018
  %v1020 = vpop.f32.mrf.mxu0
  %v1021 = vadd.f32 0.0, %v1020
  %1022 = vmatmul.bf16.gmra.mxu0 %v793
  %v1023 = vpop.f32.mrf.mxu0
  %v1024 = vadd.f32 0.0, %v1023
  %v1025 = vpop.f32.mrf.mxu0
  %v1026 = vadd.f32 0.0, %v1025
  %1027 = vmatmul.bf16.gmra.mxu0 %v796
  %v1028 = vpop.f32.mrf.mxu0
  %v1029 = vadd.f32 0.0, %v1028
  %v1030 = vpop.f32.mrf.mxu0
  %v1031 = vadd.f32 0.0, %v1030
  %1032 = vmatmul.bf16.gmra.mxu0 %v799
  %v1033 = vpop.f32.mrf.mxu0
  %v1034 = vadd.f32 0.0, %v1033
  %v1035 = vpop.f32.mrf.mxu0
  %v1036 = vadd.f32 0.0, %v1035
  %1037 = vmatmul.bf16.gmra.mxu0 %v802
  %v1038 = vpop.f32.mrf.mxu0
  %v1039 = vadd.f32 0.0, %v1038
  %v1040 = vpop.f32.mrf.mxu0
  %v1041 = vadd.f32 0.0, %v1040
  %1042 = vmatmul.bf16.gmra.mxu0 %v805
  %v1043 = vpop.f32.mrf.mxu0
  %v1044 = vadd.f32 0.0, %v1043
  %v1045 = vpop.f32.mrf.mxu0
  %v1046 = vadd.f32 0.0, %v1045
  %1047 = vmatmul.bf16.gmra.mxu0 %v808
  %v1048 = vpop.f32.mrf.mxu0
  %v1049 = vadd.f32 0.0, %v1048
  %v1050 = vpop.f32.mrf.mxu0
  %v1051 = vadd.f32 0.0, %v1050
  %1052 = vmatmul.bf16.gmra.mxu0 %v811
  %v1053 = vpop.f32.mrf.mxu0
  %v1054 = vadd.f32 0.0, %v1053
  %v1055 = vpop.f32.mrf.mxu0
  %v1056 = vadd.f32 0.0, %v1055
  %1057 = vmatmul.bf16.gmra.mxu0 %v814
  %v1058 = vpop.f32.mrf.mxu0
  %v1059 = vadd.f32 0.0, %v1058
  %v1060 = vpop.f32.mrf.mxu0
  %v1061 = vadd.f32 0.0, %v1060
  %1062 = vmatmul.bf16.gmra.mxu0 %v817
  %v1063 = vpop.f32.mrf.mxu0
  %v1064 = vadd.f32 0.0, %v1063
  %v1065 = vpop.f32.mrf.mxu0
  %v1066 = vadd.f32 0.0, %v1065
  %1067 = vmatmul.bf16.gmra.mxu0 %v820
  %v1068 = vpop.f32.mrf.mxu0
  %v1069 = vadd.f32 0.0, %v1068
  %v1070 = vpop.f32.mrf.mxu0
  %v1071 = vadd.f32 0.0, %v1070
  %1072 = vmatmul.bf16.gmra.mxu0 %v823
  %v1073 = vpop.f32.mrf.mxu0
  %v1074 = vadd.f32 0.0, %v1073
  %v1075 = vpop.f32.mrf.mxu0
  %v1076 = vadd.f32 0.0, %v1075
  %1077 = vmatmul.bf16.gmra.mxu0 %v826
  %v1078 = vpop.f32.mrf.mxu0
  %v1079 = vadd.f32 0.0, %v1078
  %v1080 = vpop.f32.mrf.mxu0
  %v1081 = vadd.f32 0.0, %v1080
  %1082 = vmatmul.bf16.gmra.mxu0 %v829
  %v1083 = vpop.f32.mrf.mxu0
  %v1084 = vadd.f32 0.0, %v1083
  %v1085 = vpop.f32.mrf.mxu0
  %v1086 = vadd.f32 0.0, %v1085
  %1087 = vmatmul.bf16.gmra.mxu0 %v832
  %v1088 = vpop.f32.mrf.mxu0
  %v1089 = vadd.f32 0.0, %v1088
  %v1090 = vpop.f32.mrf.mxu0
  %v1091 = vadd.f32 0.0, %v1090
  %1092 = vmatmul.bf16.gmra.mxu0 %v835
  %v1093 = vpop.f32.mrf.mxu0
  %v1094 = vadd.f32 0.0, %v1093
  %v1095 = vpop.f32.mrf.mxu0
  %v1096 = vadd.f32 0.0, %v1095
  %1097 = vmatmul.bf16.gmra.mxu0 %v838
  %v1098 = vpop.f32.mrf.mxu0
  %v1099 = vadd.f32 0.0, %v1098
  %v1100 = vpop.f32.mrf.mxu0
  %v1101 = vadd.f32 0.0, %v1100
  %1102 = vmatmul.bf16.gmra.mxu0 %v841
  %v1103 = vpop.f32.mrf.mxu0
  %v1104 = vadd.f32 0.0, %v1103
  %v1105 = vpop.f32.mrf.mxu0
  %v1106 = vadd.f32 0.0, %v1105
  %1107 = vmatmul.bf16.gmra.mxu0 %v844
  %v1108 = vpop.f32.mrf.mxu0
  %v1109 = vadd.f32 0.0, %v1108
  %v1110 = vpop.f32.mrf.mxu0
  %v1111 = vadd.f32 0.0, %v1110
  %1112 = vmatmul.bf16.gmra.mxu0 %v847
  %v1113 = vpop.f32.mrf.mxu0
  %v1114 = vadd.f32 0.0, %v1113
  %v1115 = vpop.f32.mrf.mxu0
  %v1116 = vadd.f32 0.0, %v1115
  %1117 = vmatmul.bf16.gmra.mxu0 %v850
  %v1118 = vpop.f32.mrf.mxu0
  %v1119 = vadd.f32 0.0, %v1118
  %v1120 = vpop.f32.mrf.mxu0
  %v1121 = vadd.f32 0.0, %v1120
  %1122 = vmatmul.bf16.gmra.mxu0 %v853
  %v1123 = vpop.f32.mrf.mxu0
  %v1124 = vadd.f32 0.0, %v1123
  %v1125 = vpop.f32.mrf.mxu0
  %v1126 = vadd.f32 0.0, %v1125
  %1127 = vmatmul.bf16.gmra.mxu0 %v856
  %v1128 = vpop.f32.mrf.mxu0
  %v1129 = vadd.f32 0.0, %v1128
  %v1130 = vpop.f32.mrf.mxu0
  %v1131 = vadd.f32 0.0, %v1130
  %1132 = vmatmul.bf16.gmra.mxu0 %v859
  %v1133 = vpop.f32.mrf.mxu0
  %v1134 = vadd.f32 0.0, %v1133
  %v1135 = vpop.f32.mrf.mxu0
  %v1136 = vadd.f32 0.0, %v1135
  %1137 = vmatmul.bf16.gmra.mxu0 %v862
  %v1138 = vpop.f32.mrf.mxu0
  %v1139 = vadd.f32 0.0, %v1138
  %v1140 = vpop.f32.mrf.mxu0
  %v1141 = vadd.f32 0.0, %v1140
  %1142 = vmatmul.bf16.gmra.mxu0 %v865
  %v1143 = vpop.f32.mrf.mxu0
  %v1144 = vadd.f32 0.0, %v1143
  %v1145 = vpop.f32.mrf.mxu0
  %v1146 = vadd.f32 0.0, %v1145
  %1147 = vmatmul.bf16.gmra.mxu0 %v868
  %v1148 = vpop.f32.mrf.mxu0
  %v1149 = vadd.f32 0.0, %v1148
  %v1150 = vpop.f32.mrf.mxu0
  %v1151 = vadd.f32 0.0, %v1150
  %1152 = vmatmul.bf16.gmra.mxu0 %v871
  %v1153 = vpop.f32.mrf.mxu0
  %v1154 = vadd.f32 0.0, %v1153
  %v1155 = vpop.f32.mrf.mxu0
  %v1156 = vadd.f32 0.0, %v1155
  %1157 = vmatmul.bf16.gmra.mxu0 %v874
  %v1158 = vpop.f32.mrf.mxu0
  %v1159 = vadd.f32 0.0, %v1158
  %v1160 = vpop.f32.mrf.mxu0
  %v1161 = vadd.f32 0.0, %v1160
  %1162 = vmatmul.bf16.gmra.mxu0 %v877
  %v1163 = vpop.f32.mrf.mxu0
  %v1164 = vadd.f32 0.0, %v1163
  %v1165 = vpop.f32.mrf.mxu0
  %v1166 = vadd.f32 0.0, %v1165
  %1167 = vmatmul.bf16.gmra.mxu0 %v880
  %v1168 = vpop.f32.mrf.mxu0
  %v1169 = vadd.f32 0.0, %v1168
  %v1170 = vpop.f32.mrf.mxu0
  %v1171 = vadd.f32 0.0, %v1170
  %1172 = vmatmul.bf16.gmra.mxu0 %v883
  %v1173 = vpop.f32.mrf.mxu0
  %v1174 = vadd.f32 0.0, %v1173
  %v1175 = vpop.f32.mrf.mxu0
  %v1176 = vadd.f32 0.0, %v1175
  %1177 = vmatmul.bf16.gmra.mxu0 %v886
  %v1178 = vpop.f32.mrf.mxu0
  %v1179 = vadd.f32 0.0, %v1178
  %v1180 = vpop.f32.mrf.mxu0
  %v1181 = vadd.f32 0.0, %v1180
  %1182 = vmatmul.bf16.gmra.mxu0 %v889
  %v1183 = vpop.f32.mrf.mxu0
  %v1184 = vadd.f32 0.0, %v1183
  %v1185 = vpop.f32.mrf.mxu0
  %v1186 = vadd.f32 0.0, %v1185
  %1187 = vmatmul.bf16.gmra.mxu0 %v892
  %v1188 = vpop.f32.mrf.mxu0
  %v1189 = vadd.f32 0.0, %v1188
  %v1190 = vpop.f32.mrf.mxu0
  %v1191 = vadd.f32 0.0, %v1190
  %1192 = vmatmul.bf16.gmra.mxu0 %v895
  %v1193 = vpop.f32.mrf.mxu0
  %v1194 = vadd.f32 0.0, %v1193
  %v1195 = vpop.f32.mrf.mxu0
  %v1196 = vadd.f32 0.0, %v1195
  %1197 = vmatmul.bf16.gmra.mxu0 %v898
  %v1198 = vpop.f32.mrf.mxu0
  %v1199 = vadd.f32 0.0, %v1198
  %v1200 = vpop.f32.mrf.mxu0
  %v1201 = vadd.f32 0.0, %v1200
  %1202 = vmatmul.bf16.gmra.mxu0 %v901
  %v1203 = vpop.f32.mrf.mxu0
  %v1204 = vadd.f32 0.0, %v1203
  %v1205 = vpop.f32.mrf.mxu0
  %v1206 = vadd.f32 0.0, %v1205
  %1207 = vmatmul.bf16.gmra.mxu0 %v904
  %v1208 = vpop.f32.mrf.mxu0
  %v1209 = vadd.f32 0.0, %v1208
  %v1210 = vpop.f32.mrf.mxu0
  %v1211 = vadd.f32 0.0, %v1210
  %1212 = vmatmul.bf16.gmra.mxu0 %v907
  %v1213 = vpop.f32.mrf.mxu0
  %v1214 = vadd.f32 0.0, %v1213
  %v1215 = vpop.f32.mrf.mxu0
  %v1216 = vadd.f32 0.0, %v1215
  %1217 = vmatmul.bf16.gmra.mxu0 %v910
  %v1218 = vpop.f32.mrf.mxu0
  %v1219 = vadd.f32 0.0, %v1218
  %v1220 = vpop.f32.mrf.mxu0
  %v1221 = vadd.f32 0.0, %v1220
  %1222 = vmatmul.bf16.gmra.mxu0 %v913
  %v1223 = vpop.f32.mrf.mxu0
  %v1224 = vadd.f32 0.0, %v1223
  %v1225 = vpop.f32.mrf.mxu0
  %v1226 = vadd.f32 0.0, %v1225
  %1227 = vmatmul.bf16.gmra.mxu0 %v916
  %v1228 = vpop.f32.mrf.mxu0
  %v1229 = vadd.f32 0.0, %v1228
  %v1230 = vpop.f32.mrf.mxu0
  %v1231 = vadd.f32 0.0, %v1230
  %1232 = vmatmul.bf16.gmra.mxu0 %v919
  %v1233 = vpop.f32.mrf.mxu0
  %v1234 = vadd.f32 0.0, %v1233
  %v1235 = vpop.f32.mrf.mxu0
  %v1236 = vadd.f32 0.0, %v1235
  %1237 = vmatmul.bf16.gmra.mxu0 %v922
  %v1238 = vpop.f32.mrf.mxu0
  %v1239 = vadd.f32 0.0, %v1238
  %v1240 = vpop.f32.mrf.mxu0
  %v1241 = vadd.f32 0.0, %v1240
  %1242 = vmatmul.bf16.gmra.mxu0 %v925
  %v1243 = vpop.f32.mrf.mxu0
  %v1244 = vadd.f32 0.0, %v1243
  %v1245 = vpop.f32.mrf.mxu0
  %v1246 = vadd.f32 0.0, %v1245
  %1247 = vmatmul.bf16.gmra.mxu0 %v928
  %v1248 = vpop.f32.mrf.mxu0
  %v1249 = vadd.f32 0.0, %v1248
  %v1250 = vpop.f32.mrf.mxu0
  %v1251 = vadd.f32 0.0, %v1250
  %1252 = vmatmul.bf16.gmra.mxu0 %v931
  %v1253 = vpop.f32.mrf.mxu0
  %v1254 = vadd.f32 0.0, %v1253
  %v1255 = vpop.f32.mrf.mxu0
  %v1256 = vadd.f32 0.0, %v1255
  %1257 = vmatmul.bf16.gmra.mxu0 %v934
  %v1258 = vpop.f32.mrf.mxu0
  %v1259 = vadd.f32 0.0, %v1258
  %v1260 = vpop.f32.mrf.mxu0
  %v1261 = vadd.f32 0.0, %v1260
  %1262 = vmatmul.bf16.gmra.mxu0 %v937
  %v1263 = vpop.f32.mrf.mxu0
  %v1264 = vadd.f32 0.0, %v1263
  %v1265 = vpop.f32.mrf.mxu0
  %v1266 = vadd.f32 0.0, %v1265
  %1267 = vmatmul.bf16.gmra.mxu0 %v940
  %v1268 = vpop.f32.mrf.mxu0
  %v1269 = vadd.f32 0.0, %v1268
  %v1270 = vpop.f32.mrf.mxu0
  %v1271 = vadd.f32 0.0, %v1270
  %1272 = vmatmul.bf16.gmra.mxu0 %v943
  %v1273 = vpop.f32.mrf.mxu0
  %v1274 = vadd.f32 0.0, %v1273
  %v1275 = vpop.f32.mrf.mxu0
  %v1276 = vadd.f32 0.0, %v1275
  %1277 = vdwg.mxu0
  %v1406 = vunpack.c.l.b16 %v45
  %v1407 = vunpack.c.l.b16 %v46
  %v1408 = vunpack.c.l.b16 %v47
  %v1409 = vunpack.c.l.b16 %v48
  %v1410 = vunpack.c.l.b16 %v49
  %v1411 = vunpack.c.l.b16 %v50
  %v1412 = vunpack.c.l.b16 %v51
  %v1413 = vunpack.c.l.b16 %v52
  %v1414 = vunpack.c.l.b16 %v53
  %v1415 = vunpack.c.l.b16 %v54
  %v1416 = vunpack.c.l.b16 %v55
  %v1417 = vunpack.c.l.b16 %v56
  %v1418 = vunpack.c.l.b16 %v57
  %v1419 = vunpack.c.l.b16 %v58
  %v1420 = vunpack.c.l.b16 %v59
  %v1421 = vunpack.c.l.b16 %v60
  %v1422 = vunpack.c.l.b16 %v61
  %v1423 = vunpack.c.l.b16 %v62
  %v1424 = vunpack.c.l.b16 %v63
  %v1425 = vunpack.c.l.b16 %v64
  %v1426 = vunpack.c.l.b16 %v65
  %v1427 = vunpack.c.l.b16 %v66
  %v1428 = vunpack.c.l.b16 %v67
  %v1429 = vunpack.c.l.b16 %v68
  %v1430 = vunpack.c.l.b16 %v69
  %v1431 = vunpack.c.l.b16 %v70
  %v1432 = vunpack.c.l.b16 %v71
  %v1433 = vunpack.c.l.b16 %v72
  %v1434 = vunpack.c.l.b16 %v73
  %v1435 = vunpack.c.l.b16 %v74
  %v1436 = vunpack.c.l.b16 %v75
  %v1437 = vunpack.c.l.b16 %v76
  %v1438 = vunpack.c.l.b16 %v77
  %v1439 = vunpack.c.l.b16 %v78
  %v1440 = vunpack.c.l.b16 %v79
  %v1441 = vunpack.c.l.b16 %v80
  %v1442 = vunpack.c.l.b16 %v81
  %v1443 = vunpack.c.l.b16 %v82
  %v1444 = vunpack.c.l.b16 %v83
  %v1445 = vunpack.c.l.b16 %v84
  %v1446 = vunpack.c.l.b16 %v85
  %v1447 = vunpack.c.l.b16 %v86
  %v1448 = vunpack.c.l.b16 %v87
  %v1449 = vunpack.c.l.b16 %v88
  %v1450 = vunpack.c.l.b16 %v89
  %v1451 = vunpack.c.l.b16 %v90
  %v1452 = vunpack.c.l.b16 %v91
  %v1453 = vunpack.c.l.b16 %v92
  %v1454 = vunpack.c.l.b16 %v93
  %v1455 = vunpack.c.l.b16 %v94
  %v1456 = vunpack.c.l.b16 %v95
  %v1457 = vunpack.c.l.b16 %v96
  %v1458 = vunpack.c.l.b16 %v97
  %v1459 = vunpack.c.l.b16 %v98
  %v1460 = vunpack.c.l.b16 %v99
  %v1461 = vunpack.c.l.b16 %v100
  %v1462 = vunpack.c.l.b16 %v101
  %v1463 = vunpack.c.l.b16 %v102
  %v1464 = vunpack.c.l.b16 %v103
  %v1465 = vunpack.c.l.b16 %v104
  %v1466 = vunpack.c.l.b16 %v105
  %v1467 = vunpack.c.l.b16 %v106
  %v1468 = vunpack.c.l.b16 %v107
  %v1469 = vunpack.c.l.b16 %v108
  %v1470 = vunpack.c.l.b16 %v109
  %v1471 = vunpack.c.l.b16 %v110
  %v1472 = vunpack.c.l.b16 %v111
  %v1473 = vunpack.c.l.b16 %v112
  %v1474 = vunpack.c.l.b16 %v113
  %v1475 = vunpack.c.l.b16 %v114
  %v1476 = vunpack.c.l.b16 %v115
  %v1477 = vunpack.c.l.b16 %v116
  %v1478 = vunpack.c.l.b16 %v117
  %v1479 = vunpack.c.l.b16 %v118
  %v1480 = vunpack.c.l.b16 %v119
  %v1481 = vunpack.c.l.b16 %v120
  %v1482 = vunpack.c.l.b16 %v121
  %v1483 = vunpack.c.l.b16 %v122
  %v1484 = vunpack.c.l.b16 %v123
  %v1485 = vunpack.c.l.b16 %v124
  %v1486 = vunpack.c.l.b16 %v125
  %v1487 = vunpack.c.l.b16 %v126
  %v1488 = vunpack.c.l.b16 %v127
  %v1489 = vunpack.c.l.b16 %v128
  %v1490 = vunpack.c.l.b16 %v129
  %v1491 = vunpack.c.l.b16 %v130
  %v1492 = vunpack.c.l.b16 %v131
  %v1493 = vunpack.c.l.b16 %v132
  %v1494 = vunpack.c.l.b16 %v133
  %v1495 = vunpack.c.l.b16 %v134
  %v1496 = vunpack.c.l.b16 %v135
  %v1497 = vunpack.c.l.b16 %v136
  %v1498 = vunpack.c.l.b16 %v137
  %v1499 = vunpack.c.l.b16 %v138
  %v1500 = vunpack.c.l.b16 %v139
  %v1501 = vunpack.c.l.b16 %v140
  %v1502 = vunpack.c.l.b16 %v141
  %v1503 = vunpack.c.l.b16 %v142
  %v1504 = vunpack.c.l.b16 %v143
  %v1505 = vunpack.c.l.b16 %v144
  %v1506 = vunpack.c.l.b16 %v145
  %v1507 = vunpack.c.l.b16 %v146
  %v1508 = vunpack.c.l.b16 %v147
  %v1509 = vunpack.c.l.b16 %v148
  %v1510 = vunpack.c.l.b16 %v149
  %v1511 = vunpack.c.l.b16 %v150
  %v1512 = vunpack.c.l.b16 %v151
  %v1513 = vunpack.c.l.b16 %v152
  %v1514 = vunpack.c.l.b16 %v153
  %v1515 = vunpack.c.l.b16 %v154
  %v1516 = vunpack.c.l.b16 %v155
  %v1517 = vunpack.c.l.b16 %v156
  %v1518 = vunpack.c.l.b16 %v157
  %v1519 = vunpack.c.l.b16 %v158
  %v1520 = vunpack.c.l.b16 %v159
  %v1521 = vunpack.c.l.b16 %v160
  %v1522 = vunpack.c.l.b16 %v161
  %v1523 = vunpack.c.l.b16 %v162
  %v1524 = vunpack.c.l.b16 %v163
  %v1525 = vunpack.c.l.b16 %v164
  %v1526 = vunpack.c.l.b16 %v165
  %v1527 = vunpack.c.l.b16 %v166
  %v1528 = vunpack.c.l.b16 %v167
  %v1529 = vunpack.c.l.b16 %v168
  %v1530 = vunpack.c.l.b16 %v169
  %v1531 = vunpack.c.l.b16 %v170
  %v1532 = vunpack.c.l.b16 %v171
  %v1533 = vunpack.c.l.b16 %v172
  %v1534 = vpack.c.b16 %v1407, %v1406
  %v1535 = vpack.c.b16 %v1409, %v1408
  %v1536 = vpack.c.b16 %v1411, %v1410
  %v1537 = vpack.c.b16 %v1413, %v1412
  %v1538 = vpack.c.b16 %v1415, %v1414
  %v1539 = vpack.c.b16 %v1417, %v1416
  %v1540 = vpack.c.b16 %v1419, %v1418
  %v1541 = vpack.c.b16 %v1421, %v1420
  %v1542 = vpack.c.b16 %v1423, %v1422
  %v1543 = vpack.c.b16 %v1425, %v1424
  %v1544 = vpack.c.b16 %v1427, %v1426
  %v1545 = vpack.c.b16 %v1429, %v1428
  %v1546 = vpack.c.b16 %v1431, %v1430
  %v1547 = vpack.c.b16 %v1433, %v1432
  %v1548 = vpack.c.b16 %v1435, %v1434
  %v1549 = vpack.c.b16 %v1437, %v1436
  %v1550 = vpack.c.b16 %v1439, %v1438
  %v1551 = vpack.c.b16 %v1441, %v1440
  %v1552 = vpack.c.b16 %v1443, %v1442
  %v1553 = vpack.c.b16 %v1445, %v1444
  %v1554 = vpack.c.b16 %v1447, %v1446
  %v1555 = vpack.c.b16 %v1449, %v1448
  %v1556 = vpack.c.b16 %v1451, %v1450
  %v1557 = vpack.c.b16 %v1453, %v1452
  %v1558 = vpack.c.b16 %v1455, %v1454
  %v1559 = vpack.c.b16 %v1457, %v1456
  %v1560 = vpack.c.b16 %v1459, %v1458
  %v1561 = vpack.c.b16 %v1461, %v1460
  %v1562 = vpack.c.b16 %v1463, %v1462
  %v1563 = vpack.c.b16 %v1465, %v1464
  %v1564 = vpack.c.b16 %v1467, %v1466
  %v1565 = vpack.c.b16 %v1469, %v1468
  %v1566 = vpack.c.b16 %v1471, %v1470
  %v1567 = vpack.c.b16 %v1473, %v1472
  %v1568 = vpack.c.b16 %v1475, %v1474
  %v1569 = vpack.c.b16 %v1477, %v1476
  %v1570 = vpack.c.b16 %v1479, %v1478
  %v1571 = vpack.c.b16 %v1481, %v1480
  %v1572 = vpack.c.b16 %v1483, %v1482
  %v1573 = vpack.c.b16 %v1485, %v1484
  %v1574 = vpack.c.b16 %v1487, %v1486
  %v1575 = vpack.c.b16 %v1489, %v1488
  %v1576 = vpack.c.b16 %v1491, %v1490
  %v1577 = vpack.c.b16 %v1493, %v1492
  %v1578 = vpack.c.b16 %v1495, %v1494
  %v1579 = vpack.c.b16 %v1497, %v1496
  %v1580 = vpack.c.b16 %v1499, %v1498
  %v1581 = vpack.c.b16 %v1501, %v1500
  %v1582 = vpack.c.b16 %v1503, %v1502
  %v1583 = vpack.c.b16 %v1505, %v1504
  %v1584 = vpack.c.b16 %v1507, %v1506
  %v1585 = vpack.c.b16 %v1509, %v1508
  %v1586 = vpack.c.b16 %v1511, %v1510
  %v1587 = vpack.c.b16 %v1513, %v1512
  %v1588 = vpack.c.b16 %v1515, %v1514
  %v1589 = vpack.c.b16 %v1517, %v1516
  %v1590 = vpack.c.b16 %v1519, %v1518
  %v1591 = vpack.c.b16 %v1521, %v1520
  %v1592 = vpack.c.b16 %v1523, %v1522
  %v1593 = vpack.c.b16 %v1525, %v1524
  %v1594 = vpack.c.b16 %v1527, %v1526
  %v1595 = vpack.c.b16 %v1529, %v1528
  %v1596 = vpack.c.b16 %v1531, %v1530
  %v1597 = vpack.c.b16 %v1533, %v1532
  %v1603 = vunpack.c.l.b16 %v735
  %v1604 = vunpack.c.l.b16 %v736
  %v1605 = vunpack.c.l.b16 %v737
  %v1606 = vunpack.c.l.b16 %v738
  %v1607 = vunpack.c.l.b16 %v739
  %v1608 = vpack.c.b16 %v1604, %v1603
  %v1609 = vpack.c.b16 %v1606, %v1605
  %v1610 = vpack.c.b16 %v1607, %v1607
  %vm1613 = vcmask 310272
  %v1615 = vsel %vm1613, %v1534, 0
  %v1618 = vsel %vm1613, %v1535, 0
  %v1621 = vsel %vm1613, %v1536, 0
  %v1624 = vsel %vm1613, %v1537, 0
  %v1627 = vsel %vm1613, %v1538, 0
  %v1630 = vsel %vm1613, %v1539, 0
  %v1633 = vsel %vm1613, %v1540, 0
  %v1636 = vsel %vm1613, %v1541, 0
  %v1639 = vsel %vm1613, %v1542, 0
  %v1642 = vsel %vm1613, %v1543, 0
  %v1645 = vsel %vm1613, %v1544, 0
  %v1648 = vsel %vm1613, %v1545, 0
  %v1651 = vsel %vm1613, %v1546, 0
  %v1654 = vsel %vm1613, %v1547, 0
  %v1657 = vsel %vm1613, %v1548, 0
  %v1660 = vsel %vm1613, %v1549, 0
  %v1663 = vsel %vm1613, %v1550, 0
  %v1666 = vsel %vm1613, %v1551, 0
  %v1669 = vsel %vm1613, %v1552, 0
  %v1672 = vsel %vm1613, %v1553, 0
  %v1675 = vsel %vm1613, %v1554, 0
  %v1678 = vsel %vm1613, %v1555, 0
  %v1681 = vsel %vm1613, %v1556, 0
  %v1684 = vsel %vm1613, %v1557, 0
  %v1687 = vsel %vm1613, %v1558, 0
  %v1690 = vsel %vm1613, %v1559, 0
  %v1693 = vsel %vm1613, %v1560, 0
  %v1696 = vsel %vm1613, %v1561, 0
  %v1699 = vsel %vm1613, %v1562, 0
  %v1702 = vsel %vm1613, %v1563, 0
  %v1705 = vsel %vm1613, %v1564, 0
  %v1708 = vsel %vm1613, %v1565, 0
  %v1711 = vsel %vm1613, %v1566, 0
  %v1714 = vsel %vm1613, %v1567, 0
  %v1717 = vsel %vm1613, %v1568, 0
  %v1720 = vsel %vm1613, %v1569, 0
  %v1723 = vsel %vm1613, %v1570, 0
  %v1726 = vsel %vm1613, %v1571, 0
  %v1729 = vsel %vm1613, %v1572, 0
  %v1732 = vsel %vm1613, %v1573, 0
  %v1735 = vsel %vm1613, %v1574, 0
  %v1738 = vsel %vm1613, %v1575, 0
  %v1741 = vsel %vm1613, %v1576, 0
  %v1744 = vsel %vm1613, %v1577, 0
  %v1747 = vsel %vm1613, %v1578, 0
  %v1750 = vsel %vm1613, %v1579, 0
  %v1753 = vsel %vm1613, %v1580, 0
  %v1756 = vsel %vm1613, %v1581, 0
  %v1759 = vsel %vm1613, %v1582, 0
  %v1762 = vsel %vm1613, %v1583, 0
  %v1765 = vsel %vm1613, %v1584, 0
  %v1768 = vsel %vm1613, %v1585, 0
  %v1771 = vsel %vm1613, %v1586, 0
  %v1774 = vsel %vm1613, %v1587, 0
  %v1777 = vsel %vm1613, %v1588, 0
  %v1780 = vsel %vm1613, %v1589, 0
  %v1783 = vsel %vm1613, %v1590, 0
  %v1786 = vsel %vm1613, %v1591, 0
  %v1789 = vsel %vm1613, %v1592, 0
  %v1792 = vsel %vm1613, %v1593, 0
  %v1795 = vsel %vm1613, %v1594, 0
  %v1798 = vsel %vm1613, %v1595, 0
  %v1801 = vsel %vm1613, %v1596, 0
  %v1804 = vsel %vm1613, %v1597, 0
  %vm1806 = vcmask 1042432
  %v1808 = vsel %vm1806, %v1610, 0
  %1810 = vmatpush.bf16.msra.mxu0 0
  %1811 = vmatpush.bf16.msra.mxu0 0
  %1812 = vmatpush.bf16.msra.mxu0 0
  %1813 = vmatpush.bf16.msra.mxu0 0
  %1814 = vmatpush.bf16.msra.mxu0 0
  %1815 = vmatpush.bf16.msra.mxu0 %v1808
  %1816 = vmatpush.bf16.msra.mxu0 %v1609
  %1817 = vmatpush.bf16.msra.mxu0 %v1608
  %1818 = vmatmul.bf16.gmra.mxu0 %v1615
  %v1819 = vpop.f32.mrf.mxu0
  %v1820 = vadd.f32 %v959, %v1819
  %v1821 = vpop.f32.mrf.mxu0
  %v1822 = vadd.f32 %v961, %v1821
  %1823 = vmatmul.bf16.gmra.mxu0 %v1618
  %v1824 = vpop.f32.mrf.mxu0
  %v1825 = vadd.f32 %v964, %v1824
  %v1826 = vpop.f32.mrf.mxu0
  %v1827 = vadd.f32 %v966, %v1826
  %1828 = vmatmul.bf16.gmra.mxu0 %v1621
  %v1829 = vpop.f32.mrf.mxu0
  %v1830 = vadd.f32 %v969, %v1829
  %v1831 = vpop.f32.mrf.mxu0
  %v1832 = vadd.f32 %v971, %v1831
  %1833 = vmatmul.bf16.gmra.mxu0 %v1624
  %v1834 = vpop.f32.mrf.mxu0
  %v1835 = vadd.f32 %v974, %v1834
  %v1836 = vpop.f32.mrf.mxu0
  %v1837 = vadd.f32 %v976, %v1836
  %1838 = vmatmul.bf16.gmra.mxu0 %v1627
  %v1839 = vpop.f32.mrf.mxu0
  %v1840 = vadd.f32 %v979, %v1839
  %v1841 = vpop.f32.mrf.mxu0
  %v1842 = vadd.f32 %v981, %v1841
  %1843 = vmatmul.bf16.gmra.mxu0 %v1630
  %v1844 = vpop.f32.mrf.mxu0
  %v1845 = vadd.f32 %v984, %v1844
  %v1846 = vpop.f32.mrf.mxu0
  %v1847 = vadd.f32 %v986, %v1846
  %1848 = vmatmul.bf16.gmra.mxu0 %v1633
  %v1849 = vpop.f32.mrf.mxu0
  %v1850 = vadd.f32 %v989, %v1849
  %v1851 = vpop.f32.mrf.mxu0
  %v1852 = vadd.f32 %v991, %v1851
  %1853 = vmatmul.bf16.gmra.mxu0 %v1636
  %v1854 = vpop.f32.mrf.mxu0
  %v1855 = vadd.f32 %v994, %v1854
  %v1856 = vpop.f32.mrf.mxu0
  %v1857 = vadd.f32 %v996, %v1856
  %1858 = vmatmul.bf16.gmra.mxu0 %v1639
  %v1859 = vpop.f32.mrf.mxu0
  %v1860 = vadd.f32 %v999, %v1859
  %v1861 = vpop.f32.mrf.mxu0
  %v1862 = vadd.f32 %v1001, %v1861
  %1863 = vmatmul.bf16.gmra.mxu0 %v1642
  %v1864 = vpop.f32.mrf.mxu0
  %v1865 = vadd.f32 %v1004, %v1864
  %v1866 = vpop.f32.mrf.mxu0
  %v1867 = vadd.f32 %v1006, %v1866
  %1868 = vmatmul.bf16.gmra.mxu0 %v1645
  %v1869 = vpop.f32.mrf.mxu0
  %v1870 = vadd.f32 %v1009, %v1869
  %v1871 = vpop.f32.mrf.mxu0
  %v1872 = vadd.f32 %v1011, %v1871
  %1873 = vmatmul.bf16.gmra.mxu0 %v1648
  %v1874 = vpop.f32.mrf.mxu0
  %v1875 = vadd.f32 %v1014, %v1874
  %v1876 = vpop.f32.mrf.mxu0
  %v1877 = vadd.f32 %v1016, %v1876
  %1878 = vmatmul.bf16.gmra.mxu0 %v1651
  %v1879 = vpop.f32.mrf.mxu0
  %v1880 = vadd.f32 %v1019, %v1879
  %v1881 = vpop.f32.mrf.mxu0
  %v1882 = vadd.f32 %v1021, %v1881
  %1883 = vmatmul.bf16.gmra.mxu0 %v1654
  %v1884 = vpop.f32.mrf.mxu0
  %v1885 = vadd.f32 %v1024, %v1884
  %v1886 = vpop.f32.mrf.mxu0
  %v1887 = vadd.f32 %v1026, %v1886
  %1888 = vmatmul.bf16.gmra.mxu0 %v1657
  %v1889 = vpop.f32.mrf.mxu0
  %v1890 = vadd.f32 %v1029, %v1889
  %v1891 = vpop.f32.mrf.mxu0
  %v1892 = vadd.f32 %v1031, %v1891
  %1893 = vmatmul.bf16.gmra.mxu0 %v1660
  %v1894 = vpop.f32.mrf.mxu0
  %v1895 = vadd.f32 %v1034, %v1894
  %v1896 = vpop.f32.mrf.mxu0
  %v1897 = vadd.f32 %v1036, %v1896
  %1898 = vmatmul.bf16.gmra.mxu0 %v1663
  %v1899 = vpop.f32.mrf.mxu0
  %v1900 = vadd.f32 %v1039, %v1899
  %v1901 = vpop.f32.mrf.mxu0
  %v1902 = vadd.f32 %v1041, %v1901
  %1903 = vmatmul.bf16.gmra.mxu0 %v1666
  %v1904 = vpop.f32.mrf.mxu0
  %v1905 = vadd.f32 %v1044, %v1904
  %v1906 = vpop.f32.mrf.mxu0
  %v1907 = vadd.f32 %v1046, %v1906
  %1908 = vmatmul.bf16.gmra.mxu0 %v1669
  %v1909 = vpop.f32.mrf.mxu0
  %v1910 = vadd.f32 %v1049, %v1909
  %v1911 = vpop.f32.mrf.mxu0
  %v1912 = vadd.f32 %v1051, %v1911
  %1913 = vmatmul.bf16.gmra.mxu0 %v1672
  %v1914 = vpop.f32.mrf.mxu0
  %v1915 = vadd.f32 %v1054, %v1914
  %v1916 = vpop.f32.mrf.mxu0
  %v1917 = vadd.f32 %v1056, %v1916
  %1918 = vmatmul.bf16.gmra.mxu0 %v1675
  %v1919 = vpop.f32.mrf.mxu0
  %v1920 = vadd.f32 %v1059, %v1919
  %v1921 = vpop.f32.mrf.mxu0
  %v1922 = vadd.f32 %v1061, %v1921
  %1923 = vmatmul.bf16.gmra.mxu0 %v1678
  %v1924 = vpop.f32.mrf.mxu0
  %v1925 = vadd.f32 %v1064, %v1924
  %v1926 = vpop.f32.mrf.mxu0
  %v1927 = vadd.f32 %v1066, %v1926
  %1928 = vmatmul.bf16.gmra.mxu0 %v1681
  %v1929 = vpop.f32.mrf.mxu0
  %v1930 = vadd.f32 %v1069, %v1929
  %v1931 = vpop.f32.mrf.mxu0
  %v1932 = vadd.f32 %v1071, %v1931
  %1933 = vmatmul.bf16.gmra.mxu0 %v1684
  %v1934 = vpop.f32.mrf.mxu0
  %v1935 = vadd.f32 %v1074, %v1934
  %v1936 = vpop.f32.mrf.mxu0
  %v1937 = vadd.f32 %v1076, %v1936
  %1938 = vmatmul.bf16.gmra.mxu0 %v1687
  %v1939 = vpop.f32.mrf.mxu0
  %v1940 = vadd.f32 %v1079, %v1939
  %v1941 = vpop.f32.mrf.mxu0
  %v1942 = vadd.f32 %v1081, %v1941
  %1943 = vmatmul.bf16.gmra.mxu0 %v1690
  %v1944 = vpop.f32.mrf.mxu0
  %v1945 = vadd.f32 %v1084, %v1944
  %v1946 = vpop.f32.mrf.mxu0
  %v1947 = vadd.f32 %v1086, %v1946
  %1948 = vmatmul.bf16.gmra.mxu0 %v1693
  %v1949 = vpop.f32.mrf.mxu0
  %v1950 = vadd.f32 %v1089, %v1949
  %v1951 = vpop.f32.mrf.mxu0
  %v1952 = vadd.f32 %v1091, %v1951
  %1953 = vmatmul.bf16.gmra.mxu0 %v1696
  %v1954 = vpop.f32.mrf.mxu0
  %v1955 = vadd.f32 %v1094, %v1954
  %v1956 = vpop.f32.mrf.mxu0
  %v1957 = vadd.f32 %v1096, %v1956
  %1958 = vmatmul.bf16.gmra.mxu0 %v1699
  %v1959 = vpop.f32.mrf.mxu0
  %v1960 = vadd.f32 %v1099, %v1959
  %v1961 = vpop.f32.mrf.mxu0
  %v1962 = vadd.f32 %v1101, %v1961
  %1963 = vmatmul.bf16.gmra.mxu0 %v1702
  %v1964 = vpop.f32.mrf.mxu0
  %v1965 = vadd.f32 %v1104, %v1964
  %v1966 = vpop.f32.mrf.mxu0
  %v1967 = vadd.f32 %v1106, %v1966
  %1968 = vmatmul.bf16.gmra.mxu0 %v1705
  %v1969 = vpop.f32.mrf.mxu0
  %v1970 = vadd.f32 %v1109, %v1969
  %v1971 = vpop.f32.mrf.mxu0
  %v1972 = vadd.f32 %v1111, %v1971
  %1973 = vmatmul.bf16.gmra.mxu0 %v1708
  %v1974 = vpop.f32.mrf.mxu0
  %v1975 = vadd.f32 %v1114, %v1974
  %v1976 = vpop.f32.mrf.mxu0
  %v1977 = vadd.f32 %v1116, %v1976
  %1978 = vmatmul.bf16.gmra.mxu0 %v1711
  %v1979 = vpop.f32.mrf.mxu0
  %v1980 = vadd.f32 %v1119, %v1979
  %v1981 = vpop.f32.mrf.mxu0
  %v1982 = vadd.f32 %v1121, %v1981
  %1983 = vmatmul.bf16.gmra.mxu0 %v1714
  %v1984 = vpop.f32.mrf.mxu0
  %v1985 = vadd.f32 %v1124, %v1984
  %v1986 = vpop.f32.mrf.mxu0
  %v1987 = vadd.f32 %v1126, %v1986
  %1988 = vmatmul.bf16.gmra.mxu0 %v1717
  %v1989 = vpop.f32.mrf.mxu0
  %v1990 = vadd.f32 %v1129, %v1989
  %v1991 = vpop.f32.mrf.mxu0
  %v1992 = vadd.f32 %v1131, %v1991
  %1993 = vmatmul.bf16.gmra.mxu0 %v1720
  %v1994 = vpop.f32.mrf.mxu0
  %v1995 = vadd.f32 %v1134, %v1994
  %v1996 = vpop.f32.mrf.mxu0
  %v1997 = vadd.f32 %v1136, %v1996
  %1998 = vmatmul.bf16.gmra.mxu0 %v1723
  %v1999 = vpop.f32.mrf.mxu0
  %v2000 = vadd.f32 %v1139, %v1999
  %v2001 = vpop.f32.mrf.mxu0
  %v2002 = vadd.f32 %v1141, %v2001
  %2003 = vmatmul.bf16.gmra.mxu0 %v1726
  %v2004 = vpop.f32.mrf.mxu0
  %v2005 = vadd.f32 %v1144, %v2004
  %v2006 = vpop.f32.mrf.mxu0
  %v2007 = vadd.f32 %v1146, %v2006
  %2008 = vmatmul.bf16.gmra.mxu0 %v1729
  %v2009 = vpop.f32.mrf.mxu0
  %v2010 = vadd.f32 %v1149, %v2009
  %v2011 = vpop.f32.mrf.mxu0
  %v2012 = vadd.f32 %v1151, %v2011
  %2013 = vmatmul.bf16.gmra.mxu0 %v1732
  %v2014 = vpop.f32.mrf.mxu0
  %v2015 = vadd.f32 %v1154, %v2014
  %v2016 = vpop.f32.mrf.mxu0
  %v2017 = vadd.f32 %v1156, %v2016
  %2018 = vmatmul.bf16.gmra.mxu0 %v1735
  %v2019 = vpop.f32.mrf.mxu0
  %v2020 = vadd.f32 %v1159, %v2019
  %v2021 = vpop.f32.mrf.mxu0
  %v2022 = vadd.f32 %v1161, %v2021
  %2023 = vmatmul.bf16.gmra.mxu0 %v1738
  %v2024 = vpop.f32.mrf.mxu0
  %v2025 = vadd.f32 %v1164, %v2024
  %v2026 = vpop.f32.mrf.mxu0
  %v2027 = vadd.f32 %v1166, %v2026
  %2028 = vmatmul.bf16.gmra.mxu0 %v1741
  %v2029 = vpop.f32.mrf.mxu0
  %v2030 = vadd.f32 %v1169, %v2029
  %v2031 = vpop.f32.mrf.mxu0
  %v2032 = vadd.f32 %v1171, %v2031
  %2033 = vmatmul.bf16.gmra.mxu0 %v1744
  %v2034 = vpop.f32.mrf.mxu0
  %v2035 = vadd.f32 %v1174, %v2034
  %v2036 = vpop.f32.mrf.mxu0
  %v2037 = vadd.f32 %v1176, %v2036
  %2038 = vmatmul.bf16.gmra.mxu0 %v1747
  %v2039 = vpop.f32.mrf.mxu0
  %v2040 = vadd.f32 %v1179, %v2039
  %v2041 = vpop.f32.mrf.mxu0
  %v2042 = vadd.f32 %v1181, %v2041
  %2043 = vmatmul.bf16.gmra.mxu0 %v1750
  %v2044 = vpop.f32.mrf.mxu0
  %v2045 = vadd.f32 %v1184, %v2044
  %v2046 = vpop.f32.mrf.mxu0
  %v2047 = vadd.f32 %v1186, %v2046
  %2048 = vmatmul.bf16.gmra.mxu0 %v1753
  %v2049 = vpop.f32.mrf.mxu0
  %v2050 = vadd.f32 %v1189, %v2049
  %v2051 = vpop.f32.mrf.mxu0
  %v2052 = vadd.f32 %v1191, %v2051
  %2053 = vmatmul.bf16.gmra.mxu0 %v1756
  %v2054 = vpop.f32.mrf.mxu0
  %v2055 = vadd.f32 %v1194, %v2054
  %v2056 = vpop.f32.mrf.mxu0
  %v2057 = vadd.f32 %v1196, %v2056
  %2058 = vmatmul.bf16.gmra.mxu0 %v1759
  %v2059 = vpop.f32.mrf.mxu0
  %v2060 = vadd.f32 %v1199, %v2059
  %v2061 = vpop.f32.mrf.mxu0
  %v2062 = vadd.f32 %v1201, %v2061
  %2063 = vmatmul.bf16.gmra.mxu0 %v1762
  %v2064 = vpop.f32.mrf.mxu0
  %v2065 = vadd.f32 %v1204, %v2064
  %v2066 = vpop.f32.mrf.mxu0
  %v2067 = vadd.f32 %v1206, %v2066
  %2068 = vmatmul.bf16.gmra.mxu0 %v1765
  %v2069 = vpop.f32.mrf.mxu0
  %v2070 = vadd.f32 %v1209, %v2069
  %v2071 = vpop.f32.mrf.mxu0
  %v2072 = vadd.f32 %v1211, %v2071
  %2073 = vmatmul.bf16.gmra.mxu0 %v1768
  %v2074 = vpop.f32.mrf.mxu0
  %v2075 = vadd.f32 %v1214, %v2074
  %v2076 = vpop.f32.mrf.mxu0
  %v2077 = vadd.f32 %v1216, %v2076
  %2078 = vmatmul.bf16.gmra.mxu0 %v1771
  %v2079 = vpop.f32.mrf.mxu0
  %v2080 = vadd.f32 %v1219, %v2079
  %v2081 = vpop.f32.mrf.mxu0
  %v2082 = vadd.f32 %v1221, %v2081
  %2083 = vmatmul.bf16.gmra.mxu0 %v1774
  %v2084 = vpop.f32.mrf.mxu0
  %v2085 = vadd.f32 %v1224, %v2084
  %v2086 = vpop.f32.mrf.mxu0
  %v2087 = vadd.f32 %v1226, %v2086
  %2088 = vmatmul.bf16.gmra.mxu0 %v1777
  %v2089 = vpop.f32.mrf.mxu0
  %v2090 = vadd.f32 %v1229, %v2089
  %v2091 = vpop.f32.mrf.mxu0
  %v2092 = vadd.f32 %v1231, %v2091
  %2093 = vmatmul.bf16.gmra.mxu0 %v1780
  %v2094 = vpop.f32.mrf.mxu0
  %v2095 = vadd.f32 %v1234, %v2094
  %v2096 = vpop.f32.mrf.mxu0
  %v2097 = vadd.f32 %v1236, %v2096
  %2098 = vmatmul.bf16.gmra.mxu0 %v1783
  %v2099 = vpop.f32.mrf.mxu0
  %v2100 = vadd.f32 %v1239, %v2099
  %v2101 = vpop.f32.mrf.mxu0
  %v2102 = vadd.f32 %v1241, %v2101
  %2103 = vmatmul.bf16.gmra.mxu0 %v1786
  %v2104 = vpop.f32.mrf.mxu0
  %v2105 = vadd.f32 %v1244, %v2104
  %v2106 = vpop.f32.mrf.mxu0
  %v2107 = vadd.f32 %v1246, %v2106
  %2108 = vmatmul.bf16.gmra.mxu0 %v1789
  %v2109 = vpop.f32.mrf.mxu0
  %v2110 = vadd.f32 %v1249, %v2109
  %v2111 = vpop.f32.mrf.mxu0
  %v2112 = vadd.f32 %v1251, %v2111
  %2113 = vmatmul.bf16.gmra.mxu0 %v1792
  %v2114 = vpop.f32.mrf.mxu0
  %v2115 = vadd.f32 %v1254, %v2114
  %v2116 = vpop.f32.mrf.mxu0
  %v2117 = vadd.f32 %v1256, %v2116
  %2118 = vmatmul.bf16.gmra.mxu0 %v1795
  %v2119 = vpop.f32.mrf.mxu0
  %v2120 = vadd.f32 %v1259, %v2119
  %v2121 = vpop.f32.mrf.mxu0
  %v2122 = vadd.f32 %v1261, %v2121
  %2123 = vmatmul.bf16.gmra.mxu0 %v1798
  %v2124 = vpop.f32.mrf.mxu0
  %v2125 = vadd.f32 %v1264, %v2124
  %v2126 = vpop.f32.mrf.mxu0
  %v2127 = vadd.f32 %v1266, %v2126
  %2128 = vmatmul.bf16.gmra.mxu0 %v1801
  %v2129 = vpop.f32.mrf.mxu0
  %v2130 = vadd.f32 %v1269, %v2129
  %v2131 = vpop.f32.mrf.mxu0
  %v2132 = vadd.f32 %v1271, %v2131
  %2133 = vmatmul.bf16.gmra.mxu0 %v1804
  %v2134 = vpop.f32.mrf.mxu0
  %v2135 = vadd.f32 %v1274, %v2134
  %v2136 = vpop.f32.mrf.mxu0
  %v2137 = vadd.f32 %v1276, %v2136
  %2138 = vdwg.mxu0
  %v2139 = vld [vmem:[%s8] sm:$0x1]
  %v2141 = vperm.slane %v2139, 0
  %v2143 = vadd.f32 %v1820, %v2141
  %v2144 = vadd.f32 %v1822, %v2141
  %v2145 = vadd.f32 %v1825, %v2141
  %v2146 = vadd.f32 %v1827, %v2141
  %v2147 = vadd.f32 %v1830, %v2141
  %v2148 = vadd.f32 %v1832, %v2141
  %v2149 = vadd.f32 %v1835, %v2141
  %v2150 = vadd.f32 %v1837, %v2141
  %v2151 = vadd.f32 %v1840, %v2141
  %v2152 = vadd.f32 %v1842, %v2141
  %v2153 = vadd.f32 %v1845, %v2141
  %v2154 = vadd.f32 %v1847, %v2141
  %v2155 = vadd.f32 %v1850, %v2141
  %v2156 = vadd.f32 %v1852, %v2141
  %v2157 = vadd.f32 %v1855, %v2141
  %v2158 = vadd.f32 %v1857, %v2141
  %v2159 = vadd.f32 %v1860, %v2141
  %v2160 = vadd.f32 %v1862, %v2141
  %v2161 = vadd.f32 %v1865, %v2141
  %v2162 = vadd.f32 %v1867, %v2141
  %v2163 = vadd.f32 %v1870, %v2141
  %v2164 = vadd.f32 %v1872, %v2141
  %v2165 = vadd.f32 %v1875, %v2141
  %v2166 = vadd.f32 %v1877, %v2141
  %v2167 = vadd.f32 %v1880, %v2141
  %v2168 = vadd.f32 %v1882, %v2141
  %v2169 = vadd.f32 %v1885, %v2141
  %v2170 = vadd.f32 %v1887, %v2141
  %v2171 = vadd.f32 %v1890, %v2141
  %v2172 = vadd.f32 %v1892, %v2141
  %v2173 = vadd.f32 %v1895, %v2141
  %v2174 = vadd.f32 %v1897, %v2141
  %v2175 = vadd.f32 %v1900, %v2141
  %v2176 = vadd.f32 %v1902, %v2141
  %v2177 = vadd.f32 %v1905, %v2141
  %v2178 = vadd.f32 %v1907, %v2141
  %v2179 = vadd.f32 %v1910, %v2141
  %v2180 = vadd.f32 %v1912, %v2141
  %v2181 = vadd.f32 %v1915, %v2141
  %v2182 = vadd.f32 %v1917, %v2141
  %v2183 = vadd.f32 %v1920, %v2141
  %v2184 = vadd.f32 %v1922, %v2141
  %v2185 = vadd.f32 %v1925, %v2141
  %v2186 = vadd.f32 %v1927, %v2141
  %v2187 = vadd.f32 %v1930, %v2141
  %v2188 = vadd.f32 %v1932, %v2141
  %v2189 = vadd.f32 %v1935, %v2141
  %v2190 = vadd.f32 %v1937, %v2141
  %v2191 = vadd.f32 %v1940, %v2141
  %v2192 = vadd.f32 %v1942, %v2141
  %v2193 = vadd.f32 %v1945, %v2141
  %v2194 = vadd.f32 %v1947, %v2141
  %v2195 = vadd.f32 %v1950, %v2141
  %v2196 = vadd.f32 %v1952, %v2141
  %v2197 = vadd.f32 %v1955, %v2141
  %v2198 = vadd.f32 %v1957, %v2141
  %v2199 = vadd.f32 %v1960, %v2141
  %v2200 = vadd.f32 %v1962, %v2141
  %v2201 = vadd.f32 %v1965, %v2141
  %v2202 = vadd.f32 %v1967, %v2141
  %v2203 = vadd.f32 %v1970, %v2141
  %v2204 = vadd.f32 %v1972, %v2141
  %v2205 = vadd.f32 %v1975, %v2141
  %v2206 = vadd.f32 %v1977, %v2141
  %v2207 = vadd.f32 %v1980, %v2141
  %v2208 = vadd.f32 %v1982, %v2141
  %v2209 = vadd.f32 %v1985, %v2141
  %v2210 = vadd.f32 %v1987, %v2141
  %v2211 = vadd.f32 %v1990, %v2141
  %v2212 = vadd.f32 %v1992, %v2141
  %v2213 = vadd.f32 %v1995, %v2141
  %v2214 = vadd.f32 %v1997, %v2141
  %v2215 = vadd.f32 %v2000, %v2141
  %v2216 = vadd.f32 %v2002, %v2141
  %v2217 = vadd.f32 %v2005, %v2141
  %v2218 = vadd.f32 %v2007, %v2141
  %v2219 = vadd.f32 %v2010, %v2141
  %v2220 = vadd.f32 %v2012, %v2141
  %v2221 = vadd.f32 %v2015, %v2141
  %v2222 = vadd.f32 %v2017, %v2141
  %v2223 = vadd.f32 %v2020, %v2141
  %v2224 = vadd.f32 %v2022, %v2141
  %v2225 = vadd.f32 %v2025, %v2141
  %v2226 = vadd.f32 %v2027, %v2141
  %v2227 = vadd.f32 %v2030, %v2141
  %v2228 = vadd.f32 %v2032, %v2141
  %v2229 = vadd.f32 %v2035, %v2141
  %v2230 = vadd.f32 %v2037, %v2141
  %v2231 = vadd.f32 %v2040, %v2141
  %v2232 = vadd.f32 %v2042, %v2141
  %v2233 = vadd.f32 %v2045, %v2141
  %v2234 = vadd.f32 %v2047, %v2141
  %v2235 = vadd.f32 %v2050, %v2141
  %v2236 = vadd.f32 %v2052, %v2141
  %v2237 = vadd.f32 %v2055, %v2141
  %v2238 = vadd.f32 %v2057, %v2141
  %v2239 = vadd.f32 %v2060, %v2141
  %v2240 = vadd.f32 %v2062, %v2141
  %v2241 = vadd.f32 %v2065, %v2141
  %v2242 = vadd.f32 %v2067, %v2141
  %v2243 = vadd.f32 %v2070, %v2141
  %v2244 = vadd.f32 %v2072, %v2141
  %v2245 = vadd.f32 %v2075, %v2141
  %v2246 = vadd.f32 %v2077, %v2141
  %v2247 = vadd.f32 %v2080, %v2141
  %v2248 = vadd.f32 %v2082, %v2141
  %v2249 = vadd.f32 %v2085, %v2141
  %v2250 = vadd.f32 %v2087, %v2141
  %v2251 = vadd.f32 %v2090, %v2141
  %v2252 = vadd.f32 %v2092, %v2141
  %v2253 = vadd.f32 %v2095, %v2141
  %v2254 = vadd.f32 %v2097, %v2141
  %v2255 = vadd.f32 %v2100, %v2141
  %v2256 = vadd.f32 %v2102, %v2141
  %v2257 = vadd.f32 %v2105, %v2141
  %v2258 = vadd.f32 %v2107, %v2141
  %v2259 = vadd.f32 %v2110, %v2141
  %v2260 = vadd.f32 %v2112, %v2141
  %v2261 = vadd.f32 %v2115, %v2141
  %v2262 = vadd.f32 %v2117, %v2141
  %v2263 = vadd.f32 %v2120, %v2141
  %v2264 = vadd.f32 %v2122, %v2141
  %v2265 = vadd.f32 %v2125, %v2141
  %v2266 = vadd.f32 %v2127, %v2141
  %v2267 = vadd.f32 %v2130, %v2141
  %v2268 = vadd.f32 %v2132, %v2141
  %v2269 = vadd.f32 %v2135, %v2141
  %v2270 = vadd.f32 %v2137, %v2141
  %v2271 = vxor.u32 %v2143, 2147483648
  %v2272 = vxor.u32 %v2144, 2147483648
  %v2273 = vxor.u32 %v2145, 2147483648
  %v2274 = vxor.u32 %v2146, 2147483648
  %v2275 = vxor.u32 %v2147, 2147483648
  %v2276 = vxor.u32 %v2148, 2147483648
  %v2277 = vxor.u32 %v2149, 2147483648
  %v2278 = vxor.u32 %v2150, 2147483648
  %v2279 = vxor.u32 %v2151, 2147483648
  %v2280 = vxor.u32 %v2152, 2147483648
  %v2281 = vxor.u32 %v2153, 2147483648
  %v2282 = vxor.u32 %v2154, 2147483648
  %v2283 = vxor.u32 %v2155, 2147483648
  %v2284 = vxor.u32 %v2156, 2147483648
  %v2285 = vxor.u32 %v2157, 2147483648
  %v2286 = vxor.u32 %v2158, 2147483648
  %v2287 = vxor.u32 %v2159, 2147483648
  %v2288 = vxor.u32 %v2160, 2147483648
  %v2289 = vxor.u32 %v2161, 2147483648
  %v2290 = vxor.u32 %v2162, 2147483648
  %v2291 = vxor.u32 %v2163, 2147483648
  %v2292 = vxor.u32 %v2164, 2147483648
  %v2293 = vxor.u32 %v2165, 2147483648
  %v2294 = vxor.u32 %v2166, 2147483648
  %v2295 = vxor.u32 %v2167, 2147483648
  %v2296 = vxor.u32 %v2168, 2147483648
  %v2297 = vxor.u32 %v2169, 2147483648
  %v2298 = vxor.u32 %v2170, 2147483648
  %v2299 = vxor.u32 %v2171, 2147483648
  %v2300 = vxor.u32 %v2172, 2147483648
  %v2301 = vxor.u32 %v2173, 2147483648
  %v2302 = vxor.u32 %v2174, 2147483648
  %v2303 = vxor.u32 %v2175, 2147483648
  %v2304 = vxor.u32 %v2176, 2147483648
  %v2305 = vxor.u32 %v2177, 2147483648
  %v2306 = vxor.u32 %v2178, 2147483648
  %v2307 = vxor.u32 %v2179, 2147483648
  %v2308 = vxor.u32 %v2180, 2147483648
  %v2309 = vxor.u32 %v2181, 2147483648
  %v2310 = vxor.u32 %v2182, 2147483648
  %v2311 = vxor.u32 %v2183, 2147483648
  %v2312 = vxor.u32 %v2184, 2147483648
  %v2313 = vxor.u32 %v2185, 2147483648
  %v2314 = vxor.u32 %v2186, 2147483648
  %v2315 = vxor.u32 %v2187, 2147483648
  %v2316 = vxor.u32 %v2188, 2147483648
  %v2317 = vxor.u32 %v2189, 2147483648
  %v2318 = vxor.u32 %v2190, 2147483648
  %v2319 = vxor.u32 %v2191, 2147483648
  %v2320 = vxor.u32 %v2192, 2147483648
  %v2321 = vxor.u32 %v2193, 2147483648
  %v2322 = vxor.u32 %v2194, 2147483648
  %v2323 = vxor.u32 %v2195, 2147483648
  %v2324 = vxor.u32 %v2196, 2147483648
  %v2325 = vxor.u32 %v2197, 2147483648
  %v2326 = vxor.u32 %v2198, 2147483648
  %v2327 = vxor.u32 %v2199, 2147483648
  %v2328 = vxor.u32 %v2200, 2147483648
  %v2329 = vxor.u32 %v2201, 2147483648
  %v2330 = vxor.u32 %v2202, 2147483648
  %v2331 = vxor.u32 %v2203, 2147483648
  %v2332 = vxor.u32 %v2204, 2147483648
  %v2333 = vxor.u32 %v2205, 2147483648
  %v2334 = vxor.u32 %v2206, 2147483648
  %v2335 = vxor.u32 %v2207, 2147483648
  %v2336 = vxor.u32 %v2208, 2147483648
  %v2337 = vxor.u32 %v2209, 2147483648
  %v2338 = vxor.u32 %v2210, 2147483648
  %v2339 = vxor.u32 %v2211, 2147483648
  %v2340 = vxor.u32 %v2212, 2147483648
  %v2341 = vxor.u32 %v2213, 2147483648
  %v2342 = vxor.u32 %v2214, 2147483648
  %v2343 = vxor.u32 %v2215, 2147483648
  %v2344 = vxor.u32 %v2216, 2147483648
  %v2345 = vxor.u32 %v2217, 2147483648
  %v2346 = vxor.u32 %v2218, 2147483648
  %v2347 = vxor.u32 %v2219, 2147483648
  %v2348 = vxor.u32 %v2220, 2147483648
  %v2349 = vxor.u32 %v2221, 2147483648
  %v2350 = vxor.u32 %v2222, 2147483648
  %v2351 = vxor.u32 %v2223, 2147483648
  %v2352 = vxor.u32 %v2224, 2147483648
  %v2353 = vxor.u32 %v2225, 2147483648
  %v2354 = vxor.u32 %v2226, 2147483648
  %v2355 = vxor.u32 %v2227, 2147483648
  %v2356 = vxor.u32 %v2228, 2147483648
  %v2357 = vxor.u32 %v2229, 2147483648
  %v2358 = vxor.u32 %v2230, 2147483648
  %v2359 = vxor.u32 %v2231, 2147483648
  %v2360 = vxor.u32 %v2232, 2147483648
  %v2361 = vxor.u32 %v2233, 2147483648
  %v2362 = vxor.u32 %v2234, 2147483648
  %v2363 = vxor.u32 %v2235, 2147483648
  %v2364 = vxor.u32 %v2236, 2147483648
  %v2365 = vxor.u32 %v2237, 2147483648
  %v2366 = vxor.u32 %v2238, 2147483648
  %v2367 = vxor.u32 %v2239, 2147483648
  %v2368 = vxor.u32 %v2240, 2147483648
  %v2369 = vxor.u32 %v2241, 2147483648
  %v2370 = vxor.u32 %v2242, 2147483648
  %v2371 = vxor.u32 %v2243, 2147483648
  %v2372 = vxor.u32 %v2244, 2147483648
  %v2373 = vxor.u32 %v2245, 2147483648
  %v2374 = vxor.u32 %v2246, 2147483648
  %v2375 = vxor.u32 %v2247, 2147483648
  %v2376 = vxor.u32 %v2248, 2147483648
  %v2377 = vxor.u32 %v2249, 2147483648
  %v2378 = vxor.u32 %v2250, 2147483648
  %v2379 = vxor.u32 %v2251, 2147483648
  %v2380 = vxor.u32 %v2252, 2147483648
  %v2381 = vxor.u32 %v2253, 2147483648
  %v2382 = vxor.u32 %v2254, 2147483648
  %v2383 = vxor.u32 %v2255, 2147483648
  %v2384 = vxor.u32 %v2256, 2147483648
  %v2385 = vxor.u32 %v2257, 2147483648
  %v2386 = vxor.u32 %v2258, 2147483648
  %v2387 = vxor.u32 %v2259, 2147483648
  %v2388 = vxor.u32 %v2260, 2147483648
  %v2389 = vxor.u32 %v2261, 2147483648
  %v2390 = vxor.u32 %v2262, 2147483648
  %v2391 = vxor.u32 %v2263, 2147483648
  %v2392 = vxor.u32 %v2264, 2147483648
  %v2393 = vxor.u32 %v2265, 2147483648
  %v2394 = vxor.u32 %v2266, 2147483648
  %v2395 = vxor.u32 %v2267, 2147483648
  %v2396 = vxor.u32 %v2268, 2147483648
  %v2397 = vxor.u32 %v2269, 2147483648
  %v2398 = vxor.u32 %v2270, 2147483648
  %v2399 = vmul.f32 %v2271, 1.442695
  %v2400 = vpow.pop %v2399
  %v2401 = vmul.f32 %v2272, 1.442695
  %v2402 = vpow.pop %v2401
  %v2403 = vmul.f32 %v2273, 1.442695
  %v2404 = vpow.pop %v2403
  %v2405 = vmul.f32 %v2274, 1.442695
  %v2406 = vpow.pop %v2405
  %v2407 = vmul.f32 %v2275, 1.442695
  %v2408 = vpow.pop %v2407
  %v2409 = vmul.f32 %v2276, 1.442695
  %v2410 = vpow.pop %v2409
  %v2411 = vmul.f32 %v2277, 1.442695
  %v2412 = vpow.pop %v2411
  %v2413 = vmul.f32 %v2278, 1.442695
  %v2414 = vpow.pop %v2413
  %v2415 = vmul.f32 %v2279, 1.442695
  %v2416 = vpow.pop %v2415
  %v2417 = vmul.f32 %v2280, 1.442695
  %v2418 = vpow.pop %v2417
  %v2419 = vmul.f32 %v2281, 1.442695
  %v2420 = vpow.pop %v2419
  %v2421 = vmul.f32 %v2282, 1.442695
  %v2422 = vpow.pop %v2421
  %v2423 = vmul.f32 %v2283, 1.442695
  %v2424 = vpow.pop %v2423
  %v2425 = vmul.f32 %v2284, 1.442695
  %v2426 = vpow.pop %v2425
  %v2427 = vmul.f32 %v2285, 1.442695
  %v2428 = vpow.pop %v2427
  %v2429 = vmul.f32 %v2286, 1.442695
  %v2430 = vpow.pop %v2429
  %v2431 = vmul.f32 %v2287, 1.442695
  %v2432 = vpow.pop %v2431
  %v2433 = vmul.f32 %v2288, 1.442695
  %v2434 = vpow.pop %v2433
  %v2435 = vmul.f32 %v2289, 1.442695
  %v2436 = vpow.pop %v2435
  %v2437 = vmul.f32 %v2290, 1.442695
  %v2438 = vpow.pop %v2437
  %v2439 = vmul.f32 %v2291, 1.442695
  %v2440 = vpow.pop %v2439
  %v2441 = vmul.f32 %v2292, 1.442695
  %v2442 = vpow.pop %v2441
  %v2443 = vmul.f32 %v2293, 1.442695
  %v2444 = vpow.pop %v2443
  %v2445 = vmul.f32 %v2294, 1.442695
  %v2446 = vpow.pop %v2445
  %v2447 = vmul.f32 %v2295, 1.442695
  %v2448 = vpow.pop %v2447
  %v2449 = vmul.f32 %v2296, 1.442695
  %v2450 = vpow.pop %v2449
  %v2451 = vmul.f32 %v2297, 1.442695
  %v2452 = vpow.pop %v2451
  %v2453 = vmul.f32 %v2298, 1.442695
  %v2454 = vpow.pop %v2453
  %v2455 = vmul.f32 %v2299, 1.442695
  %v2456 = vpow.pop %v2455
  %v2457 = vmul.f32 %v2300, 1.442695
  %v2458 = vpow.pop %v2457
  %v2459 = vmul.f32 %v2301, 1.442695
  %v2460 = vpow.pop %v2459
  %v2461 = vmul.f32 %v2302, 1.442695
  %v2462 = vpow.pop %v2461
  %v2463 = vmul.f32 %v2303, 1.442695
  %v2464 = vpow.pop %v2463
  %v2465 = vmul.f32 %v2304, 1.442695
  %v2466 = vpow.pop %v2465
  %v2467 = vmul.f32 %v2305, 1.442695
  %v2468 = vpow.pop %v2467
  %v2469 = vmul.f32 %v2306, 1.442695
  %v2470 = vpow.pop %v2469
  %v2471 = vmul.f32 %v2307, 1.442695
  %v2472 = vpow.pop %v2471
  %v2473 = vmul.f32 %v2308, 1.442695
  %v2474 = vpow.pop %v2473
  %v2475 = vmul.f32 %v2309, 1.442695
  %v2476 = vpow.pop %v2475
  %v2477 = vmul.f32 %v2310, 1.442695
  %v2478 = vpow.pop %v2477
  %v2479 = vmul.f32 %v2311, 1.442695
  %v2480 = vpow.pop %v2479
  %v2481 = vmul.f32 %v2312, 1.442695
  %v2482 = vpow.pop %v2481
  %v2483 = vmul.f32 %v2313, 1.442695
  %v2484 = vpow.pop %v2483
  %v2485 = vmul.f32 %v2314, 1.442695
  %v2486 = vpow.pop %v2485
  %v2487 = vmul.f32 %v2315, 1.442695
  %v2488 = vpow.pop %v2487
  %v2489 = vmul.f32 %v2316, 1.442695
  %v2490 = vpow.pop %v2489
  %v2491 = vmul.f32 %v2317, 1.442695
  %v2492 = vpow.pop %v2491
  %v2493 = vmul.f32 %v2318, 1.442695
  %v2494 = vpow.pop %v2493
  %v2495 = vmul.f32 %v2319, 1.442695
  %v2496 = vpow.pop %v2495
  %v2497 = vmul.f32 %v2320, 1.442695
  %v2498 = vpow.pop %v2497
  %v2499 = vmul.f32 %v2321, 1.442695
  %v2500 = vpow.pop %v2499
  %v2501 = vmul.f32 %v2322, 1.442695
  %v2502 = vpow.pop %v2501
  %v2503 = vmul.f32 %v2323, 1.442695
  %v2504 = vpow.pop %v2503
  %v2505 = vmul.f32 %v2324, 1.442695
  %v2506 = vpow.pop %v2505
  %v2507 = vmul.f32 %v2325, 1.442695
  %v2508 = vpow.pop %v2507
  %v2509 = vmul.f32 %v2326, 1.442695
  %v2510 = vpow.pop %v2509
  %v2511 = vmul.f32 %v2327, 1.442695
  %v2512 = vpow.pop %v2511
  %v2513 = vmul.f32 %v2328, 1.442695
  %v2514 = vpow.pop %v2513
  %v2515 = vmul.f32 %v2329, 1.442695
  %v2516 = vpow.pop %v2515
  %v2517 = vmul.f32 %v2330, 1.442695
  %v2518 = vpow.pop %v2517
  %v2519 = vmul.f32 %v2331, 1.442695
  %v2520 = vpow.pop %v2519
  %v2521 = vmul.f32 %v2332, 1.442695
  %v2522 = vpow.pop %v2521
  %v2523 = vmul.f32 %v2333, 1.442695
  %v2524 = vpow.pop %v2523
  %v2525 = vmul.f32 %v2334, 1.442695
  %v2526 = vpow.pop %v2525
  %v2527 = vmul.f32 %v2335, 1.442695
  %v2528 = vpow.pop %v2527
  %v2529 = vmul.f32 %v2336, 1.442695
  %v2530 = vpow.pop %v2529
  %v2531 = vmul.f32 %v2337, 1.442695
  %v2532 = vpow.pop %v2531
  %v2533 = vmul.f32 %v2338, 1.442695
  %v2534 = vpow.pop %v2533
  %v2535 = vmul.f32 %v2339, 1.442695
  %v2536 = vpow.pop %v2535
  %v2537 = vmul.f32 %v2340, 1.442695
  %v2538 = vpow.pop %v2537
  %v2539 = vmul.f32 %v2341, 1.442695
  %v2540 = vpow.pop %v2539
  %v2541 = vmul.f32 %v2342, 1.442695
  %v2542 = vpow.pop %v2541
  %v2543 = vmul.f32 %v2343, 1.442695
  %v2544 = vpow.pop %v2543
  %v2545 = vmul.f32 %v2344, 1.442695
  %v2546 = vpow.pop %v2545
  %v2547 = vmul.f32 %v2345, 1.442695
  %v2548 = vpow.pop %v2547
  %v2549 = vmul.f32 %v2346, 1.442695
  %v2550 = vpow.pop %v2549
  %v2551 = vmul.f32 %v2347, 1.442695
  %v2552 = vpow.pop %v2551
  %v2553 = vmul.f32 %v2348, 1.442695
  %v2554 = vpow.pop %v2553
  %v2555 = vmul.f32 %v2349, 1.442695
  %v2556 = vpow.pop %v2555
  %v2557 = vmul.f32 %v2350, 1.442695
  %v2558 = vpow.pop %v2557
  %v2559 = vmul.f32 %v2351, 1.442695
  %v2560 = vpow.pop %v2559
  %v2561 = vmul.f32 %v2352, 1.442695
  %v2562 = vpow.pop %v2561
  %v2563 = vmul.f32 %v2353, 1.442695
  %v2564 = vpow.pop %v2563
  %v2565 = vmul.f32 %v2354, 1.442695
  %v2566 = vpow.pop %v2565
  %v2567 = vmul.f32 %v2355, 1.442695
  %v2568 = vpow.pop %v2567
  %v2569 = vmul.f32 %v2356, 1.442695
  %v2570 = vpow.pop %v2569
  %v2571 = vmul.f32 %v2357, 1.442695
  %v2572 = vpow.pop %v2571
  %v2573 = vmul.f32 %v2358, 1.442695
  %v2574 = vpow.pop %v2573
  %v2575 = vmul.f32 %v2359, 1.442695
  %v2576 = vpow.pop %v2575
  %v2577 = vmul.f32 %v2360, 1.442695
  %v2578 = vpow.pop %v2577
  %v2579 = vmul.f32 %v2361, 1.442695
  %v2580 = vpow.pop %v2579
  %v2581 = vmul.f32 %v2362, 1.442695
  %v2582 = vpow.pop %v2581
  %v2583 = vmul.f32 %v2363, 1.442695
  %v2584 = vpow.pop %v2583
  %v2585 = vmul.f32 %v2364, 1.442695
  %v2586 = vpow.pop %v2585
  %v2587 = vmul.f32 %v2365, 1.442695
  %v2588 = vpow.pop %v2587
  %v2589 = vmul.f32 %v2366, 1.442695
  %v2590 = vpow.pop %v2589
  %v2591 = vmul.f32 %v2367, 1.442695
  %v2592 = vpow.pop %v2591
  %v2593 = vmul.f32 %v2368, 1.442695
  %v2594 = vpow.pop %v2593
  %v2595 = vmul.f32 %v2369, 1.442695
  %v2596 = vpow.pop %v2595
  %v2597 = vmul.f32 %v2370, 1.442695
  %v2598 = vpow.pop %v2597
  %v2599 = vmul.f32 %v2371, 1.442695
  %v2600 = vpow.pop %v2599
  %v2601 = vmul.f32 %v2372, 1.442695
  %v2602 = vpow.pop %v2601
  %v2603 = vmul.f32 %v2373, 1.442695
  %v2604 = vpow.pop %v2603
  %v2605 = vmul.f32 %v2374, 1.442695
  %v2606 = vpow.pop %v2605
  %v2607 = vmul.f32 %v2375, 1.442695
  %v2608 = vpow.pop %v2607
  %v2609 = vmul.f32 %v2376, 1.442695
  %v2610 = vpow.pop %v2609
  %v2611 = vmul.f32 %v2377, 1.442695
  %v2612 = vpow.pop %v2611
  %v2613 = vmul.f32 %v2378, 1.442695
  %v2614 = vpow.pop %v2613
  %v2615 = vmul.f32 %v2379, 1.442695
  %v2616 = vpow.pop %v2615
  %v2617 = vmul.f32 %v2380, 1.442695
  %v2618 = vpow.pop %v2617
  %v2619 = vmul.f32 %v2381, 1.442695
  %v2620 = vpow.pop %v2619
  %v2621 = vmul.f32 %v2382, 1.442695
  %v2622 = vpow.pop %v2621
  %v2623 = vmul.f32 %v2383, 1.442695
  %v2624 = vpow.pop %v2623
  %v2625 = vmul.f32 %v2384, 1.442695
  %v2626 = vpow.pop %v2625
  %v2627 = vmul.f32 %v2385, 1.442695
  %v2628 = vpow.pop %v2627
  %v2629 = vmul.f32 %v2386, 1.442695
  %v2630 = vpow.pop %v2629
  %v2631 = vmul.f32 %v2387, 1.442695
  %v2632 = vpow.pop %v2631
  %v2633 = vmul.f32 %v2388, 1.442695
  %v2634 = vpow.pop %v2633
  %v2635 = vmul.f32 %v2389, 1.442695
  %v2636 = vpow.pop %v2635
  %v2637 = vmul.f32 %v2390, 1.442695
  %v2638 = vpow.pop %v2637
  %v2639 = vmul.f32 %v2391, 1.442695
  %v2640 = vpow.pop %v2639
  %v2641 = vmul.f32 %v2392, 1.442695
  %v2642 = vpow.pop %v2641
  %v2643 = vmul.f32 %v2393, 1.442695
  %v2644 = vpow.pop %v2643
  %v2645 = vmul.f32 %v2394, 1.442695
  %v2646 = vpow.pop %v2645
  %v2647 = vmul.f32 %v2395, 1.442695
  %v2648 = vpow.pop %v2647
  %v2649 = vmul.f32 %v2396, 1.442695
  %v2650 = vpow.pop %v2649
  %v2651 = vmul.f32 %v2397, 1.442695
  %v2652 = vpow.pop %v2651
  %v2653 = vmul.f32 %v2398, 1.442695
  %v2654 = vpow.pop %v2653
  %v2655 = vadd.f32 %v2400, 1.0
  %v2656 = vadd.f32 %v2402, 1.0
  %v2657 = vadd.f32 %v2404, 1.0
  %v2658 = vadd.f32 %v2406, 1.0
  %v2659 = vadd.f32 %v2408, 1.0
  %v2660 = vadd.f32 %v2410, 1.0
  %v2661 = vadd.f32 %v2412, 1.0
  %v2662 = vadd.f32 %v2414, 1.0
  %v2663 = vadd.f32 %v2416, 1.0
  %v2664 = vadd.f32 %v2418, 1.0
  %v2665 = vadd.f32 %v2420, 1.0
  %v2666 = vadd.f32 %v2422, 1.0
  %v2667 = vadd.f32 %v2424, 1.0
  %v2668 = vadd.f32 %v2426, 1.0
  %v2669 = vadd.f32 %v2428, 1.0
  %v2670 = vadd.f32 %v2430, 1.0
  %v2671 = vadd.f32 %v2432, 1.0
  %v2672 = vadd.f32 %v2434, 1.0
  %v2673 = vadd.f32 %v2436, 1.0
  %v2674 = vadd.f32 %v2438, 1.0
  %v2675 = vadd.f32 %v2440, 1.0
  %v2676 = vadd.f32 %v2442, 1.0
  %v2677 = vadd.f32 %v2444, 1.0
  %v2678 = vadd.f32 %v2446, 1.0
  %v2679 = vadd.f32 %v2448, 1.0
  %v2680 = vadd.f32 %v2450, 1.0
  %v2681 = vadd.f32 %v2452, 1.0
  %v2682 = vadd.f32 %v2454, 1.0
  %v2683 = vadd.f32 %v2456, 1.0
  %v2684 = vadd.f32 %v2458, 1.0
  %v2685 = vadd.f32 %v2460, 1.0
  %v2686 = vadd.f32 %v2462, 1.0
  %v2687 = vadd.f32 %v2464, 1.0
  %v2688 = vadd.f32 %v2466, 1.0
  %v2689 = vadd.f32 %v2468, 1.0
  %v2690 = vadd.f32 %v2470, 1.0
  %v2691 = vadd.f32 %v2472, 1.0
  %v2692 = vadd.f32 %v2474, 1.0
  %v2693 = vadd.f32 %v2476, 1.0
  %v2694 = vadd.f32 %v2478, 1.0
  %v2695 = vadd.f32 %v2480, 1.0
  %v2696 = vadd.f32 %v2482, 1.0
  %v2697 = vadd.f32 %v2484, 1.0
  %v2698 = vadd.f32 %v2486, 1.0
  %v2699 = vadd.f32 %v2488, 1.0
  %v2700 = vadd.f32 %v2490, 1.0
  %v2701 = vadd.f32 %v2492, 1.0
  %v2702 = vadd.f32 %v2494, 1.0
  %v2703 = vadd.f32 %v2496, 1.0
  %v2704 = vadd.f32 %v2498, 1.0
  %v2705 = vadd.f32 %v2500, 1.0
  %v2706 = vadd.f32 %v2502, 1.0
  %v2707 = vadd.f32 %v2504, 1.0
  %v2708 = vadd.f32 %v2506, 1.0
  %v2709 = vadd.f32 %v2508, 1.0
  %v2710 = vadd.f32 %v2510, 1.0
  %v2711 = vadd.f32 %v2512, 1.0
  %v2712 = vadd.f32 %v2514, 1.0
  %v2713 = vadd.f32 %v2516, 1.0
  %v2714 = vadd.f32 %v2518, 1.0
  %v2715 = vadd.f32 %v2520, 1.0
  %v2716 = vadd.f32 %v2522, 1.0
  %v2717 = vadd.f32 %v2524, 1.0
  %v2718 = vadd.f32 %v2526, 1.0
  %v2719 = vadd.f32 %v2528, 1.0
  %v2720 = vadd.f32 %v2530, 1.0
  %v2721 = vadd.f32 %v2532, 1.0
  %v2722 = vadd.f32 %v2534, 1.0
  %v2723 = vadd.f32 %v2536, 1.0
  %v2724 = vadd.f32 %v2538, 1.0
  %v2725 = vadd.f32 %v2540, 1.0
  %v2726 = vadd.f32 %v2542, 1.0
  %v2727 = vadd.f32 %v2544, 1.0
  %v2728 = vadd.f32 %v2546, 1.0
  %v2729 = vadd.f32 %v2548, 1.0
  %v2730 = vadd.f32 %v2550, 1.0
  %v2731 = vadd.f32 %v2552, 1.0
  %v2732 = vadd.f32 %v2554, 1.0
  %v2733 = vadd.f32 %v2556, 1.0
  %v2734 = vadd.f32 %v2558, 1.0
  %v2735 = vadd.f32 %v2560, 1.0
  %v2736 = vadd.f32 %v2562, 1.0
  %v2737 = vadd.f32 %v2564, 1.0
  %v2738 = vadd.f32 %v2566, 1.0
  %v2739 = vadd.f32 %v2568, 1.0
  %v2740 = vadd.f32 %v2570, 1.0
  %v2741 = vadd.f32 %v2572, 1.0
  %v2742 = vadd.f32 %v2574, 1.0
  %v2743 = vadd.f32 %v2576, 1.0
  %v2744 = vadd.f32 %v2578, 1.0
  %v2745 = vadd.f32 %v2580, 1.0
  %v2746 = vadd.f32 %v2582, 1.0
  %v2747 = vadd.f32 %v2584, 1.0
  %v2748 = vadd.f32 %v2586, 1.0
  %v2749 = vadd.f32 %v2588, 1.0
  %v2750 = vadd.f32 %v2590, 1.0
  %v2751 = vadd.f32 %v2592, 1.0
  %v2752 = vadd.f32 %v2594, 1.0
  %v2753 = vadd.f32 %v2596, 1.0
  %v2754 = vadd.f32 %v2598, 1.0
  %v2755 = vadd.f32 %v2600, 1.0
  %v2756 = vadd.f32 %v2602, 1.0
  %v2757 = vadd.f32 %v2604, 1.0
  %v2758 = vadd.f32 %v2606, 1.0
  %v2759 = vadd.f32 %v2608, 1.0
  %v2760 = vadd.f32 %v2610, 1.0
  %v2761 = vadd.f32 %v2612, 1.0
  %v2762 = vadd.f32 %v2614, 1.0
  %v2763 = vadd.f32 %v2616, 1.0
  %v2764 = vadd.f32 %v2618, 1.0
  %v2765 = vadd.f32 %v2620, 1.0
  %v2766 = vadd.f32 %v2622, 1.0
  %v2767 = vadd.f32 %v2624, 1.0
  %v2768 = vadd.f32 %v2626, 1.0
  %v2769 = vadd.f32 %v2628, 1.0
  %v2770 = vadd.f32 %v2630, 1.0
  %v2771 = vadd.f32 %v2632, 1.0
  %v2772 = vadd.f32 %v2634, 1.0
  %v2773 = vadd.f32 %v2636, 1.0
  %v2774 = vadd.f32 %v2638, 1.0
  %v2775 = vadd.f32 %v2640, 1.0
  %v2776 = vadd.f32 %v2642, 1.0
  %v2777 = vadd.f32 %v2644, 1.0
  %v2778 = vadd.f32 %v2646, 1.0
  %v2779 = vadd.f32 %v2648, 1.0
  %v2780 = vadd.f32 %v2650, 1.0
  %v2781 = vadd.f32 %v2652, 1.0
  %v2782 = vadd.f32 %v2654, 1.0
  %v2783 = vrcp.pop %v2655
  %v2784 = vmul.f32 %v2655, %v2783
  %v2785 = vsub.f32 1.0, %v2784
  %v2786 = vmul.f32 %v2783, %v2785
  %v2787 = vadd.f32 %v2783, %v2786
  %vm2788 = vweird.f32 %v2655
  %vm2789 = vweird.f32 %v2783
  %vm2790 = vmor %vm2788, %vm2789
  %v2791 = vsel %vm2790, %v2783, %v2787
  %v2792 = vand.u32 2147483647, %v2655
  %vm2793 = vcmp.eq.f32.partialorder %v2792, 8.507059e+37
  %v2794 = vand.u32 %v2655, 2147483648
  %v2795 = vor.u32 1.1754944e-38, %v2794
  %v2796 = vsel %vm2793, %v2795, %v2791
  %v2797 = vmul.f32 1.0, %v2796
  %v2798 = vrcp.pop %v2656
  %v2799 = vmul.f32 %v2656, %v2798
  %v2800 = vsub.f32 1.0, %v2799
  %v2801 = vmul.f32 %v2798, %v2800
  %v2802 = vadd.f32 %v2798, %v2801
  %vm2803 = vweird.f32 %v2656
  %vm2804 = vweird.f32 %v2798
  %vm2805 = vmor %vm2803, %vm2804
  %v2806 = vsel %vm2805, %v2798, %v2802
  %v2807 = vand.u32 2147483647, %v2656
  %vm2808 = vcmp.eq.f32.partialorder %v2807, 8.507059e+37
  %v2809 = vand.u32 %v2656, 2147483648
  %v2810 = vor.u32 1.1754944e-38, %v2809
  %v2811 = vsel %vm2808, %v2810, %v2806
  %v2812 = vmul.f32 1.0, %v2811
  %v2813 = vrcp.pop %v2657
  %v2814 = vmul.f32 %v2657, %v2813
  %v2815 = vsub.f32 1.0, %v2814
  %v2816 = vmul.f32 %v2813, %v2815
  %v2817 = vadd.f32 %v2813, %v2816
  %vm2818 = vweird.f32 %v2657
  %vm2819 = vweird.f32 %v2813
  %vm2820 = vmor %vm2818, %vm2819
  %v2821 = vsel %vm2820, %v2813, %v2817
  %v2822 = vand.u32 2147483647, %v2657
  %vm2823 = vcmp.eq.f32.partialorder %v2822, 8.507059e+37
  %v2824 = vand.u32 %v2657, 2147483648
  %v2825 = vor.u32 1.1754944e-38, %v2824
  %v2826 = vsel %vm2823, %v2825, %v2821
  %v2827 = vmul.f32 1.0, %v2826
  %v2828 = vrcp.pop %v2658
  %v2829 = vmul.f32 %v2658, %v2828
  %v2830 = vsub.f32 1.0, %v2829
  %v2831 = vmul.f32 %v2828, %v2830
  %v2832 = vadd.f32 %v2828, %v2831
  %vm2833 = vweird.f32 %v2658
  %vm2834 = vweird.f32 %v2828
  %vm2835 = vmor %vm2833, %vm2834
  %v2836 = vsel %vm2835, %v2828, %v2832
  %v2837 = vand.u32 2147483647, %v2658
  %vm2838 = vcmp.eq.f32.partialorder %v2837, 8.507059e+37
  %v2839 = vand.u32 %v2658, 2147483648
  %v2840 = vor.u32 1.1754944e-38, %v2839
  %v2841 = vsel %vm2838, %v2840, %v2836
  %v2842 = vmul.f32 1.0, %v2841
  %v2843 = vrcp.pop %v2659
  %v2844 = vmul.f32 %v2659, %v2843
  %v2845 = vsub.f32 1.0, %v2844
  %v2846 = vmul.f32 %v2843, %v2845
  %v2847 = vadd.f32 %v2843, %v2846
  %vm2848 = vweird.f32 %v2659
  %vm2849 = vweird.f32 %v2843
  %vm2850 = vmor %vm2848, %vm2849
  %v2851 = vsel %vm2850, %v2843, %v2847
  %v2852 = vand.u32 2147483647, %v2659
  %vm2853 = vcmp.eq.f32.partialorder %v2852, 8.507059e+37
  %v2854 = vand.u32 %v2659, 2147483648
  %v2855 = vor.u32 1.1754944e-38, %v2854
  %v2856 = vsel %vm2853, %v2855, %v2851
  %v2857 = vmul.f32 1.0, %v2856
  %v2858 = vrcp.pop %v2660
  %v2859 = vmul.f32 %v2660, %v2858
  %v2860 = vsub.f32 1.0, %v2859
  %v2861 = vmul.f32 %v2858, %v2860
  %v2862 = vadd.f32 %v2858, %v2861
  %vm2863 = vweird.f32 %v2660
  %vm2864 = vweird.f32 %v2858
  %vm2865 = vmor %vm2863, %vm2864
  %v2866 = vsel %vm2865, %v2858, %v2862
  %v2867 = vand.u32 2147483647, %v2660
  %vm2868 = vcmp.eq.f32.partialorder %v2867, 8.507059e+37
  %v2869 = vand.u32 %v2660, 2147483648
  %v2870 = vor.u32 1.1754944e-38, %v2869
  %v2871 = vsel %vm2868, %v2870, %v2866
  %v2872 = vmul.f32 1.0, %v2871
  %v2873 = vrcp.pop %v2661
  %v2874 = vmul.f32 %v2661, %v2873
  %v2875 = vsub.f32 1.0, %v2874
  %v2876 = vmul.f32 %v2873, %v2875
  %v2877 = vadd.f32 %v2873, %v2876
  %vm2878 = vweird.f32 %v2661
  %vm2879 = vweird.f32 %v2873
  %vm2880 = vmor %vm2878, %vm2879
  %v2881 = vsel %vm2880, %v2873, %v2877
  %v2882 = vand.u32 2147483647, %v2661
  %vm2883 = vcmp.eq.f32.partialorder %v2882, 8.507059e+37
  %v2884 = vand.u32 %v2661, 2147483648
  %v2885 = vor.u32 1.1754944e-38, %v2884
  %v2886 = vsel %vm2883, %v2885, %v2881
  %v2887 = vmul.f32 1.0, %v2886
  %v2888 = vrcp.pop %v2662
  %v2889 = vmul.f32 %v2662, %v2888
  %v2890 = vsub.f32 1.0, %v2889
  %v2891 = vmul.f32 %v2888, %v2890
  %v2892 = vadd.f32 %v2888, %v2891
  %vm2893 = vweird.f32 %v2662
  %vm2894 = vweird.f32 %v2888
  %vm2895 = vmor %vm2893, %vm2894
  %v2896 = vsel %vm2895, %v2888, %v2892
  %v2897 = vand.u32 2147483647, %v2662
  %vm2898 = vcmp.eq.f32.partialorder %v2897, 8.507059e+37
  %v2899 = vand.u32 %v2662, 2147483648
  %v2900 = vor.u32 1.1754944e-38, %v2899
  %v2901 = vsel %vm2898, %v2900, %v2896
  %v2902 = vmul.f32 1.0, %v2901
  %v2903 = vrcp.pop %v2663
  %v2904 = vmul.f32 %v2663, %v2903
  %v2905 = vsub.f32 1.0, %v2904
  %v2906 = vmul.f32 %v2903, %v2905
  %v2907 = vadd.f32 %v2903, %v2906
  %vm2908 = vweird.f32 %v2663
  %vm2909 = vweird.f32 %v2903
  %vm2910 = vmor %vm2908, %vm2909
  %v2911 = vsel %vm2910, %v2903, %v2907
  %v2912 = vand.u32 2147483647, %v2663
  %vm2913 = vcmp.eq.f32.partialorder %v2912, 8.507059e+37
  %v2914 = vand.u32 %v2663, 2147483648
  %v2915 = vor.u32 1.1754944e-38, %v2914
  %v2916 = vsel %vm2913, %v2915, %v2911
  %v2917 = vmul.f32 1.0, %v2916
  %v2918 = vrcp.pop %v2664
  %v2919 = vmul.f32 %v2664, %v2918
  %v2920 = vsub.f32 1.0, %v2919
  %v2921 = vmul.f32 %v2918, %v2920
  %v2922 = vadd.f32 %v2918, %v2921
  %vm2923 = vweird.f32 %v2664
  %vm2924 = vweird.f32 %v2918
  %vm2925 = vmor %vm2923, %vm2924
  %v2926 = vsel %vm2925, %v2918, %v2922
  %v2927 = vand.u32 2147483647, %v2664
  %vm2928 = vcmp.eq.f32.partialorder %v2927, 8.507059e+37
  %v2929 = vand.u32 %v2664, 2147483648
  %v2930 = vor.u32 1.1754944e-38, %v2929
  %v2931 = vsel %vm2928, %v2930, %v2926
  %v2932 = vmul.f32 1.0, %v2931
  %v2933 = vrcp.pop %v2665
  %v2934 = vmul.f32 %v2665, %v2933
  %v2935 = vsub.f32 1.0, %v2934
  %v2936 = vmul.f32 %v2933, %v2935
  %v2937 = vadd.f32 %v2933, %v2936
  %vm2938 = vweird.f32 %v2665
  %vm2939 = vweird.f32 %v2933
  %vm2940 = vmor %vm2938, %vm2939
  %v2941 = vsel %vm2940, %v2933, %v2937
  %v2942 = vand.u32 2147483647, %v2665
  %vm2943 = vcmp.eq.f32.partialorder %v2942, 8.507059e+37
  %v2944 = vand.u32 %v2665, 2147483648
  %v2945 = vor.u32 1.1754944e-38, %v2944
  %v2946 = vsel %vm2943, %v2945, %v2941
  %v2947 = vmul.f32 1.0, %v2946
  %v2948 = vrcp.pop %v2666
  %v2949 = vmul.f32 %v2666, %v2948
  %v2950 = vsub.f32 1.0, %v2949
  %v2951 = vmul.f32 %v2948, %v2950
  %v2952 = vadd.f32 %v2948, %v2951
  %vm2953 = vweird.f32 %v2666
  %vm2954 = vweird.f32 %v2948
  %vm2955 = vmor %vm2953, %vm2954
  %v2956 = vsel %vm2955, %v2948, %v2952
  %v2957 = vand.u32 2147483647, %v2666
  %vm2958 = vcmp.eq.f32.partialorder %v2957, 8.507059e+37
  %v2959 = vand.u32 %v2666, 2147483648
  %v2960 = vor.u32 1.1754944e-38, %v2959
  %v2961 = vsel %vm2958, %v2960, %v2956
  %v2962 = vmul.f32 1.0, %v2961
  %v2963 = vrcp.pop %v2667
  %v2964 = vmul.f32 %v2667, %v2963
  %v2965 = vsub.f32 1.0, %v2964
  %v2966 = vmul.f32 %v2963, %v2965
  %v2967 = vadd.f32 %v2963, %v2966
  %vm2968 = vweird.f32 %v2667
  %vm2969 = vweird.f32 %v2963
  %vm2970 = vmor %vm2968, %vm2969
  %v2971 = vsel %vm2970, %v2963, %v2967
  %v2972 = vand.u32 2147483647, %v2667
  %vm2973 = vcmp.eq.f32.partialorder %v2972, 8.507059e+37
  %v2974 = vand.u32 %v2667, 2147483648
  %v2975 = vor.u32 1.1754944e-38, %v2974
  %v2976 = vsel %vm2973, %v2975, %v2971
  %v2977 = vmul.f32 1.0, %v2976
  %v2978 = vrcp.pop %v2668
  %v2979 = vmul.f32 %v2668, %v2978
  %v2980 = vsub.f32 1.0, %v2979
  %v2981 = vmul.f32 %v2978, %v2980
  %v2982 = vadd.f32 %v2978, %v2981
  %vm2983 = vweird.f32 %v2668
  %vm2984 = vweird.f32 %v2978
  %vm2985 = vmor %vm2983, %vm2984
  %v2986 = vsel %vm2985, %v2978, %v2982
  %v2987 = vand.u32 2147483647, %v2668
  %vm2988 = vcmp.eq.f32.partialorder %v2987, 8.507059e+37
  %v2989 = vand.u32 %v2668, 2147483648
  %v2990 = vor.u32 1.1754944e-38, %v2989
  %v2991 = vsel %vm2988, %v2990, %v2986
  %v2992 = vmul.f32 1.0, %v2991
  %v2993 = vrcp.pop %v2669
  %v2994 = vmul.f32 %v2669, %v2993
  %v2995 = vsub.f32 1.0, %v2994
  %v2996 = vmul.f32 %v2993, %v2995
  %v2997 = vadd.f32 %v2993, %v2996
  %vm2998 = vweird.f32 %v2669
  %vm2999 = vweird.f32 %v2993
  %vm3000 = vmor %vm2998, %vm2999
  %v3001 = vsel %vm3000, %v2993, %v2997
  %v3002 = vand.u32 2147483647, %v2669
  %vm3003 = vcmp.eq.f32.partialorder %v3002, 8.507059e+37
  %v3004 = vand.u32 %v2669, 2147483648
  %v3005 = vor.u32 1.1754944e-38, %v3004
  %v3006 = vsel %vm3003, %v3005, %v3001
  %v3007 = vmul.f32 1.0, %v3006
  %v3008 = vrcp.pop %v2670
  %v3009 = vmul.f32 %v2670, %v3008
  %v3010 = vsub.f32 1.0, %v3009
  %v3011 = vmul.f32 %v3008, %v3010
  %v3012 = vadd.f32 %v3008, %v3011
  %vm3013 = vweird.f32 %v2670
  %vm3014 = vweird.f32 %v3008
  %vm3015 = vmor %vm3013, %vm3014
  %v3016 = vsel %vm3015, %v3008, %v3012
  %v3017 = vand.u32 2147483647, %v2670
  %vm3018 = vcmp.eq.f32.partialorder %v3017, 8.507059e+37
  %v3019 = vand.u32 %v2670, 2147483648
  %v3020 = vor.u32 1.1754944e-38, %v3019
  %v3021 = vsel %vm3018, %v3020, %v3016
  %v3022 = vmul.f32 1.0, %v3021
  %v3023 = vrcp.pop %v2671
  %v3024 = vmul.f32 %v2671, %v3023
  %v3025 = vsub.f32 1.0, %v3024
  %v3026 = vmul.f32 %v3023, %v3025
  %v3027 = vadd.f32 %v3023, %v3026
  %vm3028 = vweird.f32 %v2671
  %vm3029 = vweird.f32 %v3023
  %vm3030 = vmor %vm3028, %vm3029
  %v3031 = vsel %vm3030, %v3023, %v3027
  %v3032 = vand.u32 2147483647, %v2671
  %vm3033 = vcmp.eq.f32.partialorder %v3032, 8.507059e+37
  %v3034 = vand.u32 %v2671, 2147483648
  %v3035 = vor.u32 1.1754944e-38, %v3034
  %v3036 = vsel %vm3033, %v3035, %v3031
  %v3037 = vmul.f32 1.0, %v3036
  %v3038 = vrcp.pop %v2672
  %v3039 = vmul.f32 %v2672, %v3038
  %v3040 = vsub.f32 1.0, %v3039
  %v3041 = vmul.f32 %v3038, %v3040
  %v3042 = vadd.f32 %v3038, %v3041
  %vm3043 = vweird.f32 %v2672
  %vm3044 = vweird.f32 %v3038
  %vm3045 = vmor %vm3043, %vm3044
  %v3046 = vsel %vm3045, %v3038, %v3042
  %v3047 = vand.u32 2147483647, %v2672
  %vm3048 = vcmp.eq.f32.partialorder %v3047, 8.507059e+37
  %v3049 = vand.u32 %v2672, 2147483648
  %v3050 = vor.u32 1.1754944e-38, %v3049
  %v3051 = vsel %vm3048, %v3050, %v3046
  %v3052 = vmul.f32 1.0, %v3051
  %v3053 = vrcp.pop %v2673
  %v3054 = vmul.f32 %v2673, %v3053
  %v3055 = vsub.f32 1.0, %v3054
  %v3056 = vmul.f32 %v3053, %v3055
  %v3057 = vadd.f32 %v3053, %v3056
  %vm3058 = vweird.f32 %v2673
  %vm3059 = vweird.f32 %v3053
  %vm3060 = vmor %vm3058, %vm3059
  %v3061 = vsel %vm3060, %v3053, %v3057
  %v3062 = vand.u32 2147483647, %v2673
  %vm3063 = vcmp.eq.f32.partialorder %v3062, 8.507059e+37
  %v3064 = vand.u32 %v2673, 2147483648
  %v3065 = vor.u32 1.1754944e-38, %v3064
  %v3066 = vsel %vm3063, %v3065, %v3061
  %v3067 = vmul.f32 1.0, %v3066
  %v3068 = vrcp.pop %v2674
  %v3069 = vmul.f32 %v2674, %v3068
  %v3070 = vsub.f32 1.0, %v3069
  %v3071 = vmul.f32 %v3068, %v3070
  %v3072 = vadd.f32 %v3068, %v3071
  %vm3073 = vweird.f32 %v2674
  %vm3074 = vweird.f32 %v3068
  %vm3075 = vmor %vm3073, %vm3074
  %v3076 = vsel %vm3075, %v3068, %v3072
  %v3077 = vand.u32 2147483647, %v2674
  %vm3078 = vcmp.eq.f32.partialorder %v3077, 8.507059e+37
  %v3079 = vand.u32 %v2674, 2147483648
  %v3080 = vor.u32 1.1754944e-38, %v3079
  %v3081 = vsel %vm3078, %v3080, %v3076
  %v3082 = vmul.f32 1.0, %v3081
  %v3083 = vrcp.pop %v2675
  %v3084 = vmul.f32 %v2675, %v3083
  %v3085 = vsub.f32 1.0, %v3084
  %v3086 = vmul.f32 %v3083, %v3085
  %v3087 = vadd.f32 %v3083, %v3086
  %vm3088 = vweird.f32 %v2675
  %vm3089 = vweird.f32 %v3083
  %vm3090 = vmor %vm3088, %vm3089
  %v3091 = vsel %vm3090, %v3083, %v3087
  %v3092 = vand.u32 2147483647, %v2675
  %vm3093 = vcmp.eq.f32.partialorder %v3092, 8.507059e+37
  %v3094 = vand.u32 %v2675, 2147483648
  %v3095 = vor.u32 1.1754944e-38, %v3094
  %v3096 = vsel %vm3093, %v3095, %v3091
  %v3097 = vmul.f32 1.0, %v3096
  %v3098 = vrcp.pop %v2676
  %v3099 = vmul.f32 %v2676, %v3098
  %v3100 = vsub.f32 1.0, %v3099
  %v3101 = vmul.f32 %v3098, %v3100
  %v3102 = vadd.f32 %v3098, %v3101
  %vm3103 = vweird.f32 %v2676
  %vm3104 = vweird.f32 %v3098
  %vm3105 = vmor %vm3103, %vm3104
  %v3106 = vsel %vm3105, %v3098, %v3102
  %v3107 = vand.u32 2147483647, %v2676
  %vm3108 = vcmp.eq.f32.partialorder %v3107, 8.507059e+37
  %v3109 = vand.u32 %v2676, 2147483648
  %v3110 = vor.u32 1.1754944e-38, %v3109
  %v3111 = vsel %vm3108, %v3110, %v3106
  %v3112 = vmul.f32 1.0, %v3111
  %v3113 = vrcp.pop %v2677
  %v3114 = vmul.f32 %v2677, %v3113
  %v3115 = vsub.f32 1.0, %v3114
  %v3116 = vmul.f32 %v3113, %v3115
  %v3117 = vadd.f32 %v3113, %v3116
  %vm3118 = vweird.f32 %v2677
  %vm3119 = vweird.f32 %v3113
  %vm3120 = vmor %vm3118, %vm3119
  %v3121 = vsel %vm3120, %v3113, %v3117
  %v3122 = vand.u32 2147483647, %v2677
  %vm3123 = vcmp.eq.f32.partialorder %v3122, 8.507059e+37
  %v3124 = vand.u32 %v2677, 2147483648
  %v3125 = vor.u32 1.1754944e-38, %v3124
  %v3126 = vsel %vm3123, %v3125, %v3121
  %v3127 = vmul.f32 1.0, %v3126
  %v3128 = vrcp.pop %v2678
  %v3129 = vmul.f32 %v2678, %v3128
  %v3130 = vsub.f32 1.0, %v3129
  %v3131 = vmul.f32 %v3128, %v3130
  %v3132 = vadd.f32 %v3128, %v3131
  %vm3133 = vweird.f32 %v2678
  %vm3134 = vweird.f32 %v3128
  %vm3135 = vmor %vm3133, %vm3134
  %v3136 = vsel %vm3135, %v3128, %v3132
  %v3137 = vand.u32 2147483647, %v2678
  %vm3138 = vcmp.eq.f32.partialorder %v3137, 8.507059e+37
  %v3139 = vand.u32 %v2678, 2147483648
  %v3140 = vor.u32 1.1754944e-38, %v3139
  %v3141 = vsel %vm3138, %v3140, %v3136
  %v3142 = vmul.f32 1.0, %v3141
  %v3143 = vrcp.pop %v2679
  %v3144 = vmul.f32 %v2679, %v3143
  %v3145 = vsub.f32 1.0, %v3144
  %v3146 = vmul.f32 %v3143, %v3145
  %v3147 = vadd.f32 %v3143, %v3146
  %vm3148 = vweird.f32 %v2679
  %vm3149 = vweird.f32 %v3143
  %vm3150 = vmor %vm3148, %vm3149
  %v3151 = vsel %vm3150, %v3143, %v3147
  %v3152 = vand.u32 2147483647, %v2679
  %vm3153 = vcmp.eq.f32.partialorder %v3152, 8.507059e+37
  %v3154 = vand.u32 %v2679, 2147483648
  %v3155 = vor.u32 1.1754944e-38, %v3154
  %v3156 = vsel %vm3153, %v3155, %v3151
  %v3157 = vmul.f32 1.0, %v3156
  %v3158 = vrcp.pop %v2680
  %v3159 = vmul.f32 %v2680, %v3158
  %v3160 = vsub.f32 1.0, %v3159
  %v3161 = vmul.f32 %v3158, %v3160
  %v3162 = vadd.f32 %v3158, %v3161
  %vm3163 = vweird.f32 %v2680
  %vm3164 = vweird.f32 %v3158
  %vm3165 = vmor %vm3163, %vm3164
  %v3166 = vsel %vm3165, %v3158, %v3162
  %v3167 = vand.u32 2147483647, %v2680
  %vm3168 = vcmp.eq.f32.partialorder %v3167, 8.507059e+37
  %v3169 = vand.u32 %v2680, 2147483648
  %v3170 = vor.u32 1.1754944e-38, %v3169
  %v3171 = vsel %vm3168, %v3170, %v3166
  %v3172 = vmul.f32 1.0, %v3171
  %v3173 = vrcp.pop %v2681
  %v3174 = vmul.f32 %v2681, %v3173
  %v3175 = vsub.f32 1.0, %v3174
  %v3176 = vmul.f32 %v3173, %v3175
  %v3177 = vadd.f32 %v3173, %v3176
  %vm3178 = vweird.f32 %v2681
  %vm3179 = vweird.f32 %v3173
  %vm3180 = vmor %vm3178, %vm3179
  %v3181 = vsel %vm3180, %v3173, %v3177
  %v3182 = vand.u32 2147483647, %v2681
  %vm3183 = vcmp.eq.f32.partialorder %v3182, 8.507059e+37
  %v3184 = vand.u32 %v2681, 2147483648
  %v3185 = vor.u32 1.1754944e-38, %v3184
  %v3186 = vsel %vm3183, %v3185, %v3181
  %v3187 = vmul.f32 1.0, %v3186
  %v3188 = vrcp.pop %v2682
  %v3189 = vmul.f32 %v2682, %v3188
  %v3190 = vsub.f32 1.0, %v3189
  %v3191 = vmul.f32 %v3188, %v3190
  %v3192 = vadd.f32 %v3188, %v3191
  %vm3193 = vweird.f32 %v2682
  %vm3194 = vweird.f32 %v3188
  %vm3195 = vmor %vm3193, %vm3194
  %v3196 = vsel %vm3195, %v3188, %v3192
  %v3197 = vand.u32 2147483647, %v2682
  %vm3198 = vcmp.eq.f32.partialorder %v3197, 8.507059e+37
  %v3199 = vand.u32 %v2682, 2147483648
  %v3200 = vor.u32 1.1754944e-38, %v3199
  %v3201 = vsel %vm3198, %v3200, %v3196
  %v3202 = vmul.f32 1.0, %v3201
  %v3203 = vrcp.pop %v2683
  %v3204 = vmul.f32 %v2683, %v3203
  %v3205 = vsub.f32 1.0, %v3204
  %v3206 = vmul.f32 %v3203, %v3205
  %v3207 = vadd.f32 %v3203, %v3206
  %vm3208 = vweird.f32 %v2683
  %vm3209 = vweird.f32 %v3203
  %vm3210 = vmor %vm3208, %vm3209
  %v3211 = vsel %vm3210, %v3203, %v3207
  %v3212 = vand.u32 2147483647, %v2683
  %vm3213 = vcmp.eq.f32.partialorder %v3212, 8.507059e+37
  %v3214 = vand.u32 %v2683, 2147483648
  %v3215 = vor.u32 1.1754944e-38, %v3214
  %v3216 = vsel %vm3213, %v3215, %v3211
  %v3217 = vmul.f32 1.0, %v3216
  %v3218 = vrcp.pop %v2684
  %v3219 = vmul.f32 %v2684, %v3218
  %v3220 = vsub.f32 1.0, %v3219
  %v3221 = vmul.f32 %v3218, %v3220
  %v3222 = vadd.f32 %v3218, %v3221
  %vm3223 = vweird.f32 %v2684
  %vm3224 = vweird.f32 %v3218
  %vm3225 = vmor %vm3223, %vm3224
  %v3226 = vsel %vm3225, %v3218, %v3222
  %v3227 = vand.u32 2147483647, %v2684
  %vm3228 = vcmp.eq.f32.partialorder %v3227, 8.507059e+37
  %v3229 = vand.u32 %v2684, 2147483648
  %v3230 = vor.u32 1.1754944e-38, %v3229
  %v3231 = vsel %vm3228, %v3230, %v3226
  %v3232 = vmul.f32 1.0, %v3231
  %v3233 = vrcp.pop %v2685
  %v3234 = vmul.f32 %v2685, %v3233
  %v3235 = vsub.f32 1.0, %v3234
  %v3236 = vmul.f32 %v3233, %v3235
  %v3237 = vadd.f32 %v3233, %v3236
  %vm3238 = vweird.f32 %v2685
  %vm3239 = vweird.f32 %v3233
  %vm3240 = vmor %vm3238, %vm3239
  %v3241 = vsel %vm3240, %v3233, %v3237
  %v3242 = vand.u32 2147483647, %v2685
  %vm3243 = vcmp.eq.f32.partialorder %v3242, 8.507059e+37
  %v3244 = vand.u32 %v2685, 2147483648
  %v3245 = vor.u32 1.1754944e-38, %v3244
  %v3246 = vsel %vm3243, %v3245, %v3241
  %v3247 = vmul.f32 1.0, %v3246
  %v3248 = vrcp.pop %v2686
  %v3249 = vmul.f32 %v2686, %v3248
  %v3250 = vsub.f32 1.0, %v3249
  %v3251 = vmul.f32 %v3248, %v3250
  %v3252 = vadd.f32 %v3248, %v3251
  %vm3253 = vweird.f32 %v2686
  %vm3254 = vweird.f32 %v3248
  %vm3255 = vmor %vm3253, %vm3254
  %v3256 = vsel %vm3255, %v3248, %v3252
  %v3257 = vand.u32 2147483647, %v2686
  %vm3258 = vcmp.eq.f32.partialorder %v3257, 8.507059e+37
  %v3259 = vand.u32 %v2686, 2147483648
  %v3260 = vor.u32 1.1754944e-38, %v3259
  %v3261 = vsel %vm3258, %v3260, %v3256
  %v3262 = vmul.f32 1.0, %v3261
  %v3263 = vrcp.pop %v2687
  %v3264 = vmul.f32 %v2687, %v3263
  %v3265 = vsub.f32 1.0, %v3264
  %v3266 = vmul.f32 %v3263, %v3265
  %v3267 = vadd.f32 %v3263, %v3266
  %vm3268 = vweird.f32 %v2687
  %vm3269 = vweird.f32 %v3263
  %vm3270 = vmor %vm3268, %vm3269
  %v3271 = vsel %vm3270, %v3263, %v3267
  %v3272 = vand.u32 2147483647, %v2687
  %vm3273 = vcmp.eq.f32.partialorder %v3272, 8.507059e+37
  %v3274 = vand.u32 %v2687, 2147483648
  %v3275 = vor.u32 1.1754944e-38, %v3274
  %v3276 = vsel %vm3273, %v3275, %v3271
  %v3277 = vmul.f32 1.0, %v3276
  %v3278 = vrcp.pop %v2688
  %v3279 = vmul.f32 %v2688, %v3278
  %v3280 = vsub.f32 1.0, %v3279
  %v3281 = vmul.f32 %v3278, %v3280
  %v3282 = vadd.f32 %v3278, %v3281
  %vm3283 = vweird.f32 %v2688
  %vm3284 = vweird.f32 %v3278
  %vm3285 = vmor %vm3283, %vm3284
  %v3286 = vsel %vm3285, %v3278, %v3282
  %v3287 = vand.u32 2147483647, %v2688
  %vm3288 = vcmp.eq.f32.partialorder %v3287, 8.507059e+37
  %v3289 = vand.u32 %v2688, 2147483648
  %v3290 = vor.u32 1.1754944e-38, %v3289
  %v3291 = vsel %vm3288, %v3290, %v3286
  %v3292 = vmul.f32 1.0, %v3291
  %v3293 = vrcp.pop %v2689
  %v3294 = vmul.f32 %v2689, %v3293
  %v3295 = vsub.f32 1.0, %v3294
  %v3296 = vmul.f32 %v3293, %v3295
  %v3297 = vadd.f32 %v3293, %v3296
  %vm3298 = vweird.f32 %v2689
  %vm3299 = vweird.f32 %v3293
  %vm3300 = vmor %vm3298, %vm3299
  %v3301 = vsel %vm3300, %v3293, %v3297
  %v3302 = vand.u32 2147483647, %v2689
  %vm3303 = vcmp.eq.f32.partialorder %v3302, 8.507059e+37
  %v3304 = vand.u32 %v2689, 2147483648
  %v3305 = vor.u32 1.1754944e-38, %v3304
  %v3306 = vsel %vm3303, %v3305, %v3301
  %v3307 = vmul.f32 1.0, %v3306
  %v3308 = vrcp.pop %v2690
  %v3309 = vmul.f32 %v2690, %v3308
  %v3310 = vsub.f32 1.0, %v3309
  %v3311 = vmul.f32 %v3308, %v3310
  %v3312 = vadd.f32 %v3308, %v3311
  %vm3313 = vweird.f32 %v2690
  %vm3314 = vweird.f32 %v3308
  %vm3315 = vmor %vm3313, %vm3314
  %v3316 = vsel %vm3315, %v3308, %v3312
  %v3317 = vand.u32 2147483647, %v2690
  %vm3318 = vcmp.eq.f32.partialorder %v3317, 8.507059e+37
  %v3319 = vand.u32 %v2690, 2147483648
  %v3320 = vor.u32 1.1754944e-38, %v3319
  %v3321 = vsel %vm3318, %v3320, %v3316
  %v3322 = vmul.f32 1.0, %v3321
  %v3323 = vrcp.pop %v2691
  %v3324 = vmul.f32 %v2691, %v3323
  %v3325 = vsub.f32 1.0, %v3324
  %v3326 = vmul.f32 %v3323, %v3325
  %v3327 = vadd.f32 %v3323, %v3326
  %vm3328 = vweird.f32 %v2691
  %vm3329 = vweird.f32 %v3323
  %vm3330 = vmor %vm3328, %vm3329
  %v3331 = vsel %vm3330, %v3323, %v3327
  %v3332 = vand.u32 2147483647, %v2691
  %vm3333 = vcmp.eq.f32.partialorder %v3332, 8.507059e+37
  %v3334 = vand.u32 %v2691, 2147483648
  %v3335 = vor.u32 1.1754944e-38, %v3334
  %v3336 = vsel %vm3333, %v3335, %v3331
  %v3337 = vmul.f32 1.0, %v3336
  %v3338 = vrcp.pop %v2692
  %v3339 = vmul.f32 %v2692, %v3338
  %v3340 = vsub.f32 1.0, %v3339
  %v3341 = vmul.f32 %v3338, %v3340
  %v3342 = vadd.f32 %v3338, %v3341
  %vm3343 = vweird.f32 %v2692
  %vm3344 = vweird.f32 %v3338
  %vm3345 = vmor %vm3343, %vm3344
  %v3346 = vsel %vm3345, %v3338, %v3342
  %v3347 = vand.u32 2147483647, %v2692
  %vm3348 = vcmp.eq.f32.partialorder %v3347, 8.507059e+37
  %v3349 = vand.u32 %v2692, 2147483648
  %v3350 = vor.u32 1.1754944e-38, %v3349
  %v3351 = vsel %vm3348, %v3350, %v3346
  %v3352 = vmul.f32 1.0, %v3351
  %v3353 = vrcp.pop %v2693
  %v3354 = vmul.f32 %v2693, %v3353
  %v3355 = vsub.f32 1.0, %v3354
  %v3356 = vmul.f32 %v3353, %v3355
  %v3357 = vadd.f32 %v3353, %v3356
  %vm3358 = vweird.f32 %v2693
  %vm3359 = vweird.f32 %v3353
  %vm3360 = vmor %vm3358, %vm3359
  %v3361 = vsel %vm3360, %v3353, %v3357
  %v3362 = vand.u32 2147483647, %v2693
  %vm3363 = vcmp.eq.f32.partialorder %v3362, 8.507059e+37
  %v3364 = vand.u32 %v2693, 2147483648
  %v3365 = vor.u32 1.1754944e-38, %v3364
  %v3366 = vsel %vm3363, %v3365, %v3361
  %v3367 = vmul.f32 1.0, %v3366
  %v3368 = vrcp.pop %v2694
  %v3369 = vmul.f32 %v2694, %v3368
  %v3370 = vsub.f32 1.0, %v3369
  %v3371 = vmul.f32 %v3368, %v3370
  %v3372 = vadd.f32 %v3368, %v3371
  %vm3373 = vweird.f32 %v2694
  %vm3374 = vweird.f32 %v3368
  %vm3375 = vmor %vm3373, %vm3374
  %v3376 = vsel %vm3375, %v3368, %v3372
  %v3377 = vand.u32 2147483647, %v2694
  %vm3378 = vcmp.eq.f32.partialorder %v3377, 8.507059e+37
  %v3379 = vand.u32 %v2694, 2147483648
  %v3380 = vor.u32 1.1754944e-38, %v3379
  %v3381 = vsel %vm3378, %v3380, %v3376
  %v3382 = vmul.f32 1.0, %v3381
  %v3383 = vrcp.pop %v2695
  %v3384 = vmul.f32 %v2695, %v3383
  %v3385 = vsub.f32 1.0, %v3384
  %v3386 = vmul.f32 %v3383, %v3385
  %v3387 = vadd.f32 %v3383, %v3386
  %vm3388 = vweird.f32 %v2695
  %vm3389 = vweird.f32 %v3383
  %vm3390 = vmor %vm3388, %vm3389
  %v3391 = vsel %vm3390, %v3383, %v3387
  %v3392 = vand.u32 2147483647, %v2695
  %vm3393 = vcmp.eq.f32.partialorder %v3392, 8.507059e+37
  %v3394 = vand.u32 %v2695, 2147483648
  %v3395 = vor.u32 1.1754944e-38, %v3394
  %v3396 = vsel %vm3393, %v3395, %v3391
  %v3397 = vmul.f32 1.0, %v3396
  %v3398 = vrcp.pop %v2696
  %v3399 = vmul.f32 %v2696, %v3398
  %v3400 = vsub.f32 1.0, %v3399
  %v3401 = vmul.f32 %v3398, %v3400
  %v3402 = vadd.f32 %v3398, %v3401
  %vm3403 = vweird.f32 %v2696
  %vm3404 = vweird.f32 %v3398
  %vm3405 = vmor %vm3403, %vm3404
  %v3406 = vsel %vm3405, %v3398, %v3402
  %v3407 = vand.u32 2147483647, %v2696
  %vm3408 = vcmp.eq.f32.partialorder %v3407, 8.507059e+37
  %v3409 = vand.u32 %v2696, 2147483648
  %v3410 = vor.u32 1.1754944e-38, %v3409
  %v3411 = vsel %vm3408, %v3410, %v3406
  %v3412 = vmul.f32 1.0, %v3411
  %v3413 = vrcp.pop %v2697
  %v3414 = vmul.f32 %v2697, %v3413
  %v3415 = vsub.f32 1.0, %v3414
  %v3416 = vmul.f32 %v3413, %v3415
  %v3417 = vadd.f32 %v3413, %v3416
  %vm3418 = vweird.f32 %v2697
  %vm3419 = vweird.f32 %v3413
  %vm3420 = vmor %vm3418, %vm3419
  %v3421 = vsel %vm3420, %v3413, %v3417
  %v3422 = vand.u32 2147483647, %v2697
  %vm3423 = vcmp.eq.f32.partialorder %v3422, 8.507059e+37
  %v3424 = vand.u32 %v2697, 2147483648
  %v3425 = vor.u32 1.1754944e-38, %v3424
  %v3426 = vsel %vm3423, %v3425, %v3421
  %v3427 = vmul.f32 1.0, %v3426
  %v3428 = vrcp.pop %v2698
  %v3429 = vmul.f32 %v2698, %v3428
  %v3430 = vsub.f32 1.0, %v3429
  %v3431 = vmul.f32 %v3428, %v3430
  %v3432 = vadd.f32 %v3428, %v3431
  %vm3433 = vweird.f32 %v2698
  %vm3434 = vweird.f32 %v3428
  %vm3435 = vmor %vm3433, %vm3434
  %v3436 = vsel %vm3435, %v3428, %v3432
  %v3437 = vand.u32 2147483647, %v2698
  %vm3438 = vcmp.eq.f32.partialorder %v3437, 8.507059e+37
  %v3439 = vand.u32 %v2698, 2147483648
  %v3440 = vor.u32 1.1754944e-38, %v3439
  %v3441 = vsel %vm3438, %v3440, %v3436
  %v3442 = vmul.f32 1.0, %v3441
  %v3443 = vrcp.pop %v2699
  %v3444 = vmul.f32 %v2699, %v3443
  %v3445 = vsub.f32 1.0, %v3444
  %v3446 = vmul.f32 %v3443, %v3445
  %v3447 = vadd.f32 %v3443, %v3446
  %vm3448 = vweird.f32 %v2699
  %vm3449 = vweird.f32 %v3443
  %vm3450 = vmor %vm3448, %vm3449
  %v3451 = vsel %vm3450, %v3443, %v3447
  %v3452 = vand.u32 2147483647, %v2699
  %vm3453 = vcmp.eq.f32.partialorder %v3452, 8.507059e+37
  %v3454 = vand.u32 %v2699, 2147483648
  %v3455 = vor.u32 1.1754944e-38, %v3454
  %v3456 = vsel %vm3453, %v3455, %v3451
  %v3457 = vmul.f32 1.0, %v3456
  %v3458 = vrcp.pop %v2700
  %v3459 = vmul.f32 %v2700, %v3458
  %v3460 = vsub.f32 1.0, %v3459
  %v3461 = vmul.f32 %v3458, %v3460
  %v3462 = vadd.f32 %v3458, %v3461
  %vm3463 = vweird.f32 %v2700
  %vm3464 = vweird.f32 %v3458
  %vm3465 = vmor %vm3463, %vm3464
  %v3466 = vsel %vm3465, %v3458, %v3462
  %v3467 = vand.u32 2147483647, %v2700
  %vm3468 = vcmp.eq.f32.partialorder %v3467, 8.507059e+37
  %v3469 = vand.u32 %v2700, 2147483648
  %v3470 = vor.u32 1.1754944e-38, %v3469
  %v3471 = vsel %vm3468, %v3470, %v3466
  %v3472 = vmul.f32 1.0, %v3471
  %v3473 = vrcp.pop %v2701
  %v3474 = vmul.f32 %v2701, %v3473
  %v3475 = vsub.f32 1.0, %v3474
  %v3476 = vmul.f32 %v3473, %v3475
  %v3477 = vadd.f32 %v3473, %v3476
  %vm3478 = vweird.f32 %v2701
  %vm3479 = vweird.f32 %v3473
  %vm3480 = vmor %vm3478, %vm3479
  %v3481 = vsel %vm3480, %v3473, %v3477
  %v3482 = vand.u32 2147483647, %v2701
  %vm3483 = vcmp.eq.f32.partialorder %v3482, 8.507059e+37
  %v3484 = vand.u32 %v2701, 2147483648
  %v3485 = vor.u32 1.1754944e-38, %v3484
  %v3486 = vsel %vm3483, %v3485, %v3481
  %v3487 = vmul.f32 1.0, %v3486
  %v3488 = vrcp.pop %v2702
  %v3489 = vmul.f32 %v2702, %v3488
  %v3490 = vsub.f32 1.0, %v3489
  %v3491 = vmul.f32 %v3488, %v3490
  %v3492 = vadd.f32 %v3488, %v3491
  %vm3493 = vweird.f32 %v2702
  %vm3494 = vweird.f32 %v3488
  %vm3495 = vmor %vm3493, %vm3494
  %v3496 = vsel %vm3495, %v3488, %v3492
  %v3497 = vand.u32 2147483647, %v2702
  %vm3498 = vcmp.eq.f32.partialorder %v3497, 8.507059e+37
  %v3499 = vand.u32 %v2702, 2147483648
  %v3500 = vor.u32 1.1754944e-38, %v3499
  %v3501 = vsel %vm3498, %v3500, %v3496
  %v3502 = vmul.f32 1.0, %v3501
  %v3503 = vrcp.pop %v2703
  %v3504 = vmul.f32 %v2703, %v3503
  %v3505 = vsub.f32 1.0, %v3504
  %v3506 = vmul.f32 %v3503, %v3505
  %v3507 = vadd.f32 %v3503, %v3506
  %vm3508 = vweird.f32 %v2703
  %vm3509 = vweird.f32 %v3503
  %vm3510 = vmor %vm3508, %vm3509
  %v3511 = vsel %vm3510, %v3503, %v3507
  %v3512 = vand.u32 2147483647, %v2703
  %vm3513 = vcmp.eq.f32.partialorder %v3512, 8.507059e+37
  %v3514 = vand.u32 %v2703, 2147483648
  %v3515 = vor.u32 1.1754944e-38, %v3514
  %v3516 = vsel %vm3513, %v3515, %v3511
  %v3517 = vmul.f32 1.0, %v3516
  %v3518 = vrcp.pop %v2704
  %v3519 = vmul.f32 %v2704, %v3518
  %v3520 = vsub.f32 1.0, %v3519
  %v3521 = vmul.f32 %v3518, %v3520
  %v3522 = vadd.f32 %v3518, %v3521
  %vm3523 = vweird.f32 %v2704
  %vm3524 = vweird.f32 %v3518
  %vm3525 = vmor %vm3523, %vm3524
  %v3526 = vsel %vm3525, %v3518, %v3522
  %v3527 = vand.u32 2147483647, %v2704
  %vm3528 = vcmp.eq.f32.partialorder %v3527, 8.507059e+37
  %v3529 = vand.u32 %v2704, 2147483648
  %v3530 = vor.u32 1.1754944e-38, %v3529
  %v3531 = vsel %vm3528, %v3530, %v3526
  %v3532 = vmul.f32 1.0, %v3531
  %v3533 = vrcp.pop %v2705
  %v3534 = vmul.f32 %v2705, %v3533
  %v3535 = vsub.f32 1.0, %v3534
  %v3536 = vmul.f32 %v3533, %v3535
  %v3537 = vadd.f32 %v3533, %v3536
  %vm3538 = vweird.f32 %v2705
  %vm3539 = vweird.f32 %v3533
  %vm3540 = vmor %vm3538, %vm3539
  %v3541 = vsel %vm3540, %v3533, %v3537
  %v3542 = vand.u32 2147483647, %v2705
  %vm3543 = vcmp.eq.f32.partialorder %v3542, 8.507059e+37
  %v3544 = vand.u32 %v2705, 2147483648
  %v3545 = vor.u32 1.1754944e-38, %v3544
  %v3546 = vsel %vm3543, %v3545, %v3541
  %v3547 = vmul.f32 1.0, %v3546
  %v3548 = vrcp.pop %v2706
  %v3549 = vmul.f32 %v2706, %v3548
  %v3550 = vsub.f32 1.0, %v3549
  %v3551 = vmul.f32 %v3548, %v3550
  %v3552 = vadd.f32 %v3548, %v3551
  %vm3553 = vweird.f32 %v2706
  %vm3554 = vweird.f32 %v3548
  %vm3555 = vmor %vm3553, %vm3554
  %v3556 = vsel %vm3555, %v3548, %v3552
  %v3557 = vand.u32 2147483647, %v2706
  %vm3558 = vcmp.eq.f32.partialorder %v3557, 8.507059e+37
  %v3559 = vand.u32 %v2706, 2147483648
  %v3560 = vor.u32 1.1754944e-38, %v3559
  %v3561 = vsel %vm3558, %v3560, %v3556
  %v3562 = vmul.f32 1.0, %v3561
  %v3563 = vrcp.pop %v2707
  %v3564 = vmul.f32 %v2707, %v3563
  %v3565 = vsub.f32 1.0, %v3564
  %v3566 = vmul.f32 %v3563, %v3565
  %v3567 = vadd.f32 %v3563, %v3566
  %vm3568 = vweird.f32 %v2707
  %vm3569 = vweird.f32 %v3563
  %vm3570 = vmor %vm3568, %vm3569
  %v3571 = vsel %vm3570, %v3563, %v3567
  %v3572 = vand.u32 2147483647, %v2707
  %vm3573 = vcmp.eq.f32.partialorder %v3572, 8.507059e+37
  %v3574 = vand.u32 %v2707, 2147483648
  %v3575 = vor.u32 1.1754944e-38, %v3574
  %v3576 = vsel %vm3573, %v3575, %v3571
  %v3577 = vmul.f32 1.0, %v3576
  %v3578 = vrcp.pop %v2708
  %v3579 = vmul.f32 %v2708, %v3578
  %v3580 = vsub.f32 1.0, %v3579
  %v3581 = vmul.f32 %v3578, %v3580
  %v3582 = vadd.f32 %v3578, %v3581
  %vm3583 = vweird.f32 %v2708
  %vm3584 = vweird.f32 %v3578
  %vm3585 = vmor %vm3583, %vm3584
  %v3586 = vsel %vm3585, %v3578, %v3582
  %v3587 = vand.u32 2147483647, %v2708
  %vm3588 = vcmp.eq.f32.partialorder %v3587, 8.507059e+37
  %v3589 = vand.u32 %v2708, 2147483648
  %v3590 = vor.u32 1.1754944e-38, %v3589
  %v3591 = vsel %vm3588, %v3590, %v3586
  %v3592 = vmul.f32 1.0, %v3591
  %v3593 = vrcp.pop %v2709
  %v3594 = vmul.f32 %v2709, %v3593
  %v3595 = vsub.f32 1.0, %v3594
  %v3596 = vmul.f32 %v3593, %v3595
  %v3597 = vadd.f32 %v3593, %v3596
  %vm3598 = vweird.f32 %v2709
  %vm3599 = vweird.f32 %v3593
  %vm3600 = vmor %vm3598, %vm3599
  %v3601 = vsel %vm3600, %v3593, %v3597
  %v3602 = vand.u32 2147483647, %v2709
  %vm3603 = vcmp.eq.f32.partialorder %v3602, 8.507059e+37
  %v3604 = vand.u32 %v2709, 2147483648
  %v3605 = vor.u32 1.1754944e-38, %v3604
  %v3606 = vsel %vm3603, %v3605, %v3601
  %v3607 = vmul.f32 1.0, %v3606
  %v3608 = vrcp.pop %v2710
  %v3609 = vmul.f32 %v2710, %v3608
  %v3610 = vsub.f32 1.0, %v3609
  %v3611 = vmul.f32 %v3608, %v3610
  %v3612 = vadd.f32 %v3608, %v3611
  %vm3613 = vweird.f32 %v2710
  %vm3614 = vweird.f32 %v3608
  %vm3615 = vmor %vm3613, %vm3614
  %v3616 = vsel %vm3615, %v3608, %v3612
  %v3617 = vand.u32 2147483647, %v2710
  %vm3618 = vcmp.eq.f32.partialorder %v3617, 8.507059e+37
  %v3619 = vand.u32 %v2710, 2147483648
  %v3620 = vor.u32 1.1754944e-38, %v3619
  %v3621 = vsel %vm3618, %v3620, %v3616
  %v3622 = vmul.f32 1.0, %v3621
  %v3623 = vrcp.pop %v2711
  %v3624 = vmul.f32 %v2711, %v3623
  %v3625 = vsub.f32 1.0, %v3624
  %v3626 = vmul.f32 %v3623, %v3625
  %v3627 = vadd.f32 %v3623, %v3626
  %vm3628 = vweird.f32 %v2711
  %vm3629 = vweird.f32 %v3623
  %vm3630 = vmor %vm3628, %vm3629
  %v3631 = vsel %vm3630, %v3623, %v3627
  %v3632 = vand.u32 2147483647, %v2711
  %vm3633 = vcmp.eq.f32.partialorder %v3632, 8.507059e+37
  %v3634 = vand.u32 %v2711, 2147483648
  %v3635 = vor.u32 1.1754944e-38, %v3634
  %v3636 = vsel %vm3633, %v3635, %v3631
  %v3637 = vmul.f32 1.0, %v3636
  %v3638 = vrcp.pop %v2712
  %v3639 = vmul.f32 %v2712, %v3638
  %v3640 = vsub.f32 1.0, %v3639
  %v3641 = vmul.f32 %v3638, %v3640
  %v3642 = vadd.f32 %v3638, %v3641
  %vm3643 = vweird.f32 %v2712
  %vm3644 = vweird.f32 %v3638
  %vm3645 = vmor %vm3643, %vm3644
  %v3646 = vsel %vm3645, %v3638, %v3642
  %v3647 = vand.u32 2147483647, %v2712
  %vm3648 = vcmp.eq.f32.partialorder %v3647, 8.507059e+37
  %v3649 = vand.u32 %v2712, 2147483648
  %v3650 = vor.u32 1.1754944e-38, %v3649
  %v3651 = vsel %vm3648, %v3650, %v3646
  %v3652 = vmul.f32 1.0, %v3651
  %v3653 = vrcp.pop %v2713
  %v3654 = vmul.f32 %v2713, %v3653
  %v3655 = vsub.f32 1.0, %v3654
  %v3656 = vmul.f32 %v3653, %v3655
  %v3657 = vadd.f32 %v3653, %v3656
  %vm3658 = vweird.f32 %v2713
  %vm3659 = vweird.f32 %v3653
  %vm3660 = vmor %vm3658, %vm3659
  %v3661 = vsel %vm3660, %v3653, %v3657
  %v3662 = vand.u32 2147483647, %v2713
  %vm3663 = vcmp.eq.f32.partialorder %v3662, 8.507059e+37
  %v3664 = vand.u32 %v2713, 2147483648
  %v3665 = vor.u32 1.1754944e-38, %v3664
  %v3666 = vsel %vm3663, %v3665, %v3661
  %v3667 = vmul.f32 1.0, %v3666
  %v3668 = vrcp.pop %v2714
  %v3669 = vmul.f32 %v2714, %v3668
  %v3670 = vsub.f32 1.0, %v3669
  %v3671 = vmul.f32 %v3668, %v3670
  %v3672 = vadd.f32 %v3668, %v3671
  %vm3673 = vweird.f32 %v2714
  %vm3674 = vweird.f32 %v3668
  %vm3675 = vmor %vm3673, %vm3674
  %v3676 = vsel %vm3675, %v3668, %v3672
  %v3677 = vand.u32 2147483647, %v2714
  %vm3678 = vcmp.eq.f32.partialorder %v3677, 8.507059e+37
  %v3679 = vand.u32 %v2714, 2147483648
  %v3680 = vor.u32 1.1754944e-38, %v3679
  %v3681 = vsel %vm3678, %v3680, %v3676
  %v3682 = vmul.f32 1.0, %v3681
  %v3683 = vrcp.pop %v2715
  %v3684 = vmul.f32 %v2715, %v3683
  %v3685 = vsub.f32 1.0, %v3684
  %v3686 = vmul.f32 %v3683, %v3685
  %v3687 = vadd.f32 %v3683, %v3686
  %vm3688 = vweird.f32 %v2715
  %vm3689 = vweird.f32 %v3683
  %vm3690 = vmor %vm3688, %vm3689
  %v3691 = vsel %vm3690, %v3683, %v3687
  %v3692 = vand.u32 2147483647, %v2715
  %vm3693 = vcmp.eq.f32.partialorder %v3692, 8.507059e+37
  %v3694 = vand.u32 %v2715, 2147483648
  %v3695 = vor.u32 1.1754944e-38, %v3694
  %v3696 = vsel %vm3693, %v3695, %v3691
  %v3697 = vmul.f32 1.0, %v3696
  %v3698 = vrcp.pop %v2716
  %v3699 = vmul.f32 %v2716, %v3698
  %v3700 = vsub.f32 1.0, %v3699
  %v3701 = vmul.f32 %v3698, %v3700
  %v3702 = vadd.f32 %v3698, %v3701
  %vm3703 = vweird.f32 %v2716
  %vm3704 = vweird.f32 %v3698
  %vm3705 = vmor %vm3703, %vm3704
  %v3706 = vsel %vm3705, %v3698, %v3702
  %v3707 = vand.u32 2147483647, %v2716
  %vm3708 = vcmp.eq.f32.partialorder %v3707, 8.507059e+37
  %v3709 = vand.u32 %v2716, 2147483648
  %v3710 = vor.u32 1.1754944e-38, %v3709
  %v3711 = vsel %vm3708, %v3710, %v3706
  %v3712 = vmul.f32 1.0, %v3711
  %v3713 = vrcp.pop %v2717
  %v3714 = vmul.f32 %v2717, %v3713
  %v3715 = vsub.f32 1.0, %v3714
  %v3716 = vmul.f32 %v3713, %v3715
  %v3717 = vadd.f32 %v3713, %v3716
  %vm3718 = vweird.f32 %v2717
  %vm3719 = vweird.f32 %v3713
  %vm3720 = vmor %vm3718, %vm3719
  %v3721 = vsel %vm3720, %v3713, %v3717
  %v3722 = vand.u32 2147483647, %v2717
  %vm3723 = vcmp.eq.f32.partialorder %v3722, 8.507059e+37
  %v3724 = vand.u32 %v2717, 2147483648
  %v3725 = vor.u32 1.1754944e-38, %v3724
  %v3726 = vsel %vm3723, %v3725, %v3721
  %v3727 = vmul.f32 1.0, %v3726
  %v3728 = vrcp.pop %v2718
  %v3729 = vmul.f32 %v2718, %v3728
  %v3730 = vsub.f32 1.0, %v3729
  %v3731 = vmul.f32 %v3728, %v3730
  %v3732 = vadd.f32 %v3728, %v3731
  %vm3733 = vweird.f32 %v2718
  %vm3734 = vweird.f32 %v3728
  %vm3735 = vmor %vm3733, %vm3734
  %v3736 = vsel %vm3735, %v3728, %v3732
  %v3737 = vand.u32 2147483647, %v2718
  %vm3738 = vcmp.eq.f32.partialorder %v3737, 8.507059e+37
  %v3739 = vand.u32 %v2718, 2147483648
  %v3740 = vor.u32 1.1754944e-38, %v3739
  %v3741 = vsel %vm3738, %v3740, %v3736
  %v3742 = vmul.f32 1.0, %v3741
  %v3743 = vrcp.pop %v2719
  %v3744 = vmul.f32 %v2719, %v3743
  %v3745 = vsub.f32 1.0, %v3744
  %v3746 = vmul.f32 %v3743, %v3745
  %v3747 = vadd.f32 %v3743, %v3746
  %vm3748 = vweird.f32 %v2719
  %vm3749 = vweird.f32 %v3743
  %vm3750 = vmor %vm3748, %vm3749
  %v3751 = vsel %vm3750, %v3743, %v3747
  %v3752 = vand.u32 2147483647, %v2719
  %vm3753 = vcmp.eq.f32.partialorder %v3752, 8.507059e+37
  %v3754 = vand.u32 %v2719, 2147483648
  %v3755 = vor.u32 1.1754944e-38, %v3754
  %v3756 = vsel %vm3753, %v3755, %v3751
  %v3757 = vmul.f32 1.0, %v3756
  %v3758 = vrcp.pop %v2720
  %v3759 = vmul.f32 %v2720, %v3758
  %v3760 = vsub.f32 1.0, %v3759
  %v3761 = vmul.f32 %v3758, %v3760
  %v3762 = vadd.f32 %v3758, %v3761
  %vm3763 = vweird.f32 %v2720
  %vm3764 = vweird.f32 %v3758
  %vm3765 = vmor %vm3763, %vm3764
  %v3766 = vsel %vm3765, %v3758, %v3762
  %v3767 = vand.u32 2147483647, %v2720
  %vm3768 = vcmp.eq.f32.partialorder %v3767, 8.507059e+37
  %v3769 = vand.u32 %v2720, 2147483648
  %v3770 = vor.u32 1.1754944e-38, %v3769
  %v3771 = vsel %vm3768, %v3770, %v3766
  %v3772 = vmul.f32 1.0, %v3771
  %v3773 = vrcp.pop %v2721
  %v3774 = vmul.f32 %v2721, %v3773
  %v3775 = vsub.f32 1.0, %v3774
  %v3776 = vmul.f32 %v3773, %v3775
  %v3777 = vadd.f32 %v3773, %v3776
  %vm3778 = vweird.f32 %v2721
  %vm3779 = vweird.f32 %v3773
  %vm3780 = vmor %vm3778, %vm3779
  %v3781 = vsel %vm3780, %v3773, %v3777
  %v3782 = vand.u32 2147483647, %v2721
  %vm3783 = vcmp.eq.f32.partialorder %v3782, 8.507059e+37
  %v3784 = vand.u32 %v2721, 2147483648
  %v3785 = vor.u32 1.1754944e-38, %v3784
  %v3786 = vsel %vm3783, %v3785, %v3781
  %v3787 = vmul.f32 1.0, %v3786
  %v3788 = vrcp.pop %v2722
  %v3789 = vmul.f32 %v2722, %v3788
  %v3790 = vsub.f32 1.0, %v3789
  %v3791 = vmul.f32 %v3788, %v3790
  %v3792 = vadd.f32 %v3788, %v3791
  %vm3793 = vweird.f32 %v2722
  %vm3794 = vweird.f32 %v3788
  %vm3795 = vmor %vm3793, %vm3794
  %v3796 = vsel %vm3795, %v3788, %v3792
  %v3797 = vand.u32 2147483647, %v2722
  %vm3798 = vcmp.eq.f32.partialorder %v3797, 8.507059e+37
  %v3799 = vand.u32 %v2722, 2147483648
  %v3800 = vor.u32 1.1754944e-38, %v3799
  %v3801 = vsel %vm3798, %v3800, %v3796
  %v3802 = vmul.f32 1.0, %v3801
  %v3803 = vrcp.pop %v2723
  %v3804 = vmul.f32 %v2723, %v3803
  %v3805 = vsub.f32 1.0, %v3804
  %v3806 = vmul.f32 %v3803, %v3805
  %v3807 = vadd.f32 %v3803, %v3806
  %vm3808 = vweird.f32 %v2723
  %vm3809 = vweird.f32 %v3803
  %vm3810 = vmor %vm3808, %vm3809
  %v3811 = vsel %vm3810, %v3803, %v3807
  %v3812 = vand.u32 2147483647, %v2723
  %vm3813 = vcmp.eq.f32.partialorder %v3812, 8.507059e+37
  %v3814 = vand.u32 %v2723, 2147483648
  %v3815 = vor.u32 1.1754944e-38, %v3814
  %v3816 = vsel %vm3813, %v3815, %v3811
  %v3817 = vmul.f32 1.0, %v3816
  %v3818 = vrcp.pop %v2724
  %v3819 = vmul.f32 %v2724, %v3818
  %v3820 = vsub.f32 1.0, %v3819
  %v3821 = vmul.f32 %v3818, %v3820
  %v3822 = vadd.f32 %v3818, %v3821
  %vm3823 = vweird.f32 %v2724
  %vm3824 = vweird.f32 %v3818
  %vm3825 = vmor %vm3823, %vm3824
  %v3826 = vsel %vm3825, %v3818, %v3822
  %v3827 = vand.u32 2147483647, %v2724
  %vm3828 = vcmp.eq.f32.partialorder %v3827, 8.507059e+37
  %v3829 = vand.u32 %v2724, 2147483648
  %v3830 = vor.u32 1.1754944e-38, %v3829
  %v3831 = vsel %vm3828, %v3830, %v3826
  %v3832 = vmul.f32 1.0, %v3831
  %v3833 = vrcp.pop %v2725
  %v3834 = vmul.f32 %v2725, %v3833
  %v3835 = vsub.f32 1.0, %v3834
  %v3836 = vmul.f32 %v3833, %v3835
  %v3837 = vadd.f32 %v3833, %v3836
  %vm3838 = vweird.f32 %v2725
  %vm3839 = vweird.f32 %v3833
  %vm3840 = vmor %vm3838, %vm3839
  %v3841 = vsel %vm3840, %v3833, %v3837
  %v3842 = vand.u32 2147483647, %v2725
  %vm3843 = vcmp.eq.f32.partialorder %v3842, 8.507059e+37
  %v3844 = vand.u32 %v2725, 2147483648
  %v3845 = vor.u32 1.1754944e-38, %v3844
  %v3846 = vsel %vm3843, %v3845, %v3841
  %v3847 = vmul.f32 1.0, %v3846
  %v3848 = vrcp.pop %v2726
  %v3849 = vmul.f32 %v2726, %v3848
  %v3850 = vsub.f32 1.0, %v3849
  %v3851 = vmul.f32 %v3848, %v3850
  %v3852 = vadd.f32 %v3848, %v3851
  %vm3853 = vweird.f32 %v2726
  %vm3854 = vweird.f32 %v3848
  %vm3855 = vmor %vm3853, %vm3854
  %v3856 = vsel %vm3855, %v3848, %v3852
  %v3857 = vand.u32 2147483647, %v2726
  %vm3858 = vcmp.eq.f32.partialorder %v3857, 8.507059e+37
  %v3859 = vand.u32 %v2726, 2147483648
  %v3860 = vor.u32 1.1754944e-38, %v3859
  %v3861 = vsel %vm3858, %v3860, %v3856
  %v3862 = vmul.f32 1.0, %v3861
  %v3863 = vrcp.pop %v2727
  %v3864 = vmul.f32 %v2727, %v3863
  %v3865 = vsub.f32 1.0, %v3864
  %v3866 = vmul.f32 %v3863, %v3865
  %v3867 = vadd.f32 %v3863, %v3866
  %vm3868 = vweird.f32 %v2727
  %vm3869 = vweird.f32 %v3863
  %vm3870 = vmor %vm3868, %vm3869
  %v3871 = vsel %vm3870, %v3863, %v3867
  %v3872 = vand.u32 2147483647, %v2727
  %vm3873 = vcmp.eq.f32.partialorder %v3872, 8.507059e+37
  %v3874 = vand.u32 %v2727, 2147483648
  %v3875 = vor.u32 1.1754944e-38, %v3874
  %v3876 = vsel %vm3873, %v3875, %v3871
  %v3877 = vmul.f32 1.0, %v3876
  %v3878 = vrcp.pop %v2728
  %v3879 = vmul.f32 %v2728, %v3878
  %v3880 = vsub.f32 1.0, %v3879
  %v3881 = vmul.f32 %v3878, %v3880
  %v3882 = vadd.f32 %v3878, %v3881
  %vm3883 = vweird.f32 %v2728
  %vm3884 = vweird.f32 %v3878
  %vm3885 = vmor %vm3883, %vm3884
  %v3886 = vsel %vm3885, %v3878, %v3882
  %v3887 = vand.u32 2147483647, %v2728
  %vm3888 = vcmp.eq.f32.partialorder %v3887, 8.507059e+37
  %v3889 = vand.u32 %v2728, 2147483648
  %v3890 = vor.u32 1.1754944e-38, %v3889
  %v3891 = vsel %vm3888, %v3890, %v3886
  %v3892 = vmul.f32 1.0, %v3891
  %v3893 = vrcp.pop %v2729
  %v3894 = vmul.f32 %v2729, %v3893
  %v3895 = vsub.f32 1.0, %v3894
  %v3896 = vmul.f32 %v3893, %v3895
  %v3897 = vadd.f32 %v3893, %v3896
  %vm3898 = vweird.f32 %v2729
  %vm3899 = vweird.f32 %v3893
  %vm3900 = vmor %vm3898, %vm3899
  %v3901 = vsel %vm3900, %v3893, %v3897
  %v3902 = vand.u32 2147483647, %v2729
  %vm3903 = vcmp.eq.f32.partialorder %v3902, 8.507059e+37
  %v3904 = vand.u32 %v2729, 2147483648
  %v3905 = vor.u32 1.1754944e-38, %v3904
  %v3906 = vsel %vm3903, %v3905, %v3901
  %v3907 = vmul.f32 1.0, %v3906
  %v3908 = vrcp.pop %v2730
  %v3909 = vmul.f32 %v2730, %v3908
  %v3910 = vsub.f32 1.0, %v3909
  %v3911 = vmul.f32 %v3908, %v3910
  %v3912 = vadd.f32 %v3908, %v3911
  %vm3913 = vweird.f32 %v2730
  %vm3914 = vweird.f32 %v3908
  %vm3915 = vmor %vm3913, %vm3914
  %v3916 = vsel %vm3915, %v3908, %v3912
  %v3917 = vand.u32 2147483647, %v2730
  %vm3918 = vcmp.eq.f32.partialorder %v3917, 8.507059e+37
  %v3919 = vand.u32 %v2730, 2147483648
  %v3920 = vor.u32 1.1754944e-38, %v3919
  %v3921 = vsel %vm3918, %v3920, %v3916
  %v3922 = vmul.f32 1.0, %v3921
  %v3923 = vrcp.pop %v2731
  %v3924 = vmul.f32 %v2731, %v3923
  %v3925 = vsub.f32 1.0, %v3924
  %v3926 = vmul.f32 %v3923, %v3925
  %v3927 = vadd.f32 %v3923, %v3926
  %vm3928 = vweird.f32 %v2731
  %vm3929 = vweird.f32 %v3923
  %vm3930 = vmor %vm3928, %vm3929
  %v3931 = vsel %vm3930, %v3923, %v3927
  %v3932 = vand.u32 2147483647, %v2731
  %vm3933 = vcmp.eq.f32.partialorder %v3932, 8.507059e+37
  %v3934 = vand.u32 %v2731, 2147483648
  %v3935 = vor.u32 1.1754944e-38, %v3934
  %v3936 = vsel %vm3933, %v3935, %v3931
  %v3937 = vmul.f32 1.0, %v3936
  %v3938 = vrcp.pop %v2732
  %v3939 = vmul.f32 %v2732, %v3938
  %v3940 = vsub.f32 1.0, %v3939
  %v3941 = vmul.f32 %v3938, %v3940
  %v3942 = vadd.f32 %v3938, %v3941
  %vm3943 = vweird.f32 %v2732
  %vm3944 = vweird.f32 %v3938
  %vm3945 = vmor %vm3943, %vm3944
  %v3946 = vsel %vm3945, %v3938, %v3942
  %v3947 = vand.u32 2147483647, %v2732
  %vm3948 = vcmp.eq.f32.partialorder %v3947, 8.507059e+37
  %v3949 = vand.u32 %v2732, 2147483648
  %v3950 = vor.u32 1.1754944e-38, %v3949
  %v3951 = vsel %vm3948, %v3950, %v3946
  %v3952 = vmul.f32 1.0, %v3951
  %v3953 = vrcp.pop %v2733
  %v3954 = vmul.f32 %v2733, %v3953
  %v3955 = vsub.f32 1.0, %v3954
  %v3956 = vmul.f32 %v3953, %v3955
  %v3957 = vadd.f32 %v3953, %v3956
  %vm3958 = vweird.f32 %v2733
  %vm3959 = vweird.f32 %v3953
  %vm3960 = vmor %vm3958, %vm3959
  %v3961 = vsel %vm3960, %v3953, %v3957
  %v3962 = vand.u32 2147483647, %v2733
  %vm3963 = vcmp.eq.f32.partialorder %v3962, 8.507059e+37
  %v3964 = vand.u32 %v2733, 2147483648
  %v3965 = vor.u32 1.1754944e-38, %v3964
  %v3966 = vsel %vm3963, %v3965, %v3961
  %v3967 = vmul.f32 1.0, %v3966
  %v3968 = vrcp.pop %v2734
  %v3969 = vmul.f32 %v2734, %v3968
  %v3970 = vsub.f32 1.0, %v3969
  %v3971 = vmul.f32 %v3968, %v3970
  %v3972 = vadd.f32 %v3968, %v3971
  %vm3973 = vweird.f32 %v2734
  %vm3974 = vweird.f32 %v3968
  %vm3975 = vmor %vm3973, %vm3974
  %v3976 = vsel %vm3975, %v3968, %v3972
  %v3977 = vand.u32 2147483647, %v2734
  %vm3978 = vcmp.eq.f32.partialorder %v3977, 8.507059e+37
  %v3979 = vand.u32 %v2734, 2147483648
  %v3980 = vor.u32 1.1754944e-38, %v3979
  %v3981 = vsel %vm3978, %v3980, %v3976
  %v3982 = vmul.f32 1.0, %v3981
  %v3983 = vrcp.pop %v2735
  %v3984 = vmul.f32 %v2735, %v3983
  %v3985 = vsub.f32 1.0, %v3984
  %v3986 = vmul.f32 %v3983, %v3985
  %v3987 = vadd.f32 %v3983, %v3986
  %vm3988 = vweird.f32 %v2735
  %vm3989 = vweird.f32 %v3983
  %vm3990 = vmor %vm3988, %vm3989
  %v3991 = vsel %vm3990, %v3983, %v3987
  %v3992 = vand.u32 2147483647, %v2735
  %vm3993 = vcmp.eq.f32.partialorder %v3992, 8.507059e+37
  %v3994 = vand.u32 %v2735, 2147483648
  %v3995 = vor.u32 1.1754944e-38, %v3994
  %v3996 = vsel %vm3993, %v3995, %v3991
  %v3997 = vmul.f32 1.0, %v3996
  %v3998 = vrcp.pop %v2736
  %v3999 = vmul.f32 %v2736, %v3998
  %v4000 = vsub.f32 1.0, %v3999
  %v4001 = vmul.f32 %v3998, %v4000
  %v4002 = vadd.f32 %v3998, %v4001
  %vm4003 = vweird.f32 %v2736
  %vm4004 = vweird.f32 %v3998
  %vm4005 = vmor %vm4003, %vm4004
  %v4006 = vsel %vm4005, %v3998, %v4002
  %v4007 = vand.u32 2147483647, %v2736
  %vm4008 = vcmp.eq.f32.partialorder %v4007, 8.507059e+37
  %v4009 = vand.u32 %v2736, 2147483648
  %v4010 = vor.u32 1.1754944e-38, %v4009
  %v4011 = vsel %vm4008, %v4010, %v4006
  %v4012 = vmul.f32 1.0, %v4011
  %v4013 = vrcp.pop %v2737
  %v4014 = vmul.f32 %v2737, %v4013
  %v4015 = vsub.f32 1.0, %v4014
  %v4016 = vmul.f32 %v4013, %v4015
  %v4017 = vadd.f32 %v4013, %v4016
  %vm4018 = vweird.f32 %v2737
  %vm4019 = vweird.f32 %v4013
  %vm4020 = vmor %vm4018, %vm4019
  %v4021 = vsel %vm4020, %v4013, %v4017
  %v4022 = vand.u32 2147483647, %v2737
  %vm4023 = vcmp.eq.f32.partialorder %v4022, 8.507059e+37
  %v4024 = vand.u32 %v2737, 2147483648
  %v4025 = vor.u32 1.1754944e-38, %v4024
  %v4026 = vsel %vm4023, %v4025, %v4021
  %v4027 = vmul.f32 1.0, %v4026
  %v4028 = vrcp.pop %v2738
  %v4029 = vmul.f32 %v2738, %v4028
  %v4030 = vsub.f32 1.0, %v4029
  %v4031 = vmul.f32 %v4028, %v4030
  %v4032 = vadd.f32 %v4028, %v4031
  %vm4033 = vweird.f32 %v2738
  %vm4034 = vweird.f32 %v4028
  %vm4035 = vmor %vm4033, %vm4034
  %v4036 = vsel %vm4035, %v4028, %v4032
  %v4037 = vand.u32 2147483647, %v2738
  %vm4038 = vcmp.eq.f32.partialorder %v4037, 8.507059e+37
  %v4039 = vand.u32 %v2738, 2147483648
  %v4040 = vor.u32 1.1754944e-38, %v4039
  %v4041 = vsel %vm4038, %v4040, %v4036
  %v4042 = vmul.f32 1.0, %v4041
  %v4043 = vrcp.pop %v2739
  %v4044 = vmul.f32 %v2739, %v4043
  %v4045 = vsub.f32 1.0, %v4044
  %v4046 = vmul.f32 %v4043, %v4045
  %v4047 = vadd.f32 %v4043, %v4046
  %vm4048 = vweird.f32 %v2739
  %vm4049 = vweird.f32 %v4043
  %vm4050 = vmor %vm4048, %vm4049
  %v4051 = vsel %vm4050, %v4043, %v4047
  %v4052 = vand.u32 2147483647, %v2739
  %vm4053 = vcmp.eq.f32.partialorder %v4052, 8.507059e+37
  %v4054 = vand.u32 %v2739, 2147483648
  %v4055 = vor.u32 1.1754944e-38, %v4054
  %v4056 = vsel %vm4053, %v4055, %v4051
  %v4057 = vmul.f32 1.0, %v4056
  %v4058 = vrcp.pop %v2740
  %v4059 = vmul.f32 %v2740, %v4058
  %v4060 = vsub.f32 1.0, %v4059
  %v4061 = vmul.f32 %v4058, %v4060
  %v4062 = vadd.f32 %v4058, %v4061
  %vm4063 = vweird.f32 %v2740
  %vm4064 = vweird.f32 %v4058
  %vm4065 = vmor %vm4063, %vm4064
  %v4066 = vsel %vm4065, %v4058, %v4062
  %v4067 = vand.u32 2147483647, %v2740
  %vm4068 = vcmp.eq.f32.partialorder %v4067, 8.507059e+37
  %v4069 = vand.u32 %v2740, 2147483648
  %v4070 = vor.u32 1.1754944e-38, %v4069
  %v4071 = vsel %vm4068, %v4070, %v4066
  %v4072 = vmul.f32 1.0, %v4071
  %v4073 = vrcp.pop %v2741
  %v4074 = vmul.f32 %v2741, %v4073
  %v4075 = vsub.f32 1.0, %v4074
  %v4076 = vmul.f32 %v4073, %v4075
  %v4077 = vadd.f32 %v4073, %v4076
  %vm4078 = vweird.f32 %v2741
  %vm4079 = vweird.f32 %v4073
  %vm4080 = vmor %vm4078, %vm4079
  %v4081 = vsel %vm4080, %v4073, %v4077
  %v4082 = vand.u32 2147483647, %v2741
  %vm4083 = vcmp.eq.f32.partialorder %v4082, 8.507059e+37
  %v4084 = vand.u32 %v2741, 2147483648
  %v4085 = vor.u32 1.1754944e-38, %v4084
  %v4086 = vsel %vm4083, %v4085, %v4081
  %v4087 = vmul.f32 1.0, %v4086
  %v4088 = vrcp.pop %v2742
  %v4089 = vmul.f32 %v2742, %v4088
  %v4090 = vsub.f32 1.0, %v4089
  %v4091 = vmul.f32 %v4088, %v4090
  %v4092 = vadd.f32 %v4088, %v4091
  %vm4093 = vweird.f32 %v2742
  %vm4094 = vweird.f32 %v4088
  %vm4095 = vmor %vm4093, %vm4094
  %v4096 = vsel %vm4095, %v4088, %v4092
  %v4097 = vand.u32 2147483647, %v2742
  %vm4098 = vcmp.eq.f32.partialorder %v4097, 8.507059e+37
  %v4099 = vand.u32 %v2742, 2147483648
  %v4100 = vor.u32 1.1754944e-38, %v4099
  %v4101 = vsel %vm4098, %v4100, %v4096
  %v4102 = vmul.f32 1.0, %v4101
  %v4103 = vrcp.pop %v2743
  %v4104 = vmul.f32 %v2743, %v4103
  %v4105 = vsub.f32 1.0, %v4104
  %v4106 = vmul.f32 %v4103, %v4105
  %v4107 = vadd.f32 %v4103, %v4106
  %vm4108 = vweird.f32 %v2743
  %vm4109 = vweird.f32 %v4103
  %vm4110 = vmor %vm4108, %vm4109
  %v4111 = vsel %vm4110, %v4103, %v4107
  %v4112 = vand.u32 2147483647, %v2743
  %vm4113 = vcmp.eq.f32.partialorder %v4112, 8.507059e+37
  %v4114 = vand.u32 %v2743, 2147483648
  %v4115 = vor.u32 1.1754944e-38, %v4114
  %v4116 = vsel %vm4113, %v4115, %v4111
  %v4117 = vmul.f32 1.0, %v4116
  %v4118 = vrcp.pop %v2744
  %v4119 = vmul.f32 %v2744, %v4118
  %v4120 = vsub.f32 1.0, %v4119
  %v4121 = vmul.f32 %v4118, %v4120
  %v4122 = vadd.f32 %v4118, %v4121
  %vm4123 = vweird.f32 %v2744
  %vm4124 = vweird.f32 %v4118
  %vm4125 = vmor %vm4123, %vm4124
  %v4126 = vsel %vm4125, %v4118, %v4122
  %v4127 = vand.u32 2147483647, %v2744
  %vm4128 = vcmp.eq.f32.partialorder %v4127, 8.507059e+37
  %v4129 = vand.u32 %v2744, 2147483648
  %v4130 = vor.u32 1.1754944e-38, %v4129
  %v4131 = vsel %vm4128, %v4130, %v4126
  %v4132 = vmul.f32 1.0, %v4131
  %v4133 = vrcp.pop %v2745
  %v4134 = vmul.f32 %v2745, %v4133
  %v4135 = vsub.f32 1.0, %v4134
  %v4136 = vmul.f32 %v4133, %v4135
  %v4137 = vadd.f32 %v4133, %v4136
  %vm4138 = vweird.f32 %v2745
  %vm4139 = vweird.f32 %v4133
  %vm4140 = vmor %vm4138, %vm4139
  %v4141 = vsel %vm4140, %v4133, %v4137
  %v4142 = vand.u32 2147483647, %v2745
  %vm4143 = vcmp.eq.f32.partialorder %v4142, 8.507059e+37
  %v4144 = vand.u32 %v2745, 2147483648
  %v4145 = vor.u32 1.1754944e-38, %v4144
  %v4146 = vsel %vm4143, %v4145, %v4141
  %v4147 = vmul.f32 1.0, %v4146
  %v4148 = vrcp.pop %v2746
  %v4149 = vmul.f32 %v2746, %v4148
  %v4150 = vsub.f32 1.0, %v4149
  %v4151 = vmul.f32 %v4148, %v4150
  %v4152 = vadd.f32 %v4148, %v4151
  %vm4153 = vweird.f32 %v2746
  %vm4154 = vweird.f32 %v4148
  %vm4155 = vmor %vm4153, %vm4154
  %v4156 = vsel %vm4155, %v4148, %v4152
  %v4157 = vand.u32 2147483647, %v2746
  %vm4158 = vcmp.eq.f32.partialorder %v4157, 8.507059e+37
  %v4159 = vand.u32 %v2746, 2147483648
  %v4160 = vor.u32 1.1754944e-38, %v4159
  %v4161 = vsel %vm4158, %v4160, %v4156
  %v4162 = vmul.f32 1.0, %v4161
  %v4163 = vrcp.pop %v2747
  %v4164 = vmul.f32 %v2747, %v4163
  %v4165 = vsub.f32 1.0, %v4164
  %v4166 = vmul.f32 %v4163, %v4165
  %v4167 = vadd.f32 %v4163, %v4166
  %vm4168 = vweird.f32 %v2747
  %vm4169 = vweird.f32 %v4163
  %vm4170 = vmor %vm4168, %vm4169
  %v4171 = vsel %vm4170, %v4163, %v4167
  %v4172 = vand.u32 2147483647, %v2747
  %vm4173 = vcmp.eq.f32.partialorder %v4172, 8.507059e+37
  %v4174 = vand.u32 %v2747, 2147483648
  %v4175 = vor.u32 1.1754944e-38, %v4174
  %v4176 = vsel %vm4173, %v4175, %v4171
  %v4177 = vmul.f32 1.0, %v4176
  %v4178 = vrcp.pop %v2748
  %v4179 = vmul.f32 %v2748, %v4178
  %v4180 = vsub.f32 1.0, %v4179
  %v4181 = vmul.f32 %v4178, %v4180
  %v4182 = vadd.f32 %v4178, %v4181
  %vm4183 = vweird.f32 %v2748
  %vm4184 = vweird.f32 %v4178
  %vm4185 = vmor %vm4183, %vm4184
  %v4186 = vsel %vm4185, %v4178, %v4182
  %v4187 = vand.u32 2147483647, %v2748
  %vm4188 = vcmp.eq.f32.partialorder %v4187, 8.507059e+37
  %v4189 = vand.u32 %v2748, 2147483648
  %v4190 = vor.u32 1.1754944e-38, %v4189
  %v4191 = vsel %vm4188, %v4190, %v4186
  %v4192 = vmul.f32 1.0, %v4191
  %v4193 = vrcp.pop %v2749
  %v4194 = vmul.f32 %v2749, %v4193
  %v4195 = vsub.f32 1.0, %v4194
  %v4196 = vmul.f32 %v4193, %v4195
  %v4197 = vadd.f32 %v4193, %v4196
  %vm4198 = vweird.f32 %v2749
  %vm4199 = vweird.f32 %v4193
  %vm4200 = vmor %vm4198, %vm4199
  %v4201 = vsel %vm4200, %v4193, %v4197
  %v4202 = vand.u32 2147483647, %v2749
  %vm4203 = vcmp.eq.f32.partialorder %v4202, 8.507059e+37
  %v4204 = vand.u32 %v2749, 2147483648
  %v4205 = vor.u32 1.1754944e-38, %v4204
  %v4206 = vsel %vm4203, %v4205, %v4201
  %v4207 = vmul.f32 1.0, %v4206
  %v4208 = vrcp.pop %v2750
  %v4209 = vmul.f32 %v2750, %v4208
  %v4210 = vsub.f32 1.0, %v4209
  %v4211 = vmul.f32 %v4208, %v4210
  %v4212 = vadd.f32 %v4208, %v4211
  %vm4213 = vweird.f32 %v2750
  %vm4214 = vweird.f32 %v4208
  %vm4215 = vmor %vm4213, %vm4214
  %v4216 = vsel %vm4215, %v4208, %v4212
  %v4217 = vand.u32 2147483647, %v2750
  %vm4218 = vcmp.eq.f32.partialorder %v4217, 8.507059e+37
  %v4219 = vand.u32 %v2750, 2147483648
  %v4220 = vor.u32 1.1754944e-38, %v4219
  %v4221 = vsel %vm4218, %v4220, %v4216
  %v4222 = vmul.f32 1.0, %v4221
  %v4223 = vrcp.pop %v2751
  %v4224 = vmul.f32 %v2751, %v4223
  %v4225 = vsub.f32 1.0, %v4224
  %v4226 = vmul.f32 %v4223, %v4225
  %v4227 = vadd.f32 %v4223, %v4226
  %vm4228 = vweird.f32 %v2751
  %vm4229 = vweird.f32 %v4223
  %vm4230 = vmor %vm4228, %vm4229
  %v4231 = vsel %vm4230, %v4223, %v4227
  %v4232 = vand.u32 2147483647, %v2751
  %vm4233 = vcmp.eq.f32.partialorder %v4232, 8.507059e+37
  %v4234 = vand.u32 %v2751, 2147483648
  %v4235 = vor.u32 1.1754944e-38, %v4234
  %v4236 = vsel %vm4233, %v4235, %v4231
  %v4237 = vmul.f32 1.0, %v4236
  %v4238 = vrcp.pop %v2752
  %v4239 = vmul.f32 %v2752, %v4238
  %v4240 = vsub.f32 1.0, %v4239
  %v4241 = vmul.f32 %v4238, %v4240
  %v4242 = vadd.f32 %v4238, %v4241
  %vm4243 = vweird.f32 %v2752
  %vm4244 = vweird.f32 %v4238
  %vm4245 = vmor %vm4243, %vm4244
  %v4246 = vsel %vm4245, %v4238, %v4242
  %v4247 = vand.u32 2147483647, %v2752
  %vm4248 = vcmp.eq.f32.partialorder %v4247, 8.507059e+37
  %v4249 = vand.u32 %v2752, 2147483648
  %v4250 = vor.u32 1.1754944e-38, %v4249
  %v4251 = vsel %vm4248, %v4250, %v4246
  %v4252 = vmul.f32 1.0, %v4251
  %v4253 = vrcp.pop %v2753
  %v4254 = vmul.f32 %v2753, %v4253
  %v4255 = vsub.f32 1.0, %v4254
  %v4256 = vmul.f32 %v4253, %v4255
  %v4257 = vadd.f32 %v4253, %v4256
  %vm4258 = vweird.f32 %v2753
  %vm4259 = vweird.f32 %v4253
  %vm4260 = vmor %vm4258, %vm4259
  %v4261 = vsel %vm4260, %v4253, %v4257
  %v4262 = vand.u32 2147483647, %v2753
  %vm4263 = vcmp.eq.f32.partialorder %v4262, 8.507059e+37
  %v4264 = vand.u32 %v2753, 2147483648
  %v4265 = vor.u32 1.1754944e-38, %v4264
  %v4266 = vsel %vm4263, %v4265, %v4261
  %v4267 = vmul.f32 1.0, %v4266
  %v4268 = vrcp.pop %v2754
  %v4269 = vmul.f32 %v2754, %v4268
  %v4270 = vsub.f32 1.0, %v4269
  %v4271 = vmul.f32 %v4268, %v4270
  %v4272 = vadd.f32 %v4268, %v4271
  %vm4273 = vweird.f32 %v2754
  %vm4274 = vweird.f32 %v4268
  %vm4275 = vmor %vm4273, %vm4274
  %v4276 = vsel %vm4275, %v4268, %v4272
  %v4277 = vand.u32 2147483647, %v2754
  %vm4278 = vcmp.eq.f32.partialorder %v4277, 8.507059e+37
  %v4279 = vand.u32 %v2754, 2147483648
  %v4280 = vor.u32 1.1754944e-38, %v4279
  %v4281 = vsel %vm4278, %v4280, %v4276
  %v4282 = vmul.f32 1.0, %v4281
  %v4283 = vrcp.pop %v2755
  %v4284 = vmul.f32 %v2755, %v4283
  %v4285 = vsub.f32 1.0, %v4284
  %v4286 = vmul.f32 %v4283, %v4285
  %v4287 = vadd.f32 %v4283, %v4286
  %vm4288 = vweird.f32 %v2755
  %vm4289 = vweird.f32 %v4283
  %vm4290 = vmor %vm4288, %vm4289
  %v4291 = vsel %vm4290, %v4283, %v4287
  %v4292 = vand.u32 2147483647, %v2755
  %vm4293 = vcmp.eq.f32.partialorder %v4292, 8.507059e+37
  %v4294 = vand.u32 %v2755, 2147483648
  %v4295 = vor.u32 1.1754944e-38, %v4294
  %v4296 = vsel %vm4293, %v4295, %v4291
  %v4297 = vmul.f32 1.0, %v4296
  %v4298 = vrcp.pop %v2756
  %v4299 = vmul.f32 %v2756, %v4298
  %v4300 = vsub.f32 1.0, %v4299
  %v4301 = vmul.f32 %v4298, %v4300
  %v4302 = vadd.f32 %v4298, %v4301
  %vm4303 = vweird.f32 %v2756
  %vm4304 = vweird.f32 %v4298
  %vm4305 = vmor %vm4303, %vm4304
  %v4306 = vsel %vm4305, %v4298, %v4302
  %v4307 = vand.u32 2147483647, %v2756
  %vm4308 = vcmp.eq.f32.partialorder %v4307, 8.507059e+37
  %v4309 = vand.u32 %v2756, 2147483648
  %v4310 = vor.u32 1.1754944e-38, %v4309
  %v4311 = vsel %vm4308, %v4310, %v4306
  %v4312 = vmul.f32 1.0, %v4311
  %v4313 = vrcp.pop %v2757
  %v4314 = vmul.f32 %v2757, %v4313
  %v4315 = vsub.f32 1.0, %v4314
  %v4316 = vmul.f32 %v4313, %v4315
  %v4317 = vadd.f32 %v4313, %v4316
  %vm4318 = vweird.f32 %v2757
  %vm4319 = vweird.f32 %v4313
  %vm4320 = vmor %vm4318, %vm4319
  %v4321 = vsel %vm4320, %v4313, %v4317
  %v4322 = vand.u32 2147483647, %v2757
  %vm4323 = vcmp.eq.f32.partialorder %v4322, 8.507059e+37
  %v4324 = vand.u32 %v2757, 2147483648
  %v4325 = vor.u32 1.1754944e-38, %v4324
  %v4326 = vsel %vm4323, %v4325, %v4321
  %v4327 = vmul.f32 1.0, %v4326
  %v4328 = vrcp.pop %v2758
  %v4329 = vmul.f32 %v2758, %v4328
  %v4330 = vsub.f32 1.0, %v4329
  %v4331 = vmul.f32 %v4328, %v4330
  %v4332 = vadd.f32 %v4328, %v4331
  %vm4333 = vweird.f32 %v2758
  %vm4334 = vweird.f32 %v4328
  %vm4335 = vmor %vm4333, %vm4334
  %v4336 = vsel %vm4335, %v4328, %v4332
  %v4337 = vand.u32 2147483647, %v2758
  %vm4338 = vcmp.eq.f32.partialorder %v4337, 8.507059e+37
  %v4339 = vand.u32 %v2758, 2147483648
  %v4340 = vor.u32 1.1754944e-38, %v4339
  %v4341 = vsel %vm4338, %v4340, %v4336
  %v4342 = vmul.f32 1.0, %v4341
  %v4343 = vrcp.pop %v2759
  %v4344 = vmul.f32 %v2759, %v4343
  %v4345 = vsub.f32 1.0, %v4344
  %v4346 = vmul.f32 %v4343, %v4345
  %v4347 = vadd.f32 %v4343, %v4346
  %vm4348 = vweird.f32 %v2759
  %vm4349 = vweird.f32 %v4343
  %vm4350 = vmor %vm4348, %vm4349
  %v4351 = vsel %vm4350, %v4343, %v4347
  %v4352 = vand.u32 2147483647, %v2759
  %vm4353 = vcmp.eq.f32.partialorder %v4352, 8.507059e+37
  %v4354 = vand.u32 %v2759, 2147483648
  %v4355 = vor.u32 1.1754944e-38, %v4354
  %v4356 = vsel %vm4353, %v4355, %v4351
  %v4357 = vmul.f32 1.0, %v4356
  %v4358 = vrcp.pop %v2760
  %v4359 = vmul.f32 %v2760, %v4358
  %v4360 = vsub.f32 1.0, %v4359
  %v4361 = vmul.f32 %v4358, %v4360
  %v4362 = vadd.f32 %v4358, %v4361
  %vm4363 = vweird.f32 %v2760
  %vm4364 = vweird.f32 %v4358
  %vm4365 = vmor %vm4363, %vm4364
  %v4366 = vsel %vm4365, %v4358, %v4362
  %v4367 = vand.u32 2147483647, %v2760
  %vm4368 = vcmp.eq.f32.partialorder %v4367, 8.507059e+37
  %v4369 = vand.u32 %v2760, 2147483648
  %v4370 = vor.u32 1.1754944e-38, %v4369
  %v4371 = vsel %vm4368, %v4370, %v4366
  %v4372 = vmul.f32 1.0, %v4371
  %v4373 = vrcp.pop %v2761
  %v4374 = vmul.f32 %v2761, %v4373
  %v4375 = vsub.f32 1.0, %v4374
  %v4376 = vmul.f32 %v4373, %v4375
  %v4377 = vadd.f32 %v4373, %v4376
  %vm4378 = vweird.f32 %v2761
  %vm4379 = vweird.f32 %v4373
  %vm4380 = vmor %vm4378, %vm4379
  %v4381 = vsel %vm4380, %v4373, %v4377
  %v4382 = vand.u32 2147483647, %v2761
  %vm4383 = vcmp.eq.f32.partialorder %v4382, 8.507059e+37
  %v4384 = vand.u32 %v2761, 2147483648
  %v4385 = vor.u32 1.1754944e-38, %v4384
  %v4386 = vsel %vm4383, %v4385, %v4381
  %v4387 = vmul.f32 1.0, %v4386
  %v4388 = vrcp.pop %v2762
  %v4389 = vmul.f32 %v2762, %v4388
  %v4390 = vsub.f32 1.0, %v4389
  %v4391 = vmul.f32 %v4388, %v4390
  %v4392 = vadd.f32 %v4388, %v4391
  %vm4393 = vweird.f32 %v2762
  %vm4394 = vweird.f32 %v4388
  %vm4395 = vmor %vm4393, %vm4394
  %v4396 = vsel %vm4395, %v4388, %v4392
  %v4397 = vand.u32 2147483647, %v2762
  %vm4398 = vcmp.eq.f32.partialorder %v4397, 8.507059e+37
  %v4399 = vand.u32 %v2762, 2147483648
  %v4400 = vor.u32 1.1754944e-38, %v4399
  %v4401 = vsel %vm4398, %v4400, %v4396
  %v4402 = vmul.f32 1.0, %v4401
  %v4403 = vrcp.pop %v2763
  %v4404 = vmul.f32 %v2763, %v4403
  %v4405 = vsub.f32 1.0, %v4404
  %v4406 = vmul.f32 %v4403, %v4405
  %v4407 = vadd.f32 %v4403, %v4406
  %vm4408 = vweird.f32 %v2763
  %vm4409 = vweird.f32 %v4403
  %vm4410 = vmor %vm4408, %vm4409
  %v4411 = vsel %vm4410, %v4403, %v4407
  %v4412 = vand.u32 2147483647, %v2763
  %vm4413 = vcmp.eq.f32.partialorder %v4412, 8.507059e+37
  %v4414 = vand.u32 %v2763, 2147483648
  %v4415 = vor.u32 1.1754944e-38, %v4414
  %v4416 = vsel %vm4413, %v4415, %v4411
  %v4417 = vmul.f32 1.0, %v4416
  %v4418 = vrcp.pop %v2764
  %v4419 = vmul.f32 %v2764, %v4418
  %v4420 = vsub.f32 1.0, %v4419
  %v4421 = vmul.f32 %v4418, %v4420
  %v4422 = vadd.f32 %v4418, %v4421
  %vm4423 = vweird.f32 %v2764
  %vm4424 = vweird.f32 %v4418
  %vm4425 = vmor %vm4423, %vm4424
  %v4426 = vsel %vm4425, %v4418, %v4422
  %v4427 = vand.u32 2147483647, %v2764
  %vm4428 = vcmp.eq.f32.partialorder %v4427, 8.507059e+37
  %v4429 = vand.u32 %v2764, 2147483648
  %v4430 = vor.u32 1.1754944e-38, %v4429
  %v4431 = vsel %vm4428, %v4430, %v4426
  %v4432 = vmul.f32 1.0, %v4431
  %v4433 = vrcp.pop %v2765
  %v4434 = vmul.f32 %v2765, %v4433
  %v4435 = vsub.f32 1.0, %v4434
  %v4436 = vmul.f32 %v4433, %v4435
  %v4437 = vadd.f32 %v4433, %v4436
  %vm4438 = vweird.f32 %v2765
  %vm4439 = vweird.f32 %v4433
  %vm4440 = vmor %vm4438, %vm4439
  %v4441 = vsel %vm4440, %v4433, %v4437
  %v4442 = vand.u32 2147483647, %v2765
  %vm4443 = vcmp.eq.f32.partialorder %v4442, 8.507059e+37
  %v4444 = vand.u32 %v2765, 2147483648
  %v4445 = vor.u32 1.1754944e-38, %v4444
  %v4446 = vsel %vm4443, %v4445, %v4441
  %v4447 = vmul.f32 1.0, %v4446
  %v4448 = vrcp.pop %v2766
  %v4449 = vmul.f32 %v2766, %v4448
  %v4450 = vsub.f32 1.0, %v4449
  %v4451 = vmul.f32 %v4448, %v4450
  %v4452 = vadd.f32 %v4448, %v4451
  %vm4453 = vweird.f32 %v2766
  %vm4454 = vweird.f32 %v4448
  %vm4455 = vmor %vm4453, %vm4454
  %v4456 = vsel %vm4455, %v4448, %v4452
  %v4457 = vand.u32 2147483647, %v2766
  %vm4458 = vcmp.eq.f32.partialorder %v4457, 8.507059e+37
  %v4459 = vand.u32 %v2766, 2147483648
  %v4460 = vor.u32 1.1754944e-38, %v4459
  %v4461 = vsel %vm4458, %v4460, %v4456
  %v4462 = vmul.f32 1.0, %v4461
  %v4463 = vrcp.pop %v2767
  %v4464 = vmul.f32 %v2767, %v4463
  %v4465 = vsub.f32 1.0, %v4464
  %v4466 = vmul.f32 %v4463, %v4465
  %v4467 = vadd.f32 %v4463, %v4466
  %vm4468 = vweird.f32 %v2767
  %vm4469 = vweird.f32 %v4463
  %vm4470 = vmor %vm4468, %vm4469
  %v4471 = vsel %vm4470, %v4463, %v4467
  %v4472 = vand.u32 2147483647, %v2767
  %vm4473 = vcmp.eq.f32.partialorder %v4472, 8.507059e+37
  %v4474 = vand.u32 %v2767, 2147483648
  %v4475 = vor.u32 1.1754944e-38, %v4474
  %v4476 = vsel %vm4473, %v4475, %v4471
  %v4477 = vmul.f32 1.0, %v4476
  %v4478 = vrcp.pop %v2768
  %v4479 = vmul.f32 %v2768, %v4478
  %v4480 = vsub.f32 1.0, %v4479
  %v4481 = vmul.f32 %v4478, %v4480
  %v4482 = vadd.f32 %v4478, %v4481
  %vm4483 = vweird.f32 %v2768
  %vm4484 = vweird.f32 %v4478
  %vm4485 = vmor %vm4483, %vm4484
  %v4486 = vsel %vm4485, %v4478, %v4482
  %v4487 = vand.u32 2147483647, %v2768
  %vm4488 = vcmp.eq.f32.partialorder %v4487, 8.507059e+37
  %v4489 = vand.u32 %v2768, 2147483648
  %v4490 = vor.u32 1.1754944e-38, %v4489
  %v4491 = vsel %vm4488, %v4490, %v4486
  %v4492 = vmul.f32 1.0, %v4491
  %v4493 = vrcp.pop %v2769
  %v4494 = vmul.f32 %v2769, %v4493
  %v4495 = vsub.f32 1.0, %v4494
  %v4496 = vmul.f32 %v4493, %v4495
  %v4497 = vadd.f32 %v4493, %v4496
  %vm4498 = vweird.f32 %v2769
  %vm4499 = vweird.f32 %v4493
  %vm4500 = vmor %vm4498, %vm4499
  %v4501 = vsel %vm4500, %v4493, %v4497
  %v4502 = vand.u32 2147483647, %v2769
  %vm4503 = vcmp.eq.f32.partialorder %v4502, 8.507059e+37
  %v4504 = vand.u32 %v2769, 2147483648
  %v4505 = vor.u32 1.1754944e-38, %v4504
  %v4506 = vsel %vm4503, %v4505, %v4501
  %v4507 = vmul.f32 1.0, %v4506
  %v4508 = vrcp.pop %v2770
  %v4509 = vmul.f32 %v2770, %v4508
  %v4510 = vsub.f32 1.0, %v4509
  %v4511 = vmul.f32 %v4508, %v4510
  %v4512 = vadd.f32 %v4508, %v4511
  %vm4513 = vweird.f32 %v2770
  %vm4514 = vweird.f32 %v4508
  %vm4515 = vmor %vm4513, %vm4514
  %v4516 = vsel %vm4515, %v4508, %v4512
  %v4517 = vand.u32 2147483647, %v2770
  %vm4518 = vcmp.eq.f32.partialorder %v4517, 8.507059e+37
  %v4519 = vand.u32 %v2770, 2147483648
  %v4520 = vor.u32 1.1754944e-38, %v4519
  %v4521 = vsel %vm4518, %v4520, %v4516
  %v4522 = vmul.f32 1.0, %v4521
  %v4523 = vrcp.pop %v2771
  %v4524 = vmul.f32 %v2771, %v4523
  %v4525 = vsub.f32 1.0, %v4524
  %v4526 = vmul.f32 %v4523, %v4525
  %v4527 = vadd.f32 %v4523, %v4526
  %vm4528 = vweird.f32 %v2771
  %vm4529 = vweird.f32 %v4523
  %vm4530 = vmor %vm4528, %vm4529
  %v4531 = vsel %vm4530, %v4523, %v4527
  %v4532 = vand.u32 2147483647, %v2771
  %vm4533 = vcmp.eq.f32.partialorder %v4532, 8.507059e+37
  %v4534 = vand.u32 %v2771, 2147483648
  %v4535 = vor.u32 1.1754944e-38, %v4534
  %v4536 = vsel %vm4533, %v4535, %v4531
  %v4537 = vmul.f32 1.0, %v4536
  %v4538 = vrcp.pop %v2772
  %v4539 = vmul.f32 %v2772, %v4538
  %v4540 = vsub.f32 1.0, %v4539
  %v4541 = vmul.f32 %v4538, %v4540
  %v4542 = vadd.f32 %v4538, %v4541
  %vm4543 = vweird.f32 %v2772
  %vm4544 = vweird.f32 %v4538
  %vm4545 = vmor %vm4543, %vm4544
  %v4546 = vsel %vm4545, %v4538, %v4542
  %v4547 = vand.u32 2147483647, %v2772
  %vm4548 = vcmp.eq.f32.partialorder %v4547, 8.507059e+37
  %v4549 = vand.u32 %v2772, 2147483648
  %v4550 = vor.u32 1.1754944e-38, %v4549
  %v4551 = vsel %vm4548, %v4550, %v4546
  %v4552 = vmul.f32 1.0, %v4551
  %v4553 = vrcp.pop %v2773
  %v4554 = vmul.f32 %v2773, %v4553
  %v4555 = vsub.f32 1.0, %v4554
  %v4556 = vmul.f32 %v4553, %v4555
  %v4557 = vadd.f32 %v4553, %v4556
  %vm4558 = vweird.f32 %v2773
  %vm4559 = vweird.f32 %v4553
  %vm4560 = vmor %vm4558, %vm4559
  %v4561 = vsel %vm4560, %v4553, %v4557
  %v4562 = vand.u32 2147483647, %v2773
  %vm4563 = vcmp.eq.f32.partialorder %v4562, 8.507059e+37
  %v4564 = vand.u32 %v2773, 2147483648
  %v4565 = vor.u32 1.1754944e-38, %v4564
  %v4566 = vsel %vm4563, %v4565, %v4561
  %v4567 = vmul.f32 1.0, %v4566
  %v4568 = vrcp.pop %v2774
  %v4569 = vmul.f32 %v2774, %v4568
  %v4570 = vsub.f32 1.0, %v4569
  %v4571 = vmul.f32 %v4568, %v4570
  %v4572 = vadd.f32 %v4568, %v4571
  %vm4573 = vweird.f32 %v2774
  %vm4574 = vweird.f32 %v4568
  %vm4575 = vmor %vm4573, %vm4574
  %v4576 = vsel %vm4575, %v4568, %v4572
  %v4577 = vand.u32 2147483647, %v2774
  %vm4578 = vcmp.eq.f32.partialorder %v4577, 8.507059e+37
  %v4579 = vand.u32 %v2774, 2147483648
  %v4580 = vor.u32 1.1754944e-38, %v4579
  %v4581 = vsel %vm4578, %v4580, %v4576
  %v4582 = vmul.f32 1.0, %v4581
  %v4583 = vrcp.pop %v2775
  %v4584 = vmul.f32 %v2775, %v4583
  %v4585 = vsub.f32 1.0, %v4584
  %v4586 = vmul.f32 %v4583, %v4585
  %v4587 = vadd.f32 %v4583, %v4586
  %vm4588 = vweird.f32 %v2775
  %vm4589 = vweird.f32 %v4583
  %vm4590 = vmor %vm4588, %vm4589
  %v4591 = vsel %vm4590, %v4583, %v4587
  %v4592 = vand.u32 2147483647, %v2775
  %vm4593 = vcmp.eq.f32.partialorder %v4592, 8.507059e+37
  %v4594 = vand.u32 %v2775, 2147483648
  %v4595 = vor.u32 1.1754944e-38, %v4594
  %v4596 = vsel %vm4593, %v4595, %v4591
  %v4597 = vmul.f32 1.0, %v4596
  %v4598 = vrcp.pop %v2776
  %v4599 = vmul.f32 %v2776, %v4598
  %v4600 = vsub.f32 1.0, %v4599
  %v4601 = vmul.f32 %v4598, %v4600
  %v4602 = vadd.f32 %v4598, %v4601
  %vm4603 = vweird.f32 %v2776
  %vm4604 = vweird.f32 %v4598
  %vm4605 = vmor %vm4603, %vm4604
  %v4606 = vsel %vm4605, %v4598, %v4602
  %v4607 = vand.u32 2147483647, %v2776
  %vm4608 = vcmp.eq.f32.partialorder %v4607, 8.507059e+37
  %v4609 = vand.u32 %v2776, 2147483648
  %v4610 = vor.u32 1.1754944e-38, %v4609
  %v4611 = vsel %vm4608, %v4610, %v4606
  %v4612 = vmul.f32 1.0, %v4611
  %v4613 = vrcp.pop %v2777
  %v4614 = vmul.f32 %v2777, %v4613
  %v4615 = vsub.f32 1.0, %v4614
  %v4616 = vmul.f32 %v4613, %v4615
  %v4617 = vadd.f32 %v4613, %v4616
  %vm4618 = vweird.f32 %v2777
  %vm4619 = vweird.f32 %v4613
  %vm4620 = vmor %vm4618, %vm4619
  %v4621 = vsel %vm4620, %v4613, %v4617
  %v4622 = vand.u32 2147483647, %v2777
  %vm4623 = vcmp.eq.f32.partialorder %v4622, 8.507059e+37
  %v4624 = vand.u32 %v2777, 2147483648
  %v4625 = vor.u32 1.1754944e-38, %v4624
  %v4626 = vsel %vm4623, %v4625, %v4621
  %v4627 = vmul.f32 1.0, %v4626
  %v4628 = vrcp.pop %v2778
  %v4629 = vmul.f32 %v2778, %v4628
  %v4630 = vsub.f32 1.0, %v4629
  %v4631 = vmul.f32 %v4628, %v4630
  %v4632 = vadd.f32 %v4628, %v4631
  %vm4633 = vweird.f32 %v2778
  %vm4634 = vweird.f32 %v4628
  %vm4635 = vmor %vm4633, %vm4634
  %v4636 = vsel %vm4635, %v4628, %v4632
  %v4637 = vand.u32 2147483647, %v2778
  %vm4638 = vcmp.eq.f32.partialorder %v4637, 8.507059e+37
  %v4639 = vand.u32 %v2778, 2147483648
  %v4640 = vor.u32 1.1754944e-38, %v4639
  %v4641 = vsel %vm4638, %v4640, %v4636
  %v4642 = vmul.f32 1.0, %v4641
  %v4643 = vrcp.pop %v2779
  %v4644 = vmul.f32 %v2779, %v4643
  %v4645 = vsub.f32 1.0, %v4644
  %v4646 = vmul.f32 %v4643, %v4645
  %v4647 = vadd.f32 %v4643, %v4646
  %vm4648 = vweird.f32 %v2779
  %vm4649 = vweird.f32 %v4643
  %vm4650 = vmor %vm4648, %vm4649
  %v4651 = vsel %vm4650, %v4643, %v4647
  %v4652 = vand.u32 2147483647, %v2779
  %vm4653 = vcmp.eq.f32.partialorder %v4652, 8.507059e+37
  %v4654 = vand.u32 %v2779, 2147483648
  %v4655 = vor.u32 1.1754944e-38, %v4654
  %v4656 = vsel %vm4653, %v4655, %v4651
  %v4657 = vmul.f32 1.0, %v4656
  %v4658 = vrcp.pop %v2780
  %v4659 = vmul.f32 %v2780, %v4658
  %v4660 = vsub.f32 1.0, %v4659
  %v4661 = vmul.f32 %v4658, %v4660
  %v4662 = vadd.f32 %v4658, %v4661
  %vm4663 = vweird.f32 %v2780
  %vm4664 = vweird.f32 %v4658
  %vm4665 = vmor %vm4663, %vm4664
  %v4666 = vsel %vm4665, %v4658, %v4662
  %v4667 = vand.u32 2147483647, %v2780
  %vm4668 = vcmp.eq.f32.partialorder %v4667, 8.507059e+37
  %v4669 = vand.u32 %v2780, 2147483648
  %v4670 = vor.u32 1.1754944e-38, %v4669
  %v4671 = vsel %vm4668, %v4670, %v4666
  %v4672 = vmul.f32 1.0, %v4671
  %v4673 = vrcp.pop %v2781
  %v4674 = vmul.f32 %v2781, %v4673
  %v4675 = vsub.f32 1.0, %v4674
  %v4676 = vmul.f32 %v4673, %v4675
  %v4677 = vadd.f32 %v4673, %v4676
  %vm4678 = vweird.f32 %v2781
  %vm4679 = vweird.f32 %v4673
  %vm4680 = vmor %vm4678, %vm4679
  %v4681 = vsel %vm4680, %v4673, %v4677
  %v4682 = vand.u32 2147483647, %v2781
  %vm4683 = vcmp.eq.f32.partialorder %v4682, 8.507059e+37
  %v4684 = vand.u32 %v2781, 2147483648
  %v4685 = vor.u32 1.1754944e-38, %v4684
  %v4686 = vsel %vm4683, %v4685, %v4681
  %v4687 = vmul.f32 1.0, %v4686
  %v4688 = vrcp.pop %v2782
  %v4689 = vmul.f32 %v2782, %v4688
  %v4690 = vsub.f32 1.0, %v4689
  %v4691 = vmul.f32 %v4688, %v4690
  %v4692 = vadd.f32 %v4688, %v4691
  %vm4693 = vweird.f32 %v2782
  %vm4694 = vweird.f32 %v4688
  %vm4695 = vmor %vm4693, %vm4694
  %v4696 = vsel %vm4695, %v4688, %v4692
  %v4697 = vand.u32 2147483647, %v2782
  %vm4698 = vcmp.eq.f32.partialorder %v4697, 8.507059e+37
  %v4699 = vand.u32 %v2782, 2147483648
  %v4700 = vor.u32 1.1754944e-38, %v4699
  %v4701 = vsel %vm4698, %v4700, %v4696
  %v4702 = vmul.f32 1.0, %v4701
  %v4703 = vmul.f32 %v2143, %v2797
  %v4704 = vmul.f32 %v2144, %v2812
  %v4705 = vmul.f32 %v2145, %v2827
  %v4706 = vmul.f32 %v2146, %v2842
  %v4707 = vmul.f32 %v2147, %v2857
  %v4708 = vmul.f32 %v2148, %v2872
  %v4709 = vmul.f32 %v2149, %v2887
  %v4710 = vmul.f32 %v2150, %v2902
  %v4711 = vmul.f32 %v2151, %v2917
  %v4712 = vmul.f32 %v2152, %v2932
  %v4713 = vmul.f32 %v2153, %v2947
  %v4714 = vmul.f32 %v2154, %v2962
  %v4715 = vmul.f32 %v2155, %v2977
  %v4716 = vmul.f32 %v2156, %v2992
  %v4717 = vmul.f32 %v2157, %v3007
  %v4718 = vmul.f32 %v2158, %v3022
  %v4719 = vmul.f32 %v2159, %v3037
  %v4720 = vmul.f32 %v2160, %v3052
  %v4721 = vmul.f32 %v2161, %v3067
  %v4722 = vmul.f32 %v2162, %v3082
  %v4723 = vmul.f32 %v2163, %v3097
  %v4724 = vmul.f32 %v2164, %v3112
  %v4725 = vmul.f32 %v2165, %v3127
  %v4726 = vmul.f32 %v2166, %v3142
  %v4727 = vmul.f32 %v2167, %v3157
  %v4728 = vmul.f32 %v2168, %v3172
  %v4729 = vmul.f32 %v2169, %v3187
  %v4730 = vmul.f32 %v2170, %v3202
  %v4731 = vmul.f32 %v2171, %v3217
  %v4732 = vmul.f32 %v2172, %v3232
  %v4733 = vmul.f32 %v2173, %v3247
  %v4734 = vmul.f32 %v2174, %v3262
  %v4735 = vmul.f32 %v2175, %v3277
  %v4736 = vmul.f32 %v2176, %v3292
  %v4737 = vmul.f32 %v2177, %v3307
  %v4738 = vmul.f32 %v2178, %v3322
  %v4739 = vmul.f32 %v2179, %v3337
  %v4740 = vmul.f32 %v2180, %v3352
  %v4741 = vmul.f32 %v2181, %v3367
  %v4742 = vmul.f32 %v2182, %v3382
  %v4743 = vmul.f32 %v2183, %v3397
  %v4744 = vmul.f32 %v2184, %v3412
  %v4745 = vmul.f32 %v2185, %v3427
  %v4746 = vmul.f32 %v2186, %v3442
  %v4747 = vmul.f32 %v2187, %v3457
  %v4748 = vmul.f32 %v2188, %v3472
  %v4749 = vmul.f32 %v2189, %v3487
  %v4750 = vmul.f32 %v2190, %v3502
  %v4751 = vmul.f32 %v2191, %v3517
  %v4752 = vmul.f32 %v2192, %v3532
  %v4753 = vmul.f32 %v2193, %v3547
  %v4754 = vmul.f32 %v2194, %v3562
  %v4755 = vmul.f32 %v2195, %v3577
  %v4756 = vmul.f32 %v2196, %v3592
  %v4757 = vmul.f32 %v2197, %v3607
  %v4758 = vmul.f32 %v2198, %v3622
  %v4759 = vmul.f32 %v2199, %v3637
  %v4760 = vmul.f32 %v2200, %v3652
  %v4761 = vmul.f32 %v2201, %v3667
  %v4762 = vmul.f32 %v2202, %v3682
  %v4763 = vmul.f32 %v2203, %v3697
  %v4764 = vmul.f32 %v2204, %v3712
  %v4765 = vmul.f32 %v2205, %v3727
  %v4766 = vmul.f32 %v2206, %v3742
  %v4767 = vmul.f32 %v2207, %v3757
  %v4768 = vmul.f32 %v2208, %v3772
  %v4769 = vmul.f32 %v2209, %v3787
  %v4770 = vmul.f32 %v2210, %v3802
  %v4771 = vmul.f32 %v2211, %v3817
  %v4772 = vmul.f32 %v2212, %v3832
  %v4773 = vmul.f32 %v2213, %v3847
  %v4774 = vmul.f32 %v2214, %v3862
  %v4775 = vmul.f32 %v2215, %v3877
  %v4776 = vmul.f32 %v2216, %v3892
  %v4777 = vmul.f32 %v2217, %v3907
  %v4778 = vmul.f32 %v2218, %v3922
  %v4779 = vmul.f32 %v2219, %v3937
  %v4780 = vmul.f32 %v2220, %v3952
  %v4781 = vmul.f32 %v2221, %v3967
  %v4782 = vmul.f32 %v2222, %v3982
  %v4783 = vmul.f32 %v2223, %v3997
  %v4784 = vmul.f32 %v2224, %v4012
  %v4785 = vmul.f32 %v2225, %v4027
  %v4786 = vmul.f32 %v2226, %v4042
  %v4787 = vmul.f32 %v2227, %v4057
  %v4788 = vmul.f32 %v2228, %v4072
  %v4789 = vmul.f32 %v2229, %v4087
  %v4790 = vmul.f32 %v2230, %v4102
  %v4791 = vmul.f32 %v2231, %v4117
  %v4792 = vmul.f32 %v2232, %v4132
  %v4793 = vmul.f32 %v2233, %v4147
  %v4794 = vmul.f32 %v2234, %v4162
  %v4795 = vmul.f32 %v2235, %v4177
  %v4796 = vmul.f32 %v2236, %v4192
  %v4797 = vmul.f32 %v2237, %v4207
  %v4798 = vmul.f32 %v2238, %v4222
  %v4799 = vmul.f32 %v2239, %v4237
  %v4800 = vmul.f32 %v2240, %v4252
  %v4801 = vmul.f32 %v2241, %v4267
  %v4802 = vmul.f32 %v2242, %v4282
  %v4803 = vmul.f32 %v2243, %v4297
  %v4804 = vmul.f32 %v2244, %v4312
  %v4805 = vmul.f32 %v2245, %v4327
  %v4806 = vmul.f32 %v2246, %v4342
  %v4807 = vmul.f32 %v2247, %v4357
  %v4808 = vmul.f32 %v2248, %v4372
  %v4809 = vmul.f32 %v2249, %v4387
  %v4810 = vmul.f32 %v2250, %v4402
  %v4811 = vmul.f32 %v2251, %v4417
  %v4812 = vmul.f32 %v2252, %v4432
  %v4813 = vmul.f32 %v2253, %v4447
  %v4814 = vmul.f32 %v2254, %v4462
  %v4815 = vmul.f32 %v2255, %v4477
  %v4816 = vmul.f32 %v2256, %v4492
  %v4817 = vmul.f32 %v2257, %v4507
  %v4818 = vmul.f32 %v2258, %v4522
  %v4819 = vmul.f32 %v2259, %v4537
  %v4820 = vmul.f32 %v2260, %v4552
  %v4821 = vmul.f32 %v2261, %v4567
  %v4822 = vmul.f32 %v2262, %v4582
  %v4823 = vmul.f32 %v2263, %v4597
  %v4824 = vmul.f32 %v2264, %v4612
  %v4825 = vmul.f32 %v2265, %v4627
  %v4826 = vmul.f32 %v2266, %v4642
  %v4827 = vmul.f32 %v2267, %v4657
  %v4828 = vmul.f32 %v2268, %v4672
  %v4829 = vmul.f32 %v2269, %v4687
  %v4830 = vmul.f32 %v2270, %v4702
  %v4831 = vpack.c.bf16 %v4704, %v4703
  %v4832 = vpack.c.bf16 %v4706, %v4705
  %v4833 = vpack.c.bf16 %v4708, %v4707
  %v4834 = vpack.c.bf16 %v4710, %v4709
  %v4835 = vpack.c.bf16 %v4712, %v4711
  %v4836 = vpack.c.bf16 %v4714, %v4713
  %v4837 = vpack.c.bf16 %v4716, %v4715
  %v4838 = vpack.c.bf16 %v4718, %v4717
  %v4839 = vpack.c.bf16 %v4720, %v4719
  %v4840 = vpack.c.bf16 %v4722, %v4721
  %v4841 = vpack.c.bf16 %v4724, %v4723
  %v4842 = vpack.c.bf16 %v4726, %v4725
  %v4843 = vpack.c.bf16 %v4728, %v4727
  %v4844 = vpack.c.bf16 %v4730, %v4729
  %v4845 = vpack.c.bf16 %v4732, %v4731
  %v4846 = vpack.c.bf16 %v4734, %v4733
  %v4847 = vpack.c.bf16 %v4736, %v4735
  %v4848 = vpack.c.bf16 %v4738, %v4737
  %v4849 = vpack.c.bf16 %v4740, %v4739
  %v4850 = vpack.c.bf16 %v4742, %v4741
  %v4851 = vpack.c.bf16 %v4744, %v4743
  %v4852 = vpack.c.bf16 %v4746, %v4745
  %v4853 = vpack.c.bf16 %v4748, %v4747
  %v4854 = vpack.c.bf16 %v4750, %v4749
  %v4855 = vpack.c.bf16 %v4752, %v4751
  %v4856 = vpack.c.bf16 %v4754, %v4753
  %v4857 = vpack.c.bf16 %v4756, %v4755
  %v4858 = vpack.c.bf16 %v4758, %v4757
  %v4859 = vpack.c.bf16 %v4760, %v4759
  %v4860 = vpack.c.bf16 %v4762, %v4761
  %v4861 = vpack.c.bf16 %v4764, %v4763
  %v4862 = vpack.c.bf16 %v4766, %v4765
  %v4863 = vpack.c.bf16 %v4768, %v4767
  %v4864 = vpack.c.bf16 %v4770, %v4769
  %v4865 = vpack.c.bf16 %v4772, %v4771
  %v4866 = vpack.c.bf16 %v4774, %v4773
  %v4867 = vpack.c.bf16 %v4776, %v4775
  %v4868 = vpack.c.bf16 %v4778, %v4777
  %v4869 = vpack.c.bf16 %v4780, %v4779
  %v4870 = vpack.c.bf16 %v4782, %v4781
  %v4871 = vpack.c.bf16 %v4784, %v4783
  %v4872 = vpack.c.bf16 %v4786, %v4785
  %v4873 = vpack.c.bf16 %v4788, %v4787
  %v4874 = vpack.c.bf16 %v4790, %v4789
  %v4875 = vpack.c.bf16 %v4792, %v4791
  %v4876 = vpack.c.bf16 %v4794, %v4793
  %v4877 = vpack.c.bf16 %v4796, %v4795
  %v4878 = vpack.c.bf16 %v4798, %v4797
  %v4879 = vpack.c.bf16 %v4800, %v4799
  %v4880 = vpack.c.bf16 %v4802, %v4801
  %v4881 = vpack.c.bf16 %v4804, %v4803
  %v4882 = vpack.c.bf16 %v4806, %v4805
  %v4883 = vpack.c.bf16 %v4808, %v4807
  %v4884 = vpack.c.bf16 %v4810, %v4809
  %v4885 = vpack.c.bf16 %v4812, %v4811
  %v4886 = vpack.c.bf16 %v4814, %v4813
  %v4887 = vpack.c.bf16 %v4816, %v4815
  %v4888 = vpack.c.bf16 %v4818, %v4817
  %v4889 = vpack.c.bf16 %v4820, %v4819
  %v4890 = vpack.c.bf16 %v4822, %v4821
  %v4891 = vpack.c.bf16 %v4824, %v4823
  %v4892 = vpack.c.bf16 %v4826, %v4825
  %v4893 = vpack.c.bf16 %v4828, %v4827
  %v4894 = vpack.c.bf16 %v4830, %v4829
  %v4895 = vld [vmem:[%s9] sm:$0xf]
  %v4896 = vld [vmem:[%s9 + $0x4] sm:$0xf]
  %v4897 = vld [vmem:[%s9 + $0x8] sm:$0xf]
  %v4898 = vld [vmem:[%s9 + $0xc] sm:$0xf]
  %v4899 = vld [vmem:[%s10] sm:$0x1]
  %v4901 = vperm.slane %v4899, 0
  %v4907 = vunpack.c.l.b16 %v4895
  %v4908 = vunpack.c.l.b16 %v4896
  %v4909 = vunpack.c.l.b16 %v4897
  %v4910 = vunpack.c.l.b16 %v4898
  %v4911 = vpack.c.b16 %v4908, %v4907
  %v4912 = vpack.c.b16 %v4910, %v4909
  %vm4915 = vcmask 261120
  %v4917 = vsel %vm4915, %v4831, 0
  %v4920 = vsel %vm4915, %v4832, 0
  %v4923 = vsel %vm4915, %v4833, 0
  %v4926 = vsel %vm4915, %v4834, 0
  %v4929 = vsel %vm4915, %v4835, 0
  %v4932 = vsel %vm4915, %v4836, 0
  %v4935 = vsel %vm4915, %v4837, 0
  %v4938 = vsel %vm4915, %v4838, 0
  %v4941 = vsel %vm4915, %v4839, 0
  %v4944 = vsel %vm4915, %v4840, 0
  %v4947 = vsel %vm4915, %v4841, 0
  %v4950 = vsel %vm4915, %v4842, 0
  %v4953 = vsel %vm4915, %v4843, 0
  %v4956 = vsel %vm4915, %v4844, 0
  %v4959 = vsel %vm4915, %v4845, 0
  %v4962 = vsel %vm4915, %v4846, 0
  %v4965 = vsel %vm4915, %v4847, 0
  %v4968 = vsel %vm4915, %v4848, 0
  %v4971 = vsel %vm4915, %v4849, 0
  %v4974 = vsel %vm4915, %v4850, 0
  %v4977 = vsel %vm4915, %v4851, 0
  %v4980 = vsel %vm4915, %v4852, 0
  %v4983 = vsel %vm4915, %v4853, 0
  %v4986 = vsel %vm4915, %v4854, 0
  %v4989 = vsel %vm4915, %v4855, 0
  %v4992 = vsel %vm4915, %v4856, 0
  %v4995 = vsel %vm4915, %v4857, 0
  %v4998 = vsel %vm4915, %v4858, 0
  %v5001 = vsel %vm4915, %v4859, 0
  %v5004 = vsel %vm4915, %v4860, 0
  %v5007 = vsel %vm4915, %v4861, 0
  %v5010 = vsel %vm4915, %v4862, 0
  %v5013 = vsel %vm4915, %v4863, 0
  %v5016 = vsel %vm4915, %v4864, 0
  %v5019 = vsel %vm4915, %v4865, 0
  %v5022 = vsel %vm4915, %v4866, 0
  %v5025 = vsel %vm4915, %v4867, 0
  %v5028 = vsel %vm4915, %v4868, 0
  %v5031 = vsel %vm4915, %v4869, 0
  %v5034 = vsel %vm4915, %v4870, 0
  %v5037 = vsel %vm4915, %v4871, 0
  %v5040 = vsel %vm4915, %v4872, 0
  %v5043 = vsel %vm4915, %v4873, 0
  %v5046 = vsel %vm4915, %v4874, 0
  %v5049 = vsel %vm4915, %v4875, 0
  %v5052 = vsel %vm4915, %v4876, 0
  %v5055 = vsel %vm4915, %v4877, 0
  %v5058 = vsel %vm4915, %v4878, 0
  %v5061 = vsel %vm4915, %v4879, 0
  %v5064 = vsel %vm4915, %v4880, 0
  %v5067 = vsel %vm4915, %v4881, 0
  %v5070 = vsel %vm4915, %v4882, 0
  %v5073 = vsel %vm4915, %v4883, 0
  %v5076 = vsel %vm4915, %v4884, 0
  %v5079 = vsel %vm4915, %v4885, 0
  %v5082 = vsel %vm4915, %v4886, 0
  %v5085 = vsel %vm4915, %v4887, 0
  %v5088 = vsel %vm4915, %v4888, 0
  %v5091 = vsel %vm4915, %v4889, 0
  %v5094 = vsel %vm4915, %v4890, 0
  %v5097 = vsel %vm4915, %v4891, 0
  %v5100 = vsel %vm4915, %v4892, 0
  %v5103 = vsel %vm4915, %v4893, 0
  %v5106 = vsel %vm4915, %v4894, 0
  %5108 = vmatpush.bf16.msra.mxu0 0
  %5109 = vmatpush.bf16.msra.mxu0 0
  %5110 = vmatpush.bf16.msra.mxu0 0
  %5111 = vmatpush.bf16.msra.mxu0 0
  %5112 = vmatpush.bf16.msra.mxu0 0
  %5113 = vmatpush.bf16.msra.mxu0 0
  %5114 = vmatpush.bf16.msra.mxu0 %v4912
  %5115 = vmatpush.bf16.msra.mxu0 %v4911
  %5116 = vmatmul.bf16.gmra.mxu0 %v4917
  %v5117 = vpop.f32.mrf.mxu0
  %v5118 = vadd.f32 %v4901, %v5117
  %v5119 = vpop.f32.mrf.mxu0
  %v5120 = vadd.f32 %v4901, %v5119
  %5121 = vmatmul.bf16.gmra.mxu0 %v4920
  %v5122 = vpop.f32.mrf.mxu0
  %v5123 = vadd.f32 %v4901, %v5122
  %v5124 = vpop.f32.mrf.mxu0
  %v5125 = vadd.f32 %v4901, %v5124
  %5126 = vmatmul.bf16.gmra.mxu0 %v4923
  %v5127 = vpop.f32.mrf.mxu0
  %v5128 = vadd.f32 %v4901, %v5127
  %v5129 = vpop.f32.mrf.mxu0
  %v5130 = vadd.f32 %v4901, %v5129
  %5131 = vmatmul.bf16.gmra.mxu0 %v4926
  %v5132 = vpop.f32.mrf.mxu0
  %v5133 = vadd.f32 %v4901, %v5132
  %v5134 = vpop.f32.mrf.mxu0
  %v5135 = vadd.f32 %v4901, %v5134
  %5136 = vmatmul.bf16.gmra.mxu0 %v4929
  %v5137 = vpop.f32.mrf.mxu0
  %v5138 = vadd.f32 %v4901, %v5137
  %v5139 = vpop.f32.mrf.mxu0
  %v5140 = vadd.f32 %v4901, %v5139
  %5141 = vmatmul.bf16.gmra.mxu0 %v4932
  %v5142 = vpop.f32.mrf.mxu0
  %v5143 = vadd.f32 %v4901, %v5142
  %v5144 = vpop.f32.mrf.mxu0
  %v5145 = vadd.f32 %v4901, %v5144
  %5146 = vmatmul.bf16.gmra.mxu0 %v4935
  %v5147 = vpop.f32.mrf.mxu0
  %v5148 = vadd.f32 %v4901, %v5147
  %v5149 = vpop.f32.mrf.mxu0
  %v5150 = vadd.f32 %v4901, %v5149
  %5151 = vmatmul.bf16.gmra.mxu0 %v4938
  %v5152 = vpop.f32.mrf.mxu0
  %v5153 = vadd.f32 %v4901, %v5152
  %v5154 = vpop.f32.mrf.mxu0
  %v5155 = vadd.f32 %v4901, %v5154
  %5156 = vmatmul.bf16.gmra.mxu0 %v4941
  %v5157 = vpop.f32.mrf.mxu0
  %v5158 = vadd.f32 %v4901, %v5157
  %v5159 = vpop.f32.mrf.mxu0
  %v5160 = vadd.f32 %v4901, %v5159
  %5161 = vmatmul.bf16.gmra.mxu0 %v4944
  %v5162 = vpop.f32.mrf.mxu0
  %v5163 = vadd.f32 %v4901, %v5162
  %v5164 = vpop.f32.mrf.mxu0
  %v5165 = vadd.f32 %v4901, %v5164
  %5166 = vmatmul.bf16.gmra.mxu0 %v4947
  %v5167 = vpop.f32.mrf.mxu0
  %v5168 = vadd.f32 %v4901, %v5167
  %v5169 = vpop.f32.mrf.mxu0
  %v5170 = vadd.f32 %v4901, %v5169
  %5171 = vmatmul.bf16.gmra.mxu0 %v4950
  %v5172 = vpop.f32.mrf.mxu0
  %v5173 = vadd.f32 %v4901, %v5172
  %v5174 = vpop.f32.mrf.mxu0
  %v5175 = vadd.f32 %v4901, %v5174
  %5176 = vmatmul.bf16.gmra.mxu0 %v4953
  %v5177 = vpop.f32.mrf.mxu0
  %v5178 = vadd.f32 %v4901, %v5177
  %v5179 = vpop.f32.mrf.mxu0
  %v5180 = vadd.f32 %v4901, %v5179
  %5181 = vmatmul.bf16.gmra.mxu0 %v4956
  %v5182 = vpop.f32.mrf.mxu0
  %v5183 = vadd.f32 %v4901, %v5182
  %v5184 = vpop.f32.mrf.mxu0
  %v5185 = vadd.f32 %v4901, %v5184
  %5186 = vmatmul.bf16.gmra.mxu0 %v4959
  %v5187 = vpop.f32.mrf.mxu0
  %v5188 = vadd.f32 %v4901, %v5187
  %v5189 = vpop.f32.mrf.mxu0
  %v5190 = vadd.f32 %v4901, %v5189
  %5191 = vmatmul.bf16.gmra.mxu0 %v4962
  %v5192 = vpop.f32.mrf.mxu0
  %v5193 = vadd.f32 %v4901, %v5192
  %v5194 = vpop.f32.mrf.mxu0
  %v5195 = vadd.f32 %v4901, %v5194
  %5196 = vmatmul.bf16.gmra.mxu0 %v4965
  %v5197 = vpop.f32.mrf.mxu0
  %v5198 = vadd.f32 %v4901, %v5197
  %v5199 = vpop.f32.mrf.mxu0
  %v5200 = vadd.f32 %v4901, %v5199
  %5201 = vmatmul.bf16.gmra.mxu0 %v4968
  %v5202 = vpop.f32.mrf.mxu0
  %v5203 = vadd.f32 %v4901, %v5202
  %v5204 = vpop.f32.mrf.mxu0
  %v5205 = vadd.f32 %v4901, %v5204
  %5206 = vmatmul.bf16.gmra.mxu0 %v4971
  %v5207 = vpop.f32.mrf.mxu0
  %v5208 = vadd.f32 %v4901, %v5207
  %v5209 = vpop.f32.mrf.mxu0
  %v5210 = vadd.f32 %v4901, %v5209
  %5211 = vmatmul.bf16.gmra.mxu0 %v4974
  %v5212 = vpop.f32.mrf.mxu0
  %v5213 = vadd.f32 %v4901, %v5212
  %v5214 = vpop.f32.mrf.mxu0
  %v5215 = vadd.f32 %v4901, %v5214
  %5216 = vmatmul.bf16.gmra.mxu0 %v4977
  %v5217 = vpop.f32.mrf.mxu0
  %v5218 = vadd.f32 %v4901, %v5217
  %v5219 = vpop.f32.mrf.mxu0
  %v5220 = vadd.f32 %v4901, %v5219
  %5221 = vmatmul.bf16.gmra.mxu0 %v4980
  %v5222 = vpop.f32.mrf.mxu0
  %v5223 = vadd.f32 %v4901, %v5222
  %v5224 = vpop.f32.mrf.mxu0
  %v5225 = vadd.f32 %v4901, %v5224
  %5226 = vmatmul.bf16.gmra.mxu0 %v4983
  %v5227 = vpop.f32.mrf.mxu0
  %v5228 = vadd.f32 %v4901, %v5227
  %v5229 = vpop.f32.mrf.mxu0
  %v5230 = vadd.f32 %v4901, %v5229
  %5231 = vmatmul.bf16.gmra.mxu0 %v4986
  %v5232 = vpop.f32.mrf.mxu0
  %v5233 = vadd.f32 %v4901, %v5232
  %v5234 = vpop.f32.mrf.mxu0
  %v5235 = vadd.f32 %v4901, %v5234
  %5236 = vmatmul.bf16.gmra.mxu0 %v4989
  %v5237 = vpop.f32.mrf.mxu0
  %v5238 = vadd.f32 %v4901, %v5237
  %v5239 = vpop.f32.mrf.mxu0
  %v5240 = vadd.f32 %v4901, %v5239
  %5241 = vmatmul.bf16.gmra.mxu0 %v4992
  %v5242 = vpop.f32.mrf.mxu0
  %v5243 = vadd.f32 %v4901, %v5242
  %v5244 = vpop.f32.mrf.mxu0
  %v5245 = vadd.f32 %v4901, %v5244
  %5246 = vmatmul.bf16.gmra.mxu0 %v4995
  %v5247 = vpop.f32.mrf.mxu0
  %v5248 = vadd.f32 %v4901, %v5247
  %v5249 = vpop.f32.mrf.mxu0
  %v5250 = vadd.f32 %v4901, %v5249
  %5251 = vmatmul.bf16.gmra.mxu0 %v4998
  %v5252 = vpop.f32.mrf.mxu0
  %v5253 = vadd.f32 %v4901, %v5252
  %v5254 = vpop.f32.mrf.mxu0
  %v5255 = vadd.f32 %v4901, %v5254
  %5256 = vmatmul.bf16.gmra.mxu0 %v5001
  %v5257 = vpop.f32.mrf.mxu0
  %v5258 = vadd.f32 %v4901, %v5257
  %v5259 = vpop.f32.mrf.mxu0
  %v5260 = vadd.f32 %v4901, %v5259
  %5261 = vmatmul.bf16.gmra.mxu0 %v5004
  %v5262 = vpop.f32.mrf.mxu0
  %v5263 = vadd.f32 %v4901, %v5262
  %v5264 = vpop.f32.mrf.mxu0
  %v5265 = vadd.f32 %v4901, %v5264
  %5266 = vmatmul.bf16.gmra.mxu0 %v5007
  %v5267 = vpop.f32.mrf.mxu0
  %v5268 = vadd.f32 %v4901, %v5267
  %v5269 = vpop.f32.mrf.mxu0
  %v5270 = vadd.f32 %v4901, %v5269
  %5271 = vmatmul.bf16.gmra.mxu0 %v5010
  %v5272 = vpop.f32.mrf.mxu0
  %v5273 = vadd.f32 %v4901, %v5272
  %v5274 = vpop.f32.mrf.mxu0
  %v5275 = vadd.f32 %v4901, %v5274
  %5276 = vmatmul.bf16.gmra.mxu0 %v5013
  %v5277 = vpop.f32.mrf.mxu0
  %v5278 = vadd.f32 %v4901, %v5277
  %v5279 = vpop.f32.mrf.mxu0
  %v5280 = vadd.f32 %v4901, %v5279
  %5281 = vmatmul.bf16.gmra.mxu0 %v5016
  %v5282 = vpop.f32.mrf.mxu0
  %v5283 = vadd.f32 %v4901, %v5282
  %v5284 = vpop.f32.mrf.mxu0
  %v5285 = vadd.f32 %v4901, %v5284
  %5286 = vmatmul.bf16.gmra.mxu0 %v5019
  %v5287 = vpop.f32.mrf.mxu0
  %v5288 = vadd.f32 %v4901, %v5287
  %v5289 = vpop.f32.mrf.mxu0
  %v5290 = vadd.f32 %v4901, %v5289
  %5291 = vmatmul.bf16.gmra.mxu0 %v5022
  %v5292 = vpop.f32.mrf.mxu0
  %v5293 = vadd.f32 %v4901, %v5292
  %v5294 = vpop.f32.mrf.mxu0
  %v5295 = vadd.f32 %v4901, %v5294
  %5296 = vmatmul.bf16.gmra.mxu0 %v5025
  %v5297 = vpop.f32.mrf.mxu0
  %v5298 = vadd.f32 %v4901, %v5297
  %v5299 = vpop.f32.mrf.mxu0
  %v5300 = vadd.f32 %v4901, %v5299
  %5301 = vmatmul.bf16.gmra.mxu0 %v5028
  %v5302 = vpop.f32.mrf.mxu0
  %v5303 = vadd.f32 %v4901, %v5302
  %v5304 = vpop.f32.mrf.mxu0
  %v5305 = vadd.f32 %v4901, %v5304
  %5306 = vmatmul.bf16.gmra.mxu0 %v5031
  %v5307 = vpop.f32.mrf.mxu0
  %v5308 = vadd.f32 %v4901, %v5307
  %v5309 = vpop.f32.mrf.mxu0
  %v5310 = vadd.f32 %v4901, %v5309
  %5311 = vmatmul.bf16.gmra.mxu0 %v5034
  %v5312 = vpop.f32.mrf.mxu0
  %v5313 = vadd.f32 %v4901, %v5312
  %v5314 = vpop.f32.mrf.mxu0
  %v5315 = vadd.f32 %v4901, %v5314
  %5316 = vmatmul.bf16.gmra.mxu0 %v5037
  %v5317 = vpop.f32.mrf.mxu0
  %v5318 = vadd.f32 %v4901, %v5317
  %v5319 = vpop.f32.mrf.mxu0
  %v5320 = vadd.f32 %v4901, %v5319
  %5321 = vmatmul.bf16.gmra.mxu0 %v5040
  %v5322 = vpop.f32.mrf.mxu0
  %v5323 = vadd.f32 %v4901, %v5322
  %v5324 = vpop.f32.mrf.mxu0
  %v5325 = vadd.f32 %v4901, %v5324
  %5326 = vmatmul.bf16.gmra.mxu0 %v5043
  %v5327 = vpop.f32.mrf.mxu0
  %v5328 = vadd.f32 %v4901, %v5327
  %v5329 = vpop.f32.mrf.mxu0
  %v5330 = vadd.f32 %v4901, %v5329
  %5331 = vmatmul.bf16.gmra.mxu0 %v5046
  %v5332 = vpop.f32.mrf.mxu0
  %v5333 = vadd.f32 %v4901, %v5332
  %v5334 = vpop.f32.mrf.mxu0
  %v5335 = vadd.f32 %v4901, %v5334
  %5336 = vmatmul.bf16.gmra.mxu0 %v5049
  %v5337 = vpop.f32.mrf.mxu0
  %v5338 = vadd.f32 %v4901, %v5337
  %v5339 = vpop.f32.mrf.mxu0
  %v5340 = vadd.f32 %v4901, %v5339
  %5341 = vmatmul.bf16.gmra.mxu0 %v5052
  %v5342 = vpop.f32.mrf.mxu0
  %v5343 = vadd.f32 %v4901, %v5342
  %v5344 = vpop.f32.mrf.mxu0
  %v5345 = vadd.f32 %v4901, %v5344
  %5346 = vmatmul.bf16.gmra.mxu0 %v5055
  %v5347 = vpop.f32.mrf.mxu0
  %v5348 = vadd.f32 %v4901, %v5347
  %v5349 = vpop.f32.mrf.mxu0
  %v5350 = vadd.f32 %v4901, %v5349
  %5351 = vmatmul.bf16.gmra.mxu0 %v5058
  %v5352 = vpop.f32.mrf.mxu0
  %v5353 = vadd.f32 %v4901, %v5352
  %v5354 = vpop.f32.mrf.mxu0
  %v5355 = vadd.f32 %v4901, %v5354
  %5356 = vmatmul.bf16.gmra.mxu0 %v5061
  %v5357 = vpop.f32.mrf.mxu0
  %v5358 = vadd.f32 %v4901, %v5357
  %v5359 = vpop.f32.mrf.mxu0
  %v5360 = vadd.f32 %v4901, %v5359
  %5361 = vmatmul.bf16.gmra.mxu0 %v5064
  %v5362 = vpop.f32.mrf.mxu0
  %v5363 = vadd.f32 %v4901, %v5362
  %v5364 = vpop.f32.mrf.mxu0
  %v5365 = vadd.f32 %v4901, %v5364
  %5366 = vmatmul.bf16.gmra.mxu0 %v5067
  %v5367 = vpop.f32.mrf.mxu0
  %v5368 = vadd.f32 %v4901, %v5367
  %v5369 = vpop.f32.mrf.mxu0
  %v5370 = vadd.f32 %v4901, %v5369
  %5371 = vmatmul.bf16.gmra.mxu0 %v5070
  %v5372 = vpop.f32.mrf.mxu0
  %v5373 = vadd.f32 %v4901, %v5372
  %v5374 = vpop.f32.mrf.mxu0
  %v5375 = vadd.f32 %v4901, %v5374
  %5376 = vmatmul.bf16.gmra.mxu0 %v5073
  %v5377 = vpop.f32.mrf.mxu0
  %v5378 = vadd.f32 %v4901, %v5377
  %v5379 = vpop.f32.mrf.mxu0
  %v5380 = vadd.f32 %v4901, %v5379
  %5381 = vmatmul.bf16.gmra.mxu0 %v5076
  %v5382 = vpop.f32.mrf.mxu0
  %v5383 = vadd.f32 %v4901, %v5382
  %v5384 = vpop.f32.mrf.mxu0
  %v5385 = vadd.f32 %v4901, %v5384
  %5386 = vmatmul.bf16.gmra.mxu0 %v5079
  %v5387 = vpop.f32.mrf.mxu0
  %v5388 = vadd.f32 %v4901, %v5387
  %v5389 = vpop.f32.mrf.mxu0
  %v5390 = vadd.f32 %v4901, %v5389
  %5391 = vmatmul.bf16.gmra.mxu0 %v5082
  %v5392 = vpop.f32.mrf.mxu0
  %v5393 = vadd.f32 %v4901, %v5392
  %v5394 = vpop.f32.mrf.mxu0
  %v5395 = vadd.f32 %v4901, %v5394
  %5396 = vmatmul.bf16.gmra.mxu0 %v5085
  %v5397 = vpop.f32.mrf.mxu0
  %v5398 = vadd.f32 %v4901, %v5397
  %v5399 = vpop.f32.mrf.mxu0
  %v5400 = vadd.f32 %v4901, %v5399
  %5401 = vmatmul.bf16.gmra.mxu0 %v5088
  %v5402 = vpop.f32.mrf.mxu0
  %v5403 = vadd.f32 %v4901, %v5402
  %v5404 = vpop.f32.mrf.mxu0
  %v5405 = vadd.f32 %v4901, %v5404
  %5406 = vmatmul.bf16.gmra.mxu0 %v5091
  %v5407 = vpop.f32.mrf.mxu0
  %v5408 = vadd.f32 %v4901, %v5407
  %v5409 = vpop.f32.mrf.mxu0
  %v5410 = vadd.f32 %v4901, %v5409
  %5411 = vmatmul.bf16.gmra.mxu0 %v5094
  %v5412 = vpop.f32.mrf.mxu0
  %v5413 = vadd.f32 %v4901, %v5412
  %v5414 = vpop.f32.mrf.mxu0
  %v5415 = vadd.f32 %v4901, %v5414
  %5416 = vmatmul.bf16.gmra.mxu0 %v5097
  %v5417 = vpop.f32.mrf.mxu0
  %v5418 = vadd.f32 %v4901, %v5417
  %v5419 = vpop.f32.mrf.mxu0
  %v5420 = vadd.f32 %v4901, %v5419
  %5421 = vmatmul.bf16.gmra.mxu0 %v5100
  %v5422 = vpop.f32.mrf.mxu0
  %v5423 = vadd.f32 %v4901, %v5422
  %v5424 = vpop.f32.mrf.mxu0
  %v5425 = vadd.f32 %v4901, %v5424
  %5426 = vmatmul.bf16.gmra.mxu0 %v5103
  %v5427 = vpop.f32.mrf.mxu0
  %v5428 = vadd.f32 %v4901, %v5427
  %v5429 = vpop.f32.mrf.mxu0
  %v5430 = vadd.f32 %v4901, %v5429
  %5431 = vmatmul.bf16.gmra.mxu0 %v5106
  %v5432 = vpop.f32.mrf.mxu0
  %v5433 = vadd.f32 %v4901, %v5432
  %v5434 = vpop.f32.mrf.mxu0
  %v5435 = vadd.f32 %v4901, %v5434
  %5436 = vdwg.mxu0
  %v5437 = vxor.u32 %v5118, 2147483648
  %v5438 = vxor.u32 %v5120, 2147483648
  %v5439 = vxor.u32 %v5123, 2147483648
  %v5440 = vxor.u32 %v5125, 2147483648
  %v5441 = vxor.u32 %v5128, 2147483648
  %v5442 = vxor.u32 %v5130, 2147483648
  %v5443 = vxor.u32 %v5133, 2147483648
  %v5444 = vxor.u32 %v5135, 2147483648
  %v5445 = vxor.u32 %v5138, 2147483648
  %v5446 = vxor.u32 %v5140, 2147483648
  %v5447 = vxor.u32 %v5143, 2147483648
  %v5448 = vxor.u32 %v5145, 2147483648
  %v5449 = vxor.u32 %v5148, 2147483648
  %v5450 = vxor.u32 %v5150, 2147483648
  %v5451 = vxor.u32 %v5153, 2147483648
  %v5452 = vxor.u32 %v5155, 2147483648
  %v5453 = vxor.u32 %v5158, 2147483648
  %v5454 = vxor.u32 %v5160, 2147483648
  %v5455 = vxor.u32 %v5163, 2147483648
  %v5456 = vxor.u32 %v5165, 2147483648
  %v5457 = vxor.u32 %v5168, 2147483648
  %v5458 = vxor.u32 %v5170, 2147483648
  %v5459 = vxor.u32 %v5173, 2147483648
  %v5460 = vxor.u32 %v5175, 2147483648
  %v5461 = vxor.u32 %v5178, 2147483648
  %v5462 = vxor.u32 %v5180, 2147483648
  %v5463 = vxor.u32 %v5183, 2147483648
  %v5464 = vxor.u32 %v5185, 2147483648
  %v5465 = vxor.u32 %v5188, 2147483648
  %v5466 = vxor.u32 %v5190, 2147483648
  %v5467 = vxor.u32 %v5193, 2147483648
  %v5468 = vxor.u32 %v5195, 2147483648
  %v5469 = vxor.u32 %v5198, 2147483648
  %v5470 = vxor.u32 %v5200, 2147483648
  %v5471 = vxor.u32 %v5203, 2147483648
  %v5472 = vxor.u32 %v5205, 2147483648
  %v5473 = vxor.u32 %v5208, 2147483648
  %v5474 = vxor.u32 %v5210, 2147483648
  %v5475 = vxor.u32 %v5213, 2147483648
  %v5476 = vxor.u32 %v5215, 2147483648
  %v5477 = vxor.u32 %v5218, 2147483648
  %v5478 = vxor.u32 %v5220, 2147483648
  %v5479 = vxor.u32 %v5223, 2147483648
  %v5480 = vxor.u32 %v5225, 2147483648
  %v5481 = vxor.u32 %v5228, 2147483648
  %v5482 = vxor.u32 %v5230, 2147483648
  %v5483 = vxor.u32 %v5233, 2147483648
  %v5484 = vxor.u32 %v5235, 2147483648
  %v5485 = vxor.u32 %v5238, 2147483648
  %v5486 = vxor.u32 %v5240, 2147483648
  %v5487 = vxor.u32 %v5243, 2147483648
  %v5488 = vxor.u32 %v5245, 2147483648
  %v5489 = vxor.u32 %v5248, 2147483648
  %v5490 = vxor.u32 %v5250, 2147483648
  %v5491 = vxor.u32 %v5253, 2147483648
  %v5492 = vxor.u32 %v5255, 2147483648
  %v5493 = vxor.u32 %v5258, 2147483648
  %v5494 = vxor.u32 %v5260, 2147483648
  %v5495 = vxor.u32 %v5263, 2147483648
  %v5496 = vxor.u32 %v5265, 2147483648
  %v5497 = vxor.u32 %v5268, 2147483648
  %v5498 = vxor.u32 %v5270, 2147483648
  %v5499 = vxor.u32 %v5273, 2147483648
  %v5500 = vxor.u32 %v5275, 2147483648
  %v5501 = vxor.u32 %v5278, 2147483648
  %v5502 = vxor.u32 %v5280, 2147483648
  %v5503 = vxor.u32 %v5283, 2147483648
  %v5504 = vxor.u32 %v5285, 2147483648
  %v5505 = vxor.u32 %v5288, 2147483648
  %v5506 = vxor.u32 %v5290, 2147483648
  %v5507 = vxor.u32 %v5293, 2147483648
  %v5508 = vxor.u32 %v5295, 2147483648
  %v5509 = vxor.u32 %v5298, 2147483648
  %v5510 = vxor.u32 %v5300, 2147483648
  %v5511 = vxor.u32 %v5303, 2147483648
  %v5512 = vxor.u32 %v5305, 2147483648
  %v5513 = vxor.u32 %v5308, 2147483648
  %v5514 = vxor.u32 %v5310, 2147483648
  %v5515 = vxor.u32 %v5313, 2147483648
  %v5516 = vxor.u32 %v5315, 2147483648
  %v5517 = vxor.u32 %v5318, 2147483648
  %v5518 = vxor.u32 %v5320, 2147483648
  %v5519 = vxor.u32 %v5323, 2147483648
  %v5520 = vxor.u32 %v5325, 2147483648
  %v5521 = vxor.u32 %v5328, 2147483648
  %v5522 = vxor.u32 %v5330, 2147483648
  %v5523 = vxor.u32 %v5333, 2147483648
  %v5524 = vxor.u32 %v5335, 2147483648
  %v5525 = vxor.u32 %v5338, 2147483648
  %v5526 = vxor.u32 %v5340, 2147483648
  %v5527 = vxor.u32 %v5343, 2147483648
  %v5528 = vxor.u32 %v5345, 2147483648
  %v5529 = vxor.u32 %v5348, 2147483648
  %v5530 = vxor.u32 %v5350, 2147483648
  %v5531 = vxor.u32 %v5353, 2147483648
  %v5532 = vxor.u32 %v5355, 2147483648
  %v5533 = vxor.u32 %v5358, 2147483648
  %v5534 = vxor.u32 %v5360, 2147483648
  %v5535 = vxor.u32 %v5363, 2147483648
  %v5536 = vxor.u32 %v5365, 2147483648
  %v5537 = vxor.u32 %v5368, 2147483648
  %v5538 = vxor.u32 %v5370, 2147483648
  %v5539 = vxor.u32 %v5373, 2147483648
  %v5540 = vxor.u32 %v5375, 2147483648
  %v5541 = vxor.u32 %v5378, 2147483648
  %v5542 = vxor.u32 %v5380, 2147483648
  %v5543 = vxor.u32 %v5383, 2147483648
  %v5544 = vxor.u32 %v5385, 2147483648
  %v5545 = vxor.u32 %v5388, 2147483648
  %v5546 = vxor.u32 %v5390, 2147483648
  %v5547 = vxor.u32 %v5393, 2147483648
  %v5548 = vxor.u32 %v5395, 2147483648
  %v5549 = vxor.u32 %v5398, 2147483648
  %v5550 = vxor.u32 %v5400, 2147483648
  %v5551 = vxor.u32 %v5403, 2147483648
  %v5552 = vxor.u32 %v5405, 2147483648
  %v5553 = vxor.u32 %v5408, 2147483648
  %v5554 = vxor.u32 %v5410, 2147483648
  %v5555 = vxor.u32 %v5413, 2147483648
  %v5556 = vxor.u32 %v5415, 2147483648
  %v5557 = vxor.u32 %v5418, 2147483648
  %v5558 = vxor.u32 %v5420, 2147483648
  %v5559 = vxor.u32 %v5423, 2147483648
  %v5560 = vxor.u32 %v5425, 2147483648
  %v5561 = vxor.u32 %v5428, 2147483648
  %v5562 = vxor.u32 %v5430, 2147483648
  %v5563 = vxor.u32 %v5433, 2147483648
  %v5564 = vxor.u32 %v5435, 2147483648
  %v5565 = vmul.f32 %v5437, 1.442695
  %v5566 = vpow.pop %v5565
  %v5567 = vmul.f32 %v5438, 1.442695
  %v5568 = vpow.pop %v5567
  %v5569 = vmul.f32 %v5439, 1.442695
  %v5570 = vpow.pop %v5569
  %v5571 = vmul.f32 %v5440, 1.442695
  %v5572 = vpow.pop %v5571
  %v5573 = vmul.f32 %v5441, 1.442695
  %v5574 = vpow.pop %v5573
  %v5575 = vmul.f32 %v5442, 1.442695
  %v5576 = vpow.pop %v5575
  %v5577 = vmul.f32 %v5443, 1.442695
  %v5578 = vpow.pop %v5577
  %v5579 = vmul.f32 %v5444, 1.442695
  %v5580 = vpow.pop %v5579
  %v5581 = vmul.f32 %v5445, 1.442695
  %v5582 = vpow.pop %v5581
  %v5583 = vmul.f32 %v5446, 1.442695
  %v5584 = vpow.pop %v5583
  %v5585 = vmul.f32 %v5447, 1.442695
  %v5586 = vpow.pop %v5585
  %v5587 = vmul.f32 %v5448, 1.442695
  %v5588 = vpow.pop %v5587
  %v5589 = vmul.f32 %v5449, 1.442695
  %v5590 = vpow.pop %v5589
  %v5591 = vmul.f32 %v5450, 1.442695
  %v5592 = vpow.pop %v5591
  %v5593 = vmul.f32 %v5451, 1.442695
  %v5594 = vpow.pop %v5593
  %v5595 = vmul.f32 %v5452, 1.442695
  %v5596 = vpow.pop %v5595
  %v5597 = vmul.f32 %v5453, 1.442695
  %v5598 = vpow.pop %v5597
  %v5599 = vmul.f32 %v5454, 1.442695
  %v5600 = vpow.pop %v5599
  %v5601 = vmul.f32 %v5455, 1.442695
  %v5602 = vpow.pop %v5601
  %v5603 = vmul.f32 %v5456, 1.442695
  %v5604 = vpow.pop %v5603
  %v5605 = vmul.f32 %v5457, 1.442695
  %v5606 = vpow.pop %v5605
  %v5607 = vmul.f32 %v5458, 1.442695
  %v5608 = vpow.pop %v5607
  %v5609 = vmul.f32 %v5459, 1.442695
  %v5610 = vpow.pop %v5609
  %v5611 = vmul.f32 %v5460, 1.442695
  %v5612 = vpow.pop %v5611
  %v5613 = vmul.f32 %v5461, 1.442695
  %v5614 = vpow.pop %v5613
  %v5615 = vmul.f32 %v5462, 1.442695
  %v5616 = vpow.pop %v5615
  %v5617 = vmul.f32 %v5463, 1.442695
  %v5618 = vpow.pop %v5617
  %v5619 = vmul.f32 %v5464, 1.442695
  %v5620 = vpow.pop %v5619
  %v5621 = vmul.f32 %v5465, 1.442695
  %v5622 = vpow.pop %v5621
  %v5623 = vmul.f32 %v5466, 1.442695
  %v5624 = vpow.pop %v5623
  %v5625 = vmul.f32 %v5467, 1.442695
  %v5626 = vpow.pop %v5625
  %v5627 = vmul.f32 %v5468, 1.442695
  %v5628 = vpow.pop %v5627
  %v5629 = vmul.f32 %v5469, 1.442695
  %v5630 = vpow.pop %v5629
  %v5631 = vmul.f32 %v5470, 1.442695
  %v5632 = vpow.pop %v5631
  %v5633 = vmul.f32 %v5471, 1.442695
  %v5634 = vpow.pop %v5633
  %v5635 = vmul.f32 %v5472, 1.442695
  %v5636 = vpow.pop %v5635
  %v5637 = vmul.f32 %v5473, 1.442695
  %v5638 = vpow.pop %v5637
  %v5639 = vmul.f32 %v5474, 1.442695
  %v5640 = vpow.pop %v5639
  %v5641 = vmul.f32 %v5475, 1.442695
  %v5642 = vpow.pop %v5641
  %v5643 = vmul.f32 %v5476, 1.442695
  %v5644 = vpow.pop %v5643
  %v5645 = vmul.f32 %v5477, 1.442695
  %v5646 = vpow.pop %v5645
  %v5647 = vmul.f32 %v5478, 1.442695
  %v5648 = vpow.pop %v5647
  %v5649 = vmul.f32 %v5479, 1.442695
  %v5650 = vpow.pop %v5649
  %v5651 = vmul.f32 %v5480, 1.442695
  %v5652 = vpow.pop %v5651
  %v5653 = vmul.f32 %v5481, 1.442695
  %v5654 = vpow.pop %v5653
  %v5655 = vmul.f32 %v5482, 1.442695
  %v5656 = vpow.pop %v5655
  %v5657 = vmul.f32 %v5483, 1.442695
  %v5658 = vpow.pop %v5657
  %v5659 = vmul.f32 %v5484, 1.442695
  %v5660 = vpow.pop %v5659
  %v5661 = vmul.f32 %v5485, 1.442695
  %v5662 = vpow.pop %v5661
  %v5663 = vmul.f32 %v5486, 1.442695
  %v5664 = vpow.pop %v5663
  %v5665 = vmul.f32 %v5487, 1.442695
  %v5666 = vpow.pop %v5665
  %v5667 = vmul.f32 %v5488, 1.442695
  %v5668 = vpow.pop %v5667
  %v5669 = vmul.f32 %v5489, 1.442695
  %v5670 = vpow.pop %v5669
  %v5671 = vmul.f32 %v5490, 1.442695
  %v5672 = vpow.pop %v5671
  %v5673 = vmul.f32 %v5491, 1.442695
  %v5674 = vpow.pop %v5673
  %v5675 = vmul.f32 %v5492, 1.442695
  %v5676 = vpow.pop %v5675
  %v5677 = vmul.f32 %v5493, 1.442695
  %v5678 = vpow.pop %v5677
  %v5679 = vmul.f32 %v5494, 1.442695
  %v5680 = vpow.pop %v5679
  %v5681 = vmul.f32 %v5495, 1.442695
  %v5682 = vpow.pop %v5681
  %v5683 = vmul.f32 %v5496, 1.442695
  %v5684 = vpow.pop %v5683
  %v5685 = vmul.f32 %v5497, 1.442695
  %v5686 = vpow.pop %v5685
  %v5687 = vmul.f32 %v5498, 1.442695
  %v5688 = vpow.pop %v5687
  %v5689 = vmul.f32 %v5499, 1.442695
  %v5690 = vpow.pop %v5689
  %v5691 = vmul.f32 %v5500, 1.442695
  %v5692 = vpow.pop %v5691
  %v5693 = vmul.f32 %v5501, 1.442695
  %v5694 = vpow.pop %v5693
  %v5695 = vmul.f32 %v5502, 1.442695
  %v5696 = vpow.pop %v5695
  %v5697 = vmul.f32 %v5503, 1.442695
  %v5698 = vpow.pop %v5697
  %v5699 = vmul.f32 %v5504, 1.442695
  %v5700 = vpow.pop %v5699
  %v5701 = vmul.f32 %v5505, 1.442695
  %v5702 = vpow.pop %v5701
  %v5703 = vmul.f32 %v5506, 1.442695
  %v5704 = vpow.pop %v5703
  %v5705 = vmul.f32 %v5507, 1.442695
  %v5706 = vpow.pop %v5705
  %v5707 = vmul.f32 %v5508, 1.442695
  %v5708 = vpow.pop %v5707
  %v5709 = vmul.f32 %v5509, 1.442695
  %v5710 = vpow.pop %v5709
  %v5711 = vmul.f32 %v5510, 1.442695
  %v5712 = vpow.pop %v5711
  %v5713 = vmul.f32 %v5511, 1.442695
  %v5714 = vpow.pop %v5713
  %v5715 = vmul.f32 %v5512, 1.442695
  %v5716 = vpow.pop %v5715
  %v5717 = vmul.f32 %v5513, 1.442695
  %v5718 = vpow.pop %v5717
  %v5719 = vmul.f32 %v5514, 1.442695
  %v5720 = vpow.pop %v5719
  %v5721 = vmul.f32 %v5515, 1.442695
  %v5722 = vpow.pop %v5721
  %v5723 = vmul.f32 %v5516, 1.442695
  %v5724 = vpow.pop %v5723
  %v5725 = vmul.f32 %v5517, 1.442695
  %v5726 = vpow.pop %v5725
  %v5727 = vmul.f32 %v5518, 1.442695
  %v5728 = vpow.pop %v5727
  %v5729 = vmul.f32 %v5519, 1.442695
  %v5730 = vpow.pop %v5729
  %v5731 = vmul.f32 %v5520, 1.442695
  %v5732 = vpow.pop %v5731
  %v5733 = vmul.f32 %v5521, 1.442695
  %v5734 = vpow.pop %v5733
  %v5735 = vmul.f32 %v5522, 1.442695
  %v5736 = vpow.pop %v5735
  %v5737 = vmul.f32 %v5523, 1.442695
  %v5738 = vpow.pop %v5737
  %v5739 = vmul.f32 %v5524, 1.442695
  %v5740 = vpow.pop %v5739
  %v5741 = vmul.f32 %v5525, 1.442695
  %v5742 = vpow.pop %v5741
  %v5743 = vmul.f32 %v5526, 1.442695
  %v5744 = vpow.pop %v5743
  %v5745 = vmul.f32 %v5527, 1.442695
  %v5746 = vpow.pop %v5745
  %v5747 = vmul.f32 %v5528, 1.442695
  %v5748 = vpow.pop %v5747
  %v5749 = vmul.f32 %v5529, 1.442695
  %v5750 = vpow.pop %v5749
  %v5751 = vmul.f32 %v5530, 1.442695
  %v5752 = vpow.pop %v5751
  %v5753 = vmul.f32 %v5531, 1.442695
  %v5754 = vpow.pop %v5753
  %v5755 = vmul.f32 %v5532, 1.442695
  %v5756 = vpow.pop %v5755
  %v5757 = vmul.f32 %v5533, 1.442695
  %v5758 = vpow.pop %v5757
  %v5759 = vmul.f32 %v5534, 1.442695
  %v5760 = vpow.pop %v5759
  %v5761 = vmul.f32 %v5535, 1.442695
  %v5762 = vpow.pop %v5761
  %v5763 = vmul.f32 %v5536, 1.442695
  %v5764 = vpow.pop %v5763
  %v5765 = vmul.f32 %v5537, 1.442695
  %v5766 = vpow.pop %v5765
  %v5767 = vmul.f32 %v5538, 1.442695
  %v5768 = vpow.pop %v5767
  %v5769 = vmul.f32 %v5539, 1.442695
  %v5770 = vpow.pop %v5769
  %v5771 = vmul.f32 %v5540, 1.442695
  %v5772 = vpow.pop %v5771
  %v5773 = vmul.f32 %v5541, 1.442695
  %v5774 = vpow.pop %v5773
  %v5775 = vmul.f32 %v5542, 1.442695
  %v5776 = vpow.pop %v5775
  %v5777 = vmul.f32 %v5543, 1.442695
  %v5778 = vpow.pop %v5777
  %v5779 = vmul.f32 %v5544, 1.442695
  %v5780 = vpow.pop %v5779
  %v5781 = vmul.f32 %v5545, 1.442695
  %v5782 = vpow.pop %v5781
  %v5783 = vmul.f32 %v5546, 1.442695
  %v5784 = vpow.pop %v5783
  %v5785 = vmul.f32 %v5547, 1.442695
  %v5786 = vpow.pop %v5785
  %v5787 = vmul.f32 %v5548, 1.442695
  %v5788 = vpow.pop %v5787
  %v5789 = vmul.f32 %v5549, 1.442695
  %v5790 = vpow.pop %v5789
  %v5791 = vmul.f32 %v5550, 1.442695
  %v5792 = vpow.pop %v5791
  %v5793 = vmul.f32 %v5551, 1.442695
  %v5794 = vpow.pop %v5793
  %v5795 = vmul.f32 %v5552, 1.442695
  %v5796 = vpow.pop %v5795
  %v5797 = vmul.f32 %v5553, 1.442695
  %v5798 = vpow.pop %v5797
  %v5799 = vmul.f32 %v5554, 1.442695
  %v5800 = vpow.pop %v5799
  %v5801 = vmul.f32 %v5555, 1.442695
  %v5802 = vpow.pop %v5801
  %v5803 = vmul.f32 %v5556, 1.442695
  %v5804 = vpow.pop %v5803
  %v5805 = vmul.f32 %v5557, 1.442695
  %v5806 = vpow.pop %v5805
  %v5807 = vmul.f32 %v5558, 1.442695
  %v5808 = vpow.pop %v5807
  %v5809 = vmul.f32 %v5559, 1.442695
  %v5810 = vpow.pop %v5809
  %v5811 = vmul.f32 %v5560, 1.442695
  %v5812 = vpow.pop %v5811
  %v5813 = vmul.f32 %v5561, 1.442695
  %v5814 = vpow.pop %v5813
  %v5815 = vmul.f32 %v5562, 1.442695
  %v5816 = vpow.pop %v5815
  %v5817 = vmul.f32 %v5563, 1.442695
  %v5818 = vpow.pop %v5817
  %v5819 = vmul.f32 %v5564, 1.442695
  %v5820 = vpow.pop %v5819
  %v5821 = vadd.f32 %v5566, 1.0
  %v5822 = vadd.f32 %v5568, 1.0
  %v5823 = vadd.f32 %v5570, 1.0
  %v5824 = vadd.f32 %v5572, 1.0
  %v5825 = vadd.f32 %v5574, 1.0
  %v5826 = vadd.f32 %v5576, 1.0
  %v5827 = vadd.f32 %v5578, 1.0
  %v5828 = vadd.f32 %v5580, 1.0
  %v5829 = vadd.f32 %v5582, 1.0
  %v5830 = vadd.f32 %v5584, 1.0
  %v5831 = vadd.f32 %v5586, 1.0
  %v5832 = vadd.f32 %v5588, 1.0
  %v5833 = vadd.f32 %v5590, 1.0
  %v5834 = vadd.f32 %v5592, 1.0
  %v5835 = vadd.f32 %v5594, 1.0
  %v5836 = vadd.f32 %v5596, 1.0
  %v5837 = vadd.f32 %v5598, 1.0
  %v5838 = vadd.f32 %v5600, 1.0
  %v5839 = vadd.f32 %v5602, 1.0
  %v5840 = vadd.f32 %v5604, 1.0
  %v5841 = vadd.f32 %v5606, 1.0
  %v5842 = vadd.f32 %v5608, 1.0
  %v5843 = vadd.f32 %v5610, 1.0
  %v5844 = vadd.f32 %v5612, 1.0
  %v5845 = vadd.f32 %v5614, 1.0
  %v5846 = vadd.f32 %v5616, 1.0
  %v5847 = vadd.f32 %v5618, 1.0
  %v5848 = vadd.f32 %v5620, 1.0
  %v5849 = vadd.f32 %v5622, 1.0
  %v5850 = vadd.f32 %v5624, 1.0
  %v5851 = vadd.f32 %v5626, 1.0
  %v5852 = vadd.f32 %v5628, 1.0
  %v5853 = vadd.f32 %v5630, 1.0
  %v5854 = vadd.f32 %v5632, 1.0
  %v5855 = vadd.f32 %v5634, 1.0
  %v5856 = vadd.f32 %v5636, 1.0
  %v5857 = vadd.f32 %v5638, 1.0
  %v5858 = vadd.f32 %v5640, 1.0
  %v5859 = vadd.f32 %v5642, 1.0
  %v5860 = vadd.f32 %v5644, 1.0
  %v5861 = vadd.f32 %v5646, 1.0
  %v5862 = vadd.f32 %v5648, 1.0
  %v5863 = vadd.f32 %v5650, 1.0
  %v5864 = vadd.f32 %v5652, 1.0
  %v5865 = vadd.f32 %v5654, 1.0
  %v5866 = vadd.f32 %v5656, 1.0
  %v5867 = vadd.f32 %v5658, 1.0
  %v5868 = vadd.f32 %v5660, 1.0
  %v5869 = vadd.f32 %v5662, 1.0
  %v5870 = vadd.f32 %v5664, 1.0
  %v5871 = vadd.f32 %v5666, 1.0
  %v5872 = vadd.f32 %v5668, 1.0
  %v5873 = vadd.f32 %v5670, 1.0
  %v5874 = vadd.f32 %v5672, 1.0
  %v5875 = vadd.f32 %v5674, 1.0
  %v5876 = vadd.f32 %v5676, 1.0
  %v5877 = vadd.f32 %v5678, 1.0
  %v5878 = vadd.f32 %v5680, 1.0
  %v5879 = vadd.f32 %v5682, 1.0
  %v5880 = vadd.f32 %v5684, 1.0
  %v5881 = vadd.f32 %v5686, 1.0
  %v5882 = vadd.f32 %v5688, 1.0
  %v5883 = vadd.f32 %v5690, 1.0
  %v5884 = vadd.f32 %v5692, 1.0
  %v5885 = vadd.f32 %v5694, 1.0
  %v5886 = vadd.f32 %v5696, 1.0
  %v5887 = vadd.f32 %v5698, 1.0
  %v5888 = vadd.f32 %v5700, 1.0
  %v5889 = vadd.f32 %v5702, 1.0
  %v5890 = vadd.f32 %v5704, 1.0
  %v5891 = vadd.f32 %v5706, 1.0
  %v5892 = vadd.f32 %v5708, 1.0
  %v5893 = vadd.f32 %v5710, 1.0
  %v5894 = vadd.f32 %v5712, 1.0
  %v5895 = vadd.f32 %v5714, 1.0
  %v5896 = vadd.f32 %v5716, 1.0
  %v5897 = vadd.f32 %v5718, 1.0
  %v5898 = vadd.f32 %v5720, 1.0
  %v5899 = vadd.f32 %v5722, 1.0
  %v5900 = vadd.f32 %v5724, 1.0
  %v5901 = vadd.f32 %v5726, 1.0
  %v5902 = vadd.f32 %v5728, 1.0
  %v5903 = vadd.f32 %v5730, 1.0
  %v5904 = vadd.f32 %v5732, 1.0
  %v5905 = vadd.f32 %v5734, 1.0
  %v5906 = vadd.f32 %v5736, 1.0
  %v5907 = vadd.f32 %v5738, 1.0
  %v5908 = vadd.f32 %v5740, 1.0
  %v5909 = vadd.f32 %v5742, 1.0
  %v5910 = vadd.f32 %v5744, 1.0
  %v5911 = vadd.f32 %v5746, 1.0
  %v5912 = vadd.f32 %v5748, 1.0
  %v5913 = vadd.f32 %v5750, 1.0
  %v5914 = vadd.f32 %v5752, 1.0
  %v5915 = vadd.f32 %v5754, 1.0
  %v5916 = vadd.f32 %v5756, 1.0
  %v5917 = vadd.f32 %v5758, 1.0
  %v5918 = vadd.f32 %v5760, 1.0
  %v5919 = vadd.f32 %v5762, 1.0
  %v5920 = vadd.f32 %v5764, 1.0
  %v5921 = vadd.f32 %v5766, 1.0
  %v5922 = vadd.f32 %v5768, 1.0
  %v5923 = vadd.f32 %v5770, 1.0
  %v5924 = vadd.f32 %v5772, 1.0
  %v5925 = vadd.f32 %v5774, 1.0
  %v5926 = vadd.f32 %v5776, 1.0
  %v5927 = vadd.f32 %v5778, 1.0
  %v5928 = vadd.f32 %v5780, 1.0
  %v5929 = vadd.f32 %v5782, 1.0
  %v5930 = vadd.f32 %v5784, 1.0
  %v5931 = vadd.f32 %v5786, 1.0
  %v5932 = vadd.f32 %v5788, 1.0
  %v5933 = vadd.f32 %v5790, 1.0
  %v5934 = vadd.f32 %v5792, 1.0
  %v5935 = vadd.f32 %v5794, 1.0
  %v5936 = vadd.f32 %v5796, 1.0
  %v5937 = vadd.f32 %v5798, 1.0
  %v5938 = vadd.f32 %v5800, 1.0
  %v5939 = vadd.f32 %v5802, 1.0
  %v5940 = vadd.f32 %v5804, 1.0
  %v5941 = vadd.f32 %v5806, 1.0
  %v5942 = vadd.f32 %v5808, 1.0
  %v5943 = vadd.f32 %v5810, 1.0
  %v5944 = vadd.f32 %v5812, 1.0
  %v5945 = vadd.f32 %v5814, 1.0
  %v5946 = vadd.f32 %v5816, 1.0
  %v5947 = vadd.f32 %v5818, 1.0
  %v5948 = vadd.f32 %v5820, 1.0
  %v5949 = vrcp.pop %v5821
  %v5950 = vmul.f32 %v5821, %v5949
  %v5951 = vsub.f32 1.0, %v5950
  %v5952 = vmul.f32 %v5949, %v5951
  %v5953 = vadd.f32 %v5949, %v5952
  %vm5954 = vweird.f32 %v5821
  %vm5955 = vweird.f32 %v5949
  %vm5956 = vmor %vm5954, %vm5955
  %v5957 = vsel %vm5956, %v5949, %v5953
  %v5958 = vand.u32 2147483647, %v5821
  %vm5959 = vcmp.eq.f32.partialorder %v5958, 8.507059e+37
  %v5960 = vand.u32 %v5821, 2147483648
  %v5961 = vor.u32 1.1754944e-38, %v5960
  %v5962 = vsel %vm5959, %v5961, %v5957
  %v5963 = vmul.f32 1.0, %v5962
  %v5964 = vrcp.pop %v5822
  %v5965 = vmul.f32 %v5822, %v5964
  %v5966 = vsub.f32 1.0, %v5965
  %v5967 = vmul.f32 %v5964, %v5966
  %v5968 = vadd.f32 %v5964, %v5967
  %vm5969 = vweird.f32 %v5822
  %vm5970 = vweird.f32 %v5964
  %vm5971 = vmor %vm5969, %vm5970
  %v5972 = vsel %vm5971, %v5964, %v5968
  %v5973 = vand.u32 2147483647, %v5822
  %vm5974 = vcmp.eq.f32.partialorder %v5973, 8.507059e+37
  %v5975 = vand.u32 %v5822, 2147483648
  %v5976 = vor.u32 1.1754944e-38, %v5975
  %v5977 = vsel %vm5974, %v5976, %v5972
  %v5978 = vmul.f32 1.0, %v5977
  %v5979 = vrcp.pop %v5823
  %v5980 = vmul.f32 %v5823, %v5979
  %v5981 = vsub.f32 1.0, %v5980
  %v5982 = vmul.f32 %v5979, %v5981
  %v5983 = vadd.f32 %v5979, %v5982
  %vm5984 = vweird.f32 %v5823
  %vm5985 = vweird.f32 %v5979
  %vm5986 = vmor %vm5984, %vm5985
  %v5987 = vsel %vm5986, %v5979, %v5983
  %v5988 = vand.u32 2147483647, %v5823
  %vm5989 = vcmp.eq.f32.partialorder %v5988, 8.507059e+37
  %v5990 = vand.u32 %v5823, 2147483648
  %v5991 = vor.u32 1.1754944e-38, %v5990
  %v5992 = vsel %vm5989, %v5991, %v5987
  %v5993 = vmul.f32 1.0, %v5992
  %v5994 = vrcp.pop %v5824
  %v5995 = vmul.f32 %v5824, %v5994
  %v5996 = vsub.f32 1.0, %v5995
  %v5997 = vmul.f32 %v5994, %v5996
  %v5998 = vadd.f32 %v5994, %v5997
  %vm5999 = vweird.f32 %v5824
  %vm6000 = vweird.f32 %v5994
  %vm6001 = vmor %vm5999, %vm6000
  %v6002 = vsel %vm6001, %v5994, %v5998
  %v6003 = vand.u32 2147483647, %v5824
  %vm6004 = vcmp.eq.f32.partialorder %v6003, 8.507059e+37
  %v6005 = vand.u32 %v5824, 2147483648
  %v6006 = vor.u32 1.1754944e-38, %v6005
  %v6007 = vsel %vm6004, %v6006, %v6002
  %v6008 = vmul.f32 1.0, %v6007
  %v6009 = vrcp.pop %v5825
  %v6010 = vmul.f32 %v5825, %v6009
  %v6011 = vsub.f32 1.0, %v6010
  %v6012 = vmul.f32 %v6009, %v6011
  %v6013 = vadd.f32 %v6009, %v6012
  %vm6014 = vweird.f32 %v5825
  %vm6015 = vweird.f32 %v6009
  %vm6016 = vmor %vm6014, %vm6015
  %v6017 = vsel %vm6016, %v6009, %v6013
  %v6018 = vand.u32 2147483647, %v5825
  %vm6019 = vcmp.eq.f32.partialorder %v6018, 8.507059e+37
  %v6020 = vand.u32 %v5825, 2147483648
  %v6021 = vor.u32 1.1754944e-38, %v6020
  %v6022 = vsel %vm6019, %v6021, %v6017
  %v6023 = vmul.f32 1.0, %v6022
  %v6024 = vrcp.pop %v5826
  %v6025 = vmul.f32 %v5826, %v6024
  %v6026 = vsub.f32 1.0, %v6025
  %v6027 = vmul.f32 %v6024, %v6026
  %v6028 = vadd.f32 %v6024, %v6027
  %vm6029 = vweird.f32 %v5826
  %vm6030 = vweird.f32 %v6024
  %vm6031 = vmor %vm6029, %vm6030
  %v6032 = vsel %vm6031, %v6024, %v6028
  %v6033 = vand.u32 2147483647, %v5826
  %vm6034 = vcmp.eq.f32.partialorder %v6033, 8.507059e+37
  %v6035 = vand.u32 %v5826, 2147483648
  %v6036 = vor.u32 1.1754944e-38, %v6035
  %v6037 = vsel %vm6034, %v6036, %v6032
  %v6038 = vmul.f32 1.0, %v6037
  %v6039 = vrcp.pop %v5827
  %v6040 = vmul.f32 %v5827, %v6039
  %v6041 = vsub.f32 1.0, %v6040
  %v6042 = vmul.f32 %v6039, %v6041
  %v6043 = vadd.f32 %v6039, %v6042
  %vm6044 = vweird.f32 %v5827
  %vm6045 = vweird.f32 %v6039
  %vm6046 = vmor %vm6044, %vm6045
  %v6047 = vsel %vm6046, %v6039, %v6043
  %v6048 = vand.u32 2147483647, %v5827
  %vm6049 = vcmp.eq.f32.partialorder %v6048, 8.507059e+37
  %v6050 = vand.u32 %v5827, 2147483648
  %v6051 = vor.u32 1.1754944e-38, %v6050
  %v6052 = vsel %vm6049, %v6051, %v6047
  %v6053 = vmul.f32 1.0, %v6052
  %v6054 = vrcp.pop %v5828
  %v6055 = vmul.f32 %v5828, %v6054
  %v6056 = vsub.f32 1.0, %v6055
  %v6057 = vmul.f32 %v6054, %v6056
  %v6058 = vadd.f32 %v6054, %v6057
  %vm6059 = vweird.f32 %v5828
  %vm6060 = vweird.f32 %v6054
  %vm6061 = vmor %vm6059, %vm6060
  %v6062 = vsel %vm6061, %v6054, %v6058
  %v6063 = vand.u32 2147483647, %v5828
  %vm6064 = vcmp.eq.f32.partialorder %v6063, 8.507059e+37
  %v6065 = vand.u32 %v5828, 2147483648
  %v6066 = vor.u32 1.1754944e-38, %v6065
  %v6067 = vsel %vm6064, %v6066, %v6062
  %v6068 = vmul.f32 1.0, %v6067
  %v6069 = vrcp.pop %v5829
  %v6070 = vmul.f32 %v5829, %v6069
  %v6071 = vsub.f32 1.0, %v6070
  %v6072 = vmul.f32 %v6069, %v6071
  %v6073 = vadd.f32 %v6069, %v6072
  %vm6074 = vweird.f32 %v5829
  %vm6075 = vweird.f32 %v6069
  %vm6076 = vmor %vm6074, %vm6075
  %v6077 = vsel %vm6076, %v6069, %v6073
  %v6078 = vand.u32 2147483647, %v5829
  %vm6079 = vcmp.eq.f32.partialorder %v6078, 8.507059e+37
  %v6080 = vand.u32 %v5829, 2147483648
  %v6081 = vor.u32 1.1754944e-38, %v6080
  %v6082 = vsel %vm6079, %v6081, %v6077
  %v6083 = vmul.f32 1.0, %v6082
  %v6084 = vrcp.pop %v5830
  %v6085 = vmul.f32 %v5830, %v6084
  %v6086 = vsub.f32 1.0, %v6085
  %v6087 = vmul.f32 %v6084, %v6086
  %v6088 = vadd.f32 %v6084, %v6087
  %vm6089 = vweird.f32 %v5830
  %vm6090 = vweird.f32 %v6084
  %vm6091 = vmor %vm6089, %vm6090
  %v6092 = vsel %vm6091, %v6084, %v6088
  %v6093 = vand.u32 2147483647, %v5830
  %vm6094 = vcmp.eq.f32.partialorder %v6093, 8.507059e+37
  %v6095 = vand.u32 %v5830, 2147483648
  %v6096 = vor.u32 1.1754944e-38, %v6095
  %v6097 = vsel %vm6094, %v6096, %v6092
  %v6098 = vmul.f32 1.0, %v6097
  %v6099 = vrcp.pop %v5831
  %v6100 = vmul.f32 %v5831, %v6099
  %v6101 = vsub.f32 1.0, %v6100
  %v6102 = vmul.f32 %v6099, %v6101
  %v6103 = vadd.f32 %v6099, %v6102
  %vm6104 = vweird.f32 %v5831
  %vm6105 = vweird.f32 %v6099
  %vm6106 = vmor %vm6104, %vm6105
  %v6107 = vsel %vm6106, %v6099, %v6103
  %v6108 = vand.u32 2147483647, %v5831
  %vm6109 = vcmp.eq.f32.partialorder %v6108, 8.507059e+37
  %v6110 = vand.u32 %v5831, 2147483648
  %v6111 = vor.u32 1.1754944e-38, %v6110
  %v6112 = vsel %vm6109, %v6111, %v6107
  %v6113 = vmul.f32 1.0, %v6112
  %v6114 = vrcp.pop %v5832
  %v6115 = vmul.f32 %v5832, %v6114
  %v6116 = vsub.f32 1.0, %v6115
  %v6117 = vmul.f32 %v6114, %v6116
  %v6118 = vadd.f32 %v6114, %v6117
  %vm6119 = vweird.f32 %v5832
  %vm6120 = vweird.f32 %v6114
  %vm6121 = vmor %vm6119, %vm6120
  %v6122 = vsel %vm6121, %v6114, %v6118
  %v6123 = vand.u32 2147483647, %v5832
  %vm6124 = vcmp.eq.f32.partialorder %v6123, 8.507059e+37
  %v6125 = vand.u32 %v5832, 2147483648
  %v6126 = vor.u32 1.1754944e-38, %v6125
  %v6127 = vsel %vm6124, %v6126, %v6122
  %v6128 = vmul.f32 1.0, %v6127
  %v6129 = vrcp.pop %v5833
  %v6130 = vmul.f32 %v5833, %v6129
  %v6131 = vsub.f32 1.0, %v6130
  %v6132 = vmul.f32 %v6129, %v6131
  %v6133 = vadd.f32 %v6129, %v6132
  %vm6134 = vweird.f32 %v5833
  %vm6135 = vweird.f32 %v6129
  %vm6136 = vmor %vm6134, %vm6135
  %v6137 = vsel %vm6136, %v6129, %v6133
  %v6138 = vand.u32 2147483647, %v5833
  %vm6139 = vcmp.eq.f32.partialorder %v6138, 8.507059e+37
  %v6140 = vand.u32 %v5833, 2147483648
  %v6141 = vor.u32 1.1754944e-38, %v6140
  %v6142 = vsel %vm6139, %v6141, %v6137
  %v6143 = vmul.f32 1.0, %v6142
  %v6144 = vrcp.pop %v5834
  %v6145 = vmul.f32 %v5834, %v6144
  %v6146 = vsub.f32 1.0, %v6145
  %v6147 = vmul.f32 %v6144, %v6146
  %v6148 = vadd.f32 %v6144, %v6147
  %vm6149 = vweird.f32 %v5834
  %vm6150 = vweird.f32 %v6144
  %vm6151 = vmor %vm6149, %vm6150
  %v6152 = vsel %vm6151, %v6144, %v6148
  %v6153 = vand.u32 2147483647, %v5834
  %vm6154 = vcmp.eq.f32.partialorder %v6153, 8.507059e+37
  %v6155 = vand.u32 %v5834, 2147483648
  %v6156 = vor.u32 1.1754944e-38, %v6155
  %v6157 = vsel %vm6154, %v6156, %v6152
  %v6158 = vmul.f32 1.0, %v6157
  %v6159 = vrcp.pop %v5835
  %v6160 = vmul.f32 %v5835, %v6159
  %v6161 = vsub.f32 1.0, %v6160
  %v6162 = vmul.f32 %v6159, %v6161
  %v6163 = vadd.f32 %v6159, %v6162
  %vm6164 = vweird.f32 %v5835
  %vm6165 = vweird.f32 %v6159
  %vm6166 = vmor %vm6164, %vm6165
  %v6167 = vsel %vm6166, %v6159, %v6163
  %v6168 = vand.u32 2147483647, %v5835
  %vm6169 = vcmp.eq.f32.partialorder %v6168, 8.507059e+37
  %v6170 = vand.u32 %v5835, 2147483648
  %v6171 = vor.u32 1.1754944e-38, %v6170
  %v6172 = vsel %vm6169, %v6171, %v6167
  %v6173 = vmul.f32 1.0, %v6172
  %v6174 = vrcp.pop %v5836
  %v6175 = vmul.f32 %v5836, %v6174
  %v6176 = vsub.f32 1.0, %v6175
  %v6177 = vmul.f32 %v6174, %v6176
  %v6178 = vadd.f32 %v6174, %v6177
  %vm6179 = vweird.f32 %v5836
  %vm6180 = vweird.f32 %v6174
  %vm6181 = vmor %vm6179, %vm6180
  %v6182 = vsel %vm6181, %v6174, %v6178
  %v6183 = vand.u32 2147483647, %v5836
  %vm6184 = vcmp.eq.f32.partialorder %v6183, 8.507059e+37
  %v6185 = vand.u32 %v5836, 2147483648
  %v6186 = vor.u32 1.1754944e-38, %v6185
  %v6187 = vsel %vm6184, %v6186, %v6182
  %v6188 = vmul.f32 1.0, %v6187
  %v6189 = vrcp.pop %v5837
  %v6190 = vmul.f32 %v5837, %v6189
  %v6191 = vsub.f32 1.0, %v6190
  %v6192 = vmul.f32 %v6189, %v6191
  %v6193 = vadd.f32 %v6189, %v6192
  %vm6194 = vweird.f32 %v5837
  %vm6195 = vweird.f32 %v6189
  %vm6196 = vmor %vm6194, %vm6195
  %v6197 = vsel %vm6196, %v6189, %v6193
  %v6198 = vand.u32 2147483647, %v5837
  %vm6199 = vcmp.eq.f32.partialorder %v6198, 8.507059e+37
  %v6200 = vand.u32 %v5837, 2147483648
  %v6201 = vor.u32 1.1754944e-38, %v6200
  %v6202 = vsel %vm6199, %v6201, %v6197
  %v6203 = vmul.f32 1.0, %v6202
  %v6204 = vrcp.pop %v5838
  %v6205 = vmul.f32 %v5838, %v6204
  %v6206 = vsub.f32 1.0, %v6205
  %v6207 = vmul.f32 %v6204, %v6206
  %v6208 = vadd.f32 %v6204, %v6207
  %vm6209 = vweird.f32 %v5838
  %vm6210 = vweird.f32 %v6204
  %vm6211 = vmor %vm6209, %vm6210
  %v6212 = vsel %vm6211, %v6204, %v6208
  %v6213 = vand.u32 2147483647, %v5838
  %vm6214 = vcmp.eq.f32.partialorder %v6213, 8.507059e+37
  %v6215 = vand.u32 %v5838, 2147483648
  %v6216 = vor.u32 1.1754944e-38, %v6215
  %v6217 = vsel %vm6214, %v6216, %v6212
  %v6218 = vmul.f32 1.0, %v6217
  %v6219 = vrcp.pop %v5839
  %v6220 = vmul.f32 %v5839, %v6219
  %v6221 = vsub.f32 1.0, %v6220
  %v6222 = vmul.f32 %v6219, %v6221
  %v6223 = vadd.f32 %v6219, %v6222
  %vm6224 = vweird.f32 %v5839
  %vm6225 = vweird.f32 %v6219
  %vm6226 = vmor %vm6224, %vm6225
  %v6227 = vsel %vm6226, %v6219, %v6223
  %v6228 = vand.u32 2147483647, %v5839
  %vm6229 = vcmp.eq.f32.partialorder %v6228, 8.507059e+37
  %v6230 = vand.u32 %v5839, 2147483648
  %v6231 = vor.u32 1.1754944e-38, %v6230
  %v6232 = vsel %vm6229, %v6231, %v6227
  %v6233 = vmul.f32 1.0, %v6232
  %v6234 = vrcp.pop %v5840
  %v6235 = vmul.f32 %v5840, %v6234
  %v6236 = vsub.f32 1.0, %v6235
  %v6237 = vmul.f32 %v6234, %v6236
  %v6238 = vadd.f32 %v6234, %v6237
  %vm6239 = vweird.f32 %v5840
  %vm6240 = vweird.f32 %v6234
  %vm6241 = vmor %vm6239, %vm6240
  %v6242 = vsel %vm6241, %v6234, %v6238
  %v6243 = vand.u32 2147483647, %v5840
  %vm6244 = vcmp.eq.f32.partialorder %v6243, 8.507059e+37
  %v6245 = vand.u32 %v5840, 2147483648
  %v6246 = vor.u32 1.1754944e-38, %v6245
  %v6247 = vsel %vm6244, %v6246, %v6242
  %v6248 = vmul.f32 1.0, %v6247
  %v6249 = vrcp.pop %v5841
  %v6250 = vmul.f32 %v5841, %v6249
  %v6251 = vsub.f32 1.0, %v6250
  %v6252 = vmul.f32 %v6249, %v6251
  %v6253 = vadd.f32 %v6249, %v6252
  %vm6254 = vweird.f32 %v5841
  %vm6255 = vweird.f32 %v6249
  %vm6256 = vmor %vm6254, %vm6255
  %v6257 = vsel %vm6256, %v6249, %v6253
  %v6258 = vand.u32 2147483647, %v5841
  %vm6259 = vcmp.eq.f32.partialorder %v6258, 8.507059e+37
  %v6260 = vand.u32 %v5841, 2147483648
  %v6261 = vor.u32 1.1754944e-38, %v6260
  %v6262 = vsel %vm6259, %v6261, %v6257
  %v6263 = vmul.f32 1.0, %v6262
  %v6264 = vrcp.pop %v5842
  %v6265 = vmul.f32 %v5842, %v6264
  %v6266 = vsub.f32 1.0, %v6265
  %v6267 = vmul.f32 %v6264, %v6266
  %v6268 = vadd.f32 %v6264, %v6267
  %vm6269 = vweird.f32 %v5842
  %vm6270 = vweird.f32 %v6264
  %vm6271 = vmor %vm6269, %vm6270
  %v6272 = vsel %vm6271, %v6264, %v6268
  %v6273 = vand.u32 2147483647, %v5842
  %vm6274 = vcmp.eq.f32.partialorder %v6273, 8.507059e+37
  %v6275 = vand.u32 %v5842, 2147483648
  %v6276 = vor.u32 1.1754944e-38, %v6275
  %v6277 = vsel %vm6274, %v6276, %v6272
  %v6278 = vmul.f32 1.0, %v6277
  %v6279 = vrcp.pop %v5843
  %v6280 = vmul.f32 %v5843, %v6279
  %v6281 = vsub.f32 1.0, %v6280
  %v6282 = vmul.f32 %v6279, %v6281
  %v6283 = vadd.f32 %v6279, %v6282
  %vm6284 = vweird.f32 %v5843
  %vm6285 = vweird.f32 %v6279
  %vm6286 = vmor %vm6284, %vm6285
  %v6287 = vsel %vm6286, %v6279, %v6283
  %v6288 = vand.u32 2147483647, %v5843
  %vm6289 = vcmp.eq.f32.partialorder %v6288, 8.507059e+37
  %v6290 = vand.u32 %v5843, 2147483648
  %v6291 = vor.u32 1.1754944e-38, %v6290
  %v6292 = vsel %vm6289, %v6291, %v6287
  %v6293 = vmul.f32 1.0, %v6292
  %v6294 = vrcp.pop %v5844
  %v6295 = vmul.f32 %v5844, %v6294
  %v6296 = vsub.f32 1.0, %v6295
  %v6297 = vmul.f32 %v6294, %v6296
  %v6298 = vadd.f32 %v6294, %v6297
  %vm6299 = vweird.f32 %v5844
  %vm6300 = vweird.f32 %v6294
  %vm6301 = vmor %vm6299, %vm6300
  %v6302 = vsel %vm6301, %v6294, %v6298
  %v6303 = vand.u32 2147483647, %v5844
  %vm6304 = vcmp.eq.f32.partialorder %v6303, 8.507059e+37
  %v6305 = vand.u32 %v5844, 2147483648
  %v6306 = vor.u32 1.1754944e-38, %v6305
  %v6307 = vsel %vm6304, %v6306, %v6302
  %v6308 = vmul.f32 1.0, %v6307
  %v6309 = vrcp.pop %v5845
  %v6310 = vmul.f32 %v5845, %v6309
  %v6311 = vsub.f32 1.0, %v6310
  %v6312 = vmul.f32 %v6309, %v6311
  %v6313 = vadd.f32 %v6309, %v6312
  %vm6314 = vweird.f32 %v5845
  %vm6315 = vweird.f32 %v6309
  %vm6316 = vmor %vm6314, %vm6315
  %v6317 = vsel %vm6316, %v6309, %v6313
  %v6318 = vand.u32 2147483647, %v5845
  %vm6319 = vcmp.eq.f32.partialorder %v6318, 8.507059e+37
  %v6320 = vand.u32 %v5845, 2147483648
  %v6321 = vor.u32 1.1754944e-38, %v6320
  %v6322 = vsel %vm6319, %v6321, %v6317
  %v6323 = vmul.f32 1.0, %v6322
  %v6324 = vrcp.pop %v5846
  %v6325 = vmul.f32 %v5846, %v6324
  %v6326 = vsub.f32 1.0, %v6325
  %v6327 = vmul.f32 %v6324, %v6326
  %v6328 = vadd.f32 %v6324, %v6327
  %vm6329 = vweird.f32 %v5846
  %vm6330 = vweird.f32 %v6324
  %vm6331 = vmor %vm6329, %vm6330
  %v6332 = vsel %vm6331, %v6324, %v6328
  %v6333 = vand.u32 2147483647, %v5846
  %vm6334 = vcmp.eq.f32.partialorder %v6333, 8.507059e+37
  %v6335 = vand.u32 %v5846, 2147483648
  %v6336 = vor.u32 1.1754944e-38, %v6335
  %v6337 = vsel %vm6334, %v6336, %v6332
  %v6338 = vmul.f32 1.0, %v6337
  %v6339 = vrcp.pop %v5847
  %v6340 = vmul.f32 %v5847, %v6339
  %v6341 = vsub.f32 1.0, %v6340
  %v6342 = vmul.f32 %v6339, %v6341
  %v6343 = vadd.f32 %v6339, %v6342
  %vm6344 = vweird.f32 %v5847
  %vm6345 = vweird.f32 %v6339
  %vm6346 = vmor %vm6344, %vm6345
  %v6347 = vsel %vm6346, %v6339, %v6343
  %v6348 = vand.u32 2147483647, %v5847
  %vm6349 = vcmp.eq.f32.partialorder %v6348, 8.507059e+37
  %v6350 = vand.u32 %v5847, 2147483648
  %v6351 = vor.u32 1.1754944e-38, %v6350
  %v6352 = vsel %vm6349, %v6351, %v6347
  %v6353 = vmul.f32 1.0, %v6352
  %v6354 = vrcp.pop %v5848
  %v6355 = vmul.f32 %v5848, %v6354
  %v6356 = vsub.f32 1.0, %v6355
  %v6357 = vmul.f32 %v6354, %v6356
  %v6358 = vadd.f32 %v6354, %v6357
  %vm6359 = vweird.f32 %v5848
  %vm6360 = vweird.f32 %v6354
  %vm6361 = vmor %vm6359, %vm6360
  %v6362 = vsel %vm6361, %v6354, %v6358
  %v6363 = vand.u32 2147483647, %v5848
  %vm6364 = vcmp.eq.f32.partialorder %v6363, 8.507059e+37
  %v6365 = vand.u32 %v5848, 2147483648
  %v6366 = vor.u32 1.1754944e-38, %v6365
  %v6367 = vsel %vm6364, %v6366, %v6362
  %v6368 = vmul.f32 1.0, %v6367
  %v6369 = vrcp.pop %v5849
  %v6370 = vmul.f32 %v5849, %v6369
  %v6371 = vsub.f32 1.0, %v6370
  %v6372 = vmul.f32 %v6369, %v6371
  %v6373 = vadd.f32 %v6369, %v6372
  %vm6374 = vweird.f32 %v5849
  %vm6375 = vweird.f32 %v6369
  %vm6376 = vmor %vm6374, %vm6375
  %v6377 = vsel %vm6376, %v6369, %v6373
  %v6378 = vand.u32 2147483647, %v5849
  %vm6379 = vcmp.eq.f32.partialorder %v6378, 8.507059e+37
  %v6380 = vand.u32 %v5849, 2147483648
  %v6381 = vor.u32 1.1754944e-38, %v6380
  %v6382 = vsel %vm6379, %v6381, %v6377
  %v6383 = vmul.f32 1.0, %v6382
  %v6384 = vrcp.pop %v5850
  %v6385 = vmul.f32 %v5850, %v6384
  %v6386 = vsub.f32 1.0, %v6385
  %v6387 = vmul.f32 %v6384, %v6386
  %v6388 = vadd.f32 %v6384, %v6387
  %vm6389 = vweird.f32 %v5850
  %vm6390 = vweird.f32 %v6384
  %vm6391 = vmor %vm6389, %vm6390
  %v6392 = vsel %vm6391, %v6384, %v6388
  %v6393 = vand.u32 2147483647, %v5850
  %vm6394 = vcmp.eq.f32.partialorder %v6393, 8.507059e+37
  %v6395 = vand.u32 %v5850, 2147483648
  %v6396 = vor.u32 1.1754944e-38, %v6395
  %v6397 = vsel %vm6394, %v6396, %v6392
  %v6398 = vmul.f32 1.0, %v6397
  %v6399 = vrcp.pop %v5851
  %v6400 = vmul.f32 %v5851, %v6399
  %v6401 = vsub.f32 1.0, %v6400
  %v6402 = vmul.f32 %v6399, %v6401
  %v6403 = vadd.f32 %v6399, %v6402
  %vm6404 = vweird.f32 %v5851
  %vm6405 = vweird.f32 %v6399
  %vm6406 = vmor %vm6404, %vm6405
  %v6407 = vsel %vm6406, %v6399, %v6403
  %v6408 = vand.u32 2147483647, %v5851
  %vm6409 = vcmp.eq.f32.partialorder %v6408, 8.507059e+37
  %v6410 = vand.u32 %v5851, 2147483648
  %v6411 = vor.u32 1.1754944e-38, %v6410
  %v6412 = vsel %vm6409, %v6411, %v6407
  %v6413 = vmul.f32 1.0, %v6412
  %v6414 = vrcp.pop %v5852
  %v6415 = vmul.f32 %v5852, %v6414
  %v6416 = vsub.f32 1.0, %v6415
  %v6417 = vmul.f32 %v6414, %v6416
  %v6418 = vadd.f32 %v6414, %v6417
  %vm6419 = vweird.f32 %v5852
  %vm6420 = vweird.f32 %v6414
  %vm6421 = vmor %vm6419, %vm6420
  %v6422 = vsel %vm6421, %v6414, %v6418
  %v6423 = vand.u32 2147483647, %v5852
  %vm6424 = vcmp.eq.f32.partialorder %v6423, 8.507059e+37
  %v6425 = vand.u32 %v5852, 2147483648
  %v6426 = vor.u32 1.1754944e-38, %v6425
  %v6427 = vsel %vm6424, %v6426, %v6422
  %v6428 = vmul.f32 1.0, %v6427
  %v6429 = vrcp.pop %v5853
  %v6430 = vmul.f32 %v5853, %v6429
  %v6431 = vsub.f32 1.0, %v6430
  %v6432 = vmul.f32 %v6429, %v6431
  %v6433 = vadd.f32 %v6429, %v6432
  %vm6434 = vweird.f32 %v5853
  %vm6435 = vweird.f32 %v6429
  %vm6436 = vmor %vm6434, %vm6435
  %v6437 = vsel %vm6436, %v6429, %v6433
  %v6438 = vand.u32 2147483647, %v5853
  %vm6439 = vcmp.eq.f32.partialorder %v6438, 8.507059e+37
  %v6440 = vand.u32 %v5853, 2147483648
  %v6441 = vor.u32 1.1754944e-38, %v6440
  %v6442 = vsel %vm6439, %v6441, %v6437
  %v6443 = vmul.f32 1.0, %v6442
  %v6444 = vrcp.pop %v5854
  %v6445 = vmul.f32 %v5854, %v6444
  %v6446 = vsub.f32 1.0, %v6445
  %v6447 = vmul.f32 %v6444, %v6446
  %v6448 = vadd.f32 %v6444, %v6447
  %vm6449 = vweird.f32 %v5854
  %vm6450 = vweird.f32 %v6444
  %vm6451 = vmor %vm6449, %vm6450
  %v6452 = vsel %vm6451, %v6444, %v6448
  %v6453 = vand.u32 2147483647, %v5854
  %vm6454 = vcmp.eq.f32.partialorder %v6453, 8.507059e+37
  %v6455 = vand.u32 %v5854, 2147483648
  %v6456 = vor.u32 1.1754944e-38, %v6455
  %v6457 = vsel %vm6454, %v6456, %v6452
  %v6458 = vmul.f32 1.0, %v6457
  %v6459 = vrcp.pop %v5855
  %v6460 = vmul.f32 %v5855, %v6459
  %v6461 = vsub.f32 1.0, %v6460
  %v6462 = vmul.f32 %v6459, %v6461
  %v6463 = vadd.f32 %v6459, %v6462
  %vm6464 = vweird.f32 %v5855
  %vm6465 = vweird.f32 %v6459
  %vm6466 = vmor %vm6464, %vm6465
  %v6467 = vsel %vm6466, %v6459, %v6463
  %v6468 = vand.u32 2147483647, %v5855
  %vm6469 = vcmp.eq.f32.partialorder %v6468, 8.507059e+37
  %v6470 = vand.u32 %v5855, 2147483648
  %v6471 = vor.u32 1.1754944e-38, %v6470
  %v6472 = vsel %vm6469, %v6471, %v6467
  %v6473 = vmul.f32 1.0, %v6472
  %v6474 = vrcp.pop %v5856
  %v6475 = vmul.f32 %v5856, %v6474
  %v6476 = vsub.f32 1.0, %v6475
  %v6477 = vmul.f32 %v6474, %v6476
  %v6478 = vadd.f32 %v6474, %v6477
  %vm6479 = vweird.f32 %v5856
  %vm6480 = vweird.f32 %v6474
  %vm6481 = vmor %vm6479, %vm6480
  %v6482 = vsel %vm6481, %v6474, %v6478
  %v6483 = vand.u32 2147483647, %v5856
  %vm6484 = vcmp.eq.f32.partialorder %v6483, 8.507059e+37
  %v6485 = vand.u32 %v5856, 2147483648
  %v6486 = vor.u32 1.1754944e-38, %v6485
  %v6487 = vsel %vm6484, %v6486, %v6482
  %v6488 = vmul.f32 1.0, %v6487
  %v6489 = vrcp.pop %v5857
  %v6490 = vmul.f32 %v5857, %v6489
  %v6491 = vsub.f32 1.0, %v6490
  %v6492 = vmul.f32 %v6489, %v6491
  %v6493 = vadd.f32 %v6489, %v6492
  %vm6494 = vweird.f32 %v5857
  %vm6495 = vweird.f32 %v6489
  %vm6496 = vmor %vm6494, %vm6495
  %v6497 = vsel %vm6496, %v6489, %v6493
  %v6498 = vand.u32 2147483647, %v5857
  %vm6499 = vcmp.eq.f32.partialorder %v6498, 8.507059e+37
  %v6500 = vand.u32 %v5857, 2147483648
  %v6501 = vor.u32 1.1754944e-38, %v6500
  %v6502 = vsel %vm6499, %v6501, %v6497
  %v6503 = vmul.f32 1.0, %v6502
  %v6504 = vrcp.pop %v5858
  %v6505 = vmul.f32 %v5858, %v6504
  %v6506 = vsub.f32 1.0, %v6505
  %v6507 = vmul.f32 %v6504, %v6506
  %v6508 = vadd.f32 %v6504, %v6507
  %vm6509 = vweird.f32 %v5858
  %vm6510 = vweird.f32 %v6504
  %vm6511 = vmor %vm6509, %vm6510
  %v6512 = vsel %vm6511, %v6504, %v6508
  %v6513 = vand.u32 2147483647, %v5858
  %vm6514 = vcmp.eq.f32.partialorder %v6513, 8.507059e+37
  %v6515 = vand.u32 %v5858, 2147483648
  %v6516 = vor.u32 1.1754944e-38, %v6515
  %v6517 = vsel %vm6514, %v6516, %v6512
  %v6518 = vmul.f32 1.0, %v6517
  %v6519 = vrcp.pop %v5859
  %v6520 = vmul.f32 %v5859, %v6519
  %v6521 = vsub.f32 1.0, %v6520
  %v6522 = vmul.f32 %v6519, %v6521
  %v6523 = vadd.f32 %v6519, %v6522
  %vm6524 = vweird.f32 %v5859
  %vm6525 = vweird.f32 %v6519
  %vm6526 = vmor %vm6524, %vm6525
  %v6527 = vsel %vm6526, %v6519, %v6523
  %v6528 = vand.u32 2147483647, %v5859
  %vm6529 = vcmp.eq.f32.partialorder %v6528, 8.507059e+37
  %v6530 = vand.u32 %v5859, 2147483648
  %v6531 = vor.u32 1.1754944e-38, %v6530
  %v6532 = vsel %vm6529, %v6531, %v6527
  %v6533 = vmul.f32 1.0, %v6532
  %v6534 = vrcp.pop %v5860
  %v6535 = vmul.f32 %v5860, %v6534
  %v6536 = vsub.f32 1.0, %v6535
  %v6537 = vmul.f32 %v6534, %v6536
  %v6538 = vadd.f32 %v6534, %v6537
  %vm6539 = vweird.f32 %v5860
  %vm6540 = vweird.f32 %v6534
  %vm6541 = vmor %vm6539, %vm6540
  %v6542 = vsel %vm6541, %v6534, %v6538
  %v6543 = vand.u32 2147483647, %v5860
  %vm6544 = vcmp.eq.f32.partialorder %v6543, 8.507059e+37
  %v6545 = vand.u32 %v5860, 2147483648
  %v6546 = vor.u32 1.1754944e-38, %v6545
  %v6547 = vsel %vm6544, %v6546, %v6542
  %v6548 = vmul.f32 1.0, %v6547
  %v6549 = vrcp.pop %v5861
  %v6550 = vmul.f32 %v5861, %v6549
  %v6551 = vsub.f32 1.0, %v6550
  %v6552 = vmul.f32 %v6549, %v6551
  %v6553 = vadd.f32 %v6549, %v6552
  %vm6554 = vweird.f32 %v5861
  %vm6555 = vweird.f32 %v6549
  %vm6556 = vmor %vm6554, %vm6555
  %v6557 = vsel %vm6556, %v6549, %v6553
  %v6558 = vand.u32 2147483647, %v5861
  %vm6559 = vcmp.eq.f32.partialorder %v6558, 8.507059e+37
  %v6560 = vand.u32 %v5861, 2147483648
  %v6561 = vor.u32 1.1754944e-38, %v6560
  %v6562 = vsel %vm6559, %v6561, %v6557
  %v6563 = vmul.f32 1.0, %v6562
  %v6564 = vrcp.pop %v5862
  %v6565 = vmul.f32 %v5862, %v6564
  %v6566 = vsub.f32 1.0, %v6565
  %v6567 = vmul.f32 %v6564, %v6566
  %v6568 = vadd.f32 %v6564, %v6567
  %vm6569 = vweird.f32 %v5862
  %vm6570 = vweird.f32 %v6564
  %vm6571 = vmor %vm6569, %vm6570
  %v6572 = vsel %vm6571, %v6564, %v6568
  %v6573 = vand.u32 2147483647, %v5862
  %vm6574 = vcmp.eq.f32.partialorder %v6573, 8.507059e+37
  %v6575 = vand.u32 %v5862, 2147483648
  %v6576 = vor.u32 1.1754944e-38, %v6575
  %v6577 = vsel %vm6574, %v6576, %v6572
  %v6578 = vmul.f32 1.0, %v6577
  %v6579 = vrcp.pop %v5863
  %v6580 = vmul.f32 %v5863, %v6579
  %v6581 = vsub.f32 1.0, %v6580
  %v6582 = vmul.f32 %v6579, %v6581
  %v6583 = vadd.f32 %v6579, %v6582
  %vm6584 = vweird.f32 %v5863
  %vm6585 = vweird.f32 %v6579
  %vm6586 = vmor %vm6584, %vm6585
  %v6587 = vsel %vm6586, %v6579, %v6583
  %v6588 = vand.u32 2147483647, %v5863
  %vm6589 = vcmp.eq.f32.partialorder %v6588, 8.507059e+37
  %v6590 = vand.u32 %v5863, 2147483648
  %v6591 = vor.u32 1.1754944e-38, %v6590
  %v6592 = vsel %vm6589, %v6591, %v6587
  %v6593 = vmul.f32 1.0, %v6592
  %v6594 = vrcp.pop %v5864
  %v6595 = vmul.f32 %v5864, %v6594
  %v6596 = vsub.f32 1.0, %v6595
  %v6597 = vmul.f32 %v6594, %v6596
  %v6598 = vadd.f32 %v6594, %v6597
  %vm6599 = vweird.f32 %v5864
  %vm6600 = vweird.f32 %v6594
  %vm6601 = vmor %vm6599, %vm6600
  %v6602 = vsel %vm6601, %v6594, %v6598
  %v6603 = vand.u32 2147483647, %v5864
  %vm6604 = vcmp.eq.f32.partialorder %v6603, 8.507059e+37
  %v6605 = vand.u32 %v5864, 2147483648
  %v6606 = vor.u32 1.1754944e-38, %v6605
  %v6607 = vsel %vm6604, %v6606, %v6602
  %v6608 = vmul.f32 1.0, %v6607
  %v6609 = vrcp.pop %v5865
  %v6610 = vmul.f32 %v5865, %v6609
  %v6611 = vsub.f32 1.0, %v6610
  %v6612 = vmul.f32 %v6609, %v6611
  %v6613 = vadd.f32 %v6609, %v6612
  %vm6614 = vweird.f32 %v5865
  %vm6615 = vweird.f32 %v6609
  %vm6616 = vmor %vm6614, %vm6615
  %v6617 = vsel %vm6616, %v6609, %v6613
  %v6618 = vand.u32 2147483647, %v5865
  %vm6619 = vcmp.eq.f32.partialorder %v6618, 8.507059e+37
  %v6620 = vand.u32 %v5865, 2147483648
  %v6621 = vor.u32 1.1754944e-38, %v6620
  %v6622 = vsel %vm6619, %v6621, %v6617
  %v6623 = vmul.f32 1.0, %v6622
  %v6624 = vrcp.pop %v5866
  %v6625 = vmul.f32 %v5866, %v6624
  %v6626 = vsub.f32 1.0, %v6625
  %v6627 = vmul.f32 %v6624, %v6626
  %v6628 = vadd.f32 %v6624, %v6627
  %vm6629 = vweird.f32 %v5866
  %vm6630 = vweird.f32 %v6624
  %vm6631 = vmor %vm6629, %vm6630
  %v6632 = vsel %vm6631, %v6624, %v6628
  %v6633 = vand.u32 2147483647, %v5866
  %vm6634 = vcmp.eq.f32.partialorder %v6633, 8.507059e+37
  %v6635 = vand.u32 %v5866, 2147483648
  %v6636 = vor.u32 1.1754944e-38, %v6635
  %v6637 = vsel %vm6634, %v6636, %v6632
  %v6638 = vmul.f32 1.0, %v6637
  %v6639 = vrcp.pop %v5867
  %v6640 = vmul.f32 %v5867, %v6639
  %v6641 = vsub.f32 1.0, %v6640
  %v6642 = vmul.f32 %v6639, %v6641
  %v6643 = vadd.f32 %v6639, %v6642
  %vm6644 = vweird.f32 %v5867
  %vm6645 = vweird.f32 %v6639
  %vm6646 = vmor %vm6644, %vm6645
  %v6647 = vsel %vm6646, %v6639, %v6643
  %v6648 = vand.u32 2147483647, %v5867
  %vm6649 = vcmp.eq.f32.partialorder %v6648, 8.507059e+37
  %v6650 = vand.u32 %v5867, 2147483648
  %v6651 = vor.u32 1.1754944e-38, %v6650
  %v6652 = vsel %vm6649, %v6651, %v6647
  %v6653 = vmul.f32 1.0, %v6652
  %v6654 = vrcp.pop %v5868
  %v6655 = vmul.f32 %v5868, %v6654
  %v6656 = vsub.f32 1.0, %v6655
  %v6657 = vmul.f32 %v6654, %v6656
  %v6658 = vadd.f32 %v6654, %v6657
  %vm6659 = vweird.f32 %v5868
  %vm6660 = vweird.f32 %v6654
  %vm6661 = vmor %vm6659, %vm6660
  %v6662 = vsel %vm6661, %v6654, %v6658
  %v6663 = vand.u32 2147483647, %v5868
  %vm6664 = vcmp.eq.f32.partialorder %v6663, 8.507059e+37
  %v6665 = vand.u32 %v5868, 2147483648
  %v6666 = vor.u32 1.1754944e-38, %v6665
  %v6667 = vsel %vm6664, %v6666, %v6662
  %v6668 = vmul.f32 1.0, %v6667
  %v6669 = vrcp.pop %v5869
  %v6670 = vmul.f32 %v5869, %v6669
  %v6671 = vsub.f32 1.0, %v6670
  %v6672 = vmul.f32 %v6669, %v6671
  %v6673 = vadd.f32 %v6669, %v6672
  %vm6674 = vweird.f32 %v5869
  %vm6675 = vweird.f32 %v6669
  %vm6676 = vmor %vm6674, %vm6675
  %v6677 = vsel %vm6676, %v6669, %v6673
  %v6678 = vand.u32 2147483647, %v5869
  %vm6679 = vcmp.eq.f32.partialorder %v6678, 8.507059e+37
  %v6680 = vand.u32 %v5869, 2147483648
  %v6681 = vor.u32 1.1754944e-38, %v6680
  %v6682 = vsel %vm6679, %v6681, %v6677
  %v6683 = vmul.f32 1.0, %v6682
  %v6684 = vrcp.pop %v5870
  %v6685 = vmul.f32 %v5870, %v6684
  %v6686 = vsub.f32 1.0, %v6685
  %v6687 = vmul.f32 %v6684, %v6686
  %v6688 = vadd.f32 %v6684, %v6687
  %vm6689 = vweird.f32 %v5870
  %vm6690 = vweird.f32 %v6684
  %vm6691 = vmor %vm6689, %vm6690
  %v6692 = vsel %vm6691, %v6684, %v6688
  %v6693 = vand.u32 2147483647, %v5870
  %vm6694 = vcmp.eq.f32.partialorder %v6693, 8.507059e+37
  %v6695 = vand.u32 %v5870, 2147483648
  %v6696 = vor.u32 1.1754944e-38, %v6695
  %v6697 = vsel %vm6694, %v6696, %v6692
  %v6698 = vmul.f32 1.0, %v6697
  %v6699 = vrcp.pop %v5871
  %v6700 = vmul.f32 %v5871, %v6699
  %v6701 = vsub.f32 1.0, %v6700
  %v6702 = vmul.f32 %v6699, %v6701
  %v6703 = vadd.f32 %v6699, %v6702
  %vm6704 = vweird.f32 %v5871
  %vm6705 = vweird.f32 %v6699
  %vm6706 = vmor %vm6704, %vm6705
  %v6707 = vsel %vm6706, %v6699, %v6703
  %v6708 = vand.u32 2147483647, %v5871
  %vm6709 = vcmp.eq.f32.partialorder %v6708, 8.507059e+37
  %v6710 = vand.u32 %v5871, 2147483648
  %v6711 = vor.u32 1.1754944e-38, %v6710
  %v6712 = vsel %vm6709, %v6711, %v6707
  %v6713 = vmul.f32 1.0, %v6712
  %v6714 = vrcp.pop %v5872
  %v6715 = vmul.f32 %v5872, %v6714
  %v6716 = vsub.f32 1.0, %v6715
  %v6717 = vmul.f32 %v6714, %v6716
  %v6718 = vadd.f32 %v6714, %v6717
  %vm6719 = vweird.f32 %v5872
  %vm6720 = vweird.f32 %v6714
  %vm6721 = vmor %vm6719, %vm6720
  %v6722 = vsel %vm6721, %v6714, %v6718
  %v6723 = vand.u32 2147483647, %v5872
  %vm6724 = vcmp.eq.f32.partialorder %v6723, 8.507059e+37
  %v6725 = vand.u32 %v5872, 2147483648
  %v6726 = vor.u32 1.1754944e-38, %v6725
  %v6727 = vsel %vm6724, %v6726, %v6722
  %v6728 = vmul.f32 1.0, %v6727
  %v6729 = vrcp.pop %v5873
  %v6730 = vmul.f32 %v5873, %v6729
  %v6731 = vsub.f32 1.0, %v6730
  %v6732 = vmul.f32 %v6729, %v6731
  %v6733 = vadd.f32 %v6729, %v6732
  %vm6734 = vweird.f32 %v5873
  %vm6735 = vweird.f32 %v6729
  %vm6736 = vmor %vm6734, %vm6735
  %v6737 = vsel %vm6736, %v6729, %v6733
  %v6738 = vand.u32 2147483647, %v5873
  %vm6739 = vcmp.eq.f32.partialorder %v6738, 8.507059e+37
  %v6740 = vand.u32 %v5873, 2147483648
  %v6741 = vor.u32 1.1754944e-38, %v6740
  %v6742 = vsel %vm6739, %v6741, %v6737
  %v6743 = vmul.f32 1.0, %v6742
  %v6744 = vrcp.pop %v5874
  %v6745 = vmul.f32 %v5874, %v6744
  %v6746 = vsub.f32 1.0, %v6745
  %v6747 = vmul.f32 %v6744, %v6746
  %v6748 = vadd.f32 %v6744, %v6747
  %vm6749 = vweird.f32 %v5874
  %vm6750 = vweird.f32 %v6744
  %vm6751 = vmor %vm6749, %vm6750
  %v6752 = vsel %vm6751, %v6744, %v6748
  %v6753 = vand.u32 2147483647, %v5874
  %vm6754 = vcmp.eq.f32.partialorder %v6753, 8.507059e+37
  %v6755 = vand.u32 %v5874, 2147483648
  %v6756 = vor.u32 1.1754944e-38, %v6755
  %v6757 = vsel %vm6754, %v6756, %v6752
  %v6758 = vmul.f32 1.0, %v6757
  %v6759 = vrcp.pop %v5875
  %v6760 = vmul.f32 %v5875, %v6759
  %v6761 = vsub.f32 1.0, %v6760
  %v6762 = vmul.f32 %v6759, %v6761
  %v6763 = vadd.f32 %v6759, %v6762
  %vm6764 = vweird.f32 %v5875
  %vm6765 = vweird.f32 %v6759
  %vm6766 = vmor %vm6764, %vm6765
  %v6767 = vsel %vm6766, %v6759, %v6763
  %v6768 = vand.u32 2147483647, %v5875
  %vm6769 = vcmp.eq.f32.partialorder %v6768, 8.507059e+37
  %v6770 = vand.u32 %v5875, 2147483648
  %v6771 = vor.u32 1.1754944e-38, %v6770
  %v6772 = vsel %vm6769, %v6771, %v6767
  %v6773 = vmul.f32 1.0, %v6772
  %v6774 = vrcp.pop %v5876
  %v6775 = vmul.f32 %v5876, %v6774
  %v6776 = vsub.f32 1.0, %v6775
  %v6777 = vmul.f32 %v6774, %v6776
  %v6778 = vadd.f32 %v6774, %v6777
  %vm6779 = vweird.f32 %v5876
  %vm6780 = vweird.f32 %v6774
  %vm6781 = vmor %vm6779, %vm6780
  %v6782 = vsel %vm6781, %v6774, %v6778
  %v6783 = vand.u32 2147483647, %v5876
  %vm6784 = vcmp.eq.f32.partialorder %v6783, 8.507059e+37
  %v6785 = vand.u32 %v5876, 2147483648
  %v6786 = vor.u32 1.1754944e-38, %v6785
  %v6787 = vsel %vm6784, %v6786, %v6782
  %v6788 = vmul.f32 1.0, %v6787
  %v6789 = vrcp.pop %v5877
  %v6790 = vmul.f32 %v5877, %v6789
  %v6791 = vsub.f32 1.0, %v6790
  %v6792 = vmul.f32 %v6789, %v6791
  %v6793 = vadd.f32 %v6789, %v6792
  %vm6794 = vweird.f32 %v5877
  %vm6795 = vweird.f32 %v6789
  %vm6796 = vmor %vm6794, %vm6795
  %v6797 = vsel %vm6796, %v6789, %v6793
  %v6798 = vand.u32 2147483647, %v5877
  %vm6799 = vcmp.eq.f32.partialorder %v6798, 8.507059e+37
  %v6800 = vand.u32 %v5877, 2147483648
  %v6801 = vor.u32 1.1754944e-38, %v6800
  %v6802 = vsel %vm6799, %v6801, %v6797
  %v6803 = vmul.f32 1.0, %v6802
  %v6804 = vrcp.pop %v5878
  %v6805 = vmul.f32 %v5878, %v6804
  %v6806 = vsub.f32 1.0, %v6805
  %v6807 = vmul.f32 %v6804, %v6806
  %v6808 = vadd.f32 %v6804, %v6807
  %vm6809 = vweird.f32 %v5878
  %vm6810 = vweird.f32 %v6804
  %vm6811 = vmor %vm6809, %vm6810
  %v6812 = vsel %vm6811, %v6804, %v6808
  %v6813 = vand.u32 2147483647, %v5878
  %vm6814 = vcmp.eq.f32.partialorder %v6813, 8.507059e+37
  %v6815 = vand.u32 %v5878, 2147483648
  %v6816 = vor.u32 1.1754944e-38, %v6815
  %v6817 = vsel %vm6814, %v6816, %v6812
  %v6818 = vmul.f32 1.0, %v6817
  %v6819 = vrcp.pop %v5879
  %v6820 = vmul.f32 %v5879, %v6819
  %v6821 = vsub.f32 1.0, %v6820
  %v6822 = vmul.f32 %v6819, %v6821
  %v6823 = vadd.f32 %v6819, %v6822
  %vm6824 = vweird.f32 %v5879
  %vm6825 = vweird.f32 %v6819
  %vm6826 = vmor %vm6824, %vm6825
  %v6827 = vsel %vm6826, %v6819, %v6823
  %v6828 = vand.u32 2147483647, %v5879
  %vm6829 = vcmp.eq.f32.partialorder %v6828, 8.507059e+37
  %v6830 = vand.u32 %v5879, 2147483648
  %v6831 = vor.u32 1.1754944e-38, %v6830
  %v6832 = vsel %vm6829, %v6831, %v6827
  %v6833 = vmul.f32 1.0, %v6832
  %v6834 = vrcp.pop %v5880
  %v6835 = vmul.f32 %v5880, %v6834
  %v6836 = vsub.f32 1.0, %v6835
  %v6837 = vmul.f32 %v6834, %v6836
  %v6838 = vadd.f32 %v6834, %v6837
  %vm6839 = vweird.f32 %v5880
  %vm6840 = vweird.f32 %v6834
  %vm6841 = vmor %vm6839, %vm6840
  %v6842 = vsel %vm6841, %v6834, %v6838
  %v6843 = vand.u32 2147483647, %v5880
  %vm6844 = vcmp.eq.f32.partialorder %v6843, 8.507059e+37
  %v6845 = vand.u32 %v5880, 2147483648
  %v6846 = vor.u32 1.1754944e-38, %v6845
  %v6847 = vsel %vm6844, %v6846, %v6842
  %v6848 = vmul.f32 1.0, %v6847
  %v6849 = vrcp.pop %v5881
  %v6850 = vmul.f32 %v5881, %v6849
  %v6851 = vsub.f32 1.0, %v6850
  %v6852 = vmul.f32 %v6849, %v6851
  %v6853 = vadd.f32 %v6849, %v6852
  %vm6854 = vweird.f32 %v5881
  %vm6855 = vweird.f32 %v6849
  %vm6856 = vmor %vm6854, %vm6855
  %v6857 = vsel %vm6856, %v6849, %v6853
  %v6858 = vand.u32 2147483647, %v5881
  %vm6859 = vcmp.eq.f32.partialorder %v6858, 8.507059e+37
  %v6860 = vand.u32 %v5881, 2147483648
  %v6861 = vor.u32 1.1754944e-38, %v6860
  %v6862 = vsel %vm6859, %v6861, %v6857
  %v6863 = vmul.f32 1.0, %v6862
  %v6864 = vrcp.pop %v5882
  %v6865 = vmul.f32 %v5882, %v6864
  %v6866 = vsub.f32 1.0, %v6865
  %v6867 = vmul.f32 %v6864, %v6866
  %v6868 = vadd.f32 %v6864, %v6867
  %vm6869 = vweird.f32 %v5882
  %vm6870 = vweird.f32 %v6864
  %vm6871 = vmor %vm6869, %vm6870
  %v6872 = vsel %vm6871, %v6864, %v6868
  %v6873 = vand.u32 2147483647, %v5882
  %vm6874 = vcmp.eq.f32.partialorder %v6873, 8.507059e+37
  %v6875 = vand.u32 %v5882, 2147483648
  %v6876 = vor.u32 1.1754944e-38, %v6875
  %v6877 = vsel %vm6874, %v6876, %v6872
  %v6878 = vmul.f32 1.0, %v6877
  %v6879 = vrcp.pop %v5883
  %v6880 = vmul.f32 %v5883, %v6879
  %v6881 = vsub.f32 1.0, %v6880
  %v6882 = vmul.f32 %v6879, %v6881
  %v6883 = vadd.f32 %v6879, %v6882
  %vm6884 = vweird.f32 %v5883
  %vm6885 = vweird.f32 %v6879
  %vm6886 = vmor %vm6884, %vm6885
  %v6887 = vsel %vm6886, %v6879, %v6883
  %v6888 = vand.u32 2147483647, %v5883
  %vm6889 = vcmp.eq.f32.partialorder %v6888, 8.507059e+37
  %v6890 = vand.u32 %v5883, 2147483648
  %v6891 = vor.u32 1.1754944e-38, %v6890
  %v6892 = vsel %vm6889, %v6891, %v6887
  %v6893 = vmul.f32 1.0, %v6892
  %v6894 = vrcp.pop %v5884
  %v6895 = vmul.f32 %v5884, %v6894
  %v6896 = vsub.f32 1.0, %v6895
  %v6897 = vmul.f32 %v6894, %v6896
  %v6898 = vadd.f32 %v6894, %v6897
  %vm6899 = vweird.f32 %v5884
  %vm6900 = vweird.f32 %v6894
  %vm6901 = vmor %vm6899, %vm6900
  %v6902 = vsel %vm6901, %v6894, %v6898
  %v6903 = vand.u32 2147483647, %v5884
  %vm6904 = vcmp.eq.f32.partialorder %v6903, 8.507059e+37
  %v6905 = vand.u32 %v5884, 2147483648
  %v6906 = vor.u32 1.1754944e-38, %v6905
  %v6907 = vsel %vm6904, %v6906, %v6902
  %v6908 = vmul.f32 1.0, %v6907
  %v6909 = vrcp.pop %v5885
  %v6910 = vmul.f32 %v5885, %v6909
  %v6911 = vsub.f32 1.0, %v6910
  %v6912 = vmul.f32 %v6909, %v6911
  %v6913 = vadd.f32 %v6909, %v6912
  %vm6914 = vweird.f32 %v5885
  %vm6915 = vweird.f32 %v6909
  %vm6916 = vmor %vm6914, %vm6915
  %v6917 = vsel %vm6916, %v6909, %v6913
  %v6918 = vand.u32 2147483647, %v5885
  %vm6919 = vcmp.eq.f32.partialorder %v6918, 8.507059e+37
  %v6920 = vand.u32 %v5885, 2147483648
  %v6921 = vor.u32 1.1754944e-38, %v6920
  %v6922 = vsel %vm6919, %v6921, %v6917
  %v6923 = vmul.f32 1.0, %v6922
  %v6924 = vrcp.pop %v5886
  %v6925 = vmul.f32 %v5886, %v6924
  %v6926 = vsub.f32 1.0, %v6925
  %v6927 = vmul.f32 %v6924, %v6926
  %v6928 = vadd.f32 %v6924, %v6927
  %vm6929 = vweird.f32 %v5886
  %vm6930 = vweird.f32 %v6924
  %vm6931 = vmor %vm6929, %vm6930
  %v6932 = vsel %vm6931, %v6924, %v6928
  %v6933 = vand.u32 2147483647, %v5886
  %vm6934 = vcmp.eq.f32.partialorder %v6933, 8.507059e+37
  %v6935 = vand.u32 %v5886, 2147483648
  %v6936 = vor.u32 1.1754944e-38, %v6935
  %v6937 = vsel %vm6934, %v6936, %v6932
  %v6938 = vmul.f32 1.0, %v6937
  %v6939 = vrcp.pop %v5887
  %v6940 = vmul.f32 %v5887, %v6939
  %v6941 = vsub.f32 1.0, %v6940
  %v6942 = vmul.f32 %v6939, %v6941
  %v6943 = vadd.f32 %v6939, %v6942
  %vm6944 = vweird.f32 %v5887
  %vm6945 = vweird.f32 %v6939
  %vm6946 = vmor %vm6944, %vm6945
  %v6947 = vsel %vm6946, %v6939, %v6943
  %v6948 = vand.u32 2147483647, %v5887
  %vm6949 = vcmp.eq.f32.partialorder %v6948, 8.507059e+37
  %v6950 = vand.u32 %v5887, 2147483648
  %v6951 = vor.u32 1.1754944e-38, %v6950
  %v6952 = vsel %vm6949, %v6951, %v6947
  %v6953 = vmul.f32 1.0, %v6952
  %v6954 = vrcp.pop %v5888
  %v6955 = vmul.f32 %v5888, %v6954
  %v6956 = vsub.f32 1.0, %v6955
  %v6957 = vmul.f32 %v6954, %v6956
  %v6958 = vadd.f32 %v6954, %v6957
  %vm6959 = vweird.f32 %v5888
  %vm6960 = vweird.f32 %v6954
  %vm6961 = vmor %vm6959, %vm6960
  %v6962 = vsel %vm6961, %v6954, %v6958
  %v6963 = vand.u32 2147483647, %v5888
  %vm6964 = vcmp.eq.f32.partialorder %v6963, 8.507059e+37
  %v6965 = vand.u32 %v5888, 2147483648
  %v6966 = vor.u32 1.1754944e-38, %v6965
  %v6967 = vsel %vm6964, %v6966, %v6962
  %v6968 = vmul.f32 1.0, %v6967
  %v6969 = vrcp.pop %v5889
  %v6970 = vmul.f32 %v5889, %v6969
  %v6971 = vsub.f32 1.0, %v6970
  %v6972 = vmul.f32 %v6969, %v6971
  %v6973 = vadd.f32 %v6969, %v6972
  %vm6974 = vweird.f32 %v5889
  %vm6975 = vweird.f32 %v6969
  %vm6976 = vmor %vm6974, %vm6975
  %v6977 = vsel %vm6976, %v6969, %v6973
  %v6978 = vand.u32 2147483647, %v5889
  %vm6979 = vcmp.eq.f32.partialorder %v6978, 8.507059e+37
  %v6980 = vand.u32 %v5889, 2147483648
  %v6981 = vor.u32 1.1754944e-38, %v6980
  %v6982 = vsel %vm6979, %v6981, %v6977
  %v6983 = vmul.f32 1.0, %v6982
  %v6984 = vrcp.pop %v5890
  %v6985 = vmul.f32 %v5890, %v6984
  %v6986 = vsub.f32 1.0, %v6985
  %v6987 = vmul.f32 %v6984, %v6986
  %v6988 = vadd.f32 %v6984, %v6987
  %vm6989 = vweird.f32 %v5890
  %vm6990 = vweird.f32 %v6984
  %vm6991 = vmor %vm6989, %vm6990
  %v6992 = vsel %vm6991, %v6984, %v6988
  %v6993 = vand.u32 2147483647, %v5890
  %vm6994 = vcmp.eq.f32.partialorder %v6993, 8.507059e+37
  %v6995 = vand.u32 %v5890, 2147483648
  %v6996 = vor.u32 1.1754944e-38, %v6995
  %v6997 = vsel %vm6994, %v6996, %v6992
  %v6998 = vmul.f32 1.0, %v6997
  %v6999 = vrcp.pop %v5891
  %v7000 = vmul.f32 %v5891, %v6999
  %v7001 = vsub.f32 1.0, %v7000
  %v7002 = vmul.f32 %v6999, %v7001
  %v7003 = vadd.f32 %v6999, %v7002
  %vm7004 = vweird.f32 %v5891
  %vm7005 = vweird.f32 %v6999
  %vm7006 = vmor %vm7004, %vm7005
  %v7007 = vsel %vm7006, %v6999, %v7003
  %v7008 = vand.u32 2147483647, %v5891
  %vm7009 = vcmp.eq.f32.partialorder %v7008, 8.507059e+37
  %v7010 = vand.u32 %v5891, 2147483648
  %v7011 = vor.u32 1.1754944e-38, %v7010
  %v7012 = vsel %vm7009, %v7011, %v7007
  %v7013 = vmul.f32 1.0, %v7012
  %v7014 = vrcp.pop %v5892
  %v7015 = vmul.f32 %v5892, %v7014
  %v7016 = vsub.f32 1.0, %v7015
  %v7017 = vmul.f32 %v7014, %v7016
  %v7018 = vadd.f32 %v7014, %v7017
  %vm7019 = vweird.f32 %v5892
  %vm7020 = vweird.f32 %v7014
  %vm7021 = vmor %vm7019, %vm7020
  %v7022 = vsel %vm7021, %v7014, %v7018
  %v7023 = vand.u32 2147483647, %v5892
  %vm7024 = vcmp.eq.f32.partialorder %v7023, 8.507059e+37
  %v7025 = vand.u32 %v5892, 2147483648
  %v7026 = vor.u32 1.1754944e-38, %v7025
  %v7027 = vsel %vm7024, %v7026, %v7022
  %v7028 = vmul.f32 1.0, %v7027
  %v7029 = vrcp.pop %v5893
  %v7030 = vmul.f32 %v5893, %v7029
  %v7031 = vsub.f32 1.0, %v7030
  %v7032 = vmul.f32 %v7029, %v7031
  %v7033 = vadd.f32 %v7029, %v7032
  %vm7034 = vweird.f32 %v5893
  %vm7035 = vweird.f32 %v7029
  %vm7036 = vmor %vm7034, %vm7035
  %v7037 = vsel %vm7036, %v7029, %v7033
  %v7038 = vand.u32 2147483647, %v5893
  %vm7039 = vcmp.eq.f32.partialorder %v7038, 8.507059e+37
  %v7040 = vand.u32 %v5893, 2147483648
  %v7041 = vor.u32 1.1754944e-38, %v7040
  %v7042 = vsel %vm7039, %v7041, %v7037
  %v7043 = vmul.f32 1.0, %v7042
  %v7044 = vrcp.pop %v5894
  %v7045 = vmul.f32 %v5894, %v7044
  %v7046 = vsub.f32 1.0, %v7045
  %v7047 = vmul.f32 %v7044, %v7046
  %v7048 = vadd.f32 %v7044, %v7047
  %vm7049 = vweird.f32 %v5894
  %vm7050 = vweird.f32 %v7044
  %vm7051 = vmor %vm7049, %vm7050
  %v7052 = vsel %vm7051, %v7044, %v7048
  %v7053 = vand.u32 2147483647, %v5894
  %vm7054 = vcmp.eq.f32.partialorder %v7053, 8.507059e+37
  %v7055 = vand.u32 %v5894, 2147483648
  %v7056 = vor.u32 1.1754944e-38, %v7055
  %v7057 = vsel %vm7054, %v7056, %v7052
  %v7058 = vmul.f32 1.0, %v7057
  %v7059 = vrcp.pop %v5895
  %v7060 = vmul.f32 %v5895, %v7059
  %v7061 = vsub.f32 1.0, %v7060
  %v7062 = vmul.f32 %v7059, %v7061
  %v7063 = vadd.f32 %v7059, %v7062
  %vm7064 = vweird.f32 %v5895
  %vm7065 = vweird.f32 %v7059
  %vm7066 = vmor %vm7064, %vm7065
  %v7067 = vsel %vm7066, %v7059, %v7063
  %v7068 = vand.u32 2147483647, %v5895
  %vm7069 = vcmp.eq.f32.partialorder %v7068, 8.507059e+37
  %v7070 = vand.u32 %v5895, 2147483648
  %v7071 = vor.u32 1.1754944e-38, %v7070
  %v7072 = vsel %vm7069, %v7071, %v7067
  %v7073 = vmul.f32 1.0, %v7072
  %v7074 = vrcp.pop %v5896
  %v7075 = vmul.f32 %v5896, %v7074
  %v7076 = vsub.f32 1.0, %v7075
  %v7077 = vmul.f32 %v7074, %v7076
  %v7078 = vadd.f32 %v7074, %v7077
  %vm7079 = vweird.f32 %v5896
  %vm7080 = vweird.f32 %v7074
  %vm7081 = vmor %vm7079, %vm7080
  %v7082 = vsel %vm7081, %v7074, %v7078
  %v7083 = vand.u32 2147483647, %v5896
  %vm7084 = vcmp.eq.f32.partialorder %v7083, 8.507059e+37
  %v7085 = vand.u32 %v5896, 2147483648
  %v7086 = vor.u32 1.1754944e-38, %v7085
  %v7087 = vsel %vm7084, %v7086, %v7082
  %v7088 = vmul.f32 1.0, %v7087
  %v7089 = vrcp.pop %v5897
  %v7090 = vmul.f32 %v5897, %v7089
  %v7091 = vsub.f32 1.0, %v7090
  %v7092 = vmul.f32 %v7089, %v7091
  %v7093 = vadd.f32 %v7089, %v7092
  %vm7094 = vweird.f32 %v5897
  %vm7095 = vweird.f32 %v7089
  %vm7096 = vmor %vm7094, %vm7095
  %v7097 = vsel %vm7096, %v7089, %v7093
  %v7098 = vand.u32 2147483647, %v5897
  %vm7099 = vcmp.eq.f32.partialorder %v7098, 8.507059e+37
  %v7100 = vand.u32 %v5897, 2147483648
  %v7101 = vor.u32 1.1754944e-38, %v7100
  %v7102 = vsel %vm7099, %v7101, %v7097
  %v7103 = vmul.f32 1.0, %v7102
  %v7104 = vrcp.pop %v5898
  %v7105 = vmul.f32 %v5898, %v7104
  %v7106 = vsub.f32 1.0, %v7105
  %v7107 = vmul.f32 %v7104, %v7106
  %v7108 = vadd.f32 %v7104, %v7107
  %vm7109 = vweird.f32 %v5898
  %vm7110 = vweird.f32 %v7104
  %vm7111 = vmor %vm7109, %vm7110
  %v7112 = vsel %vm7111, %v7104, %v7108
  %v7113 = vand.u32 2147483647, %v5898
  %vm7114 = vcmp.eq.f32.partialorder %v7113, 8.507059e+37
  %v7115 = vand.u32 %v5898, 2147483648
  %v7116 = vor.u32 1.1754944e-38, %v7115
  %v7117 = vsel %vm7114, %v7116, %v7112
  %v7118 = vmul.f32 1.0, %v7117
  %v7119 = vrcp.pop %v5899
  %v7120 = vmul.f32 %v5899, %v7119
  %v7121 = vsub.f32 1.0, %v7120
  %v7122 = vmul.f32 %v7119, %v7121
  %v7123 = vadd.f32 %v7119, %v7122
  %vm7124 = vweird.f32 %v5899
  %vm7125 = vweird.f32 %v7119
  %vm7126 = vmor %vm7124, %vm7125
  %v7127 = vsel %vm7126, %v7119, %v7123
  %v7128 = vand.u32 2147483647, %v5899
  %vm7129 = vcmp.eq.f32.partialorder %v7128, 8.507059e+37
  %v7130 = vand.u32 %v5899, 2147483648
  %v7131 = vor.u32 1.1754944e-38, %v7130
  %v7132 = vsel %vm7129, %v7131, %v7127
  %v7133 = vmul.f32 1.0, %v7132
  %v7134 = vrcp.pop %v5900
  %v7135 = vmul.f32 %v5900, %v7134
  %v7136 = vsub.f32 1.0, %v7135
  %v7137 = vmul.f32 %v7134, %v7136
  %v7138 = vadd.f32 %v7134, %v7137
  %vm7139 = vweird.f32 %v5900
  %vm7140 = vweird.f32 %v7134
  %vm7141 = vmor %vm7139, %vm7140
  %v7142 = vsel %vm7141, %v7134, %v7138
  %v7143 = vand.u32 2147483647, %v5900
  %vm7144 = vcmp.eq.f32.partialorder %v7143, 8.507059e+37
  %v7145 = vand.u32 %v5900, 2147483648
  %v7146 = vor.u32 1.1754944e-38, %v7145
  %v7147 = vsel %vm7144, %v7146, %v7142
  %v7148 = vmul.f32 1.0, %v7147
  %v7149 = vrcp.pop %v5901
  %v7150 = vmul.f32 %v5901, %v7149
  %v7151 = vsub.f32 1.0, %v7150
  %v7152 = vmul.f32 %v7149, %v7151
  %v7153 = vadd.f32 %v7149, %v7152
  %vm7154 = vweird.f32 %v5901
  %vm7155 = vweird.f32 %v7149
  %vm7156 = vmor %vm7154, %vm7155
  %v7157 = vsel %vm7156, %v7149, %v7153
  %v7158 = vand.u32 2147483647, %v5901
  %vm7159 = vcmp.eq.f32.partialorder %v7158, 8.507059e+37
  %v7160 = vand.u32 %v5901, 2147483648
  %v7161 = vor.u32 1.1754944e-38, %v7160
  %v7162 = vsel %vm7159, %v7161, %v7157
  %v7163 = vmul.f32 1.0, %v7162
  %v7164 = vrcp.pop %v5902
  %v7165 = vmul.f32 %v5902, %v7164
  %v7166 = vsub.f32 1.0, %v7165
  %v7167 = vmul.f32 %v7164, %v7166
  %v7168 = vadd.f32 %v7164, %v7167
  %vm7169 = vweird.f32 %v5902
  %vm7170 = vweird.f32 %v7164
  %vm7171 = vmor %vm7169, %vm7170
  %v7172 = vsel %vm7171, %v7164, %v7168
  %v7173 = vand.u32 2147483647, %v5902
  %vm7174 = vcmp.eq.f32.partialorder %v7173, 8.507059e+37
  %v7175 = vand.u32 %v5902, 2147483648
  %v7176 = vor.u32 1.1754944e-38, %v7175
  %v7177 = vsel %vm7174, %v7176, %v7172
  %v7178 = vmul.f32 1.0, %v7177
  %v7179 = vrcp.pop %v5903
  %v7180 = vmul.f32 %v5903, %v7179
  %v7181 = vsub.f32 1.0, %v7180
  %v7182 = vmul.f32 %v7179, %v7181
  %v7183 = vadd.f32 %v7179, %v7182
  %vm7184 = vweird.f32 %v5903
  %vm7185 = vweird.f32 %v7179
  %vm7186 = vmor %vm7184, %vm7185
  %v7187 = vsel %vm7186, %v7179, %v7183
  %v7188 = vand.u32 2147483647, %v5903
  %vm7189 = vcmp.eq.f32.partialorder %v7188, 8.507059e+37
  %v7190 = vand.u32 %v5903, 2147483648
  %v7191 = vor.u32 1.1754944e-38, %v7190
  %v7192 = vsel %vm7189, %v7191, %v7187
  %v7193 = vmul.f32 1.0, %v7192
  %v7194 = vrcp.pop %v5904
  %v7195 = vmul.f32 %v5904, %v7194
  %v7196 = vsub.f32 1.0, %v7195
  %v7197 = vmul.f32 %v7194, %v7196
  %v7198 = vadd.f32 %v7194, %v7197
  %vm7199 = vweird.f32 %v5904
  %vm7200 = vweird.f32 %v7194
  %vm7201 = vmor %vm7199, %vm7200
  %v7202 = vsel %vm7201, %v7194, %v7198
  %v7203 = vand.u32 2147483647, %v5904
  %vm7204 = vcmp.eq.f32.partialorder %v7203, 8.507059e+37
  %v7205 = vand.u32 %v5904, 2147483648
  %v7206 = vor.u32 1.1754944e-38, %v7205
  %v7207 = vsel %vm7204, %v7206, %v7202
  %v7208 = vmul.f32 1.0, %v7207
  %v7209 = vrcp.pop %v5905
  %v7210 = vmul.f32 %v5905, %v7209
  %v7211 = vsub.f32 1.0, %v7210
  %v7212 = vmul.f32 %v7209, %v7211
  %v7213 = vadd.f32 %v7209, %v7212
  %vm7214 = vweird.f32 %v5905
  %vm7215 = vweird.f32 %v7209
  %vm7216 = vmor %vm7214, %vm7215
  %v7217 = vsel %vm7216, %v7209, %v7213
  %v7218 = vand.u32 2147483647, %v5905
  %vm7219 = vcmp.eq.f32.partialorder %v7218, 8.507059e+37
  %v7220 = vand.u32 %v5905, 2147483648
  %v7221 = vor.u32 1.1754944e-38, %v7220
  %v7222 = vsel %vm7219, %v7221, %v7217
  %v7223 = vmul.f32 1.0, %v7222
  %v7224 = vrcp.pop %v5906
  %v7225 = vmul.f32 %v5906, %v7224
  %v7226 = vsub.f32 1.0, %v7225
  %v7227 = vmul.f32 %v7224, %v7226
  %v7228 = vadd.f32 %v7224, %v7227
  %vm7229 = vweird.f32 %v5906
  %vm7230 = vweird.f32 %v7224
  %vm7231 = vmor %vm7229, %vm7230
  %v7232 = vsel %vm7231, %v7224, %v7228
  %v7233 = vand.u32 2147483647, %v5906
  %vm7234 = vcmp.eq.f32.partialorder %v7233, 8.507059e+37
  %v7235 = vand.u32 %v5906, 2147483648
  %v7236 = vor.u32 1.1754944e-38, %v7235
  %v7237 = vsel %vm7234, %v7236, %v7232
  %v7238 = vmul.f32 1.0, %v7237
  %v7239 = vrcp.pop %v5907
  %v7240 = vmul.f32 %v5907, %v7239
  %v7241 = vsub.f32 1.0, %v7240
  %v7242 = vmul.f32 %v7239, %v7241
  %v7243 = vadd.f32 %v7239, %v7242
  %vm7244 = vweird.f32 %v5907
  %vm7245 = vweird.f32 %v7239
  %vm7246 = vmor %vm7244, %vm7245
  %v7247 = vsel %vm7246, %v7239, %v7243
  %v7248 = vand.u32 2147483647, %v5907
  %vm7249 = vcmp.eq.f32.partialorder %v7248, 8.507059e+37
  %v7250 = vand.u32 %v5907, 2147483648
  %v7251 = vor.u32 1.1754944e-38, %v7250
  %v7252 = vsel %vm7249, %v7251, %v7247
  %v7253 = vmul.f32 1.0, %v7252
  %v7254 = vrcp.pop %v5908
  %v7255 = vmul.f32 %v5908, %v7254
  %v7256 = vsub.f32 1.0, %v7255
  %v7257 = vmul.f32 %v7254, %v7256
  %v7258 = vadd.f32 %v7254, %v7257
  %vm7259 = vweird.f32 %v5908
  %vm7260 = vweird.f32 %v7254
  %vm7261 = vmor %vm7259, %vm7260
  %v7262 = vsel %vm7261, %v7254, %v7258
  %v7263 = vand.u32 2147483647, %v5908
  %vm7264 = vcmp.eq.f32.partialorder %v7263, 8.507059e+37
  %v7265 = vand.u32 %v5908, 2147483648
  %v7266 = vor.u32 1.1754944e-38, %v7265
  %v7267 = vsel %vm7264, %v7266, %v7262
  %v7268 = vmul.f32 1.0, %v7267
  %v7269 = vrcp.pop %v5909
  %v7270 = vmul.f32 %v5909, %v7269
  %v7271 = vsub.f32 1.0, %v7270
  %v7272 = vmul.f32 %v7269, %v7271
  %v7273 = vadd.f32 %v7269, %v7272
  %vm7274 = vweird.f32 %v5909
  %vm7275 = vweird.f32 %v7269
  %vm7276 = vmor %vm7274, %vm7275
  %v7277 = vsel %vm7276, %v7269, %v7273
  %v7278 = vand.u32 2147483647, %v5909
  %vm7279 = vcmp.eq.f32.partialorder %v7278, 8.507059e+37
  %v7280 = vand.u32 %v5909, 2147483648
  %v7281 = vor.u32 1.1754944e-38, %v7280
  %v7282 = vsel %vm7279, %v7281, %v7277
  %v7283 = vmul.f32 1.0, %v7282
  %v7284 = vrcp.pop %v5910
  %v7285 = vmul.f32 %v5910, %v7284
  %v7286 = vsub.f32 1.0, %v7285
  %v7287 = vmul.f32 %v7284, %v7286
  %v7288 = vadd.f32 %v7284, %v7287
  %vm7289 = vweird.f32 %v5910
  %vm7290 = vweird.f32 %v7284
  %vm7291 = vmor %vm7289, %vm7290
  %v7292 = vsel %vm7291, %v7284, %v7288
  %v7293 = vand.u32 2147483647, %v5910
  %vm7294 = vcmp.eq.f32.partialorder %v7293, 8.507059e+37
  %v7295 = vand.u32 %v5910, 2147483648
  %v7296 = vor.u32 1.1754944e-38, %v7295
  %v7297 = vsel %vm7294, %v7296, %v7292
  %v7298 = vmul.f32 1.0, %v7297
  %v7299 = vrcp.pop %v5911
  %v7300 = vmul.f32 %v5911, %v7299
  %v7301 = vsub.f32 1.0, %v7300
  %v7302 = vmul.f32 %v7299, %v7301
  %v7303 = vadd.f32 %v7299, %v7302
  %vm7304 = vweird.f32 %v5911
  %vm7305 = vweird.f32 %v7299
  %vm7306 = vmor %vm7304, %vm7305
  %v7307 = vsel %vm7306, %v7299, %v7303
  %v7308 = vand.u32 2147483647, %v5911
  %vm7309 = vcmp.eq.f32.partialorder %v7308, 8.507059e+37
  %v7310 = vand.u32 %v5911, 2147483648
  %v7311 = vor.u32 1.1754944e-38, %v7310
  %v7312 = vsel %vm7309, %v7311, %v7307
  %v7313 = vmul.f32 1.0, %v7312
  %v7314 = vrcp.pop %v5912
  %v7315 = vmul.f32 %v5912, %v7314
  %v7316 = vsub.f32 1.0, %v7315
  %v7317 = vmul.f32 %v7314, %v7316
  %v7318 = vadd.f32 %v7314, %v7317
  %vm7319 = vweird.f32 %v5912
  %vm7320 = vweird.f32 %v7314
  %vm7321 = vmor %vm7319, %vm7320
  %v7322 = vsel %vm7321, %v7314, %v7318
  %v7323 = vand.u32 2147483647, %v5912
  %vm7324 = vcmp.eq.f32.partialorder %v7323, 8.507059e+37
  %v7325 = vand.u32 %v5912, 2147483648
  %v7326 = vor.u32 1.1754944e-38, %v7325
  %v7327 = vsel %vm7324, %v7326, %v7322
  %v7328 = vmul.f32 1.0, %v7327
  %v7329 = vrcp.pop %v5913
  %v7330 = vmul.f32 %v5913, %v7329
  %v7331 = vsub.f32 1.0, %v7330
  %v7332 = vmul.f32 %v7329, %v7331
  %v7333 = vadd.f32 %v7329, %v7332
  %vm7334 = vweird.f32 %v5913
  %vm7335 = vweird.f32 %v7329
  %vm7336 = vmor %vm7334, %vm7335
  %v7337 = vsel %vm7336, %v7329, %v7333
  %v7338 = vand.u32 2147483647, %v5913
  %vm7339 = vcmp.eq.f32.partialorder %v7338, 8.507059e+37
  %v7340 = vand.u32 %v5913, 2147483648
  %v7341 = vor.u32 1.1754944e-38, %v7340
  %v7342 = vsel %vm7339, %v7341, %v7337
  %v7343 = vmul.f32 1.0, %v7342
  %v7344 = vrcp.pop %v5914
  %v7345 = vmul.f32 %v5914, %v7344
  %v7346 = vsub.f32 1.0, %v7345
  %v7347 = vmul.f32 %v7344, %v7346
  %v7348 = vadd.f32 %v7344, %v7347
  %vm7349 = vweird.f32 %v5914
  %vm7350 = vweird.f32 %v7344
  %vm7351 = vmor %vm7349, %vm7350
  %v7352 = vsel %vm7351, %v7344, %v7348
  %v7353 = vand.u32 2147483647, %v5914
  %vm7354 = vcmp.eq.f32.partialorder %v7353, 8.507059e+37
  %v7355 = vand.u32 %v5914, 2147483648
  %v7356 = vor.u32 1.1754944e-38, %v7355
  %v7357 = vsel %vm7354, %v7356, %v7352
  %v7358 = vmul.f32 1.0, %v7357
  %v7359 = vrcp.pop %v5915
  %v7360 = vmul.f32 %v5915, %v7359
  %v7361 = vsub.f32 1.0, %v7360
  %v7362 = vmul.f32 %v7359, %v7361
  %v7363 = vadd.f32 %v7359, %v7362
  %vm7364 = vweird.f32 %v5915
  %vm7365 = vweird.f32 %v7359
  %vm7366 = vmor %vm7364, %vm7365
  %v7367 = vsel %vm7366, %v7359, %v7363
  %v7368 = vand.u32 2147483647, %v5915
  %vm7369 = vcmp.eq.f32.partialorder %v7368, 8.507059e+37
  %v7370 = vand.u32 %v5915, 2147483648
  %v7371 = vor.u32 1.1754944e-38, %v7370
  %v7372 = vsel %vm7369, %v7371, %v7367
  %v7373 = vmul.f32 1.0, %v7372
  %v7374 = vrcp.pop %v5916
  %v7375 = vmul.f32 %v5916, %v7374
  %v7376 = vsub.f32 1.0, %v7375
  %v7377 = vmul.f32 %v7374, %v7376
  %v7378 = vadd.f32 %v7374, %v7377
  %vm7379 = vweird.f32 %v5916
  %vm7380 = vweird.f32 %v7374
  %vm7381 = vmor %vm7379, %vm7380
  %v7382 = vsel %vm7381, %v7374, %v7378
  %v7383 = vand.u32 2147483647, %v5916
  %vm7384 = vcmp.eq.f32.partialorder %v7383, 8.507059e+37
  %v7385 = vand.u32 %v5916, 2147483648
  %v7386 = vor.u32 1.1754944e-38, %v7385
  %v7387 = vsel %vm7384, %v7386, %v7382
  %v7388 = vmul.f32 1.0, %v7387
  %v7389 = vrcp.pop %v5917
  %v7390 = vmul.f32 %v5917, %v7389
  %v7391 = vsub.f32 1.0, %v7390
  %v7392 = vmul.f32 %v7389, %v7391
  %v7393 = vadd.f32 %v7389, %v7392
  %vm7394 = vweird.f32 %v5917
  %vm7395 = vweird.f32 %v7389
  %vm7396 = vmor %vm7394, %vm7395
  %v7397 = vsel %vm7396, %v7389, %v7393
  %v7398 = vand.u32 2147483647, %v5917
  %vm7399 = vcmp.eq.f32.partialorder %v7398, 8.507059e+37
  %v7400 = vand.u32 %v5917, 2147483648
  %v7401 = vor.u32 1.1754944e-38, %v7400
  %v7402 = vsel %vm7399, %v7401, %v7397
  %v7403 = vmul.f32 1.0, %v7402
  %v7404 = vrcp.pop %v5918
  %v7405 = vmul.f32 %v5918, %v7404
  %v7406 = vsub.f32 1.0, %v7405
  %v7407 = vmul.f32 %v7404, %v7406
  %v7408 = vadd.f32 %v7404, %v7407
  %vm7409 = vweird.f32 %v5918
  %vm7410 = vweird.f32 %v7404
  %vm7411 = vmor %vm7409, %vm7410
  %v7412 = vsel %vm7411, %v7404, %v7408
  %v7413 = vand.u32 2147483647, %v5918
  %vm7414 = vcmp.eq.f32.partialorder %v7413, 8.507059e+37
  %v7415 = vand.u32 %v5918, 2147483648
  %v7416 = vor.u32 1.1754944e-38, %v7415
  %v7417 = vsel %vm7414, %v7416, %v7412
  %v7418 = vmul.f32 1.0, %v7417
  %v7419 = vrcp.pop %v5919
  %v7420 = vmul.f32 %v5919, %v7419
  %v7421 = vsub.f32 1.0, %v7420
  %v7422 = vmul.f32 %v7419, %v7421
  %v7423 = vadd.f32 %v7419, %v7422
  %vm7424 = vweird.f32 %v5919
  %vm7425 = vweird.f32 %v7419
  %vm7426 = vmor %vm7424, %vm7425
  %v7427 = vsel %vm7426, %v7419, %v7423
  %v7428 = vand.u32 2147483647, %v5919
  %vm7429 = vcmp.eq.f32.partialorder %v7428, 8.507059e+37
  %v7430 = vand.u32 %v5919, 2147483648
  %v7431 = vor.u32 1.1754944e-38, %v7430
  %v7432 = vsel %vm7429, %v7431, %v7427
  %v7433 = vmul.f32 1.0, %v7432
  %v7434 = vrcp.pop %v5920
  %v7435 = vmul.f32 %v5920, %v7434
  %v7436 = vsub.f32 1.0, %v7435
  %v7437 = vmul.f32 %v7434, %v7436
  %v7438 = vadd.f32 %v7434, %v7437
  %vm7439 = vweird.f32 %v5920
  %vm7440 = vweird.f32 %v7434
  %vm7441 = vmor %vm7439, %vm7440
  %v7442 = vsel %vm7441, %v7434, %v7438
  %v7443 = vand.u32 2147483647, %v5920
  %vm7444 = vcmp.eq.f32.partialorder %v7443, 8.507059e+37
  %v7445 = vand.u32 %v5920, 2147483648
  %v7446 = vor.u32 1.1754944e-38, %v7445
  %v7447 = vsel %vm7444, %v7446, %v7442
  %v7448 = vmul.f32 1.0, %v7447
  %v7449 = vrcp.pop %v5921
  %v7450 = vmul.f32 %v5921, %v7449
  %v7451 = vsub.f32 1.0, %v7450
  %v7452 = vmul.f32 %v7449, %v7451
  %v7453 = vadd.f32 %v7449, %v7452
  %vm7454 = vweird.f32 %v5921
  %vm7455 = vweird.f32 %v7449
  %vm7456 = vmor %vm7454, %vm7455
  %v7457 = vsel %vm7456, %v7449, %v7453
  %v7458 = vand.u32 2147483647, %v5921
  %vm7459 = vcmp.eq.f32.partialorder %v7458, 8.507059e+37
  %v7460 = vand.u32 %v5921, 2147483648
  %v7461 = vor.u32 1.1754944e-38, %v7460
  %v7462 = vsel %vm7459, %v7461, %v7457
  %v7463 = vmul.f32 1.0, %v7462
  %v7464 = vrcp.pop %v5922
  %v7465 = vmul.f32 %v5922, %v7464
  %v7466 = vsub.f32 1.0, %v7465
  %v7467 = vmul.f32 %v7464, %v7466
  %v7468 = vadd.f32 %v7464, %v7467
  %vm7469 = vweird.f32 %v5922
  %vm7470 = vweird.f32 %v7464
  %vm7471 = vmor %vm7469, %vm7470
  %v7472 = vsel %vm7471, %v7464, %v7468
  %v7473 = vand.u32 2147483647, %v5922
  %vm7474 = vcmp.eq.f32.partialorder %v7473, 8.507059e+37
  %v7475 = vand.u32 %v5922, 2147483648
  %v7476 = vor.u32 1.1754944e-38, %v7475
  %v7477 = vsel %vm7474, %v7476, %v7472
  %v7478 = vmul.f32 1.0, %v7477
  %v7479 = vrcp.pop %v5923
  %v7480 = vmul.f32 %v5923, %v7479
  %v7481 = vsub.f32 1.0, %v7480
  %v7482 = vmul.f32 %v7479, %v7481
  %v7483 = vadd.f32 %v7479, %v7482
  %vm7484 = vweird.f32 %v5923
  %vm7485 = vweird.f32 %v7479
  %vm7486 = vmor %vm7484, %vm7485
  %v7487 = vsel %vm7486, %v7479, %v7483
  %v7488 = vand.u32 2147483647, %v5923
  %vm7489 = vcmp.eq.f32.partialorder %v7488, 8.507059e+37
  %v7490 = vand.u32 %v5923, 2147483648
  %v7491 = vor.u32 1.1754944e-38, %v7490
  %v7492 = vsel %vm7489, %v7491, %v7487
  %v7493 = vmul.f32 1.0, %v7492
  %v7494 = vrcp.pop %v5924
  %v7495 = vmul.f32 %v5924, %v7494
  %v7496 = vsub.f32 1.0, %v7495
  %v7497 = vmul.f32 %v7494, %v7496
  %v7498 = vadd.f32 %v7494, %v7497
  %vm7499 = vweird.f32 %v5924
  %vm7500 = vweird.f32 %v7494
  %vm7501 = vmor %vm7499, %vm7500
  %v7502 = vsel %vm7501, %v7494, %v7498
  %v7503 = vand.u32 2147483647, %v5924
  %vm7504 = vcmp.eq.f32.partialorder %v7503, 8.507059e+37
  %v7505 = vand.u32 %v5924, 2147483648
  %v7506 = vor.u32 1.1754944e-38, %v7505
  %v7507 = vsel %vm7504, %v7506, %v7502
  %v7508 = vmul.f32 1.0, %v7507
  %v7509 = vrcp.pop %v5925
  %v7510 = vmul.f32 %v5925, %v7509
  %v7511 = vsub.f32 1.0, %v7510
  %v7512 = vmul.f32 %v7509, %v7511
  %v7513 = vadd.f32 %v7509, %v7512
  %vm7514 = vweird.f32 %v5925
  %vm7515 = vweird.f32 %v7509
  %vm7516 = vmor %vm7514, %vm7515
  %v7517 = vsel %vm7516, %v7509, %v7513
  %v7518 = vand.u32 2147483647, %v5925
  %vm7519 = vcmp.eq.f32.partialorder %v7518, 8.507059e+37
  %v7520 = vand.u32 %v5925, 2147483648
  %v7521 = vor.u32 1.1754944e-38, %v7520
  %v7522 = vsel %vm7519, %v7521, %v7517
  %v7523 = vmul.f32 1.0, %v7522
  %v7524 = vrcp.pop %v5926
  %v7525 = vmul.f32 %v5926, %v7524
  %v7526 = vsub.f32 1.0, %v7525
  %v7527 = vmul.f32 %v7524, %v7526
  %v7528 = vadd.f32 %v7524, %v7527
  %vm7529 = vweird.f32 %v5926
  %vm7530 = vweird.f32 %v7524
  %vm7531 = vmor %vm7529, %vm7530
  %v7532 = vsel %vm7531, %v7524, %v7528
  %v7533 = vand.u32 2147483647, %v5926
  %vm7534 = vcmp.eq.f32.partialorder %v7533, 8.507059e+37
  %v7535 = vand.u32 %v5926, 2147483648
  %v7536 = vor.u32 1.1754944e-38, %v7535
  %v7537 = vsel %vm7534, %v7536, %v7532
  %v7538 = vmul.f32 1.0, %v7537
  %v7539 = vrcp.pop %v5927
  %v7540 = vmul.f32 %v5927, %v7539
  %v7541 = vsub.f32 1.0, %v7540
  %v7542 = vmul.f32 %v7539, %v7541
  %v7543 = vadd.f32 %v7539, %v7542
  %vm7544 = vweird.f32 %v5927
  %vm7545 = vweird.f32 %v7539
  %vm7546 = vmor %vm7544, %vm7545
  %v7547 = vsel %vm7546, %v7539, %v7543
  %v7548 = vand.u32 2147483647, %v5927
  %vm7549 = vcmp.eq.f32.partialorder %v7548, 8.507059e+37
  %v7550 = vand.u32 %v5927, 2147483648
  %v7551 = vor.u32 1.1754944e-38, %v7550
  %v7552 = vsel %vm7549, %v7551, %v7547
  %v7553 = vmul.f32 1.0, %v7552
  %v7554 = vrcp.pop %v5928
  %v7555 = vmul.f32 %v5928, %v7554
  %v7556 = vsub.f32 1.0, %v7555
  %v7557 = vmul.f32 %v7554, %v7556
  %v7558 = vadd.f32 %v7554, %v7557
  %vm7559 = vweird.f32 %v5928
  %vm7560 = vweird.f32 %v7554
  %vm7561 = vmor %vm7559, %vm7560
  %v7562 = vsel %vm7561, %v7554, %v7558
  %v7563 = vand.u32 2147483647, %v5928
  %vm7564 = vcmp.eq.f32.partialorder %v7563, 8.507059e+37
  %v7565 = vand.u32 %v5928, 2147483648
  %v7566 = vor.u32 1.1754944e-38, %v7565
  %v7567 = vsel %vm7564, %v7566, %v7562
  %v7568 = vmul.f32 1.0, %v7567
  %v7569 = vrcp.pop %v5929
  %v7570 = vmul.f32 %v5929, %v7569
  %v7571 = vsub.f32 1.0, %v7570
  %v7572 = vmul.f32 %v7569, %v7571
  %v7573 = vadd.f32 %v7569, %v7572
  %vm7574 = vweird.f32 %v5929
  %vm7575 = vweird.f32 %v7569
  %vm7576 = vmor %vm7574, %vm7575
  %v7577 = vsel %vm7576, %v7569, %v7573
  %v7578 = vand.u32 2147483647, %v5929
  %vm7579 = vcmp.eq.f32.partialorder %v7578, 8.507059e+37
  %v7580 = vand.u32 %v5929, 2147483648
  %v7581 = vor.u32 1.1754944e-38, %v7580
  %v7582 = vsel %vm7579, %v7581, %v7577
  %v7583 = vmul.f32 1.0, %v7582
  %v7584 = vrcp.pop %v5930
  %v7585 = vmul.f32 %v5930, %v7584
  %v7586 = vsub.f32 1.0, %v7585
  %v7587 = vmul.f32 %v7584, %v7586
  %v7588 = vadd.f32 %v7584, %v7587
  %vm7589 = vweird.f32 %v5930
  %vm7590 = vweird.f32 %v7584
  %vm7591 = vmor %vm7589, %vm7590
  %v7592 = vsel %vm7591, %v7584, %v7588
  %v7593 = vand.u32 2147483647, %v5930
  %vm7594 = vcmp.eq.f32.partialorder %v7593, 8.507059e+37
  %v7595 = vand.u32 %v5930, 2147483648
  %v7596 = vor.u32 1.1754944e-38, %v7595
  %v7597 = vsel %vm7594, %v7596, %v7592
  %v7598 = vmul.f32 1.0, %v7597
  %v7599 = vrcp.pop %v5931
  %v7600 = vmul.f32 %v5931, %v7599
  %v7601 = vsub.f32 1.0, %v7600
  %v7602 = vmul.f32 %v7599, %v7601
  %v7603 = vadd.f32 %v7599, %v7602
  %vm7604 = vweird.f32 %v5931
  %vm7605 = vweird.f32 %v7599
  %vm7606 = vmor %vm7604, %vm7605
  %v7607 = vsel %vm7606, %v7599, %v7603
  %v7608 = vand.u32 2147483647, %v5931
  %vm7609 = vcmp.eq.f32.partialorder %v7608, 8.507059e+37
  %v7610 = vand.u32 %v5931, 2147483648
  %v7611 = vor.u32 1.1754944e-38, %v7610
  %v7612 = vsel %vm7609, %v7611, %v7607
  %v7613 = vmul.f32 1.0, %v7612
  %v7614 = vrcp.pop %v5932
  %v7615 = vmul.f32 %v5932, %v7614
  %v7616 = vsub.f32 1.0, %v7615
  %v7617 = vmul.f32 %v7614, %v7616
  %v7618 = vadd.f32 %v7614, %v7617
  %vm7619 = vweird.f32 %v5932
  %vm7620 = vweird.f32 %v7614
  %vm7621 = vmor %vm7619, %vm7620
  %v7622 = vsel %vm7621, %v7614, %v7618
  %v7623 = vand.u32 2147483647, %v5932
  %vm7624 = vcmp.eq.f32.partialorder %v7623, 8.507059e+37
  %v7625 = vand.u32 %v5932, 2147483648
  %v7626 = vor.u32 1.1754944e-38, %v7625
  %v7627 = vsel %vm7624, %v7626, %v7622
  %v7628 = vmul.f32 1.0, %v7627
  %v7629 = vrcp.pop %v5933
  %v7630 = vmul.f32 %v5933, %v7629
  %v7631 = vsub.f32 1.0, %v7630
  %v7632 = vmul.f32 %v7629, %v7631
  %v7633 = vadd.f32 %v7629, %v7632
  %vm7634 = vweird.f32 %v5933
  %vm7635 = vweird.f32 %v7629
  %vm7636 = vmor %vm7634, %vm7635
  %v7637 = vsel %vm7636, %v7629, %v7633
  %v7638 = vand.u32 2147483647, %v5933
  %vm7639 = vcmp.eq.f32.partialorder %v7638, 8.507059e+37
  %v7640 = vand.u32 %v5933, 2147483648
  %v7641 = vor.u32 1.1754944e-38, %v7640
  %v7642 = vsel %vm7639, %v7641, %v7637
  %v7643 = vmul.f32 1.0, %v7642
  %v7644 = vrcp.pop %v5934
  %v7645 = vmul.f32 %v5934, %v7644
  %v7646 = vsub.f32 1.0, %v7645
  %v7647 = vmul.f32 %v7644, %v7646
  %v7648 = vadd.f32 %v7644, %v7647
  %vm7649 = vweird.f32 %v5934
  %vm7650 = vweird.f32 %v7644
  %vm7651 = vmor %vm7649, %vm7650
  %v7652 = vsel %vm7651, %v7644, %v7648
  %v7653 = vand.u32 2147483647, %v5934
  %vm7654 = vcmp.eq.f32.partialorder %v7653, 8.507059e+37
  %v7655 = vand.u32 %v5934, 2147483648
  %v7656 = vor.u32 1.1754944e-38, %v7655
  %v7657 = vsel %vm7654, %v7656, %v7652
  %v7658 = vmul.f32 1.0, %v7657
  %v7659 = vrcp.pop %v5935
  %v7660 = vmul.f32 %v5935, %v7659
  %v7661 = vsub.f32 1.0, %v7660
  %v7662 = vmul.f32 %v7659, %v7661
  %v7663 = vadd.f32 %v7659, %v7662
  %vm7664 = vweird.f32 %v5935
  %vm7665 = vweird.f32 %v7659
  %vm7666 = vmor %vm7664, %vm7665
  %v7667 = vsel %vm7666, %v7659, %v7663
  %v7668 = vand.u32 2147483647, %v5935
  %vm7669 = vcmp.eq.f32.partialorder %v7668, 8.507059e+37
  %v7670 = vand.u32 %v5935, 2147483648
  %v7671 = vor.u32 1.1754944e-38, %v7670
  %v7672 = vsel %vm7669, %v7671, %v7667
  %v7673 = vmul.f32 1.0, %v7672
  %v7674 = vrcp.pop %v5936
  %v7675 = vmul.f32 %v5936, %v7674
  %v7676 = vsub.f32 1.0, %v7675
  %v7677 = vmul.f32 %v7674, %v7676
  %v7678 = vadd.f32 %v7674, %v7677
  %vm7679 = vweird.f32 %v5936
  %vm7680 = vweird.f32 %v7674
  %vm7681 = vmor %vm7679, %vm7680
  %v7682 = vsel %vm7681, %v7674, %v7678
  %v7683 = vand.u32 2147483647, %v5936
  %vm7684 = vcmp.eq.f32.partialorder %v7683, 8.507059e+37
  %v7685 = vand.u32 %v5936, 2147483648
  %v7686 = vor.u32 1.1754944e-38, %v7685
  %v7687 = vsel %vm7684, %v7686, %v7682
  %v7688 = vmul.f32 1.0, %v7687
  %v7689 = vrcp.pop %v5937
  %v7690 = vmul.f32 %v5937, %v7689
  %v7691 = vsub.f32 1.0, %v7690
  %v7692 = vmul.f32 %v7689, %v7691
  %v7693 = vadd.f32 %v7689, %v7692
  %vm7694 = vweird.f32 %v5937
  %vm7695 = vweird.f32 %v7689
  %vm7696 = vmor %vm7694, %vm7695
  %v7697 = vsel %vm7696, %v7689, %v7693
  %v7698 = vand.u32 2147483647, %v5937
  %vm7699 = vcmp.eq.f32.partialorder %v7698, 8.507059e+37
  %v7700 = vand.u32 %v5937, 2147483648
  %v7701 = vor.u32 1.1754944e-38, %v7700
  %v7702 = vsel %vm7699, %v7701, %v7697
  %v7703 = vmul.f32 1.0, %v7702
  %v7704 = vrcp.pop %v5938
  %v7705 = vmul.f32 %v5938, %v7704
  %v7706 = vsub.f32 1.0, %v7705
  %v7707 = vmul.f32 %v7704, %v7706
  %v7708 = vadd.f32 %v7704, %v7707
  %vm7709 = vweird.f32 %v5938
  %vm7710 = vweird.f32 %v7704
  %vm7711 = vmor %vm7709, %vm7710
  %v7712 = vsel %vm7711, %v7704, %v7708
  %v7713 = vand.u32 2147483647, %v5938
  %vm7714 = vcmp.eq.f32.partialorder %v7713, 8.507059e+37
  %v7715 = vand.u32 %v5938, 2147483648
  %v7716 = vor.u32 1.1754944e-38, %v7715
  %v7717 = vsel %vm7714, %v7716, %v7712
  %v7718 = vmul.f32 1.0, %v7717
  %v7719 = vrcp.pop %v5939
  %v7720 = vmul.f32 %v5939, %v7719
  %v7721 = vsub.f32 1.0, %v7720
  %v7722 = vmul.f32 %v7719, %v7721
  %v7723 = vadd.f32 %v7719, %v7722
  %vm7724 = vweird.f32 %v5939
  %vm7725 = vweird.f32 %v7719
  %vm7726 = vmor %vm7724, %vm7725
  %v7727 = vsel %vm7726, %v7719, %v7723
  %v7728 = vand.u32 2147483647, %v5939
  %vm7729 = vcmp.eq.f32.partialorder %v7728, 8.507059e+37
  %v7730 = vand.u32 %v5939, 2147483648
  %v7731 = vor.u32 1.1754944e-38, %v7730
  %v7732 = vsel %vm7729, %v7731, %v7727
  %v7733 = vmul.f32 1.0, %v7732
  %v7734 = vrcp.pop %v5940
  %v7735 = vmul.f32 %v5940, %v7734
  %v7736 = vsub.f32 1.0, %v7735
  %v7737 = vmul.f32 %v7734, %v7736
  %v7738 = vadd.f32 %v7734, %v7737
  %vm7739 = vweird.f32 %v5940
  %vm7740 = vweird.f32 %v7734
  %vm7741 = vmor %vm7739, %vm7740
  %v7742 = vsel %vm7741, %v7734, %v7738
  %v7743 = vand.u32 2147483647, %v5940
  %vm7744 = vcmp.eq.f32.partialorder %v7743, 8.507059e+37
  %v7745 = vand.u32 %v5940, 2147483648
  %v7746 = vor.u32 1.1754944e-38, %v7745
  %v7747 = vsel %vm7744, %v7746, %v7742
  %v7748 = vmul.f32 1.0, %v7747
  %v7749 = vrcp.pop %v5941
  %v7750 = vmul.f32 %v5941, %v7749
  %v7751 = vsub.f32 1.0, %v7750
  %v7752 = vmul.f32 %v7749, %v7751
  %v7753 = vadd.f32 %v7749, %v7752
  %vm7754 = vweird.f32 %v5941
  %vm7755 = vweird.f32 %v7749
  %vm7756 = vmor %vm7754, %vm7755
  %v7757 = vsel %vm7756, %v7749, %v7753
  %v7758 = vand.u32 2147483647, %v5941
  %vm7759 = vcmp.eq.f32.partialorder %v7758, 8.507059e+37
  %v7760 = vand.u32 %v5941, 2147483648
  %v7761 = vor.u32 1.1754944e-38, %v7760
  %v7762 = vsel %vm7759, %v7761, %v7757
  %v7763 = vmul.f32 1.0, %v7762
  %v7764 = vrcp.pop %v5942
  %v7765 = vmul.f32 %v5942, %v7764
  %v7766 = vsub.f32 1.0, %v7765
  %v7767 = vmul.f32 %v7764, %v7766
  %v7768 = vadd.f32 %v7764, %v7767
  %vm7769 = vweird.f32 %v5942
  %vm7770 = vweird.f32 %v7764
  %vm7771 = vmor %vm7769, %vm7770
  %v7772 = vsel %vm7771, %v7764, %v7768
  %v7773 = vand.u32 2147483647, %v5942
  %vm7774 = vcmp.eq.f32.partialorder %v7773, 8.507059e+37
  %v7775 = vand.u32 %v5942, 2147483648
  %v7776 = vor.u32 1.1754944e-38, %v7775
  %v7777 = vsel %vm7774, %v7776, %v7772
  %v7778 = vmul.f32 1.0, %v7777
  %v7779 = vrcp.pop %v5943
  %v7780 = vmul.f32 %v5943, %v7779
  %v7781 = vsub.f32 1.0, %v7780
  %v7782 = vmul.f32 %v7779, %v7781
  %v7783 = vadd.f32 %v7779, %v7782
  %vm7784 = vweird.f32 %v5943
  %vm7785 = vweird.f32 %v7779
  %vm7786 = vmor %vm7784, %vm7785
  %v7787 = vsel %vm7786, %v7779, %v7783
  %v7788 = vand.u32 2147483647, %v5943
  %vm7789 = vcmp.eq.f32.partialorder %v7788, 8.507059e+37
  %v7790 = vand.u32 %v5943, 2147483648
  %v7791 = vor.u32 1.1754944e-38, %v7790
  %v7792 = vsel %vm7789, %v7791, %v7787
  %v7793 = vmul.f32 1.0, %v7792
  %v7794 = vrcp.pop %v5944
  %v7795 = vmul.f32 %v5944, %v7794
  %v7796 = vsub.f32 1.0, %v7795
  %v7797 = vmul.f32 %v7794, %v7796
  %v7798 = vadd.f32 %v7794, %v7797
  %vm7799 = vweird.f32 %v5944
  %vm7800 = vweird.f32 %v7794
  %vm7801 = vmor %vm7799, %vm7800
  %v7802 = vsel %vm7801, %v7794, %v7798
  %v7803 = vand.u32 2147483647, %v5944
  %vm7804 = vcmp.eq.f32.partialorder %v7803, 8.507059e+37
  %v7805 = vand.u32 %v5944, 2147483648
  %v7806 = vor.u32 1.1754944e-38, %v7805
  %v7807 = vsel %vm7804, %v7806, %v7802
  %v7808 = vmul.f32 1.0, %v7807
  %v7809 = vrcp.pop %v5945
  %v7810 = vmul.f32 %v5945, %v7809
  %v7811 = vsub.f32 1.0, %v7810
  %v7812 = vmul.f32 %v7809, %v7811
  %v7813 = vadd.f32 %v7809, %v7812
  %vm7814 = vweird.f32 %v5945
  %vm7815 = vweird.f32 %v7809
  %vm7816 = vmor %vm7814, %vm7815
  %v7817 = vsel %vm7816, %v7809, %v7813
  %v7818 = vand.u32 2147483647, %v5945
  %vm7819 = vcmp.eq.f32.partialorder %v7818, 8.507059e+37
  %v7820 = vand.u32 %v5945, 2147483648
  %v7821 = vor.u32 1.1754944e-38, %v7820
  %v7822 = vsel %vm7819, %v7821, %v7817
  %v7823 = vmul.f32 1.0, %v7822
  %v7824 = vrcp.pop %v5946
  %v7825 = vmul.f32 %v5946, %v7824
  %v7826 = vsub.f32 1.0, %v7825
  %v7827 = vmul.f32 %v7824, %v7826
  %v7828 = vadd.f32 %v7824, %v7827
  %vm7829 = vweird.f32 %v5946
  %vm7830 = vweird.f32 %v7824
  %vm7831 = vmor %vm7829, %vm7830
  %v7832 = vsel %vm7831, %v7824, %v7828
  %v7833 = vand.u32 2147483647, %v5946
  %vm7834 = vcmp.eq.f32.partialorder %v7833, 8.507059e+37
  %v7835 = vand.u32 %v5946, 2147483648
  %v7836 = vor.u32 1.1754944e-38, %v7835
  %v7837 = vsel %vm7834, %v7836, %v7832
  %v7838 = vmul.f32 1.0, %v7837
  %v7839 = vrcp.pop %v5947
  %v7840 = vmul.f32 %v5947, %v7839
  %v7841 = vsub.f32 1.0, %v7840
  %v7842 = vmul.f32 %v7839, %v7841
  %v7843 = vadd.f32 %v7839, %v7842
  %vm7844 = vweird.f32 %v5947
  %vm7845 = vweird.f32 %v7839
  %vm7846 = vmor %vm7844, %vm7845
  %v7847 = vsel %vm7846, %v7839, %v7843
  %v7848 = vand.u32 2147483647, %v5947
  %vm7849 = vcmp.eq.f32.partialorder %v7848, 8.507059e+37
  %v7850 = vand.u32 %v5947, 2147483648
  %v7851 = vor.u32 1.1754944e-38, %v7850
  %v7852 = vsel %vm7849, %v7851, %v7847
  %v7853 = vmul.f32 1.0, %v7852
  %v7854 = vrcp.pop %v5948
  %v7855 = vmul.f32 %v5948, %v7854
  %v7856 = vsub.f32 1.0, %v7855
  %v7857 = vmul.f32 %v7854, %v7856
  %v7858 = vadd.f32 %v7854, %v7857
  %vm7859 = vweird.f32 %v5948
  %vm7860 = vweird.f32 %v7854
  %vm7861 = vmor %vm7859, %vm7860
  %v7862 = vsel %vm7861, %v7854, %v7858
  %v7863 = vand.u32 2147483647, %v5948
  %vm7864 = vcmp.eq.f32.partialorder %v7863, 8.507059e+37
  %v7865 = vand.u32 %v5948, 2147483648
  %v7866 = vor.u32 1.1754944e-38, %v7865
  %v7867 = vsel %vm7864, %v7866, %v7862
  %v7868 = vmul.f32 1.0, %v7867
  %v7869 = vmul.f32 %v5118, %v5963
  %v7870 = vmul.f32 %v5120, %v5978
  %v7871 = vmul.f32 %v5123, %v5993
  %v7872 = vmul.f32 %v5125, %v6008
  %v7873 = vmul.f32 %v5128, %v6023
  %v7874 = vmul.f32 %v5130, %v6038
  %v7875 = vmul.f32 %v5133, %v6053
  %v7876 = vmul.f32 %v5135, %v6068
  %v7877 = vmul.f32 %v5138, %v6083
  %v7878 = vmul.f32 %v5140, %v6098
  %v7879 = vmul.f32 %v5143, %v6113
  %v7880 = vmul.f32 %v5145, %v6128
  %v7881 = vmul.f32 %v5148, %v6143
  %v7882 = vmul.f32 %v5150, %v6158
  %v7883 = vmul.f32 %v5153, %v6173
  %v7884 = vmul.f32 %v5155, %v6188
  %v7885 = vmul.f32 %v5158, %v6203
  %v7886 = vmul.f32 %v5160, %v6218
  %v7887 = vmul.f32 %v5163, %v6233
  %v7888 = vmul.f32 %v5165, %v6248
  %v7889 = vmul.f32 %v5168, %v6263
  %v7890 = vmul.f32 %v5170, %v6278
  %v7891 = vmul.f32 %v5173, %v6293
  %v7892 = vmul.f32 %v5175, %v6308
  %v7893 = vmul.f32 %v5178, %v6323
  %v7894 = vmul.f32 %v5180, %v6338
  %v7895 = vmul.f32 %v5183, %v6353
  %v7896 = vmul.f32 %v5185, %v6368
  %v7897 = vmul.f32 %v5188, %v6383
  %v7898 = vmul.f32 %v5190, %v6398
  %v7899 = vmul.f32 %v5193, %v6413
  %v7900 = vmul.f32 %v5195, %v6428
  %v7901 = vmul.f32 %v5198, %v6443
  %v7902 = vmul.f32 %v5200, %v6458
  %v7903 = vmul.f32 %v5203, %v6473
  %v7904 = vmul.f32 %v5205, %v6488
  %v7905 = vmul.f32 %v5208, %v6503
  %v7906 = vmul.f32 %v5210, %v6518
  %v7907 = vmul.f32 %v5213, %v6533
  %v7908 = vmul.f32 %v5215, %v6548
  %v7909 = vmul.f32 %v5218, %v6563
  %v7910 = vmul.f32 %v5220, %v6578
  %v7911 = vmul.f32 %v5223, %v6593
  %v7912 = vmul.f32 %v5225, %v6608
  %v7913 = vmul.f32 %v5228, %v6623
  %v7914 = vmul.f32 %v5230, %v6638
  %v7915 = vmul.f32 %v5233, %v6653
  %v7916 = vmul.f32 %v5235, %v6668
  %v7917 = vmul.f32 %v5238, %v6683
  %v7918 = vmul.f32 %v5240, %v6698
  %v7919 = vmul.f32 %v5243, %v6713
  %v7920 = vmul.f32 %v5245, %v6728
  %v7921 = vmul.f32 %v5248, %v6743
  %v7922 = vmul.f32 %v5250, %v6758
  %v7923 = vmul.f32 %v5253, %v6773
  %v7924 = vmul.f32 %v5255, %v6788
  %v7925 = vmul.f32 %v5258, %v6803
  %v7926 = vmul.f32 %v5260, %v6818
  %v7927 = vmul.f32 %v5263, %v6833
  %v7928 = vmul.f32 %v5265, %v6848
  %v7929 = vmul.f32 %v5268, %v6863
  %v7930 = vmul.f32 %v5270, %v6878
  %v7931 = vmul.f32 %v5273, %v6893
  %v7932 = vmul.f32 %v5275, %v6908
  %v7933 = vmul.f32 %v5278, %v6923
  %v7934 = vmul.f32 %v5280, %v6938
  %v7935 = vmul.f32 %v5283, %v6953
  %v7936 = vmul.f32 %v5285, %v6968
  %v7937 = vmul.f32 %v5288, %v6983
  %v7938 = vmul.f32 %v5290, %v6998
  %v7939 = vmul.f32 %v5293, %v7013
  %v7940 = vmul.f32 %v5295, %v7028
  %v7941 = vmul.f32 %v5298, %v7043
  %v7942 = vmul.f32 %v5300, %v7058
  %v7943 = vmul.f32 %v5303, %v7073
  %v7944 = vmul.f32 %v5305, %v7088
  %v7945 = vmul.f32 %v5308, %v7103
  %v7946 = vmul.f32 %v5310, %v7118
  %v7947 = vmul.f32 %v5313, %v7133
  %v7948 = vmul.f32 %v5315, %v7148
  %v7949 = vmul.f32 %v5318, %v7163
  %v7950 = vmul.f32 %v5320, %v7178
  %v7951 = vmul.f32 %v5323, %v7193
  %v7952 = vmul.f32 %v5325, %v7208
  %v7953 = vmul.f32 %v5328, %v7223
  %v7954 = vmul.f32 %v5330, %v7238
  %v7955 = vmul.f32 %v5333, %v7253
  %v7956 = vmul.f32 %v5335, %v7268
  %v7957 = vmul.f32 %v5338, %v7283
  %v7958 = vmul.f32 %v5340, %v7298
  %v7959 = vmul.f32 %v5343, %v7313
  %v7960 = vmul.f32 %v5345, %v7328
  %v7961 = vmul.f32 %v5348, %v7343
  %v7962 = vmul.f32 %v5350, %v7358
  %v7963 = vmul.f32 %v5353, %v7373
  %v7964 = vmul.f32 %v5355, %v7388
  %v7965 = vmul.f32 %v5358, %v7403
  %v7966 = vmul.f32 %v5360, %v7418
  %v7967 = vmul.f32 %v5363, %v7433
  %v7968 = vmul.f32 %v5365, %v7448
  %v7969 = vmul.f32 %v5368, %v7463
  %v7970 = vmul.f32 %v5370, %v7478
  %v7971 = vmul.f32 %v5373, %v7493
  %v7972 = vmul.f32 %v5375, %v7508
  %v7973 = vmul.f32 %v5378, %v7523
  %v7974 = vmul.f32 %v5380, %v7538
  %v7975 = vmul.f32 %v5383, %v7553
  %v7976 = vmul.f32 %v5385, %v7568
  %v7977 = vmul.f32 %v5388, %v7583
  %v7978 = vmul.f32 %v5390, %v7598
  %v7979 = vmul.f32 %v5393, %v7613
  %v7980 = vmul.f32 %v5395, %v7628
  %v7981 = vmul.f32 %v5398, %v7643
  %v7982 = vmul.f32 %v5400, %v7658
  %v7983 = vmul.f32 %v5403, %v7673
  %v7984 = vmul.f32 %v5405, %v7688
  %v7985 = vmul.f32 %v5408, %v7703
  %v7986 = vmul.f32 %v5410, %v7718
  %v7987 = vmul.f32 %v5413, %v7733
  %v7988 = vmul.f32 %v5415, %v7748
  %v7989 = vmul.f32 %v5418, %v7763
  %v7990 = vmul.f32 %v5420, %v7778
  %v7991 = vmul.f32 %v5423, %v7793
  %v7992 = vmul.f32 %v5425, %v7808
  %v7993 = vmul.f32 %v5428, %v7823
  %v7994 = vmul.f32 %v5430, %v7838
  %v7995 = vmul.f32 %v5433, %v7853
  %v7996 = vmul.f32 %v5435, %v7868
  %v7997 = vld [vmem:[%s3] sm:$0xff]
  %v7998 = vld [vmem:[%s3 + $0x8] sm:$0xff]
  %v7999 = vld [vmem:[%s3 + $0x10] sm:$0xff]
  %v8000 = vld [vmem:[%s3 + $0x18] sm:$0xff]
  %v8001 = vld [vmem:[%s3 + $0x20] sm:$0xff]
  %v8002 = vld [vmem:[%s3 + $0x28] sm:$0xff]
  %v8003 = vld [vmem:[%s3 + $0x30] sm:$0xff]
  %v8004 = vld [vmem:[%s3 + $0x38] sm:$0xff]
  %v8005 = vld [vmem:[%s3 + $0x40] sm:$0xff]
  %v8006 = vld [vmem:[%s3 + $0x48] sm:$0xff]
  %v8007 = vld [vmem:[%s3 + $0x50] sm:$0xff]
  %v8008 = vld [vmem:[%s3 + $0x58] sm:$0xff]
  %v8009 = vld [vmem:[%s3 + $0x60] sm:$0xff]
  %v8010 = vld [vmem:[%s3 + $0x68] sm:$0xff]
  %v8011 = vld [vmem:[%s3 + $0x70] sm:$0xff]
  %v8012 = vld [vmem:[%s3 + $0x78] sm:$0xff]
  %v8013 = vsub.f32 1.0, %v7997
  %v8014 = vsub.f32 1.0, %v7998
  %v8015 = vsub.f32 1.0, %v7999
  %v8016 = vsub.f32 1.0, %v8000
  %v8017 = vsub.f32 1.0, %v8001
  %v8018 = vsub.f32 1.0, %v8002
  %v8019 = vsub.f32 1.0, %v8003
  %v8020 = vsub.f32 1.0, %v8004
  %v8021 = vsub.f32 1.0, %v8005
  %v8022 = vsub.f32 1.0, %v8006
  %v8023 = vsub.f32 1.0, %v8007
  %v8024 = vsub.f32 1.0, %v8008
  %v8025 = vsub.f32 1.0, %v8009
  %v8026 = vsub.f32 1.0, %v8010
  %v8027 = vsub.f32 1.0, %v8011
  %v8028 = vsub.f32 1.0, %v8012
  %v8029 = vand.u32 2147483647, %v8013
  %v8030 = vand.u32 2147483647, %v8014
  %v8031 = vand.u32 2147483647, %v8015
  %v8032 = vand.u32 2147483647, %v8016
  %v8033 = vand.u32 2147483647, %v8017
  %v8034 = vand.u32 2147483647, %v8018
  %v8035 = vand.u32 2147483647, %v8019
  %v8036 = vand.u32 2147483647, %v8020
  %v8037 = vand.u32 2147483647, %v8021
  %v8038 = vand.u32 2147483647, %v8022
  %v8039 = vand.u32 2147483647, %v8023
  %v8040 = vand.u32 2147483647, %v8024
  %v8041 = vand.u32 2147483647, %v8025
  %v8042 = vand.u32 2147483647, %v8026
  %v8043 = vand.u32 2147483647, %v8027
  %v8044 = vand.u32 2147483647, %v8028
  %8061 = vrot.lane.b32.xlu0 %v8029, 127
  %v8062 = vpop.permute.xlu0 %8061
  %8063 = vrot.lane.b32.xlu0 %v8030, 127
  %v8064 = vpop.permute.xlu0 %8063
  %8065 = vrot.lane.b32.xlu0 %v8031, 127
  %v8066 = vpop.permute.xlu0 %8065
  %8067 = vrot.lane.b32.xlu0 %v8032, 127
  %v8068 = vpop.permute.xlu0 %8067
  %8069 = vrot.lane.b32.xlu0 %v8033, 127
  %v8070 = vpop.permute.xlu0 %8069
  %8071 = vrot.lane.b32.xlu0 %v8034, 127
  %v8072 = vpop.permute.xlu0 %8071
  %8073 = vrot.lane.b32.xlu0 %v8035, 127
  %v8074 = vpop.permute.xlu0 %8073
  %8075 = vrot.lane.b32.xlu0 %v8036, 127
  %v8076 = vpop.permute.xlu0 %8075
  %8077 = vrot.lane.b32.xlu0 %v8037, 127
  %v8078 = vpop.permute.xlu0 %8077
  %8079 = vrot.lane.b32.xlu0 %v8038, 127
  %v8080 = vpop.permute.xlu0 %8079
  %8081 = vrot.lane.b32.xlu0 %v8039, 127
  %v8082 = vpop.permute.xlu0 %8081
  %8083 = vrot.lane.b32.xlu0 %v8040, 127
  %v8084 = vpop.permute.xlu0 %8083
  %8085 = vrot.lane.b32.xlu0 %v8041, 127
  %v8086 = vpop.permute.xlu0 %8085
  %8087 = vrot.lane.b32.xlu0 %v8042, 127
  %v8088 = vpop.permute.xlu0 %8087
  %8089 = vrot.lane.b32.xlu0 %v8043, 127
  %v8090 = vpop.permute.xlu0 %8089
  %8091 = vrot.lane.b32.xlu0 %v8044, 127
  %v8092 = vpop.permute.xlu0 %8091
  %v8109 = vmul.f32 %v8029, %v8062
  %v8110 = vmul.f32 %v8030, %v8064
  %v8111 = vmul.f32 %v8031, %v8066
  %v8112 = vmul.f32 %v8032, %v8068
  %v8113 = vmul.f32 %v8033, %v8070
  %v8114 = vmul.f32 %v8034, %v8072
  %v8115 = vmul.f32 %v8035, %v8074
  %v8116 = vmul.f32 %v8036, %v8076
  %v8117 = vmul.f32 %v8037, %v8078
  %v8118 = vmul.f32 %v8038, %v8080
  %v8119 = vmul.f32 %v8039, %v8082
  %v8120 = vmul.f32 %v8040, %v8084
  %v8121 = vmul.f32 %v8041, %v8086
  %v8122 = vmul.f32 %v8042, %v8088
  %v8123 = vmul.f32 %v8043, %v8090
  %v8124 = vmul.f32 %v8044, %v8092
  %8125 = vrot.lane.b32.xlu0 %v8029, 126
  %v8126 = vpop.permute.xlu0 %8125
  %8127 = vrot.lane.b32.xlu0 %v8030, 126
  %v8128 = vpop.permute.xlu0 %8127
  %8129 = vrot.lane.b32.xlu0 %v8031, 126
  %v8130 = vpop.permute.xlu0 %8129
  %8131 = vrot.lane.b32.xlu0 %v8032, 126
  %v8132 = vpop.permute.xlu0 %8131
  %8133 = vrot.lane.b32.xlu0 %v8033, 126
  %v8134 = vpop.permute.xlu0 %8133
  %8135 = vrot.lane.b32.xlu0 %v8034, 126
  %v8136 = vpop.permute.xlu0 %8135
  %8137 = vrot.lane.b32.xlu0 %v8035, 126
  %v8138 = vpop.permute.xlu0 %8137
  %8139 = vrot.lane.b32.xlu0 %v8036, 126
  %v8140 = vpop.permute.xlu0 %8139
  %8141 = vrot.lane.b32.xlu0 %v8037, 126
  %v8142 = vpop.permute.xlu0 %8141
  %8143 = vrot.lane.b32.xlu0 %v8038, 126
  %v8144 = vpop.permute.xlu0 %8143
  %8145 = vrot.lane.b32.xlu0 %v8039, 126
  %v8146 = vpop.permute.xlu0 %8145
  %8147 = vrot.lane.b32.xlu0 %v8040, 126
  %v8148 = vpop.permute.xlu0 %8147
  %8149 = vrot.lane.b32.xlu0 %v8041, 126
  %v8150 = vpop.permute.xlu0 %8149
  %8151 = vrot.lane.b32.xlu0 %v8042, 126
  %v8152 = vpop.permute.xlu0 %8151
  %8153 = vrot.lane.b32.xlu0 %v8043, 126
  %v8154 = vpop.permute.xlu0 %8153
  %8155 = vrot.lane.b32.xlu0 %v8044, 126
  %v8156 = vpop.permute.xlu0 %8155
  %v8173 = vmul.f32 %v8109, %v8126
  %v8174 = vmul.f32 %v8110, %v8128
  %v8175 = vmul.f32 %v8111, %v8130
  %v8176 = vmul.f32 %v8112, %v8132
  %v8177 = vmul.f32 %v8113, %v8134
  %v8178 = vmul.f32 %v8114, %v8136
  %v8179 = vmul.f32 %v8115, %v8138
  %v8180 = vmul.f32 %v8116, %v8140
  %v8181 = vmul.f32 %v8117, %v8142
  %v8182 = vmul.f32 %v8118, %v8144
  %v8183 = vmul.f32 %v8119, %v8146
  %v8184 = vmul.f32 %v8120, %v8148
  %v8185 = vmul.f32 %v8121, %v8150
  %v8186 = vmul.f32 %v8122, %v8152
  %v8187 = vmul.f32 %v8123, %v8154
  %v8188 = vmul.f32 %v8124, %v8156
  %8190 = vset.pattern.permute.xlu0 0
  %8191 = vperm.xlu0 %8190, %v8173
  %v8192 = vpop.permute.xlu0 %8191
  %8195 = vset.pattern.permute.xlu0 0
  %8196 = vperm.xlu0 %8195, %v8174
  %v8197 = vpop.permute.xlu0 %8196
  %8200 = vset.pattern.permute.xlu0 0
  %8201 = vperm.xlu0 %8200, %v8175
  %v8202 = vpop.permute.xlu0 %8201
  %8205 = vset.pattern.permute.xlu0 0
  %8206 = vperm.xlu0 %8205, %v8176
  %v8207 = vpop.permute.xlu0 %8206
  %8210 = vset.pattern.permute.xlu0 0
  %8211 = vperm.xlu0 %8210, %v8177
  %v8212 = vpop.permute.xlu0 %8211
  %8215 = vset.pattern.permute.xlu0 0
  %8216 = vperm.xlu0 %8215, %v8178
  %v8217 = vpop.permute.xlu0 %8216
  %8220 = vset.pattern.permute.xlu0 0
  %8221 = vperm.xlu0 %8220, %v8179
  %v8222 = vpop.permute.xlu0 %8221
  %8225 = vset.pattern.permute.xlu0 0
  %8226 = vperm.xlu0 %8225, %v8180
  %v8227 = vpop.permute.xlu0 %8226
  %8230 = vset.pattern.permute.xlu0 0
  %8231 = vperm.xlu0 %8230, %v8181
  %v8232 = vpop.permute.xlu0 %8231
  %8235 = vset.pattern.permute.xlu0 0
  %8236 = vperm.xlu0 %8235, %v8182
  %v8237 = vpop.permute.xlu0 %8236
  %8240 = vset.pattern.permute.xlu0 0
  %8241 = vperm.xlu0 %8240, %v8183
  %v8242 = vpop.permute.xlu0 %8241
  %8245 = vset.pattern.permute.xlu0 0
  %8246 = vperm.xlu0 %8245, %v8184
  %v8247 = vpop.permute.xlu0 %8246
  %8250 = vset.pattern.permute.xlu0 0
  %8251 = vperm.xlu0 %8250, %v8185
  %v8252 = vpop.permute.xlu0 %8251
  %8255 = vset.pattern.permute.xlu0 0
  %8256 = vperm.xlu0 %8255, %v8186
  %v8257 = vpop.permute.xlu0 %8256
  %8260 = vset.pattern.permute.xlu0 0
  %8261 = vperm.xlu0 %8260, %v8187
  %v8262 = vpop.permute.xlu0 %8261
  %8265 = vset.pattern.permute.xlu0 0
  %8266 = vperm.xlu0 %8265, %v8188
  %v8267 = vpop.permute.xlu0 %8266
  %v8269 = vmul.f32 %v8192, %v7869
  %v8270 = vmul.f32 %v8197, %v7870
  %v8271 = vmul.f32 %v8202, %v7871
  %v8272 = vmul.f32 %v8207, %v7872
  %v8273 = vmul.f32 %v8212, %v7873
  %v8274 = vmul.f32 %v8217, %v7874
  %v8275 = vmul.f32 %v8222, %v7875
  %v8276 = vmul.f32 %v8227, %v7876
  %v8277 = vmul.f32 %v8232, %v7877
  %v8278 = vmul.f32 %v8237, %v7878
  %v8279 = vmul.f32 %v8242, %v7879
  %v8280 = vmul.f32 %v8247, %v7880
  %v8281 = vmul.f32 %v8252, %v7881
  %v8282 = vmul.f32 %v8257, %v7882
  %v8283 = vmul.f32 %v8262, %v7883
  %v8284 = vmul.f32 %v8267, %v7884
  %v8285 = vadd.f32 %v8269, 0.0
  %v8286 = vadd.f32 %v8270, 0.0
  %v8287 = vadd.f32 %v8271, 0.0
  %v8288 = vadd.f32 %v8272, 0.0
  %v8289 = vadd.f32 %v8273, 0.0
  %v8290 = vadd.f32 %v8274, 0.0
  %v8291 = vadd.f32 %v8275, 0.0
  %v8292 = vadd.f32 %v8276, 0.0
  %v8293 = vadd.f32 %v8277, 0.0
  %v8294 = vadd.f32 %v8278, 0.0
  %v8295 = vadd.f32 %v8279, 0.0
  %v8296 = vadd.f32 %v8280, 0.0
  %v8297 = vadd.f32 %v8281, 0.0
  %v8298 = vadd.f32 %v8282, 0.0
  %v8299 = vadd.f32 %v8283, 0.0
  %v8300 = vadd.f32 %v8284, 0.0
  %v8301 = vadd.f32 %v8173, 0.0
  %v8302 = vadd.f32 %v8174, 0.0
  %v8303 = vadd.f32 %v8175, 0.0
  %v8304 = vadd.f32 %v8176, 0.0
  %v8305 = vadd.f32 %v8177, 0.0
  %v8306 = vadd.f32 %v8178, 0.0
  %v8307 = vadd.f32 %v8179, 0.0
  %v8308 = vadd.f32 %v8180, 0.0
  %v8309 = vadd.f32 %v8181, 0.0
  %v8310 = vadd.f32 %v8182, 0.0
  %v8311 = vadd.f32 %v8183, 0.0
  %v8312 = vadd.f32 %v8184, 0.0
  %v8313 = vadd.f32 %v8185, 0.0
  %v8314 = vadd.f32 %v8186, 0.0
  %v8315 = vadd.f32 %v8187, 0.0
  %v8316 = vadd.f32 %v8188, 0.0
  %v8317 = vsub.f32 0.0, %v7997
  %v8318 = vsub.f32 0.0, %v7998
  %v8319 = vsub.f32 0.0, %v7999
  %v8320 = vsub.f32 0.0, %v8000
  %v8321 = vsub.f32 0.0, %v8001
  %v8322 = vsub.f32 0.0, %v8002
  %v8323 = vsub.f32 0.0, %v8003
  %v8324 = vsub.f32 0.0, %v8004
  %v8325 = vsub.f32 0.0, %v8005
  %v8326 = vsub.f32 0.0, %v8006
  %v8327 = vsub.f32 0.0, %v8007
  %v8328 = vsub.f32 0.0, %v8008
  %v8329 = vsub.f32 0.0, %v8009
  %v8330 = vsub.f32 0.0, %v8010
  %v8331 = vsub.f32 0.0, %v8011
  %v8332 = vsub.f32 0.0, %v8012
  %v8333 = vand.u32 2147483647, %v8317
  %v8334 = vand.u32 2147483647, %v8318
  %v8335 = vand.u32 2147483647, %v8319
  %v8336 = vand.u32 2147483647, %v8320
  %v8337 = vand.u32 2147483647, %v8321
  %v8338 = vand.u32 2147483647, %v8322
  %v8339 = vand.u32 2147483647, %v8323
  %v8340 = vand.u32 2147483647, %v8324
  %v8341 = vand.u32 2147483647, %v8325
  %v8342 = vand.u32 2147483647, %v8326
  %v8343 = vand.u32 2147483647, %v8327
  %v8344 = vand.u32 2147483647, %v8328
  %v8345 = vand.u32 2147483647, %v8329
  %v8346 = vand.u32 2147483647, %v8330
  %v8347 = vand.u32 2147483647, %v8331
  %v8348 = vand.u32 2147483647, %v8332
  %8365 = vrot.lane.b32.xlu0 %v8333, 126
  %v8366 = vpop.permute.xlu0 %8365
  %8367 = vrot.lane.b32.xlu0 %v8334, 126
  %v8368 = vpop.permute.xlu0 %8367
  %8369 = vrot.lane.b32.xlu0 %v8335, 126
  %v8370 = vpop.permute.xlu0 %8369
  %8371 = vrot.lane.b32.xlu0 %v8336, 126
  %v8372 = vpop.permute.xlu0 %8371
  %8373 = vrot.lane.b32.xlu0 %v8337, 126
  %v8374 = vpop.permute.xlu0 %8373
  %8375 = vrot.lane.b32.xlu0 %v8338, 126
  %v8376 = vpop.permute.xlu0 %8375
  %8377 = vrot.lane.b32.xlu0 %v8339, 126
  %v8378 = vpop.permute.xlu0 %8377
  %8379 = vrot.lane.b32.xlu0 %v8340, 126
  %v8380 = vpop.permute.xlu0 %8379
  %8381 = vrot.lane.b32.xlu0 %v8341, 126
  %v8382 = vpop.permute.xlu0 %8381
  %8383 = vrot.lane.b32.xlu0 %v8342, 126
  %v8384 = vpop.permute.xlu0 %8383
  %8385 = vrot.lane.b32.xlu0 %v8343, 126
  %v8386 = vpop.permute.xlu0 %8385
  %8387 = vrot.lane.b32.xlu0 %v8344, 126
  %v8388 = vpop.permute.xlu0 %8387
  %8389 = vrot.lane.b32.xlu0 %v8345, 126
  %v8390 = vpop.permute.xlu0 %8389
  %8391 = vrot.lane.b32.xlu0 %v8346, 126
  %v8392 = vpop.permute.xlu0 %8391
  %8393 = vrot.lane.b32.xlu0 %v8347, 126
  %v8394 = vpop.permute.xlu0 %8393
  %8395 = vrot.lane.b32.xlu0 %v8348, 126
  %v8396 = vpop.permute.xlu0 %8395
  %v8413 = vmul.f32 %v8109, %v8366
  %v8414 = vmul.f32 %v8110, %v8368
  %v8415 = vmul.f32 %v8111, %v8370
  %v8416 = vmul.f32 %v8112, %v8372
  %v8417 = vmul.f32 %v8113, %v8374
  %v8418 = vmul.f32 %v8114, %v8376
  %v8419 = vmul.f32 %v8115, %v8378
  %v8420 = vmul.f32 %v8116, %v8380
  %v8421 = vmul.f32 %v8117, %v8382
  %v8422 = vmul.f32 %v8118, %v8384
  %v8423 = vmul.f32 %v8119, %v8386
  %v8424 = vmul.f32 %v8120, %v8388
  %v8425 = vmul.f32 %v8121, %v8390
  %v8426 = vmul.f32 %v8122, %v8392
  %v8427 = vmul.f32 %v8123, %v8394
  %v8428 = vmul.f32 %v8124, %v8396
  %8430 = vset.pattern.permute.xlu0 0
  %8431 = vperm.xlu0 %8430, %v8413
  %v8432 = vpop.permute.xlu0 %8431
  %8435 = vset.pattern.permute.xlu0 0
  %8436 = vperm.xlu0 %8435, %v8414
  %v8437 = vpop.permute.xlu0 %8436
  %8440 = vset.pattern.permute.xlu0 0
  %8441 = vperm.xlu0 %8440, %v8415
  %v8442 = vpop.permute.xlu0 %8441
  %8445 = vset.pattern.permute.xlu0 0
  %8446 = vperm.xlu0 %8445, %v8416
  %v8447 = vpop.permute.xlu0 %8446
  %8450 = vset.pattern.permute.xlu0 0
  %8451 = vperm.xlu0 %8450, %v8417
  %v8452 = vpop.permute.xlu0 %8451
  %8455 = vset.pattern.permute.xlu0 0
  %8456 = vperm.xlu0 %8455, %v8418
  %v8457 = vpop.permute.xlu0 %8456
  %8460 = vset.pattern.permute.xlu0 0
  %8461 = vperm.xlu0 %8460, %v8419
  %v8462 = vpop.permute.xlu0 %8461
  %8465 = vset.pattern.permute.xlu0 0
  %8466 = vperm.xlu0 %8465, %v8420
  %v8467 = vpop.permute.xlu0 %8466
  %8470 = vset.pattern.permute.xlu0 0
  %8471 = vperm.xlu0 %8470, %v8421
  %v8472 = vpop.permute.xlu0 %8471
  %8475 = vset.pattern.permute.xlu0 0
  %8476 = vperm.xlu0 %8475, %v8422
  %v8477 = vpop.permute.xlu0 %8476
  %8480 = vset.pattern.permute.xlu0 0
  %8481 = vperm.xlu0 %8480, %v8423
  %v8482 = vpop.permute.xlu0 %8481
  %8485 = vset.pattern.permute.xlu0 0
  %8486 = vperm.xlu0 %8485, %v8424
  %v8487 = vpop.permute.xlu0 %8486
  %8490 = vset.pattern.permute.xlu0 0
  %8491 = vperm.xlu0 %8490, %v8425
  %v8492 = vpop.permute.xlu0 %8491
  %8495 = vset.pattern.permute.xlu0 0
  %8496 = vperm.xlu0 %8495, %v8426
  %v8497 = vpop.permute.xlu0 %8496
  %8500 = vset.pattern.permute.xlu0 0
  %8501 = vperm.xlu0 %8500, %v8427
  %v8502 = vpop.permute.xlu0 %8501
  %8505 = vset.pattern.permute.xlu0 0
  %8506 = vperm.xlu0 %8505, %v8428
  %v8507 = vpop.permute.xlu0 %8506
  %v8509 = vmul.f32 %v8432, %v7885
  %v8510 = vmul.f32 %v8437, %v7886
  %v8511 = vmul.f32 %v8442, %v7887
  %v8512 = vmul.f32 %v8447, %v7888
  %v8513 = vmul.f32 %v8452, %v7889
  %v8514 = vmul.f32 %v8457, %v7890
  %v8515 = vmul.f32 %v8462, %v7891
  %v8516 = vmul.f32 %v8467, %v7892
  %v8517 = vmul.f32 %v8472, %v7893
  %v8518 = vmul.f32 %v8477, %v7894
  %v8519 = vmul.f32 %v8482, %v7895
  %v8520 = vmul.f32 %v8487, %v7896
  %v8521 = vmul.f32 %v8492, %v7897
  %v8522 = vmul.f32 %v8497, %v7898
  %v8523 = vmul.f32 %v8502, %v7899
  %v8524 = vmul.f32 %v8507, %v7900
  %v8525 = vadd.f32 %v8285, %v8509
  %v8526 = vadd.f32 %v8286, %v8510
  %v8527 = vadd.f32 %v8287, %v8511
  %v8528 = vadd.f32 %v8288, %v8512
  %v8529 = vadd.f32 %v8289, %v8513
  %v8530 = vadd.f32 %v8290, %v8514
  %v8531 = vadd.f32 %v8291, %v8515
  %v8532 = vadd.f32 %v8292, %v8516
  %v8533 = vadd.f32 %v8293, %v8517
  %v8534 = vadd.f32 %v8294, %v8518
  %v8535 = vadd.f32 %v8295, %v8519
  %v8536 = vadd.f32 %v8296, %v8520
  %v8537 = vadd.f32 %v8297, %v8521
  %v8538 = vadd.f32 %v8298, %v8522
  %v8539 = vadd.f32 %v8299, %v8523
  %v8540 = vadd.f32 %v8300, %v8524
  %v8541 = vadd.f32 %v8301, %v8413
  %v8542 = vadd.f32 %v8302, %v8414
  %v8543 = vadd.f32 %v8303, %v8415
  %v8544 = vadd.f32 %v8304, %v8416
  %v8545 = vadd.f32 %v8305, %v8417
  %v8546 = vadd.f32 %v8306, %v8418
  %v8547 = vadd.f32 %v8307, %v8419
  %v8548 = vadd.f32 %v8308, %v8420
  %v8549 = vadd.f32 %v8309, %v8421
  %v8550 = vadd.f32 %v8310, %v8422
  %v8551 = vadd.f32 %v8311, %v8423
  %v8552 = vadd.f32 %v8312, %v8424
  %v8553 = vadd.f32 %v8313, %v8425
  %v8554 = vadd.f32 %v8314, %v8426
  %v8555 = vadd.f32 %v8315, %v8427
  %v8556 = vadd.f32 %v8316, %v8428
  %8557 = vrot.lane.b32.xlu0 %v8333, 127
  %v8558 = vpop.permute.xlu0 %8557
  %8559 = vrot.lane.b32.xlu0 %v8334, 127
  %v8560 = vpop.permute.xlu0 %8559
  %8561 = vrot.lane.b32.xlu0 %v8335, 127
  %v8562 = vpop.permute.xlu0 %8561
  %8563 = vrot.lane.b32.xlu0 %v8336, 127
  %v8564 = vpop.permute.xlu0 %8563
  %8565 = vrot.lane.b32.xlu0 %v8337, 127
  %v8566 = vpop.permute.xlu0 %8565
  %8567 = vrot.lane.b32.xlu0 %v8338, 127
  %v8568 = vpop.permute.xlu0 %8567
  %8569 = vrot.lane.b32.xlu0 %v8339, 127
  %v8570 = vpop.permute.xlu0 %8569
  %8571 = vrot.lane.b32.xlu0 %v8340, 127
  %v8572 = vpop.permute.xlu0 %8571
  %8573 = vrot.lane.b32.xlu0 %v8341, 127
  %v8574 = vpop.permute.xlu0 %8573
  %8575 = vrot.lane.b32.xlu0 %v8342, 127
  %v8576 = vpop.permute.xlu0 %8575
  %8577 = vrot.lane.b32.xlu0 %v8343, 127
  %v8578 = vpop.permute.xlu0 %8577
  %8579 = vrot.lane.b32.xlu0 %v8344, 127
  %v8580 = vpop.permute.xlu0 %8579
  %8581 = vrot.lane.b32.xlu0 %v8345, 127
  %v8582 = vpop.permute.xlu0 %8581
  %8583 = vrot.lane.b32.xlu0 %v8346, 127
  %v8584 = vpop.permute.xlu0 %8583
  %8585 = vrot.lane.b32.xlu0 %v8347, 127
  %v8586 = vpop.permute.xlu0 %8585
  %8587 = vrot.lane.b32.xlu0 %v8348, 127
  %v8588 = vpop.permute.xlu0 %8587
  %v8605 = vmul.f32 %v8029, %v8558
  %v8606 = vmul.f32 %v8030, %v8560
  %v8607 = vmul.f32 %v8031, %v8562
  %v8608 = vmul.f32 %v8032, %v8564
  %v8609 = vmul.f32 %v8033, %v8566
  %v8610 = vmul.f32 %v8034, %v8568
  %v8611 = vmul.f32 %v8035, %v8570
  %v8612 = vmul.f32 %v8036, %v8572
  %v8613 = vmul.f32 %v8037, %v8574
  %v8614 = vmul.f32 %v8038, %v8576
  %v8615 = vmul.f32 %v8039, %v8578
  %v8616 = vmul.f32 %v8040, %v8580
  %v8617 = vmul.f32 %v8041, %v8582
  %v8618 = vmul.f32 %v8042, %v8584
  %v8619 = vmul.f32 %v8043, %v8586
  %v8620 = vmul.f32 %v8044, %v8588
  %v8621 = vmul.f32 %v8605, %v8126
  %v8622 = vmul.f32 %v8606, %v8128
  %v8623 = vmul.f32 %v8607, %v8130
  %v8624 = vmul.f32 %v8608, %v8132
  %v8625 = vmul.f32 %v8609, %v8134
  %v8626 = vmul.f32 %v8610, %v8136
  %v8627 = vmul.f32 %v8611, %v8138
  %v8628 = vmul.f32 %v8612, %v8140
  %v8629 = vmul.f32 %v8613, %v8142
  %v8630 = vmul.f32 %v8614, %v8144
  %v8631 = vmul.f32 %v8615, %v8146
  %v8632 = vmul.f32 %v8616, %v8148
  %v8633 = vmul.f32 %v8617, %v8150
  %v8634 = vmul.f32 %v8618, %v8152
  %v8635 = vmul.f32 %v8619, %v8154
  %v8636 = vmul.f32 %v8620, %v8156
  %8638 = vset.pattern.permute.xlu0 0
  %8639 = vperm.xlu0 %8638, %v8621
  %v8640 = vpop.permute.xlu0 %8639
  %8643 = vset.pattern.permute.xlu0 0
  %8644 = vperm.xlu0 %8643, %v8622
  %v8645 = vpop.permute.xlu0 %8644
  %8648 = vset.pattern.permute.xlu0 0
  %8649 = vperm.xlu0 %8648, %v8623
  %v8650 = vpop.permute.xlu0 %8649
  %8653 = vset.pattern.permute.xlu0 0
  %8654 = vperm.xlu0 %8653, %v8624
  %v8655 = vpop.permute.xlu0 %8654
  %8658 = vset.pattern.permute.xlu0 0
  %8659 = vperm.xlu0 %8658, %v8625
  %v8660 = vpop.permute.xlu0 %8659
  %8663 = vset.pattern.permute.xlu0 0
  %8664 = vperm.xlu0 %8663, %v8626
  %v8665 = vpop.permute.xlu0 %8664
  %8668 = vset.pattern.permute.xlu0 0
  %8669 = vperm.xlu0 %8668, %v8627
  %v8670 = vpop.permute.xlu0 %8669
  %8673 = vset.pattern.permute.xlu0 0
  %8674 = vperm.xlu0 %8673, %v8628
  %v8675 = vpop.permute.xlu0 %8674
  %8678 = vset.pattern.permute.xlu0 0
  %8679 = vperm.xlu0 %8678, %v8629
  %v8680 = vpop.permute.xlu0 %8679
  %8683 = vset.pattern.permute.xlu0 0
  %8684 = vperm.xlu0 %8683, %v8630
  %v8685 = vpop.permute.xlu0 %8684
  %8688 = vset.pattern.permute.xlu0 0
  %8689 = vperm.xlu0 %8688, %v8631
  %v8690 = vpop.permute.xlu0 %8689
  %8693 = vset.pattern.permute.xlu0 0
  %8694 = vperm.xlu0 %8693, %v8632
  %v8695 = vpop.permute.xlu0 %8694
  %8698 = vset.pattern.permute.xlu0 0
  %8699 = vperm.xlu0 %8698, %v8633
  %v8700 = vpop.permute.xlu0 %8699
  %8703 = vset.pattern.permute.xlu0 0
  %8704 = vperm.xlu0 %8703, %v8634
  %v8705 = vpop.permute.xlu0 %8704
  %8708 = vset.pattern.permute.xlu0 0
  %8709 = vperm.xlu0 %8708, %v8635
  %v8710 = vpop.permute.xlu0 %8709
  %8713 = vset.pattern.permute.xlu0 0
  %8714 = vperm.xlu0 %8713, %v8636
  %v8715 = vpop.permute.xlu0 %8714
  %v8717 = vmul.f32 %v8640, %v7901
  %v8718 = vmul.f32 %v8645, %v7902
  %v8719 = vmul.f32 %v8650, %v7903
  %v8720 = vmul.f32 %v8655, %v7904
  %v8721 = vmul.f32 %v8660, %v7905
  %v8722 = vmul.f32 %v8665, %v7906
  %v8723 = vmul.f32 %v8670, %v7907
  %v8724 = vmul.f32 %v8675, %v7908
  %v8725 = vmul.f32 %v8680, %v7909
  %v8726 = vmul.f32 %v8685, %v7910
  %v8727 = vmul.f32 %v8690, %v7911
  %v8728 = vmul.f32 %v8695, %v7912
  %v8729 = vmul.f32 %v8700, %v7913
  %v8730 = vmul.f32 %v8705, %v7914
  %v8731 = vmul.f32 %v8710, %v7915
  %v8732 = vmul.f32 %v8715, %v7916
  %v8733 = vadd.f32 %v8525, %v8717
  %v8734 = vadd.f32 %v8526, %v8718
  %v8735 = vadd.f32 %v8527, %v8719
  %v8736 = vadd.f32 %v8528, %v8720
  %v8737 = vadd.f32 %v8529, %v8721
  %v8738 = vadd.f32 %v8530, %v8722
  %v8739 = vadd.f32 %v8531, %v8723
  %v8740 = vadd.f32 %v8532, %v8724
  %v8741 = vadd.f32 %v8533, %v8725
  %v8742 = vadd.f32 %v8534, %v8726
  %v8743 = vadd.f32 %v8535, %v8727
  %v8744 = vadd.f32 %v8536, %v8728
  %v8745 = vadd.f32 %v8537, %v8729
  %v8746 = vadd.f32 %v8538, %v8730
  %v8747 = vadd.f32 %v8539, %v8731
  %v8748 = vadd.f32 %v8540, %v8732
  %v8749 = vadd.f32 %v8541, %v8621
  %v8750 = vadd.f32 %v8542, %v8622
  %v8751 = vadd.f32 %v8543, %v8623
  %v8752 = vadd.f32 %v8544, %v8624
  %v8753 = vadd.f32 %v8545, %v8625
  %v8754 = vadd.f32 %v8546, %v8626
  %v8755 = vadd.f32 %v8547, %v8627
  %v8756 = vadd.f32 %v8548, %v8628
  %v8757 = vadd.f32 %v8549, %v8629
  %v8758 = vadd.f32 %v8550, %v8630
  %v8759 = vadd.f32 %v8551, %v8631
  %v8760 = vadd.f32 %v8552, %v8632
  %v8761 = vadd.f32 %v8553, %v8633
  %v8762 = vadd.f32 %v8554, %v8634
  %v8763 = vadd.f32 %v8555, %v8635
  %v8764 = vadd.f32 %v8556, %v8636
  %v8765 = vmul.f32 %v8605, %v8366
  %v8766 = vmul.f32 %v8606, %v8368
  %v8767 = vmul.f32 %v8607, %v8370
  %v8768 = vmul.f32 %v8608, %v8372
  %v8769 = vmul.f32 %v8609, %v8374
  %v8770 = vmul.f32 %v8610, %v8376
  %v8771 = vmul.f32 %v8611, %v8378
  %v8772 = vmul.f32 %v8612, %v8380
  %v8773 = vmul.f32 %v8613, %v8382
  %v8774 = vmul.f32 %v8614, %v8384
  %v8775 = vmul.f32 %v8615, %v8386
  %v8776 = vmul.f32 %v8616, %v8388
  %v8777 = vmul.f32 %v8617, %v8390
  %v8778 = vmul.f32 %v8618, %v8392
  %v8779 = vmul.f32 %v8619, %v8394
  %v8780 = vmul.f32 %v8620, %v8396
  %8782 = vset.pattern.permute.xlu0 0
  %8783 = vperm.xlu0 %8782, %v8765
  %v8784 = vpop.permute.xlu0 %8783
  %8787 = vset.pattern.permute.xlu0 0
  %8788 = vperm.xlu0 %8787, %v8766
  %v8789 = vpop.permute.xlu0 %8788
  %8792 = vset.pattern.permute.xlu0 0
  %8793 = vperm.xlu0 %8792, %v8767
  %v8794 = vpop.permute.xlu0 %8793
  %8797 = vset.pattern.permute.xlu0 0
  %8798 = vperm.xlu0 %8797, %v8768
  %v8799 = vpop.permute.xlu0 %8798
  %8802 = vset.pattern.permute.xlu0 0
  %8803 = vperm.xlu0 %8802, %v8769
  %v8804 = vpop.permute.xlu0 %8803
  %8807 = vset.pattern.permute.xlu0 0
  %8808 = vperm.xlu0 %8807, %v8770
  %v8809 = vpop.permute.xlu0 %8808
  %8812 = vset.pattern.permute.xlu0 0
  %8813 = vperm.xlu0 %8812, %v8771
  %v8814 = vpop.permute.xlu0 %8813
  %8817 = vset.pattern.permute.xlu0 0
  %8818 = vperm.xlu0 %8817, %v8772
  %v8819 = vpop.permute.xlu0 %8818
  %8822 = vset.pattern.permute.xlu0 0
  %8823 = vperm.xlu0 %8822, %v8773
  %v8824 = vpop.permute.xlu0 %8823
  %8827 = vset.pattern.permute.xlu0 0
  %8828 = vperm.xlu0 %8827, %v8774
  %v8829 = vpop.permute.xlu0 %8828
  %8832 = vset.pattern.permute.xlu0 0
  %8833 = vperm.xlu0 %8832, %v8775
  %v8834 = vpop.permute.xlu0 %8833
  %8837 = vset.pattern.permute.xlu0 0
  %8838 = vperm.xlu0 %8837, %v8776
  %v8839 = vpop.permute.xlu0 %8838
  %8842 = vset.pattern.permute.xlu0 0
  %8843 = vperm.xlu0 %8842, %v8777
  %v8844 = vpop.permute.xlu0 %8843
  %8847 = vset.pattern.permute.xlu0 0
  %8848 = vperm.xlu0 %8847, %v8778
  %v8849 = vpop.permute.xlu0 %8848
  %8852 = vset.pattern.permute.xlu0 0
  %8853 = vperm.xlu0 %8852, %v8779
  %v8854 = vpop.permute.xlu0 %8853
  %8857 = vset.pattern.permute.xlu0 0
  %8858 = vperm.xlu0 %8857, %v8780
  %v8859 = vpop.permute.xlu0 %8858
  %v8861 = vmul.f32 %v8784, %v7917
  %v8862 = vmul.f32 %v8789, %v7918
  %v8863 = vmul.f32 %v8794, %v7919
  %v8864 = vmul.f32 %v8799, %v7920
  %v8865 = vmul.f32 %v8804, %v7921
  %v8866 = vmul.f32 %v8809, %v7922
  %v8867 = vmul.f32 %v8814, %v7923
  %v8868 = vmul.f32 %v8819, %v7924
  %v8869 = vmul.f32 %v8824, %v7925
  %v8870 = vmul.f32 %v8829, %v7926
  %v8871 = vmul.f32 %v8834, %v7927
  %v8872 = vmul.f32 %v8839, %v7928
  %v8873 = vmul.f32 %v8844, %v7929
  %v8874 = vmul.f32 %v8849, %v7930
  %v8875 = vmul.f32 %v8854, %v7931
  %v8876 = vmul.f32 %v8859, %v7932
  %v8877 = vadd.f32 %v8733, %v8861
  %v8878 = vadd.f32 %v8734, %v8862
  %v8879 = vadd.f32 %v8735, %v8863
  %v8880 = vadd.f32 %v8736, %v8864
  %v8881 = vadd.f32 %v8737, %v8865
  %v8882 = vadd.f32 %v8738, %v8866
  %v8883 = vadd.f32 %v8739, %v8867
  %v8884 = vadd.f32 %v8740, %v8868
  %v8885 = vadd.f32 %v8741, %v8869
  %v8886 = vadd.f32 %v8742, %v8870
  %v8887 = vadd.f32 %v8743, %v8871
  %v8888 = vadd.f32 %v8744, %v8872
  %v8889 = vadd.f32 %v8745, %v8873
  %v8890 = vadd.f32 %v8746, %v8874
  %v8891 = vadd.f32 %v8747, %v8875
  %v8892 = vadd.f32 %v8748, %v8876
  %v8893 = vadd.f32 %v8749, %v8765
  %v8894 = vadd.f32 %v8750, %v8766
  %v8895 = vadd.f32 %v8751, %v8767
  %v8896 = vadd.f32 %v8752, %v8768
  %v8897 = vadd.f32 %v8753, %v8769
  %v8898 = vadd.f32 %v8754, %v8770
  %v8899 = vadd.f32 %v8755, %v8771
  %v8900 = vadd.f32 %v8756, %v8772
  %v8901 = vadd.f32 %v8757, %v8773
  %v8902 = vadd.f32 %v8758, %v8774
  %v8903 = vadd.f32 %v8759, %v8775
  %v8904 = vadd.f32 %v8760, %v8776
  %v8905 = vadd.f32 %v8761, %v8777
  %v8906 = vadd.f32 %v8762, %v8778
  %v8907 = vadd.f32 %v8763, %v8779
  %v8908 = vadd.f32 %v8764, %v8780
  %v8909 = vmul.f32 %v8333, %v8062
  %v8910 = vmul.f32 %v8334, %v8064
  %v8911 = vmul.f32 %v8335, %v8066
  %v8912 = vmul.f32 %v8336, %v8068
  %v8913 = vmul.f32 %v8337, %v8070
  %v8914 = vmul.f32 %v8338, %v8072
  %v8915 = vmul.f32 %v8339, %v8074
  %v8916 = vmul.f32 %v8340, %v8076
  %v8917 = vmul.f32 %v8341, %v8078
  %v8918 = vmul.f32 %v8342, %v8080
  %v8919 = vmul.f32 %v8343, %v8082
  %v8920 = vmul.f32 %v8344, %v8084
  %v8921 = vmul.f32 %v8345, %v8086
  %v8922 = vmul.f32 %v8346, %v8088
  %v8923 = vmul.f32 %v8347, %v8090
  %v8924 = vmul.f32 %v8348, %v8092
  %v8925 = vmul.f32 %v8909, %v8126
  %v8926 = vmul.f32 %v8910, %v8128
  %v8927 = vmul.f32 %v8911, %v8130
  %v8928 = vmul.f32 %v8912, %v8132
  %v8929 = vmul.f32 %v8913, %v8134
  %v8930 = vmul.f32 %v8914, %v8136
  %v8931 = vmul.f32 %v8915, %v8138
  %v8932 = vmul.f32 %v8916, %v8140
  %v8933 = vmul.f32 %v8917, %v8142
  %v8934 = vmul.f32 %v8918, %v8144
  %v8935 = vmul.f32 %v8919, %v8146
  %v8936 = vmul.f32 %v8920, %v8148
  %v8937 = vmul.f32 %v8921, %v8150
  %v8938 = vmul.f32 %v8922, %v8152
  %v8939 = vmul.f32 %v8923, %v8154
  %v8940 = vmul.f32 %v8924, %v8156
  %8942 = vset.pattern.permute.xlu0 0
  %8943 = vperm.xlu0 %8942, %v8925
  %v8944 = vpop.permute.xlu0 %8943
  %8947 = vset.pattern.permute.xlu0 0
  %8948 = vperm.xlu0 %8947, %v8926
  %v8949 = vpop.permute.xlu0 %8948
  %8952 = vset.pattern.permute.xlu0 0
  %8953 = vperm.xlu0 %8952, %v8927
  %v8954 = vpop.permute.xlu0 %8953
  %8957 = vset.pattern.permute.xlu0 0
  %8958 = vperm.xlu0 %8957, %v8928
  %v8959 = vpop.permute.xlu0 %8958
  %8962 = vset.pattern.permute.xlu0 0
  %8963 = vperm.xlu0 %8962, %v8929
  %v8964 = vpop.permute.xlu0 %8963
  %8967 = vset.pattern.permute.xlu0 0
  %8968 = vperm.xlu0 %8967, %v8930
  %v8969 = vpop.permute.xlu0 %8968
  %8972 = vset.pattern.permute.xlu0 0
  %8973 = vperm.xlu0 %8972, %v8931
  %v8974 = vpop.permute.xlu0 %8973
  %8977 = vset.pattern.permute.xlu0 0
  %8978 = vperm.xlu0 %8977, %v8932
  %v8979 = vpop.permute.xlu0 %8978
  %8982 = vset.pattern.permute.xlu0 0
  %8983 = vperm.xlu0 %8982, %v8933
  %v8984 = vpop.permute.xlu0 %8983
  %8987 = vset.pattern.permute.xlu0 0
  %8988 = vperm.xlu0 %8987, %v8934
  %v8989 = vpop.permute.xlu0 %8988
  %8992 = vset.pattern.permute.xlu0 0
  %8993 = vperm.xlu0 %8992, %v8935
  %v8994 = vpop.permute.xlu0 %8993
  %8997 = vset.pattern.permute.xlu0 0
  %8998 = vperm.xlu0 %8997, %v8936
  %v8999 = vpop.permute.xlu0 %8998
  %9002 = vset.pattern.permute.xlu0 0
  %9003 = vperm.xlu0 %9002, %v8937
  %v9004 = vpop.permute.xlu0 %9003
  %9007 = vset.pattern.permute.xlu0 0
  %9008 = vperm.xlu0 %9007, %v8938
  %v9009 = vpop.permute.xlu0 %9008
  %9012 = vset.pattern.permute.xlu0 0
  %9013 = vperm.xlu0 %9012, %v8939
  %v9014 = vpop.permute.xlu0 %9013
  %9017 = vset.pattern.permute.xlu0 0
  %9018 = vperm.xlu0 %9017, %v8940
  %v9019 = vpop.permute.xlu0 %9018
  %v9021 = vmul.f32 %v8944, %v7933
  %v9022 = vmul.f32 %v8949, %v7934
  %v9023 = vmul.f32 %v8954, %v7935
  %v9024 = vmul.f32 %v8959, %v7936
  %v9025 = vmul.f32 %v8964, %v7937
  %v9026 = vmul.f32 %v8969, %v7938
  %v9027 = vmul.f32 %v8974, %v7939
  %v9028 = vmul.f32 %v8979, %v7940
  %v9029 = vmul.f32 %v8984, %v7941
  %v9030 = vmul.f32 %v8989, %v7942
  %v9031 = vmul.f32 %v8994, %v7943
  %v9032 = vmul.f32 %v8999, %v7944
  %v9033 = vmul.f32 %v9004, %v7945
  %v9034 = vmul.f32 %v9009, %v7946
  %v9035 = vmul.f32 %v9014, %v7947
  %v9036 = vmul.f32 %v9019, %v7948
  %v9037 = vadd.f32 %v8877, %v9021
  %v9038 = vadd.f32 %v8878, %v9022
  %v9039 = vadd.f32 %v8879, %v9023
  %v9040 = vadd.f32 %v8880, %v9024
  %v9041 = vadd.f32 %v8881, %v9025
  %v9042 = vadd.f32 %v8882, %v9026
  %v9043 = vadd.f32 %v8883, %v9027
  %v9044 = vadd.f32 %v8884, %v9028
  %v9045 = vadd.f32 %v8885, %v9029
  %v9046 = vadd.f32 %v8886, %v9030
  %v9047 = vadd.f32 %v8887, %v9031
  %v9048 = vadd.f32 %v8888, %v9032
  %v9049 = vadd.f32 %v8889, %v9033
  %v9050 = vadd.f32 %v8890, %v9034
  %v9051 = vadd.f32 %v8891, %v9035
  %v9052 = vadd.f32 %v8892, %v9036
  %v9053 = vadd.f32 %v8893, %v8925
  %v9054 = vadd.f32 %v8894, %v8926
  %v9055 = vadd.f32 %v8895, %v8927
  %v9056 = vadd.f32 %v8896, %v8928
  %v9057 = vadd.f32 %v8897, %v8929
  %v9058 = vadd.f32 %v8898, %v8930
  %v9059 = vadd.f32 %v8899, %v8931
  %v9060 = vadd.f32 %v8900, %v8932
  %v9061 = vadd.f32 %v8901, %v8933
  %v9062 = vadd.f32 %v8902, %v8934
  %v9063 = vadd.f32 %v8903, %v8935
  %v9064 = vadd.f32 %v8904, %v8936
  %v9065 = vadd.f32 %v8905, %v8937
  %v9066 = vadd.f32 %v8906, %v8938
  %v9067 = vadd.f32 %v8907, %v8939
  %v9068 = vadd.f32 %v8908, %v8940
  %v9069 = vmul.f32 %v8909, %v8366
  %v9070 = vmul.f32 %v8910, %v8368
  %v9071 = vmul.f32 %v8911, %v8370
  %v9072 = vmul.f32 %v8912, %v8372
  %v9073 = vmul.f32 %v8913, %v8374
  %v9074 = vmul.f32 %v8914, %v8376
  %v9075 = vmul.f32 %v8915, %v8378
  %v9076 = vmul.f32 %v8916, %v8380
  %v9077 = vmul.f32 %v8917, %v8382
  %v9078 = vmul.f32 %v8918, %v8384
  %v9079 = vmul.f32 %v8919, %v8386
  %v9080 = vmul.f32 %v8920, %v8388
  %v9081 = vmul.f32 %v8921, %v8390
  %v9082 = vmul.f32 %v8922, %v8392
  %v9083 = vmul.f32 %v8923, %v8394
  %v9084 = vmul.f32 %v8924, %v8396
  %9086 = vset.pattern.permute.xlu0 0
  %9087 = vperm.xlu0 %9086, %v9069
  %v9088 = vpop.permute.xlu0 %9087
  %9091 = vset.pattern.permute.xlu0 0
  %9092 = vperm.xlu0 %9091, %v9070
  %v9093 = vpop.permute.xlu0 %9092
  %9096 = vset.pattern.permute.xlu0 0
  %9097 = vperm.xlu0 %9096, %v9071
  %v9098 = vpop.permute.xlu0 %9097
  %9101 = vset.pattern.permute.xlu0 0
  %9102 = vperm.xlu0 %9101, %v9072
  %v9103 = vpop.permute.xlu0 %9102
  %9106 = vset.pattern.permute.xlu0 0
  %9107 = vperm.xlu0 %9106, %v9073
  %v9108 = vpop.permute.xlu0 %9107
  %9111 = vset.pattern.permute.xlu0 0
  %9112 = vperm.xlu0 %9111, %v9074
  %v9113 = vpop.permute.xlu0 %9112
  %9116 = vset.pattern.permute.xlu0 0
  %9117 = vperm.xlu0 %9116, %v9075
  %v9118 = vpop.permute.xlu0 %9117
  %9121 = vset.pattern.permute.xlu0 0
  %9122 = vperm.xlu0 %9121, %v9076
  %v9123 = vpop.permute.xlu0 %9122
  %9126 = vset.pattern.permute.xlu0 0
  %9127 = vperm.xlu0 %9126, %v9077
  %v9128 = vpop.permute.xlu0 %9127
  %9131 = vset.pattern.permute.xlu0 0
  %9132 = vperm.xlu0 %9131, %v9078
  %v9133 = vpop.permute.xlu0 %9132
  %9136 = vset.pattern.permute.xlu0 0
  %9137 = vperm.xlu0 %9136, %v9079
  %v9138 = vpop.permute.xlu0 %9137
  %9141 = vset.pattern.permute.xlu0 0
  %9142 = vperm.xlu0 %9141, %v9080
  %v9143 = vpop.permute.xlu0 %9142
  %9146 = vset.pattern.permute.xlu0 0
  %9147 = vperm.xlu0 %9146, %v9081
  %v9148 = vpop.permute.xlu0 %9147
  %9151 = vset.pattern.permute.xlu0 0
  %9152 = vperm.xlu0 %9151, %v9082
  %v9153 = vpop.permute.xlu0 %9152
  %9156 = vset.pattern.permute.xlu0 0
  %9157 = vperm.xlu0 %9156, %v9083
  %v9158 = vpop.permute.xlu0 %9157
  %9161 = vset.pattern.permute.xlu0 0
  %9162 = vperm.xlu0 %9161, %v9084
  %v9163 = vpop.permute.xlu0 %9162
  %v9165 = vmul.f32 %v9088, %v7949
  %v9166 = vmul.f32 %v9093, %v7950
  %v9167 = vmul.f32 %v9098, %v7951
  %v9168 = vmul.f32 %v9103, %v7952
  %v9169 = vmul.f32 %v9108, %v7953
  %v9170 = vmul.f32 %v9113, %v7954
  %v9171 = vmul.f32 %v9118, %v7955
  %v9172 = vmul.f32 %v9123, %v7956
  %v9173 = vmul.f32 %v9128, %v7957
  %v9174 = vmul.f32 %v9133, %v7958
  %v9175 = vmul.f32 %v9138, %v7959
  %v9176 = vmul.f32 %v9143, %v7960
  %v9177 = vmul.f32 %v9148, %v7961
  %v9178 = vmul.f32 %v9153, %v7962
  %v9179 = vmul.f32 %v9158, %v7963
  %v9180 = vmul.f32 %v9163, %v7964
  %v9181 = vadd.f32 %v9037, %v9165
  %v9182 = vadd.f32 %v9038, %v9166
  %v9183 = vadd.f32 %v9039, %v9167
  %v9184 = vadd.f32 %v9040, %v9168
  %v9185 = vadd.f32 %v9041, %v9169
  %v9186 = vadd.f32 %v9042, %v9170
  %v9187 = vadd.f32 %v9043, %v9171
  %v9188 = vadd.f32 %v9044, %v9172
  %v9189 = vadd.f32 %v9045, %v9173
  %v9190 = vadd.f32 %v9046, %v9174
  %v9191 = vadd.f32 %v9047, %v9175
  %v9192 = vadd.f32 %v9048, %v9176
  %v9193 = vadd.f32 %v9049, %v9177
  %v9194 = vadd.f32 %v9050, %v9178
  %v9195 = vadd.f32 %v9051, %v9179
  %v9196 = vadd.f32 %v9052, %v9180
  %v9197 = vadd.f32 %v9053, %v9069
  %v9198 = vadd.f32 %v9054, %v9070
  %v9199 = vadd.f32 %v9055, %v9071
  %v9200 = vadd.f32 %v9056, %v9072
  %v9201 = vadd.f32 %v9057, %v9073
  %v9202 = vadd.f32 %v9058, %v9074
  %v9203 = vadd.f32 %v9059, %v9075
  %v9204 = vadd.f32 %v9060, %v9076
  %v9205 = vadd.f32 %v9061, %v9077
  %v9206 = vadd.f32 %v9062, %v9078
  %v9207 = vadd.f32 %v9063, %v9079
  %v9208 = vadd.f32 %v9064, %v9080
  %v9209 = vadd.f32 %v9065, %v9081
  %v9210 = vadd.f32 %v9066, %v9082
  %v9211 = vadd.f32 %v9067, %v9083
  %v9212 = vadd.f32 %v9068, %v9084
  %v9213 = vmul.f32 %v8333, %v8558
  %v9214 = vmul.f32 %v8334, %v8560
  %v9215 = vmul.f32 %v8335, %v8562
  %v9216 = vmul.f32 %v8336, %v8564
  %v9217 = vmul.f32 %v8337, %v8566
  %v9218 = vmul.f32 %v8338, %v8568
  %v9219 = vmul.f32 %v8339, %v8570
  %v9220 = vmul.f32 %v8340, %v8572
  %v9221 = vmul.f32 %v8341, %v8574
  %v9222 = vmul.f32 %v8342, %v8576
  %v9223 = vmul.f32 %v8343, %v8578
  %v9224 = vmul.f32 %v8344, %v8580
  %v9225 = vmul.f32 %v8345, %v8582
  %v9226 = vmul.f32 %v8346, %v8584
  %v9227 = vmul.f32 %v8347, %v8586
  %v9228 = vmul.f32 %v8348, %v8588
  %v9229 = vmul.f32 %v9213, %v8126
  %v9230 = vmul.f32 %v9214, %v8128
  %v9231 = vmul.f32 %v9215, %v8130
  %v9232 = vmul.f32 %v9216, %v8132
  %v9233 = vmul.f32 %v9217, %v8134
  %v9234 = vmul.f32 %v9218, %v8136
  %v9235 = vmul.f32 %v9219, %v8138
  %v9236 = vmul.f32 %v9220, %v8140
  %v9237 = vmul.f32 %v9221, %v8142
  %v9238 = vmul.f32 %v9222, %v8144
  %v9239 = vmul.f32 %v9223, %v8146
  %v9240 = vmul.f32 %v9224, %v8148
  %v9241 = vmul.f32 %v9225, %v8150
  %v9242 = vmul.f32 %v9226, %v8152
  %v9243 = vmul.f32 %v9227, %v8154
  %v9244 = vmul.f32 %v9228, %v8156
  %9246 = vset.pattern.permute.xlu0 0
  %9247 = vperm.xlu0 %9246, %v9229
  %v9248 = vpop.permute.xlu0 %9247
  %9251 = vset.pattern.permute.xlu0 0
  %9252 = vperm.xlu0 %9251, %v9230
  %v9253 = vpop.permute.xlu0 %9252
  %9256 = vset.pattern.permute.xlu0 0
  %9257 = vperm.xlu0 %9256, %v9231
  %v9258 = vpop.permute.xlu0 %9257
  %9261 = vset.pattern.permute.xlu0 0
  %9262 = vperm.xlu0 %9261, %v9232
  %v9263 = vpop.permute.xlu0 %9262
  %9266 = vset.pattern.permute.xlu0 0
  %9267 = vperm.xlu0 %9266, %v9233
  %v9268 = vpop.permute.xlu0 %9267
  %9271 = vset.pattern.permute.xlu0 0
  %9272 = vperm.xlu0 %9271, %v9234
  %v9273 = vpop.permute.xlu0 %9272
  %9276 = vset.pattern.permute.xlu0 0
  %9277 = vperm.xlu0 %9276, %v9235
  %v9278 = vpop.permute.xlu0 %9277
  %9281 = vset.pattern.permute.xlu0 0
  %9282 = vperm.xlu0 %9281, %v9236
  %v9283 = vpop.permute.xlu0 %9282
  %9286 = vset.pattern.permute.xlu0 0
  %9287 = vperm.xlu0 %9286, %v9237
  %v9288 = vpop.permute.xlu0 %9287
  %9291 = vset.pattern.permute.xlu0 0
  %9292 = vperm.xlu0 %9291, %v9238
  %v9293 = vpop.permute.xlu0 %9292
  %9296 = vset.pattern.permute.xlu0 0
  %9297 = vperm.xlu0 %9296, %v9239
  %v9298 = vpop.permute.xlu0 %9297
  %9301 = vset.pattern.permute.xlu0 0
  %9302 = vperm.xlu0 %9301, %v9240
  %v9303 = vpop.permute.xlu0 %9302
  %9306 = vset.pattern.permute.xlu0 0
  %9307 = vperm.xlu0 %9306, %v9241
  %v9308 = vpop.permute.xlu0 %9307
  %9311 = vset.pattern.permute.xlu0 0
  %9312 = vperm.xlu0 %9311, %v9242
  %v9313 = vpop.permute.xlu0 %9312
  %9316 = vset.pattern.permute.xlu0 0
  %9317 = vperm.xlu0 %9316, %v9243
  %v9318 = vpop.permute.xlu0 %9317
  %9321 = vset.pattern.permute.xlu0 0
  %9322 = vperm.xlu0 %9321, %v9244
  %v9323 = vpop.permute.xlu0 %9322
  %v9325 = vmul.f32 %v9248, %v7965
  %v9326 = vmul.f32 %v9253, %v7966
  %v9327 = vmul.f32 %v9258, %v7967
  %v9328 = vmul.f32 %v9263, %v7968
  %v9329 = vmul.f32 %v9268, %v7969
  %v9330 = vmul.f32 %v9273, %v7970
  %v9331 = vmul.f32 %v9278, %v7971
  %v9332 = vmul.f32 %v9283, %v7972
  %v9333 = vmul.f32 %v9288, %v7973
  %v9334 = vmul.f32 %v9293, %v7974
  %v9335 = vmul.f32 %v9298, %v7975
  %v9336 = vmul.f32 %v9303, %v7976
  %v9337 = vmul.f32 %v9308, %v7977
  %v9338 = vmul.f32 %v9313, %v7978
  %v9339 = vmul.f32 %v9318, %v7979
  %v9340 = vmul.f32 %v9323, %v7980
  %v9341 = vadd.f32 %v9181, %v9325
  %v9342 = vadd.f32 %v9182, %v9326
  %v9343 = vadd.f32 %v9183, %v9327
  %v9344 = vadd.f32 %v9184, %v9328
  %v9345 = vadd.f32 %v9185, %v9329
  %v9346 = vadd.f32 %v9186, %v9330
  %v9347 = vadd.f32 %v9187, %v9331
  %v9348 = vadd.f32 %v9188, %v9332
  %v9349 = vadd.f32 %v9189, %v9333
  %v9350 = vadd.f32 %v9190, %v9334
  %v9351 = vadd.f32 %v9191, %v9335
  %v9352 = vadd.f32 %v9192, %v9336
  %v9353 = vadd.f32 %v9193, %v9337
  %v9354 = vadd.f32 %v9194, %v9338
  %v9355 = vadd.f32 %v9195, %v9339
  %v9356 = vadd.f32 %v9196, %v9340
  %v9357 = vadd.f32 %v9197, %v9229
  %v9358 = vadd.f32 %v9198, %v9230
  %v9359 = vadd.f32 %v9199, %v9231
  %v9360 = vadd.f32 %v9200, %v9232
  %v9361 = vadd.f32 %v9201, %v9233
  %v9362 = vadd.f32 %v9202, %v9234
  %v9363 = vadd.f32 %v9203, %v9235
  %v9364 = vadd.f32 %v9204, %v9236
  %v9365 = vadd.f32 %v9205, %v9237
  %v9366 = vadd.f32 %v9206, %v9238
  %v9367 = vadd.f32 %v9207, %v9239
  %v9368 = vadd.f32 %v9208, %v9240
  %v9369 = vadd.f32 %v9209, %v9241
  %v9370 = vadd.f32 %v9210, %v9242
  %v9371 = vadd.f32 %v9211, %v9243
  %v9372 = vadd.f32 %v9212, %v9244
  %v9373 = vmul.f32 %v9213, %v8366
  %v9374 = vmul.f32 %v9214, %v8368
  %v9375 = vmul.f32 %v9215, %v8370
  %v9376 = vmul.f32 %v9216, %v8372
  %v9377 = vmul.f32 %v9217, %v8374
  %v9378 = vmul.f32 %v9218, %v8376
  %v9379 = vmul.f32 %v9219, %v8378
  %v9380 = vmul.f32 %v9220, %v8380
  %v9381 = vmul.f32 %v9221, %v8382
  %v9382 = vmul.f32 %v9222, %v8384
  %v9383 = vmul.f32 %v9223, %v8386
  %v9384 = vmul.f32 %v9224, %v8388
  %v9385 = vmul.f32 %v9225, %v8390
  %v9386 = vmul.f32 %v9226, %v8392
  %v9387 = vmul.f32 %v9227, %v8394
  %v9388 = vmul.f32 %v9228, %v8396
  %9390 = vset.pattern.permute.xlu0 0
  %9391 = vperm.xlu0 %9390, %v9373
  %v9392 = vpop.permute.xlu0 %9391
  %9395 = vset.pattern.permute.xlu0 0
  %9396 = vperm.xlu0 %9395, %v9374
  %v9397 = vpop.permute.xlu0 %9396
  %9400 = vset.pattern.permute.xlu0 0
  %9401 = vperm.xlu0 %9400, %v9375
  %v9402 = vpop.permute.xlu0 %9401
  %9405 = vset.pattern.permute.xlu0 0
  %9406 = vperm.xlu0 %9405, %v9376
  %v9407 = vpop.permute.xlu0 %9406
  %9410 = vset.pattern.permute.xlu0 0
  %9411 = vperm.xlu0 %9410, %v9377
  %v9412 = vpop.permute.xlu0 %9411
  %9415 = vset.pattern.permute.xlu0 0
  %9416 = vperm.xlu0 %9415, %v9378
  %v9417 = vpop.permute.xlu0 %9416
  %9420 = vset.pattern.permute.xlu0 0
  %9421 = vperm.xlu0 %9420, %v9379
  %v9422 = vpop.permute.xlu0 %9421
  %9425 = vset.pattern.permute.xlu0 0
  %9426 = vperm.xlu0 %9425, %v9380
  %v9427 = vpop.permute.xlu0 %9426
  %9430 = vset.pattern.permute.xlu0 0
  %9431 = vperm.xlu0 %9430, %v9381
  %v9432 = vpop.permute.xlu0 %9431
  %9435 = vset.pattern.permute.xlu0 0
  %9436 = vperm.xlu0 %9435, %v9382
  %v9437 = vpop.permute.xlu0 %9436
  %9440 = vset.pattern.permute.xlu0 0
  %9441 = vperm.xlu0 %9440, %v9383
  %v9442 = vpop.permute.xlu0 %9441
  %9445 = vset.pattern.permute.xlu0 0
  %9446 = vperm.xlu0 %9445, %v9384
  %v9447 = vpop.permute.xlu0 %9446
  %9450 = vset.pattern.permute.xlu0 0
  %9451 = vperm.xlu0 %9450, %v9385
  %v9452 = vpop.permute.xlu0 %9451
  %9455 = vset.pattern.permute.xlu0 0
  %9456 = vperm.xlu0 %9455, %v9386
  %v9457 = vpop.permute.xlu0 %9456
  %9460 = vset.pattern.permute.xlu0 0
  %9461 = vperm.xlu0 %9460, %v9387
  %v9462 = vpop.permute.xlu0 %9461
  %9465 = vset.pattern.permute.xlu0 0
  %9466 = vperm.xlu0 %9465, %v9388
  %v9467 = vpop.permute.xlu0 %9466
  %v9469 = vmul.f32 %v9392, %v7981
  %v9470 = vmul.f32 %v9397, %v7982
  %v9471 = vmul.f32 %v9402, %v7983
  %v9472 = vmul.f32 %v9407, %v7984
  %v9473 = vmul.f32 %v9412, %v7985
  %v9474 = vmul.f32 %v9417, %v7986
  %v9475 = vmul.f32 %v9422, %v7987
  %v9476 = vmul.f32 %v9427, %v7988
  %v9477 = vmul.f32 %v9432, %v7989
  %v9478 = vmul.f32 %v9437, %v7990
  %v9479 = vmul.f32 %v9442, %v7991
  %v9480 = vmul.f32 %v9447, %v7992
  %v9481 = vmul.f32 %v9452, %v7993
  %v9482 = vmul.f32 %v9457, %v7994
  %v9483 = vmul.f32 %v9462, %v7995
  %v9484 = vmul.f32 %v9467, %v7996
  %v9485 = vadd.f32 %v9341, %v9469
  %v9486 = vadd.f32 %v9342, %v9470
  %v9487 = vadd.f32 %v9343, %v9471
  %v9488 = vadd.f32 %v9344, %v9472
  %v9489 = vadd.f32 %v9345, %v9473
  %v9490 = vadd.f32 %v9346, %v9474
  %v9491 = vadd.f32 %v9347, %v9475
  %v9492 = vadd.f32 %v9348, %v9476
  %v9493 = vadd.f32 %v9349, %v9477
  %v9494 = vadd.f32 %v9350, %v9478
  %v9495 = vadd.f32 %v9351, %v9479
  %v9496 = vadd.f32 %v9352, %v9480
  %v9497 = vadd.f32 %v9353, %v9481
  %v9498 = vadd.f32 %v9354, %v9482
  %v9499 = vadd.f32 %v9355, %v9483
  %v9500 = vadd.f32 %v9356, %v9484
  %v9501 = vadd.f32 %v9357, %v9373
  %v9502 = vadd.f32 %v9358, %v9374
  %v9503 = vadd.f32 %v9359, %v9375
  %v9504 = vadd.f32 %v9360, %v9376
  %v9505 = vadd.f32 %v9361, %v9377
  %v9506 = vadd.f32 %v9362, %v9378
  %v9507 = vadd.f32 %v9363, %v9379
  %v9508 = vadd.f32 %v9364, %v9380
  %v9509 = vadd.f32 %v9365, %v9381
  %v9510 = vadd.f32 %v9366, %v9382
  %v9511 = vadd.f32 %v9367, %v9383
  %v9512 = vadd.f32 %v9368, %v9384
  %v9513 = vadd.f32 %v9369, %v9385
  %v9514 = vadd.f32 %v9370, %v9386
  %v9515 = vadd.f32 %v9371, %v9387
  %v9516 = vadd.f32 %v9372, %v9388
  %v9517 = vpack.c.bf16 %v9486, %v9485
  %v9518 = vpack.c.bf16 %v9488, %v9487
  %v9519 = vpack.c.bf16 %v9490, %v9489
  %v9520 = vpack.c.bf16 %v9492, %v9491
  %v9521 = vpack.c.bf16 %v9494, %v9493
  %v9522 = vpack.c.bf16 %v9496, %v9495
  %v9523 = vpack.c.bf16 %v9498, %v9497
  %v9524 = vpack.c.bf16 %v9500, %v9499
  %v9525 = vld [vmem:[%s11] sm:$0xf]
  %v9526 = vld [vmem:[%s11 + $0x4] sm:$0xf]
  %v9527 = vld [vmem:[%s11 + $0x8] sm:$0xf]
  %v9528 = vld [vmem:[%s11 + $0xc] sm:$0xf]
  %v9529 = vld [vmem:[%s12] sm:$0x1]
  %9531 = vset.pattern.permute.xlu0 0
  %9532 = vperm.xlu0 %9531, %v9501
  %v9533 = vpop.permute.xlu0 %9532
  %9536 = vset.pattern.permute.xlu0 0
  %9537 = vperm.xlu0 %9536, %v9502
  %v9538 = vpop.permute.xlu0 %9537
  %9541 = vset.pattern.permute.xlu0 0
  %9542 = vperm.xlu0 %9541, %v9503
  %v9543 = vpop.permute.xlu0 %9542
  %9546 = vset.pattern.permute.xlu0 0
  %9547 = vperm.xlu0 %9546, %v9504
  %v9548 = vpop.permute.xlu0 %9547
  %9551 = vset.pattern.permute.xlu0 0
  %9552 = vperm.xlu0 %9551, %v9505
  %v9553 = vpop.permute.xlu0 %9552
  %9556 = vset.pattern.permute.xlu0 0
  %9557 = vperm.xlu0 %9556, %v9506
  %v9558 = vpop.permute.xlu0 %9557
  %9561 = vset.pattern.permute.xlu0 0
  %9562 = vperm.xlu0 %9561, %v9507
  %v9563 = vpop.permute.xlu0 %9562
  %9566 = vset.pattern.permute.xlu0 0
  %9567 = vperm.xlu0 %9566, %v9508
  %v9568 = vpop.permute.xlu0 %9567
  %9571 = vset.pattern.permute.xlu0 0
  %9572 = vperm.xlu0 %9571, %v9509
  %v9573 = vpop.permute.xlu0 %9572
  %9576 = vset.pattern.permute.xlu0 0
  %9577 = vperm.xlu0 %9576, %v9510
  %v9578 = vpop.permute.xlu0 %9577
  %9581 = vset.pattern.permute.xlu0 0
  %9582 = vperm.xlu0 %9581, %v9511
  %v9583 = vpop.permute.xlu0 %9582
  %9586 = vset.pattern.permute.xlu0 0
  %9587 = vperm.xlu0 %9586, %v9512
  %v9588 = vpop.permute.xlu0 %9587
  %9591 = vset.pattern.permute.xlu0 0
  %9592 = vperm.xlu0 %9591, %v9513
  %v9593 = vpop.permute.xlu0 %9592
  %9596 = vset.pattern.permute.xlu0 0
  %9597 = vperm.xlu0 %9596, %v9514
  %v9598 = vpop.permute.xlu0 %9597
  %9601 = vset.pattern.permute.xlu0 0
  %9602 = vperm.xlu0 %9601, %v9515
  %v9603 = vpop.permute.xlu0 %9602
  %9606 = vset.pattern.permute.xlu0 0
  %9607 = vperm.xlu0 %9606, %v9516
  %v9608 = vpop.permute.xlu0 %9607
  %v9611 = vperm.slane %v9529, 0
  %v9613 = vmul.f32 %v9533, %v9611
  %v9614 = vmul.f32 %v9538, %v9611
  %v9615 = vmul.f32 %v9543, %v9611
  %v9616 = vmul.f32 %v9548, %v9611
  %v9617 = vmul.f32 %v9553, %v9611
  %v9618 = vmul.f32 %v9558, %v9611
  %v9619 = vmul.f32 %v9563, %v9611
  %v9620 = vmul.f32 %v9568, %v9611
  %v9621 = vmul.f32 %v9573, %v9611
  %v9622 = vmul.f32 %v9578, %v9611
  %v9623 = vmul.f32 %v9583, %v9611
  %v9624 = vmul.f32 %v9588, %v9611
  %v9625 = vmul.f32 %v9593, %v9611
  %v9626 = vmul.f32 %v9598, %v9611
  %v9627 = vmul.f32 %v9603, %v9611
  %v9628 = vmul.f32 %v9608, %v9611
  %v9633 = vunpack.c.l.b16 %v9525
  %v9634 = vunpack.c.l.b16 %v9526
  %v9635 = vunpack.c.l.b16 %v9527
  %v9636 = vunpack.c.l.b16 %v9528
  %v9637 = vpack.c.b16 %v9634, %v9633
  %v9638 = vpack.c.b16 %v9636, %v9635
  %v9642 = vsel %vm4915, %v9517, 0
  %v9645 = vsel %vm4915, %v9518, 0
  %v9648 = vsel %vm4915, %v9519, 0
  %v9651 = vsel %vm4915, %v9520, 0
  %v9654 = vsel %vm4915, %v9521, 0
  %v9657 = vsel %vm4915, %v9522, 0
  %v9660 = vsel %vm4915, %v9523, 0
  %v9663 = vsel %vm4915, %v9524, 0
  %9665 = vmatpush.bf16.msra.mxu0 0
  %9666 = vmatpush.bf16.msra.mxu0 0
  %9667 = vmatpush.bf16.msra.mxu0 0
  %9668 = vmatpush.bf16.msra.mxu0 0
  %9669 = vmatpush.bf16.msra.mxu0 0
  %9670 = vmatpush.bf16.msra.mxu0 0
  %9671 = vmatpush.bf16.msra.mxu0 %v9638
  %9672 = vmatpush.bf16.msra.mxu0 %v9637
  %9673 = vmatmul.bf16.gmra.mxu0 %v9642
  %v9674 = vpop.f32.mrf.mxu0
  %v9675 = vadd.f32 %v9613, %v9674
  %v9676 = vpop.f32.mrf.mxu0
  %v9677 = vadd.f32 %v9614, %v9676
  %9678 = vmatmul.bf16.gmra.mxu0 %v9645
  %v9679 = vpop.f32.mrf.mxu0
  %v9680 = vadd.f32 %v9615, %v9679
  %v9681 = vpop.f32.mrf.mxu0
  %v9682 = vadd.f32 %v9616, %v9681
  %9683 = vmatmul.bf16.gmra.mxu0 %v9648
  %v9684 = vpop.f32.mrf.mxu0
  %v9685 = vadd.f32 %v9617, %v9684
  %v9686 = vpop.f32.mrf.mxu0
  %v9687 = vadd.f32 %v9618, %v9686
  %9688 = vmatmul.bf16.gmra.mxu0 %v9651
  %v9689 = vpop.f32.mrf.mxu0
  %v9690 = vadd.f32 %v9619, %v9689
  %v9691 = vpop.f32.mrf.mxu0
  %v9692 = vadd.f32 %v9620, %v9691
  %9693 = vmatmul.bf16.gmra.mxu0 %v9654
  %v9694 = vpop.f32.mrf.mxu0
  %v9695 = vadd.f32 %v9621, %v9694
  %v9696 = vpop.f32.mrf.mxu0
  %v9697 = vadd.f32 %v9622, %v9696
  %9698 = vmatmul.bf16.gmra.mxu0 %v9657
  %v9699 = vpop.f32.mrf.mxu0
  %v9700 = vadd.f32 %v9623, %v9699
  %v9701 = vpop.f32.mrf.mxu0
  %v9702 = vadd.f32 %v9624, %v9701
  %9703 = vmatmul.bf16.gmra.mxu0 %v9660
  %v9704 = vpop.f32.mrf.mxu0
  %v9705 = vadd.f32 %v9625, %v9704
  %v9706 = vpop.f32.mrf.mxu0
  %v9707 = vadd.f32 %v9626, %v9706
  %9708 = vmatmul.bf16.gmra.mxu0 %v9663
  %v9709 = vpop.f32.mrf.mxu0
  %v9710 = vadd.f32 %v9627, %v9709
  %v9711 = vpop.f32.mrf.mxu0
  %v9712 = vadd.f32 %v9628, %v9711
  %9713 = vdwg.mxu0
  %vm9714 = vcmask 64512
  %9715 = vst.msk [vmem:[%s13] sm:$0xff] %vm9714, %v9675
  %9716 = vst.msk [vmem:[%s13 + $0x8] sm:$0xff] %vm9714, %v9677
  %9717 = vst.msk [vmem:[%s13 + $0x10] sm:$0xff] %vm9714, %v9680
  %9718 = vst.msk [vmem:[%s13 + $0x18] sm:$0xff] %vm9714, %v9682
  %9719 = vst.msk [vmem:[%s13 + $0x20] sm:$0xff] %vm9714, %v9685
  %9720 = vst.msk [vmem:[%s13 + $0x28] sm:$0xff] %vm9714, %v9687
  %9721 = vst.msk [vmem:[%s13 + $0x30] sm:$0xff] %vm9714, %v9690
  %9722 = vst.msk [vmem:[%s13 + $0x38] sm:$0xff] %vm9714, %v9692
  %9723 = vst.msk [vmem:[%s13 + $0x40] sm:$0xff] %vm9714, %v9695
  %9724 = vst.msk [vmem:[%s13 + $0x48] sm:$0xff] %vm9714, %v9697
  %9725 = vst.msk [vmem:[%s13 + $0x50] sm:$0xff] %vm9714, %v9700
  %9726 = vst.msk [vmem:[%s13 + $0x58] sm:$0xff] %vm9714, %v9702
  %9727 = vst.msk [vmem:[%s13 + $0x60] sm:$0xff] %vm9714, %v9705
  %9728 = vst.msk [vmem:[%s13 + $0x68] sm:$0xff] %vm9714, %v9707
  %9729 = vst.msk [vmem:[%s13 + $0x70] sm:$0xff] %vm9714, %v9710
  %9730 = vst.msk [vmem:[%s13 + $0x78] sm:$0xff] %vm9714, %v9712
  // Predicated region
  $region54: #{tpu_custom_call.1} parent=0 // pred_check
    _
  $region55: #{tpu_custom_call.1} parent=0 // pred_check_branch
    %9732 = sbr.rel (0) target = $region57
  $region56: #{tpu_custom_call.1} parent=0 // pred_region
    _
  $region57: #{tpu_custom_call.1} parent=0 // pred_fallthru
    _
  // Predicated region
  $region58: #{tpu_custom_call.1} parent=0 // pred_check
    _
  $region59: #{tpu_custom_call.1} parent=0 // pred_check_branch
    %9734 = sbr.rel (0) target = $region61
  $region60: #{tpu_custom_call.1} parent=0 // pred_region
    _
  $region61: #{tpu_custom_call.1} parent=0 // pred_fallthru
    _

</llo_original>
